<compile_context>
chip_gen: v6e
topology: v6e:2x2x1
jax: 0.10.0
libtpu: 0.0.40
codegen_flags: <defaults>
</compile_context>

<pallas_src>
import functools

import jax
import jax.numpy as jnp
from jax import lax
from jax.experimental import pallas as pl
from jax.experimental.pallas import tpu as pltpu


# ----------------------------- helpers (usable in- and out-of-kernel) ------------

def _round_up(x, m):
    return ((x + m - 1) // m) * m


def _cdiv(a, b):
    return -(-a // b)


def _layernorm(x, gamma, beta, eps=1e-5):
    # Two-pass (PyTorch-style) LayerNorm: mean, then variance of the centered values.
    mu = jnp.mean(x, axis=-1, keepdims=True)
    xc = x - mu
    var = jnp.mean(xc * xc, axis=-1, keepdims=True)
    return xc * lax.rsqrt(var + eps) * gamma + beta


def _silu(x):
    return x * jax.nn.sigmoid(x)


# ----------------------------- Pallas kernel ------------------------------------

def _decoder_kernel(n_sub, sub_rows,
                    eig_ref, mc_ref, tmod_ref,
                    w1, b1, g1, be1,
                    w2, b2, g2, be2,
                    w3, b3,
                    w4, b4, g4, be4,
                    w5, b5, g5, be5,
                    w6, b6,
                    out_ref):
    f32 = jnp.float32
    bf16 = jnp.bfloat16

    def chunk(j, carry):
        r0 = pl.multiple_of(j * sub_rows, sub_rows)
        rows = pl.ds(r0, sub_rows)

        # weighted_modes = eigenmodes * sigmoid(mode_classes)   (f32 elementwise)
        x = eig_ref[rows, :] * jax.nn.sigmoid(mc_ref[rows, :])

        # mode_combiner: Linear -> LN -> SiLU -> Linear -> LN -> SiLU -> Linear
        h = jnp.dot(x.astype(bf16), w1[...], preferred_element_type=f32) + b1[...]
        h = _silu(_layernorm(h, g1[...], be1[...]))
        h = jnp.dot(h.astype(bf16), w2[...], preferred_element_type=f32) + b2[...]
        h = _silu(_layernorm(h, g2[...], be2[...]))
        latent = jnp.dot(h.astype(bf16), w3[...], preferred_element_type=f32) + b3[...]

        # temperature modulation: factor precomputed in the wrapper (tanh hoisted out).
        latent = latent * tmod_ref[rows, :]

        # decoder: Linear -> LN -> SiLU -> Linear -> LN -> SiLU -> Linear
        h = jnp.dot(latent.astype(bf16), w4[...], preferred_element_type=f32) + b4[...]
        h = _silu(_layernorm(h, g4[...], be4[...]))
        h = jnp.dot(h.astype(bf16), w5[...], preferred_element_type=f32) + b5[...]
        h = _silu(_layernorm(h, g5[...], be5[...]))
        coords = jnp.dot(h.astype(bf16), w6[...], preferred_element_type=f32) + b6[...]

        out_ref[rows, :] = coords.astype(out_ref.dtype)
        return carry

    # Fully-unrolled loop over independent sub-chunks -> LLO scheduler interleaves the
    # MXU stream of one chunk with the elementwise (VPU/EUP/XLU) work of the previous.
    lax.fori_loop(0, n_sub, chunk, 0, unroll=True)


_WEIGHT_NAMES = ["w1", "b1", "g1", "be1",
                 "w2", "b2", "g2", "be2",
                 "w3", "b3",
                 "w4", "b4", "g4", "be4",
                 "w5", "b5", "g5", "be5",
                 "w6", "b6"]
_MATMUL_WEIGHTS = {"w1", "w2", "w3", "w4", "w5", "w6"}


def _vmem_capacity_bytes():
    """Trace-time hardware query with a conservative (v7x per-TC) fallback."""
    try:
        info = pltpu.get_tpu_info()
        for attr in ("vmem_capacity_bytes", "vmem_bytes", "vmem_capacity"):
            v = getattr(info, attr, None)
            if v:
                return int(v)
    except Exception:
        pass
    return 64 << 20


# ----------------------------- wrapper -------------------------------------------

@functools.partial(jax.jit, static_argnames=("tm",))
def hierarchical_motion_decoder(eigenmodes, mode_classes, temperature, params, *, tm=1024):
    """eigenmodes/mode_classes: [B, T, n_eig] f32; temperature: [B] int32 indices (or None)."""
    B, T, n_eig = eigenmodes.shape
    N = B * T
    latent_dim = params["w3"].shape[1]
    output_dim = params["w6"].shape[1]

    # Generation-gated tile size / scoped-VMEM budget.
    cap = _vmem_capacity_bytes()
    if cap >= (128 << 20):            # v5e / v6e: 128 MiB physical VMEM
        tm_cap, vmem_limit = 2048, 96 << 20
    else:                             # v7x (64 MiB per TC) or unknown
        tm_cap, vmem_limit = 1024, 48 << 20

    # Row tile: MXU-aligned, capped so there are >= 2 grid steps whenever N allows it
    # (keeps both v7x TensorCores busy on the "parallel" axis). Tail block is partial;
    # Pallas masks the out-of-bounds portion of the final output write, and the garbage
    # rows never mix into valid rows (all per-row math).
    half_rows = _round_up(_cdiv(N, 2), 8)
    tm_eff = max(8, min(_round_up(min(tm, tm_cap), 8), half_rows))
    grid = _cdiv(N, tm_eff)

    # Intra-step sub-chunking (rows per sub-chunk must stay a multiple of 8).
    if tm_eff % 32 == 0:
        n_sub = 4
    elif tm_eff % 16 == 0:
        n_sub = 2
    else:
        n_sub = 1
    sub_rows = tm_eff // n_sub

    # Lane-dense output: pad the output feature dim to a multiple of 128 so stores are
    # full vregs (no masked partial stores); padding is sliced off afterwards.
    out_pad = _round_up(output_dim, 128)

    eig = eigenmodes.reshape(N, n_eig)
    mc = mode_classes.reshape(N, n_eig)

    # Temperature modulation factor precomputed once per batch element (tanh hoisted out
    # of the kernel), then expanded over time. Tiny data-dependent glue op.
    if temperature is not None:
        assert latent_dim == 16, "temperature-modulation broadcast requires latent_dim == 16"
        tf = 1.0 + 0.05 * jnp.tanh(params["temp_table"][temperature])       # [B, 16]
        tmod = jnp.broadcast_to(tf[:, None, :], (B, T, latent_dim)).reshape(N, latent_dim)
    else:
        tmod = jnp.ones((N, latent_dim), jnp.float32)

    # bf16 matmul weights (f32 accumulation in-kernel); biases / LN params stay f32.
    def prep(name):
        w = params[name]
        if name in _MATMUL_WEIGHTS:
            w = w.astype(jnp.bfloat16)
        if name in ("w6", "b6") and out_pad != output_dim:
            w = jnp.pad(w, ((0, 0), (0, out_pad - output_dim)))
        return w

    weight_args = [prep(n) for n in _WEIGHT_NAMES]

    def row_spec(f):
        return pl.BlockSpec((tm_eff, f), lambda i: (i, 0))

    def weight_spec(shape):
        # Constant index_map -> DMA'd once; single-buffered (no wasted second buffer).
        return pl.BlockSpec(shape, lambda i, _nd=len(shape): (0,) * _nd,
                            pipeline_mode=pl.Buffered(1))

    weight_specs = [weight_spec(w.shape) for w in weight_args]

    kernel = functools.partial(_decoder_kernel, n_sub, sub_rows)

    out = pl.pallas_call(
        kernel,
        out_shape=jax.ShapeDtypeStruct((N, out_pad), jnp.float32),
        grid_spec=pltpu.PrefetchScalarGridSpec(
            num_scalar_prefetch=0,
            grid=(grid,),
            in_specs=[row_spec(n_eig), row_spec(n_eig), row_spec(latent_dim)] + weight_specs,
            out_specs=pl.BlockSpec((tm_eff, out_pad), lambda i: (i, 0)),
        ),
        compiler_params=pltpu.CompilerParams(
            dimension_semantics=("parallel",),
            vmem_limit_bytes=vmem_limit,
        ),
    )(eig, mc, tmod, *weight_args)

    return out[:, :output_dim].reshape(B, T, output_dim)


# ----------------------------- deterministic params -------------------------------

def init_params(key, n_eigenmodes, latent_dim, output_dim):
    ks = jax.random.split(key, 8)

    def lin(k, fin, fout):
        k1, k2 = jax.random.split(k)
        scale = 1.0 / jnp.sqrt(fin)
        w = jax.random.uniform(k1, (fin, fout), jnp.float32, -scale, scale)   # stored transposed
        b = jax.random.uniform(k2, (1, fout), jnp.float32, -scale, scale)
        return w, b

    p = {}
    p["temp_table"] = jax.random.normal(ks[0], (450, 16), jnp.float32)
    # mode_combiner
    p["w1"], p["b1"] = lin(ks[1], n_eigenmodes, 256)
    p["g1"], p["be1"] = jnp.ones((1, 256), jnp.float32), jnp.zeros((1, 256), jnp.float32)
    p["w2"], p["b2"] = lin(ks[2], 256, 512)
    p["g2"], p["be2"] = jnp.ones((1, 512), jnp.float32), jnp.zeros((1, 512), jnp.float32)
    p["w3"], p["b3"] = lin(ks[3], 512, latent_dim)
    # decoder
    p["w4"], p["b4"] = lin(ks[4], latent_dim, 512)
    p["g4"], p["be4"] = jnp.ones((1, 512), jnp.float32), jnp.zeros((1, 512), jnp.float32)
    p["w5"], p["b5"] = lin(ks[5], 512, 1024)
    p["g5"], p["be5"] = jnp.ones((1, 1024), jnp.float32), jnp.zeros((1, 1024), jnp.float32)
    p["w6"], p["b6"] = lin(ks[6], 1024, output_dim)
    return p


# ----------------------------- pure-JAX references ---------------------------------

def reference_forward(eigenmodes, mode_classes, temperature, params, *, matmul_dtype=jnp.float32):
    """PyTorch-equivalent forward. matmul_dtype=bf16 replicates the kernel's MXU numerics;
    matmul_dtype=f32 (with HIGHEST precision) is the 'true' f32 reference."""
    B, T, n_eig = eigenmodes.shape
    f32 = jnp.float32

    def dot(a, w):
        if matmul_dtype == jnp.float32:
            return jnp.dot(a, w, precision=jax.lax.Precision.HIGHEST)
        return jnp.dot(a.astype(matmul_dtype), w.astype(matmul_dtype),
                       preferred_element_type=f32)

    x = (eigenmodes * jax.nn.sigmoid(mode_classes)).reshape(B * T, n_eig)
    h = dot(x, params["w1"]) + params["b1"]
    h = _silu(_layernorm(h, params["g1"], params["be1"]))
    h = dot(h, params["w2"]) + params["b2"]
    h = _silu(_layernorm(h, params["g2"], params["be2"]))
    latent = dot(h, params["w3"]) + params["b3"]
    if temperature is not None:
        tf = 1.0 + 0.05 * jnp.tanh(params["temp_table"][temperature])
        latent = latent * jnp.broadcast_to(tf[:, None, :], (B, T, 16)).reshape(B * T, 16)
    h = dot(latent, params["w4"]) + params["b4"]
    h = _silu(_layernorm(h, params["g4"], params["be4"]))
    h = dot(h, params["w5"]) + params["b5"]
    h = _silu(_layernorm(h, params["g5"], params["be5"]))
    coords = dot(h, params["w6"]) + params["b6"]
    return coords.reshape(B, T, params["w6"].shape[1])


# TODO(synk): `predict_forces` / force_predictor is a separate method (not part of
# forward) and is not implemented here; it would be the same fused
# Linear->LN->SiLU->Linear row-tiled kernel pattern.


if __name__ == "__main__":
    B, T = 2, 11          # N = 22: exercises the partial (masked) tail block
    n_eigenmodes = 32
    latent_dim = 16       # must be 16 so the PyTorch broadcast with the temp embedding is valid
    output_dim = 64       # exercises lane padding to 128

    key = jax.random.PRNGKey(0)
    k_e, k_m, k_t, k_p = jax.random.split(key, 4)

    eigenmodes = jax.random.normal(k_e, (B, T, n_eigenmodes), jnp.float32)
    mode_classes = jax.random.normal(k_m, (B, T, n_eigenmodes), jnp.float32)
    temperature = jax.random.randint(k_t, (B,), 0, 450, jnp.int32)

    params = init_params(k_p, n_eigenmodes, latent_dim, output_dim)

    coords = hierarchical_motion_decoder(eigenmodes, mode_classes, temperature, params)
    coords = jax.block_until_ready(coords)

    assert coords.shape == (B, T, output_dim)
    assert bool(jnp.all(jnp.isfinite(coords)))

    # 1) reference with identical MXU numerics (bf16 inputs, f32 accumulation): tight check.
    ref_bf16 = reference_forward(eigenmodes, mode_classes, temperature, params,
                                 matmul_dtype=jnp.bfloat16)
    assert jnp.allclose(coords, ref_bf16, rtol=1e-2, atol=1e-2), "mismatch vs bf16-numerics reference"

    # 2) true f32 two-pass-LN reference (PyTorch semantics): loose check for bf16 drift.
    ref_f32 = reference_forward(eigenmodes, mode_classes, temperature, params,
                                matmul_dtype=jnp.float32)
    assert jnp.allclose(coords, ref_f32, rtol=5e-2, atol=5e-2), "mismatch vs f32 reference"

    print("KERNEL_OK")
</pallas_src>

<mosaic_0001>
module attributes {stable_mosaic.version = 11 : i64} {
  func.func @_decoder_kernel(%arg0: i32, %arg1: memref<16x32xf32, #tpu.memory_space<vmem>>, %arg2: memref<16x32xf32, #tpu.memory_space<vmem>>, %arg3: memref<16x16xf32, #tpu.memory_space<vmem>>, %arg4: memref<32x256xbf16, #tpu.memory_space<vmem>>, %arg5: memref<1x256xf32, #tpu.memory_space<vmem>>, %arg6: memref<1x256xf32, #tpu.memory_space<vmem>>, %arg7: memref<1x256xf32, #tpu.memory_space<vmem>>, %arg8: memref<256x512xbf16, #tpu.memory_space<vmem>>, %arg9: memref<1x512xf32, #tpu.memory_space<vmem>>, %arg10: memref<1x512xf32, #tpu.memory_space<vmem>>, %arg11: memref<1x512xf32, #tpu.memory_space<vmem>>, %arg12: memref<512x16xbf16, #tpu.memory_space<vmem>>, %arg13: memref<1x16xf32, #tpu.memory_space<vmem>>, %arg14: memref<16x512xbf16, #tpu.memory_space<vmem>>, %arg15: memref<1x512xf32, #tpu.memory_space<vmem>>, %arg16: memref<1x512xf32, #tpu.memory_space<vmem>>, %arg17: memref<1x512xf32, #tpu.memory_space<vmem>>, %arg18: memref<512x1024xbf16, #tpu.memory_space<vmem>>, %arg19: memref<1x1024xf32, #tpu.memory_space<vmem>>, %arg20: memref<1x1024xf32, #tpu.memory_space<vmem>>, %arg21: memref<1x1024xf32, #tpu.memory_space<vmem>>, %arg22: memref<1024x128xbf16, #tpu.memory_space<vmem>>, %arg23: memref<1x128xf32, #tpu.memory_space<vmem>>, %arg24: memref<16x128xf32, #tpu.memory_space<vmem>>) attributes {dimension_semantics = [#tpu.dimension_semantics<parallel>], iteration_bounds = array<i64: 2>, scalar_prefetch = 0 : i64, scratch_operands = 0 : i64, tpu.core_type = #tpu.core_type<tc>, window_params = [{transform_indices = @transform_0, window_bounds = array<i64: 16, 32>}, {transform_indices = @transform_1, window_bounds = array<i64: 16, 32>}, {transform_indices = @transform_2, window_bounds = array<i64: 16, 16>}, {pipeline_mode = #tpu.pipeline_mode<synchronous>, transform_indices = @transform_3, window_bounds = array<i64: 32, 256>}, {pipeline_mode = #tpu.pipeline_mode<synchronous>, transform_indices = @transform_4, window_bounds = array<i64: 1, 256>}, {pipeline_mode = #tpu.pipeline_mode<synchronous>, transform_indices = @transform_5, window_bounds = array<i64: 1, 256>}, {pipeline_mode = #tpu.pipeline_mode<synchronous>, transform_indices = @transform_6, window_bounds = array<i64: 1, 256>}, {pipeline_mode = #tpu.pipeline_mode<synchronous>, transform_indices = @transform_7, window_bounds = array<i64: 256, 512>}, {pipeline_mode = #tpu.pipeline_mode<synchronous>, transform_indices = @transform_8, window_bounds = array<i64: 1, 512>}, {pipeline_mode = #tpu.pipeline_mode<synchronous>, transform_indices = @transform_9, window_bounds = array<i64: 1, 512>}, {pipeline_mode = #tpu.pipeline_mode<synchronous>, transform_indices = @transform_10, window_bounds = array<i64: 1, 512>}, {pipeline_mode = #tpu.pipeline_mode<synchronous>, transform_indices = @transform_11, window_bounds = array<i64: 512, 16>}, {pipeline_mode = #tpu.pipeline_mode<synchronous>, transform_indices = @transform_12, window_bounds = array<i64: 1, 16>}, {pipeline_mode = #tpu.pipeline_mode<synchronous>, transform_indices = @transform_13, window_bounds = array<i64: 16, 512>}, {pipeline_mode = #tpu.pipeline_mode<synchronous>, transform_indices = @transform_14, window_bounds = array<i64: 1, 512>}, {pipeline_mode = #tpu.pipeline_mode<synchronous>, transform_indices = @transform_15, window_bounds = array<i64: 1, 512>}, {pipeline_mode = #tpu.pipeline_mode<synchronous>, transform_indices = @transform_16, window_bounds = array<i64: 1, 512>}, {pipeline_mode = #tpu.pipeline_mode<synchronous>, transform_indices = @transform_17, window_bounds = array<i64: 512, 1024>}, {pipeline_mode = #tpu.pipeline_mode<synchronous>, transform_indices = @transform_18, window_bounds = array<i64: 1, 1024>}, {pipeline_mode = #tpu.pipeline_mode<synchronous>, transform_indices = @transform_19, window_bounds = array<i64: 1, 1024>}, {pipeline_mode = #tpu.pipeline_mode<synchronous>, transform_indices = @transform_20, window_bounds = array<i64: 1, 1024>}, {pipeline_mode = #tpu.pipeline_mode<synchronous>, transform_indices = @transform_21, window_bounds = array<i64: 1024, 128>}, {pipeline_mode = #tpu.pipeline_mode<synchronous>, transform_indices = @transform_22, window_bounds = array<i64: 1, 128>}, {transform_indices = @transform_23, window_bounds = array<i64: 16, 128>}]} {
    %c0_i32 = arith.constant 0 : i32
    %c8_i32 = arith.constant 8 : i32
    %0 = arith.muli %c0_i32, %c8_i32 : i32
    %1 = tpu.assume_multiple %0, 8 : i32
    %2 = arith.index_cast %1 : i32 to index
    %c0 = arith.constant 0 : index
    %3 = vector.load %arg1[%2, %c0] : memref<16x32xf32, #tpu.memory_space<vmem>>, vector<8x32xf32>
    %4 = arith.index_cast %1 : i32 to index
    %c0_0 = arith.constant 0 : index
    %5 = vector.load %arg2[%4, %c0_0] : memref<16x32xf32, #tpu.memory_space<vmem>>, vector<8x32xf32>
    %6 = arith.negf %5 : vector<8x32xf32>
    %7 = math.exp %6 : vector<8x32xf32>
    %cst = arith.constant 1.000000e+00 : f32
    %8 = vector.broadcast %cst : f32 to vector<8x32xf32>
    %9 = arith.addf %8, %7 : vector<8x32xf32>
    %10 = arith.divf %8, %9 : vector<8x32xf32>
    %11 = arith.mulf %3, %10 : vector<8x32xf32>
    %12 = arith.truncf %11 : vector<8x32xf32> to vector<8x32xbf16>
    %c0_1 = arith.constant 0 : index
    %c0_2 = arith.constant 0 : index
    %13 = vector.load %arg4[%c0_1, %c0_2] : memref<32x256xbf16, #tpu.memory_space<vmem>>, vector<32x256xbf16>
    %cst_3 = arith.constant dense<0.000000e+00> : vector<8x256xf32>
    %14 = tpu.matmul %12, %13, %cst_3 {dimension_numbers = #tpu.dot_dimension_numbers<[1], [0], [0], [1], [0, 0, 1, 1], [], []>} : vector<8x32xbf16>, vector<32x256xbf16>, vector<8x256xf32> -> vector<8x256xf32>
    %c0_4 = arith.constant 0 : index
    %c0_5 = arith.constant 0 : index
    %15 = vector.load %arg5[%c0_4, %c0_5] : memref<1x256xf32, #tpu.memory_space<vmem>>, vector<1x256xf32>
    %16 = vector.broadcast %15 : vector<1x256xf32> to vector<8x256xf32>
    %17 = arith.addf %14, %16 : vector<8x256xf32>
    %c0_6 = arith.constant 0 : index
    %c0_7 = arith.constant 0 : index
    %18 = vector.load %arg6[%c0_6, %c0_7] : memref<1x256xf32, #tpu.memory_space<vmem>>, vector<1x256xf32>
    %c0_8 = arith.constant 0 : index
    %c0_9 = arith.constant 0 : index
    %19 = vector.load %arg7[%c0_8, %c0_9] : memref<1x256xf32, #tpu.memory_space<vmem>>, vector<1x256xf32>
    %cst_10 = arith.constant dense<0.000000e+00> : vector<8xf32>
    %20 = vector.multi_reduction <add>, %17, %cst_10 [1] : vector<8x256xf32> to vector<8xf32>
    %21 = vector.shape_cast %20 : vector<8xf32> to vector<8x1xf32>
    %cst_11 = arith.constant 2.560000e+02 : f32
    %22 = vector.broadcast %cst_11 : f32 to vector<8x1xf32>
    %23 = arith.divf %21, %22 : vector<8x1xf32>
    %24 = vector.broadcast %23 : vector<8x1xf32> to vector<8x256xf32>
    %25 = arith.subf %17, %24 : vector<8x256xf32>
    %26 = arith.mulf %25, %25 : vector<8x256xf32>
    %cst_12 = arith.constant dense<0.000000e+00> : vector<8xf32>
    %27 = vector.multi_reduction <add>, %26, %cst_12 [1] : vector<8x256xf32> to vector<8xf32>
    %28 = vector.shape_cast %27 : vector<8xf32> to vector<8x1xf32>
    %cst_13 = arith.constant 2.560000e+02 : f32
    %29 = vector.broadcast %cst_13 : f32 to vector<8x1xf32>
    %30 = arith.divf %28, %29 : vector<8x1xf32>
    %cst_14 = arith.constant 9.99999974E-6 : f32
    %31 = vector.broadcast %cst_14 : f32 to vector<8x1xf32>
    %32 = arith.addf %30, %31 : vector<8x1xf32>
    %33 = math.rsqrt %32 : vector<8x1xf32>
    %34 = vector.broadcast %33 : vector<8x1xf32> to vector<8x256xf32>
    %35 = arith.mulf %25, %34 : vector<8x256xf32>
    %36 = vector.broadcast %18 : vector<1x256xf32> to vector<8x256xf32>
    %37 = arith.mulf %35, %36 : vector<8x256xf32>
    %38 = vector.broadcast %19 : vector<1x256xf32> to vector<8x256xf32>
    %39 = arith.addf %37, %38 : vector<8x256xf32>
    %40 = arith.negf %39 : vector<8x256xf32>
    %41 = math.exp %40 : vector<8x256xf32>
    %cst_15 = arith.constant 1.000000e+00 : f32
    %42 = vector.broadcast %cst_15 : f32 to vector<8x256xf32>
    %43 = arith.addf %42, %41 : vector<8x256xf32>
    %44 = arith.divf %42, %43 : vector<8x256xf32>
    %45 = arith.mulf %39, %44 : vector<8x256xf32>
    %46 = arith.truncf %45 : vector<8x256xf32> to vector<8x256xbf16>
    %c0_16 = arith.constant 0 : index
    %c0_17 = arith.constant 0 : index
    %47 = vector.load %arg8[%c0_16, %c0_17] : memref<256x512xbf16, #tpu.memory_space<vmem>>, vector<256x512xbf16>
    %cst_18 = arith.constant dense<0.000000e+00> : vector<8x512xf32>
    %48 = tpu.matmul %46, %47, %cst_18 {dimension_numbers = #tpu.dot_dimension_numbers<[1], [0], [0], [1], [0, 0, 1, 1], [], []>} : vector<8x256xbf16>, vector<256x512xbf16>, vector<8x512xf32> -> vector<8x512xf32>
    %c0_19 = arith.constant 0 : index
    %c0_20 = arith.constant 0 : index
    %49 = vector.load %arg9[%c0_19, %c0_20] : memref<1x512xf32, #tpu.memory_space<vmem>>, vector<1x512xf32>
    %50 = vector.broadcast %49 : vector<1x512xf32> to vector<8x512xf32>
    %51 = arith.addf %48, %50 : vector<8x512xf32>
    %c0_21 = arith.constant 0 : index
    %c0_22 = arith.constant 0 : index
    %52 = vector.load %arg10[%c0_21, %c0_22] : memref<1x512xf32, #tpu.memory_space<vmem>>, vector<1x512xf32>
    %c0_23 = arith.constant 0 : index
    %c0_24 = arith.constant 0 : index
    %53 = vector.load %arg11[%c0_23, %c0_24] : memref<1x512xf32, #tpu.memory_space<vmem>>, vector<1x512xf32>
    %cst_25 = arith.constant dense<0.000000e+00> : vector<8xf32>
    %54 = vector.multi_reduction <add>, %51, %cst_25 [1] : vector<8x512xf32> to vector<8xf32>
    %55 = vector.shape_cast %54 : vector<8xf32> to vector<8x1xf32>
    %cst_26 = arith.constant 5.120000e+02 : f32
    %56 = vector.broadcast %cst_26 : f32 to vector<8x1xf32>
    %57 = arith.divf %55, %56 : vector<8x1xf32>
    %58 = vector.broadcast %57 : vector<8x1xf32> to vector<8x512xf32>
    %59 = arith.subf %51, %58 : vector<8x512xf32>
    %60 = arith.mulf %59, %59 : vector<8x512xf32>
    %cst_27 = arith.constant dense<0.000000e+00> : vector<8xf32>
    %61 = vector.multi_reduction <add>, %60, %cst_27 [1] : vector<8x512xf32> to vector<8xf32>
    %62 = vector.shape_cast %61 : vector<8xf32> to vector<8x1xf32>
    %cst_28 = arith.constant 5.120000e+02 : f32
    %63 = vector.broadcast %cst_28 : f32 to vector<8x1xf32>
    %64 = arith.divf %62, %63 : vector<8x1xf32>
    %cst_29 = arith.constant 9.99999974E-6 : f32
    %65 = vector.broadcast %cst_29 : f32 to vector<8x1xf32>
    %66 = arith.addf %64, %65 : vector<8x1xf32>
    %67 = math.rsqrt %66 : vector<8x1xf32>
    %68 = vector.broadcast %67 : vector<8x1xf32> to vector<8x512xf32>
    %69 = arith.mulf %59, %68 : vector<8x512xf32>
    %70 = vector.broadcast %52 : vector<1x512xf32> to vector<8x512xf32>
    %71 = arith.mulf %69, %70 : vector<8x512xf32>
    %72 = vector.broadcast %53 : vector<1x512xf32> to vector<8x512xf32>
    %73 = arith.addf %71, %72 : vector<8x512xf32>
    %74 = arith.negf %73 : vector<8x512xf32>
    %75 = math.exp %74 : vector<8x512xf32>
    %cst_30 = arith.constant 1.000000e+00 : f32
    %76 = vector.broadcast %cst_30 : f32 to vector<8x512xf32>
    %77 = arith.addf %76, %75 : vector<8x512xf32>
    %78 = arith.divf %76, %77 : vector<8x512xf32>
    %79 = arith.mulf %73, %78 : vector<8x512xf32>
    %80 = arith.truncf %79 : vector<8x512xf32> to vector<8x512xbf16>
    %c0_31 = arith.constant 0 : index
    %c0_32 = arith.constant 0 : index
    %81 = vector.load %arg12[%c0_31, %c0_32] : memref<512x16xbf16, #tpu.memory_space<vmem>>, vector<512x16xbf16>
    %cst_33 = arith.constant dense<0.000000e+00> : vector<8x16xf32>
    %82 = tpu.matmul %80, %81, %cst_33 {dimension_numbers = #tpu.dot_dimension_numbers<[1], [0], [0], [1], [0, 0, 1, 1], [], []>} : vector<8x512xbf16>, vector<512x16xbf16>, vector<8x16xf32> -> vector<8x16xf32>
    %c0_34 = arith.constant 0 : index
    %c0_35 = arith.constant 0 : index
    %83 = vector.load %arg13[%c0_34, %c0_35] : memref<1x16xf32, #tpu.memory_space<vmem>>, vector<1x16xf32>
    %84 = vector.broadcast %83 : vector<1x16xf32> to vector<8x16xf32>
    %85 = arith.addf %82, %84 : vector<8x16xf32>
    %86 = arith.index_cast %1 : i32 to index
    %c0_36 = arith.constant 0 : index
    %87 = vector.load %arg3[%86, %c0_36] : memref<16x16xf32, #tpu.memory_space<vmem>>, vector<8x16xf32>
    %88 = arith.mulf %85, %87 : vector<8x16xf32>
    %89 = arith.truncf %88 : vector<8x16xf32> to vector<8x16xbf16>
    %c0_37 = arith.constant 0 : index
    %c0_38 = arith.constant 0 : index
    %90 = vector.load %arg14[%c0_37, %c0_38] : memref<16x512xbf16, #tpu.memory_space<vmem>>, vector<16x512xbf16>
    %cst_39 = arith.constant dense<0.000000e+00> : vector<8x512xf32>
    %91 = tpu.matmul %89, %90, %cst_39 {dimension_numbers = #tpu.dot_dimension_numbers<[1], [0], [0], [1], [0, 0, 1, 1], [], []>} : vector<8x16xbf16>, vector<16x512xbf16>, vector<8x512xf32> -> vector<8x512xf32>
    %c0_40 = arith.constant 0 : index
    %c0_41 = arith.constant 0 : index
    %92 = vector.load %arg15[%c0_40, %c0_41] : memref<1x512xf32, #tpu.memory_space<vmem>>, vector<1x512xf32>
    %93 = vector.broadcast %92 : vector<1x512xf32> to vector<8x512xf32>
    %94 = arith.addf %91, %93 : vector<8x512xf32>
    %c0_42 = arith.constant 0 : index
    %c0_43 = arith.constant 0 : index
    %95 = vector.load %arg16[%c0_42, %c0_43] : memref<1x512xf32, #tpu.memory_space<vmem>>, vector<1x512xf32>
    %c0_44 = arith.constant 0 : index
    %c0_45 = arith.constant 0 : index
    %96 = vector.load %arg17[%c0_44, %c0_45] : memref<1x512xf32, #tpu.memory_space<vmem>>, vector<1x512xf32>
    %cst_46 = arith.constant dense<0.000000e+00> : vector<8xf32>
    %97 = vector.multi_reduction <add>, %94, %cst_46 [1] : vector<8x512xf32> to vector<8xf32>
    %98 = vector.shape_cast %97 : vector<8xf32> to vector<8x1xf32>
    %cst_47 = arith.constant 5.120000e+02 : f32
    %99 = vector.broadcast %cst_47 : f32 to vector<8x1xf32>
    %100 = arith.divf %98, %99 : vector<8x1xf32>
    %101 = vector.broadcast %100 : vector<8x1xf32> to vector<8x512xf32>
    %102 = arith.subf %94, %101 : vector<8x512xf32>
    %103 = arith.mulf %102, %102 : vector<8x512xf32>
    %cst_48 = arith.constant dense<0.000000e+00> : vector<8xf32>
    %104 = vector.multi_reduction <add>, %103, %cst_48 [1] : vector<8x512xf32> to vector<8xf32>
    %105 = vector.shape_cast %104 : vector<8xf32> to vector<8x1xf32>
    %cst_49 = arith.constant 5.120000e+02 : f32
    %106 = vector.broadcast %cst_49 : f32 to vector<8x1xf32>
    %107 = arith.divf %105, %106 : vector<8x1xf32>
    %cst_50 = arith.constant 9.99999974E-6 : f32
    %108 = vector.broadcast %cst_50 : f32 to vector<8x1xf32>
    %109 = arith.addf %107, %108 : vector<8x1xf32>
    %110 = math.rsqrt %109 : vector<8x1xf32>
    %111 = vector.broadcast %110 : vector<8x1xf32> to vector<8x512xf32>
    %112 = arith.mulf %102, %111 : vector<8x512xf32>
    %113 = vector.broadcast %95 : vector<1x512xf32> to vector<8x512xf32>
    %114 = arith.mulf %112, %113 : vector<8x512xf32>
    %115 = vector.broadcast %96 : vector<1x512xf32> to vector<8x512xf32>
    %116 = arith.addf %114, %115 : vector<8x512xf32>
    %117 = arith.negf %116 : vector<8x512xf32>
    %118 = math.exp %117 : vector<8x512xf32>
    %cst_51 = arith.constant 1.000000e+00 : f32
    %119 = vector.broadcast %cst_51 : f32 to vector<8x512xf32>
    %120 = arith.addf %119, %118 : vector<8x512xf32>
    %121 = arith.divf %119, %120 : vector<8x512xf32>
    %122 = arith.mulf %116, %121 : vector<8x512xf32>
    %123 = arith.truncf %122 : vector<8x512xf32> to vector<8x512xbf16>
    %c0_52 = arith.constant 0 : index
    %c0_53 = arith.constant 0 : index
    %124 = vector.load %arg18[%c0_52, %c0_53] : memref<512x1024xbf16, #tpu.memory_space<vmem>>, vector<512x1024xbf16>
    %cst_54 = arith.constant dense<0.000000e+00> : vector<8x1024xf32>
    %125 = tpu.matmul %123, %124, %cst_54 {dimension_numbers = #tpu.dot_dimension_numbers<[1], [0], [0], [1], [0, 0, 1, 1], [], []>} : vector<8x512xbf16>, vector<512x1024xbf16>, vector<8x1024xf32> -> vector<8x1024xf32>
    %c0_55 = arith.constant 0 : index
    %c0_56 = arith.constant 0 : index
    %126 = vector.load %arg19[%c0_55, %c0_56] : memref<1x1024xf32, #tpu.memory_space<vmem>>, vector<1x1024xf32>
    %127 = vector.broadcast %126 : vector<1x1024xf32> to vector<8x1024xf32>
    %128 = arith.addf %125, %127 : vector<8x1024xf32>
    %c0_57 = arith.constant 0 : index
    %c0_58 = arith.constant 0 : index
    %129 = vector.load %arg20[%c0_57, %c0_58] : memref<1x1024xf32, #tpu.memory_space<vmem>>, vector<1x1024xf32>
    %c0_59 = arith.constant 0 : index
    %c0_60 = arith.constant 0 : index
    %130 = vector.load %arg21[%c0_59, %c0_60] : memref<1x1024xf32, #tpu.memory_space<vmem>>, vector<1x1024xf32>
    %cst_61 = arith.constant dense<0.000000e+00> : vector<8xf32>
    %131 = vector.multi_reduction <add>, %128, %cst_61 [1] : vector<8x1024xf32> to vector<8xf32>
    %132 = vector.shape_cast %131 : vector<8xf32> to vector<8x1xf32>
    %cst_62 = arith.constant 1.024000e+03 : f32
    %133 = vector.broadcast %cst_62 : f32 to vector<8x1xf32>
    %134 = arith.divf %132, %133 : vector<8x1xf32>
    %135 = vector.broadcast %134 : vector<8x1xf32> to vector<8x1024xf32>
    %136 = arith.subf %128, %135 : vector<8x1024xf32>
    %137 = arith.mulf %136, %136 : vector<8x1024xf32>
    %cst_63 = arith.constant dense<0.000000e+00> : vector<8xf32>
    %138 = vector.multi_reduction <add>, %137, %cst_63 [1] : vector<8x1024xf32> to vector<8xf32>
    %139 = vector.shape_cast %138 : vector<8xf32> to vector<8x1xf32>
    %cst_64 = arith.constant 1.024000e+03 : f32
    %140 = vector.broadcast %cst_64 : f32 to vector<8x1xf32>
    %141 = arith.divf %139, %140 : vector<8x1xf32>
    %cst_65 = arith.constant 9.99999974E-6 : f32
    %142 = vector.broadcast %cst_65 : f32 to vector<8x1xf32>
    %143 = arith.addf %141, %142 : vector<8x1xf32>
    %144 = math.rsqrt %143 : vector<8x1xf32>
    %145 = vector.broadcast %144 : vector<8x1xf32> to vector<8x1024xf32>
    %146 = arith.mulf %136, %145 : vector<8x1024xf32>
    %147 = vector.broadcast %129 : vector<1x1024xf32> to vector<8x1024xf32>
    %148 = arith.mulf %146, %147 : vector<8x1024xf32>
    %149 = vector.broadcast %130 : vector<1x1024xf32> to vector<8x1024xf32>
    %150 = arith.addf %148, %149 : vector<8x1024xf32>
    %151 = arith.negf %150 : vector<8x1024xf32>
    %152 = math.exp %151 : vector<8x1024xf32>
    %cst_66 = arith.constant 1.000000e+00 : f32
    %153 = vector.broadcast %cst_66 : f32 to vector<8x1024xf32>
    %154 = arith.addf %153, %152 : vector<8x1024xf32>
    %155 = arith.divf %153, %154 : vector<8x1024xf32>
    %156 = arith.mulf %150, %155 : vector<8x1024xf32>
    %157 = arith.truncf %156 : vector<8x1024xf32> to vector<8x1024xbf16>
    %c0_67 = arith.constant 0 : index
    %c0_68 = arith.constant 0 : index
    %158 = vector.load %arg22[%c0_67, %c0_68] : memref<1024x128xbf16, #tpu.memory_space<vmem>>, vector<1024x128xbf16>
    %cst_69 = arith.constant dense<0.000000e+00> : vector<8x128xf32>
    %159 = tpu.matmul %157, %158, %cst_69 {dimension_numbers = #tpu.dot_dimension_numbers<[1], [0], [0], [1], [0, 0, 1, 1], [], []>} : vector<8x1024xbf16>, vector<1024x128xbf16>, vector<8x128xf32> -> vector<8x128xf32>
    %c0_70 = arith.constant 0 : index
    %c0_71 = arith.constant 0 : index
    %160 = vector.load %arg23[%c0_70, %c0_71] : memref<1x128xf32, #tpu.memory_space<vmem>>, vector<1x128xf32>
    %161 = vector.broadcast %160 : vector<1x128xf32> to vector<8x128xf32>
    %162 = arith.addf %159, %161 : vector<8x128xf32>
    %163 = arith.index_cast %1 : i32 to index
    %c0_72 = arith.constant 0 : index
    %164 = vector.load %arg24[%163, %c0_72] : memref<16x128xf32, #tpu.memory_space<vmem>>, vector<8x128xf32>
    tpu.vector_store %arg24[%163, %c0_72], %162 {strides = array<i32>} : memref<16x128xf32, #tpu.memory_space<vmem>>, vector<8x128xf32>,
    %c1_i32 = arith.constant 1 : i32
    %c8_i32_73 = arith.constant 8 : i32
    %165 = arith.muli %c1_i32, %c8_i32_73 : i32
    %166 = tpu.assume_multiple %165, 8 : i32
    %167 = arith.index_cast %166 : i32 to index
    %c0_74 = arith.constant 0 : index
    %168 = vector.load %arg1[%167, %c0_74] : memref<16x32xf32, #tpu.memory_space<vmem>>, vector<8x32xf32>
    %169 = arith.index_cast %166 : i32 to index
    %c0_75 = arith.constant 0 : index
    %170 = vector.load %arg2[%169, %c0_75] : memref<16x32xf32, #tpu.memory_space<vmem>>, vector<8x32xf32>
    %171 = arith.negf %170 : vector<8x32xf32>
    %172 = math.exp %171 : vector<8x32xf32>
    %cst_76 = arith.constant 1.000000e+00 : f32
    %173 = vector.broadcast %cst_76 : f32 to vector<8x32xf32>
    %174 = arith.addf %173, %172 : vector<8x32xf32>
    %175 = arith.divf %173, %174 : vector<8x32xf32>
    %176 = arith.mulf %168, %175 : vector<8x32xf32>
    %177 = arith.truncf %176 : vector<8x32xf32> to vector<8x32xbf16>
    %c0_77 = arith.constant 0 : index
    %c0_78 = arith.constant 0 : index
    %178 = vector.load %arg4[%c0_77, %c0_78] : memref<32x256xbf16, #tpu.memory_space<vmem>>, vector<32x256xbf16>
    %cst_79 = arith.constant dense<0.000000e+00> : vector<8x256xf32>
    %179 = tpu.matmul %177, %178, %cst_79 {dimension_numbers = #tpu.dot_dimension_numbers<[1], [0], [0], [1], [0, 0, 1, 1], [], []>} : vector<8x32xbf16>, vector<32x256xbf16>, vector<8x256xf32> -> vector<8x256xf32>
    %c0_80 = arith.constant 0 : index
    %c0_81 = arith.constant 0 : index
    %180 = vector.load %arg5[%c0_80, %c0_81] : memref<1x256xf32, #tpu.memory_space<vmem>>, vector<1x256xf32>
    %181 = vector.broadcast %180 : vector<1x256xf32> to vector<8x256xf32>
    %182 = arith.addf %179, %181 : vector<8x256xf32>
    %c0_82 = arith.constant 0 : index
    %c0_83 = arith.constant 0 : index
    %183 = vector.load %arg6[%c0_82, %c0_83] : memref<1x256xf32, #tpu.memory_space<vmem>>, vector<1x256xf32>
    %c0_84 = arith.constant 0 : index
    %c0_85 = arith.constant 0 : index
    %184 = vector.load %arg7[%c0_84, %c0_85] : memref<1x256xf32, #tpu.memory_space<vmem>>, vector<1x256xf32>
    %cst_86 = arith.constant dense<0.000000e+00> : vector<8xf32>
    %185 = vector.multi_reduction <add>, %182, %cst_86 [1] : vector<8x256xf32> to vector<8xf32>
    %186 = vector.shape_cast %185 : vector<8xf32> to vector<8x1xf32>
    %cst_87 = arith.constant 2.560000e+02 : f32
    %187 = vector.broadcast %cst_87 : f32 to vector<8x1xf32>
    %188 = arith.divf %186, %187 : vector<8x1xf32>
    %189 = vector.broadcast %188 : vector<8x1xf32> to vector<8x256xf32>
    %190 = arith.subf %182, %189 : vector<8x256xf32>
    %191 = arith.mulf %190, %190 : vector<8x256xf32>
    %cst_88 = arith.constant dense<0.000000e+00> : vector<8xf32>
    %192 = vector.multi_reduction <add>, %191, %cst_88 [1] : vector<8x256xf32> to vector<8xf32>
    %193 = vector.shape_cast %192 : vector<8xf32> to vector<8x1xf32>
    %cst_89 = arith.constant 2.560000e+02 : f32
    %194 = vector.broadcast %cst_89 : f32 to vector<8x1xf32>
    %195 = arith.divf %193, %194 : vector<8x1xf32>
    %cst_90 = arith.constant 9.99999974E-6 : f32
    %196 = vector.broadcast %cst_90 : f32 to vector<8x1xf32>
    %197 = arith.addf %195, %196 : vector<8x1xf32>
    %198 = math.rsqrt %197 : vector<8x1xf32>
    %199 = vector.broadcast %198 : vector<8x1xf32> to vector<8x256xf32>
    %200 = arith.mulf %190, %199 : vector<8x256xf32>
    %201 = vector.broadcast %183 : vector<1x256xf32> to vector<8x256xf32>
    %202 = arith.mulf %200, %201 : vector<8x256xf32>
    %203 = vector.broadcast %184 : vector<1x256xf32> to vector<8x256xf32>
    %204 = arith.addf %202, %203 : vector<8x256xf32>
    %205 = arith.negf %204 : vector<8x256xf32>
    %206 = math.exp %205 : vector<8x256xf32>
    %cst_91 = arith.constant 1.000000e+00 : f32
    %207 = vector.broadcast %cst_91 : f32 to vector<8x256xf32>
    %208 = arith.addf %207, %206 : vector<8x256xf32>
    %209 = arith.divf %207, %208 : vector<8x256xf32>
    %210 = arith.mulf %204, %209 : vector<8x256xf32>
    %211 = arith.truncf %210 : vector<8x256xf32> to vector<8x256xbf16>
    %c0_92 = arith.constant 0 : index
    %c0_93 = arith.constant 0 : index
    %212 = vector.load %arg8[%c0_92, %c0_93] : memref<256x512xbf16, #tpu.memory_space<vmem>>, vector<256x512xbf16>
    %cst_94 = arith.constant dense<0.000000e+00> : vector<8x512xf32>
    %213 = tpu.matmul %211, %212, %cst_94 {dimension_numbers = #tpu.dot_dimension_numbers<[1], [0], [0], [1], [0, 0, 1, 1], [], []>} : vector<8x256xbf16>, vector<256x512xbf16>, vector<8x512xf32> -> vector<8x512xf32>
    %c0_95 = arith.constant 0 : index
    %c0_96 = arith.constant 0 : index
    %214 = vector.load %arg9[%c0_95, %c0_96] : memref<1x512xf32, #tpu.memory_space<vmem>>, vector<1x512xf32>
    %215 = vector.broadcast %214 : vector<1x512xf32> to vector<8x512xf32>
    %216 = arith.addf %213, %215 : vector<8x512xf32>
    %c0_97 = arith.constant 0 : index
    %c0_98 = arith.constant 0 : index
    %217 = vector.load %arg10[%c0_97, %c0_98] : memref<1x512xf32, #tpu.memory_space<vmem>>, vector<1x512xf32>
    %c0_99 = arith.constant 0 : index
    %c0_100 = arith.constant 0 : index
    %218 = vector.load %arg11[%c0_99, %c0_100] : memref<1x512xf32, #tpu.memory_space<vmem>>, vector<1x512xf32>
    %cst_101 = arith.constant dense<0.000000e+00> : vector<8xf32>
    %219 = vector.multi_reduction <add>, %216, %cst_101 [1] : vector<8x512xf32> to vector<8xf32>
    %220 = vector.shape_cast %219 : vector<8xf32> to vector<8x1xf32>
    %cst_102 = arith.constant 5.120000e+02 : f32
    %221 = vector.broadcast %cst_102 : f32 to vector<8x1xf32>
    %222 = arith.divf %220, %221 : vector<8x1xf32>
    %223 = vector.broadcast %222 : vector<8x1xf32> to vector<8x512xf32>
    %224 = arith.subf %216, %223 : vector<8x512xf32>
    %225 = arith.mulf %224, %224 : vector<8x512xf32>
    %cst_103 = arith.constant dense<0.000000e+00> : vector<8xf32>
    %226 = vector.multi_reduction <add>, %225, %cst_103 [1] : vector<8x512xf32> to vector<8xf32>
    %227 = vector.shape_cast %226 : vector<8xf32> to vector<8x1xf32>
    %cst_104 = arith.constant 5.120000e+02 : f32
    %228 = vector.broadcast %cst_104 : f32 to vector<8x1xf32>
    %229 = arith.divf %227, %228 : vector<8x1xf32>
    %cst_105 = arith.constant 9.99999974E-6 : f32
    %230 = vector.broadcast %cst_105 : f32 to vector<8x1xf32>
    %231 = arith.addf %229, %230 : vector<8x1xf32>
    %232 = math.rsqrt %231 : vector<8x1xf32>
    %233 = vector.broadcast %232 : vector<8x1xf32> to vector<8x512xf32>
    %234 = arith.mulf %224, %233 : vector<8x512xf32>
    %235 = vector.broadcast %217 : vector<1x512xf32> to vector<8x512xf32>
    %236 = arith.mulf %234, %235 : vector<8x512xf32>
    %237 = vector.broadcast %218 : vector<1x512xf32> to vector<8x512xf32>
    %238 = arith.addf %236, %237 : vector<8x512xf32>
    %239 = arith.negf %238 : vector<8x512xf32>
    %240 = math.exp %239 : vector<8x512xf32>
    %cst_106 = arith.constant 1.000000e+00 : f32
    %241 = vector.broadcast %cst_106 : f32 to vector<8x512xf32>
    %242 = arith.addf %241, %240 : vector<8x512xf32>
    %243 = arith.divf %241, %242 : vector<8x512xf32>
    %244 = arith.mulf %238, %243 : vector<8x512xf32>
    %245 = arith.truncf %244 : vector<8x512xf32> to vector<8x512xbf16>
    %c0_107 = arith.constant 0 : index
    %c0_108 = arith.constant 0 : index
    %246 = vector.load %arg12[%c0_107, %c0_108] : memref<512x16xbf16, #tpu.memory_space<vmem>>, vector<512x16xbf16>
    %cst_109 = arith.constant dense<0.000000e+00> : vector<8x16xf32>
    %247 = tpu.matmul %245, %246, %cst_109 {dimension_numbers = #tpu.dot_dimension_numbers<[1], [0], [0], [1], [0, 0, 1, 1], [], []>} : vector<8x512xbf16>, vector<512x16xbf16>, vector<8x16xf32> -> vector<8x16xf32>
    %c0_110 = arith.constant 0 : index
    %c0_111 = arith.constant 0 : index
    %248 = vector.load %arg13[%c0_110, %c0_111] : memref<1x16xf32, #tpu.memory_space<vmem>>, vector<1x16xf32>
    %249 = vector.broadcast %248 : vector<1x16xf32> to vector<8x16xf32>
    %250 = arith.addf %247, %249 : vector<8x16xf32>
    %251 = arith.index_cast %166 : i32 to index
    %c0_112 = arith.constant 0 : index
    %252 = vector.load %arg3[%251, %c0_112] : memref<16x16xf32, #tpu.memory_space<vmem>>, vector<8x16xf32>
    %253 = arith.mulf %250, %252 : vector<8x16xf32>
    %254 = arith.truncf %253 : vector<8x16xf32> to vector<8x16xbf16>
    %c0_113 = arith.constant 0 : index
    %c0_114 = arith.constant 0 : index
    %255 = vector.load %arg14[%c0_113, %c0_114] : memref<16x512xbf16, #tpu.memory_space<vmem>>, vector<16x512xbf16>
    %cst_115 = arith.constant dense<0.000000e+00> : vector<8x512xf32>
    %256 = tpu.matmul %254, %255, %cst_115 {dimension_numbers = #tpu.dot_dimension_numbers<[1], [0], [0], [1], [0, 0, 1, 1], [], []>} : vector<8x16xbf16>, vector<16x512xbf16>, vector<8x512xf32> -> vector<8x512xf32>
    %c0_116 = arith.constant 0 : index
    %c0_117 = arith.constant 0 : index
    %257 = vector.load %arg15[%c0_116, %c0_117] : memref<1x512xf32, #tpu.memory_space<vmem>>, vector<1x512xf32>
    %258 = vector.broadcast %257 : vector<1x512xf32> to vector<8x512xf32>
    %259 = arith.addf %256, %258 : vector<8x512xf32>
    %c0_118 = arith.constant 0 : index
    %c0_119 = arith.constant 0 : index
    %260 = vector.load %arg16[%c0_118, %c0_119] : memref<1x512xf32, #tpu.memory_space<vmem>>, vector<1x512xf32>
    %c0_120 = arith.constant 0 : index
    %c0_121 = arith.constant 0 : index
    %261 = vector.load %arg17[%c0_120, %c0_121] : memref<1x512xf32, #tpu.memory_space<vmem>>, vector<1x512xf32>
    %cst_122 = arith.constant dense<0.000000e+00> : vector<8xf32>
    %262 = vector.multi_reduction <add>, %259, %cst_122 [1] : vector<8x512xf32> to vector<8xf32>
    %263 = vector.shape_cast %262 : vector<8xf32> to vector<8x1xf32>
    %cst_123 = arith.constant 5.120000e+02 : f32
    %264 = vector.broadcast %cst_123 : f32 to vector<8x1xf32>
    %265 = arith.divf %263, %264 : vector<8x1xf32>
    %266 = vector.broadcast %265 : vector<8x1xf32> to vector<8x512xf32>
    %267 = arith.subf %259, %266 : vector<8x512xf32>
    %268 = arith.mulf %267, %267 : vector<8x512xf32>
    %cst_124 = arith.constant dense<0.000000e+00> : vector<8xf32>
    %269 = vector.multi_reduction <add>, %268, %cst_124 [1] : vector<8x512xf32> to vector<8xf32>
    %270 = vector.shape_cast %269 : vector<8xf32> to vector<8x1xf32>
    %cst_125 = arith.constant 5.120000e+02 : f32
    %271 = vector.broadcast %cst_125 : f32 to vector<8x1xf32>
    %272 = arith.divf %270, %271 : vector<8x1xf32>
    %cst_126 = arith.constant 9.99999974E-6 : f32
    %273 = vector.broadcast %cst_126 : f32 to vector<8x1xf32>
    %274 = arith.addf %272, %273 : vector<8x1xf32>
    %275 = math.rsqrt %274 : vector<8x1xf32>
    %276 = vector.broadcast %275 : vector<8x1xf32> to vector<8x512xf32>
    %277 = arith.mulf %267, %276 : vector<8x512xf32>
    %278 = vector.broadcast %260 : vector<1x512xf32> to vector<8x512xf32>
    %279 = arith.mulf %277, %278 : vector<8x512xf32>
    %280 = vector.broadcast %261 : vector<1x512xf32> to vector<8x512xf32>
    %281 = arith.addf %279, %280 : vector<8x512xf32>
    %282 = arith.negf %281 : vector<8x512xf32>
    %283 = math.exp %282 : vector<8x512xf32>
    %cst_127 = arith.constant 1.000000e+00 : f32
    %284 = vector.broadcast %cst_127 : f32 to vector<8x512xf32>
    %285 = arith.addf %284, %283 : vector<8x512xf32>
    %286 = arith.divf %284, %285 : vector<8x512xf32>
    %287 = arith.mulf %281, %286 : vector<8x512xf32>
    %288 = arith.truncf %287 : vector<8x512xf32> to vector<8x512xbf16>
    %c0_128 = arith.constant 0 : index
    %c0_129 = arith.constant 0 : index
    %289 = vector.load %arg18[%c0_128, %c0_129] : memref<512x1024xbf16, #tpu.memory_space<vmem>>, vector<512x1024xbf16>
    %cst_130 = arith.constant dense<0.000000e+00> : vector<8x1024xf32>
    %290 = tpu.matmul %288, %289, %cst_130 {dimension_numbers = #tpu.dot_dimension_numbers<[1], [0], [0], [1], [0, 0, 1, 1], [], []>} : vector<8x512xbf16>, vector<512x1024xbf16>, vector<8x1024xf32> -> vector<8x1024xf32>
    %c0_131 = arith.constant 0 : index
    %c0_132 = arith.constant 0 : index
    %291 = vector.load %arg19[%c0_131, %c0_132] : memref<1x1024xf32, #tpu.memory_space<vmem>>, vector<1x1024xf32>
    %292 = vector.broadcast %291 : vector<1x1024xf32> to vector<8x1024xf32>
    %293 = arith.addf %290, %292 : vector<8x1024xf32>
    %c0_133 = arith.constant 0 : index
    %c0_134 = arith.constant 0 : index
    %294 = vector.load %arg20[%c0_133, %c0_134] : memref<1x1024xf32, #tpu.memory_space<vmem>>, vector<1x1024xf32>
    %c0_135 = arith.constant 0 : index
    %c0_136 = arith.constant 0 : index
    %295 = vector.load %arg21[%c0_135, %c0_136] : memref<1x1024xf32, #tpu.memory_space<vmem>>, vector<1x1024xf32>
    %cst_137 = arith.constant dense<0.000000e+00> : vector<8xf32>
    %296 = vector.multi_reduction <add>, %293, %cst_137 [1] : vector<8x1024xf32> to vector<8xf32>
    %297 = vector.shape_cast %296 : vector<8xf32> to vector<8x1xf32>
    %cst_138 = arith.constant 1.024000e+03 : f32
    %298 = vector.broadcast %cst_138 : f32 to vector<8x1xf32>
    %299 = arith.divf %297, %298 : vector<8x1xf32>
    %300 = vector.broadcast %299 : vector<8x1xf32> to vector<8x1024xf32>
    %301 = arith.subf %293, %300 : vector<8x1024xf32>
    %302 = arith.mulf %301, %301 : vector<8x1024xf32>
    %cst_139 = arith.constant dense<0.000000e+00> : vector<8xf32>
    %303 = vector.multi_reduction <add>, %302, %cst_139 [1] : vector<8x1024xf32> to vector<8xf32>
    %304 = vector.shape_cast %303 : vector<8xf32> to vector<8x1xf32>
    %cst_140 = arith.constant 1.024000e+03 : f32
    %305 = vector.broadcast %cst_140 : f32 to vector<8x1xf32>
    %306 = arith.divf %304, %305 : vector<8x1xf32>
    %cst_141 = arith.constant 9.99999974E-6 : f32
    %307 = vector.broadcast %cst_141 : f32 to vector<8x1xf32>
    %308 = arith.addf %306, %307 : vector<8x1xf32>
    %309 = math.rsqrt %308 : vector<8x1xf32>
    %310 = vector.broadcast %309 : vector<8x1xf32> to vector<8x1024xf32>
    %311 = arith.mulf %301, %310 : vector<8x1024xf32>
    %312 = vector.broadcast %294 : vector<1x1024xf32> to vector<8x1024xf32>
    %313 = arith.mulf %311, %312 : vector<8x1024xf32>
    %314 = vector.broadcast %295 : vector<1x1024xf32> to vector<8x1024xf32>
    %315 = arith.addf %313, %314 : vector<8x1024xf32>
    %316 = arith.negf %315 : vector<8x1024xf32>
    %317 = math.exp %316 : vector<8x1024xf32>
    %cst_142 = arith.constant 1.000000e+00 : f32
    %318 = vector.broadcast %cst_142 : f32 to vector<8x1024xf32>
    %319 = arith.addf %318, %317 : vector<8x1024xf32>
    %320 = arith.divf %318, %319 : vector<8x1024xf32>
    %321 = arith.mulf %315, %320 : vector<8x1024xf32>
    %322 = arith.truncf %321 : vector<8x1024xf32> to vector<8x1024xbf16>
    %c0_143 = arith.constant 0 : index
    %c0_144 = arith.constant 0 : index
    %323 = vector.load %arg22[%c0_143, %c0_144] : memref<1024x128xbf16, #tpu.memory_space<vmem>>, vector<1024x128xbf16>
    %cst_145 = arith.constant dense<0.000000e+00> : vector<8x128xf32>
    %324 = tpu.matmul %322, %323, %cst_145 {dimension_numbers = #tpu.dot_dimension_numbers<[1], [0], [0], [1], [0, 0, 1, 1], [], []>} : vector<8x1024xbf16>, vector<1024x128xbf16>, vector<8x128xf32> -> vector<8x128xf32>
    %c0_146 = arith.constant 0 : index
    %c0_147 = arith.constant 0 : index
    %325 = vector.load %arg23[%c0_146, %c0_147] : memref<1x128xf32, #tpu.memory_space<vmem>>, vector<1x128xf32>
    %326 = vector.broadcast %325 : vector<1x128xf32> to vector<8x128xf32>
    %327 = arith.addf %324, %326 : vector<8x128xf32>
    %328 = arith.index_cast %166 : i32 to index
    %c0_148 = arith.constant 0 : index
    %329 = vector.load %arg24[%328, %c0_148] : memref<16x128xf32, #tpu.memory_space<vmem>>, vector<8x128xf32>
    tpu.vector_store %arg24[%328, %c0_148], %327 {strides = array<i32>} : memref<16x128xf32, #tpu.memory_space<vmem>>, vector<8x128xf32>,
    %c2_i32 = arith.constant 2 : i32
    return
  }
  func.func @transform_0(%arg0: i32) -> (i32, i32) {
    %c0_i32 = arith.constant 0 : i32
    %c0_i32_0 = arith.constant 0 : i32
    return %arg0, %c0_i32 : i32, i32
  }
  func.func @transform_1(%arg0: i32) -> (i32, i32) {
    %c0_i32 = arith.constant 0 : i32
    %c0_i32_0 = arith.constant 0 : i32
    return %arg0, %c0_i32 : i32, i32
  }
  func.func @transform_2(%arg0: i32) -> (i32, i32) {
    %c0_i32 = arith.constant 0 : i32
    %c0_i32_0 = arith.constant 0 : i32
    return %arg0, %c0_i32 : i32, i32
  }
  func.func @transform_3(%arg0: i32) -> (i32, i32) {
    %c0_i32 = arith.constant 0 : i32
    %c0_i32_0 = arith.constant 0 : i32
    %c0_i32_1 = arith.constant 0 : i32
    return %c0_i32, %c0_i32_0 : i32, i32
  }
  func.func @transform_4(%arg0: i32) -> (i32, i32) {
    %c0_i32 = arith.constant 0 : i32
    %c0_i32_0 = arith.constant 0 : i32
    %c0_i32_1 = arith.constant 0 : i32
    return %c0_i32, %c0_i32_0 : i32, i32
  }
  func.func @transform_5(%arg0: i32) -> (i32, i32) {
    %c0_i32 = arith.constant 0 : i32
    %c0_i32_0 = arith.constant 0 : i32
    %c0_i32_1 = arith.constant 0 : i32
    return %c0_i32, %c0_i32_0 : i32, i32
  }
  func.func @transform_6(%arg0: i32) -> (i32, i32) {
    %c0_i32 = arith.constant 0 : i32
    %c0_i32_0 = arith.constant 0 : i32
    %c0_i32_1 = arith.constant 0 : i32
    return %c0_i32, %c0_i32_0 : i32, i32
  }
  func.func @transform_7(%arg0: i32) -> (i32, i32) {
    %c0_i32 = arith.constant 0 : i32
    %c0_i32_0 = arith.constant 0 : i32
    %c0_i32_1 = arith.constant 0 : i32
    return %c0_i32, %c0_i32_0 : i32, i32
  }
  func.func @transform_8(%arg0: i32) -> (i32, i32) {
    %c0_i32 = arith.constant 0 : i32
    %c0_i32_0 = arith.constant 0 : i32
    %c0_i32_1 = arith.constant 0 : i32
    return %c0_i32, %c0_i32_0 : i32, i32
  }
  func.func @transform_9(%arg0: i32) -> (i32, i32) {
    %c0_i32 = arith.constant 0 : i32
    %c0_i32_0 = arith.constant 0 : i32
    %c0_i32_1 = arith.constant 0 : i32
    return %c0_i32, %c0_i32_0 : i32, i32
  }
  func.func @transform_10(%arg0: i32) -> (i32, i32) {
    %c0_i32 = arith.constant 0 : i32
    %c0_i32_0 = arith.constant 0 : i32
    %c0_i32_1 = arith.constant 0 : i32
    return %c0_i32, %c0_i32_0 : i32, i32
  }
  func.func @transform_11(%arg0: i32) -> (i32, i32) {
    %c0_i32 = arith.constant 0 : i32
    %c0_i32_0 = arith.constant 0 : i32
    %c0_i32_1 = arith.constant 0 : i32
    return %c0_i32, %c0_i32_0 : i32, i32
  }
  func.func @transform_12(%arg0: i32) -> (i32, i32) {
    %c0_i32 = arith.constant 0 : i32
    %c0_i32_0 = arith.constant 0 : i32
    %c0_i32_1 = arith.constant 0 : i32
    return %c0_i32, %c0_i32_0 : i32, i32
  }
  func.func @transform_13(%arg0: i32) -> (i32, i32) {
    %c0_i32 = arith.constant 0 : i32
    %c0_i32_0 = arith.constant 0 : i32
    %c0_i32_1 = arith.constant 0 : i32
    return %c0_i32, %c0_i32_0 : i32, i32
  }
  func.func @transform_14(%arg0: i32) -> (i32, i32) {
    %c0_i32 = arith.constant 0 : i32
    %c0_i32_0 = arith.constant 0 : i32
    %c0_i32_1 = arith.constant 0 : i32
    return %c0_i32, %c0_i32_0 : i32, i32
  }
  func.func @transform_15(%arg0: i32) -> (i32, i32) {
    %c0_i32 = arith.constant 0 : i32
    %c0_i32_0 = arith.constant 0 : i32
    %c0_i32_1 = arith.constant 0 : i32
    return %c0_i32, %c0_i32_0 : i32, i32
  }
  func.func @transform_16(%arg0: i32) -> (i32, i32) {
    %c0_i32 = arith.constant 0 : i32
    %c0_i32_0 = arith.constant 0 : i32
    %c0_i32_1 = arith.constant 0 : i32
    return %c0_i32, %c0_i32_0 : i32, i32
  }
  func.func @transform_17(%arg0: i32) -> (i32, i32) {
    %c0_i32 = arith.constant 0 : i32
    %c0_i32_0 = arith.constant 0 : i32
    %c0_i32_1 = arith.constant 0 : i32
    return %c0_i32, %c0_i32_0 : i32, i32
  }
  func.func @transform_18(%arg0: i32) -> (i32, i32) {
    %c0_i32 = arith.constant 0 : i32
    %c0_i32_0 = arith.constant 0 : i32
    %c0_i32_1 = arith.constant 0 : i32
    return %c0_i32, %c0_i32_0 : i32, i32
  }
  func.func @transform_19(%arg0: i32) -> (i32, i32) {
    %c0_i32 = arith.constant 0 : i32
    %c0_i32_0 = arith.constant 0 : i32
    %c0_i32_1 = arith.constant 0 : i32
    return %c0_i32, %c0_i32_0 : i32, i32
  }
  func.func @transform_20(%arg0: i32) -> (i32, i32) {
    %c0_i32 = arith.constant 0 : i32
    %c0_i32_0 = arith.constant 0 : i32
    %c0_i32_1 = arith.constant 0 : i32
    return %c0_i32, %c0_i32_0 : i32, i32
  }
  func.func @transform_21(%arg0: i32) -> (i32, i32) {
    %c0_i32 = arith.constant 0 : i32
    %c0_i32_0 = arith.constant 0 : i32
    %c0_i32_1 = arith.constant 0 : i32
    return %c0_i32, %c0_i32_0 : i32, i32
  }
  func.func @transform_22(%arg0: i32) -> (i32, i32) {
    %c0_i32 = arith.constant 0 : i32
    %c0_i32_0 = arith.constant 0 : i32
    %c0_i32_1 = arith.constant 0 : i32
    return %c0_i32, %c0_i32_0 : i32, i32
  }
  func.func @transform_23(%arg0: i32) -> (i32, i32) {
    %c0_i32 = arith.constant 0 : i32
    %c0_i32_0 = arith.constant 0 : i32
    return %arg0, %c0_i32 : i32, i32
  }
}

</mosaic_0001>

<llo_original>
// kernel: hierarchical_motion_decoder.1
$region0: #{hierarchical_motion_decoder.1}
  #allocation0 [shape = 'u32[]', space=smem, size = 0x4, offset = 0x4, fixed_abs, tag = 'smem constant byte address 0x4 - core index']
  #allocation1 [shape = 'u32[144,128]{1,0:T(1,128)}', space=vmem, size = 0x12000, scoped, tag = 'internal scratch']
  %s0 = inlined_call_operand.vmem [shape: f32[22,32], index: 0, kind: input, shape index: {}]
  %s1 = inlined_call_operand.vmem [shape: f32[22,32], index: 1, kind: input, shape index: {}]
  %s2 = inlined_call_operand.vmem [shape: f32[22,16], index: 2, kind: input, shape index: {}]
  %s3 = inlined_call_operand.vmem [shape: bf16[32,256], index: 3, kind: input, shape index: {}]
  %s4 = inlined_call_operand.vmem [shape: f32[1,256], index: 4, kind: input, shape index: {}]
  %s5 = inlined_call_operand.vmem [shape: f32[1,256], index: 5, kind: input, shape index: {}]
  %s6 = inlined_call_operand.vmem [shape: f32[1,256], index: 6, kind: input, shape index: {}]
  %s7 = inlined_call_operand.vmem [shape: bf16[256,512], index: 7, kind: input, shape index: {}]
  %s8 = inlined_call_operand.vmem [shape: f32[1,512], index: 8, kind: input, shape index: {}]
  %s9 = inlined_call_operand.vmem [shape: f32[1,512], index: 9, kind: input, shape index: {}]
  %s10 = inlined_call_operand.vmem [shape: f32[1,512], index: 10, kind: input, shape index: {}]
  %s11 = inlined_call_operand.vmem [shape: bf16[512,16], index: 11, kind: input, shape index: {}]
  %s12 = inlined_call_operand.vmem [shape: f32[1,16], index: 12, kind: input, shape index: {}]
  %s13 = inlined_call_operand.vmem [shape: bf16[16,512], index: 13, kind: input, shape index: {}]
  %s14 = inlined_call_operand.vmem [shape: f32[1,512], index: 14, kind: input, shape index: {}]
  %s15 = inlined_call_operand.vmem [shape: f32[1,512], index: 15, kind: input, shape index: {}]
  %s16 = inlined_call_operand.vmem [shape: f32[1,512], index: 16, kind: input, shape index: {}]
  %s17 = inlined_call_operand.vmem [shape: bf16[512,1024], index: 17, kind: input, shape index: {}]
  %s18 = inlined_call_operand.vmem [shape: f32[1,1024], index: 18, kind: input, shape index: {}]
  %s19 = inlined_call_operand.vmem [shape: f32[1,1024], index: 19, kind: input, shape index: {}]
  %s20 = inlined_call_operand.vmem [shape: f32[1,1024], index: 20, kind: input, shape index: {}]
  %s21 = inlined_call_operand.vmem [shape: bf16[1024,128], index: 21, kind: input, shape index: {}]
  %s22 = inlined_call_operand.vmem [shape: f32[1,128], index: 22, kind: input, shape index: {}]
  %s23 = inlined_call_operand.vmem [shape: f32[22,128], index: 23, kind: output, shape index: {}]
  %s24 = sld [smem:[#allocation0]]
  $region173: #{hierarchical_motion_decoder.1} parent=0
    _
  %s26 = ssub.s32 1, %s24
  %s27 = scalar_select 0, %s26, %s24
  $region1: #{hierarchical_motion_decoder.1} parent=0
    #allocation2 [shape = 'u8[16384]{0}', space=vmem, size = 0x4000, scoped, tag = 'output window, operand 0']
    loop: start=0, step=1, limit=4
    $region2: #{hierarchical_motion_decoder.1} parent=1 // loop_pre_header
      _
    $region3: #{hierarchical_motion_decoder.1} parent=1 // loop_header
      %s29 = sphi 0, %s33
      %p30 = scmp.ge.s32.totalorder %s29, 4
      %s39 = sphi 0, %s41
      %s42 = sphi 0, %s39
      %s43 = sphi 0, %s42
      %s59 = sphi 0, %s43
      %s65 = sphi 0, %s67
      %s68 = sphi 0, %s65
      %s69 = sphi 0, %s68
      %s85 = sphi 0, %s69
      %s91 = sphi 0, %s93
      %s94 = sphi 0, %s91
      %s95 = sphi 0, %s94
      %s111 = sphi 0, %s95
      %s115 = sphi 0, %s115
      %s117 = sphi 0, %s115
      %s118 = sphi 0, %s117
      %s132 = sphi 0, %s118
      %s136 = sphi 0, %s136
      %s138 = sphi 0, %s136
      %s139 = sphi 0, %s138
      %s153 = sphi 0, %s139
      %s157 = sphi 0, %s157
      %s159 = sphi 0, %s157
      %s160 = sphi 0, %s159
      %s174 = sphi 0, %s160
      %s178 = sphi 0, %s178
      %s180 = sphi 0, %s178
      %s181 = sphi 0, %s180
      %s195 = sphi 0, %s181
      %s199 = sphi 0, %s199
      %s201 = sphi 0, %s199
      %s202 = sphi 0, %s201
      %s216 = sphi 0, %s202
      %s220 = sphi 0, %s220
      %s222 = sphi 0, %s220
      %s223 = sphi 0, %s222
      %s237 = sphi 0, %s223
      %s241 = sphi 0, %s241
      %s243 = sphi 0, %s241
      %s244 = sphi 0, %s243
      %s258 = sphi 0, %s244
      %s262 = sphi 0, %s262
      %s264 = sphi 0, %s262
      %s265 = sphi 0, %s264
      %s279 = sphi 0, %s265
      %s283 = sphi 0, %s283
      %s285 = sphi 0, %s283
      %s286 = sphi 0, %s285
      %s300 = sphi 0, %s286
      %s304 = sphi 0, %s304
      %s306 = sphi 0, %s304
      %s307 = sphi 0, %s306
      %s321 = sphi 0, %s307
      %s325 = sphi 0, %s325
      %s327 = sphi 0, %s325
      %s328 = sphi 0, %s327
      %s342 = sphi 0, %s328
      %s346 = sphi 0, %s346
      %s348 = sphi 0, %s346
      %s349 = sphi 0, %s348
      %s363 = sphi 0, %s349
      %s367 = sphi 0, %s367
      %s369 = sphi 0, %s367
      %s370 = sphi 0, %s369
      %s384 = sphi 0, %s370
      %s388 = sphi 0, %s388
      %s390 = sphi 0, %s388
      %s391 = sphi 0, %s390
      %s405 = sphi 0, %s391
      %s409 = sphi 0, %s409
      %s411 = sphi 0, %s409
      %s412 = sphi 0, %s411
      %s426 = sphi 0, %s412
      %s430 = sphi 0, %s430
      %s432 = sphi 0, %s430
      %s433 = sphi 0, %s432
      %s447 = sphi 0, %s433
      %s451 = sphi 0, %s451
      %s453 = sphi 0, %s451
      %s454 = sphi 0, %s453
      %s468 = sphi 0, %s454
      %s472 = sphi 0, %s472
      %s474 = sphi 0, %s472
      %s475 = sphi 0, %s474
      %s489 = sphi 0, %s475
      %s493 = sphi 0, %s493
      %s495 = sphi 0, %s493
      %s496 = sphi 0, %s495
      %s510 = sphi 0, %s496
      %s514 = sphi 0, %s514
      %s516 = sphi 0, %s514
      %s517 = sphi 0, %s516
      %s531 = sphi 0, %s517
      %s537 = sphi 0, %s539
      %s540 = sphi 0, %s537
      %s541 = sphi 0, %s540
      %s557 = sphi 0, %s541
    $region4: #{hierarchical_motion_decoder.1} parent=1 // loop_header_branch
      %32 = sbr.rel (%p30) target = $region8
    $region5: #{hierarchical_motion_decoder.1} parent=1 // loop_body
      %s34 = ssub.s32 %s29, 1
      %s35 = ssub.s32 %s29, 2
      %s36 = sadd.s32 %s29, 1
      %s37 = ssub.s32 %s29, %s36
      %p38 = scmp.eq.s32.totalorder %s37, 0
      %s40 = sadd.s32 %s39, 1
      %s41 = scalar_select %p38, %s39, %s40
      %p44 = pneg %p38
      %p45 = scmp.eq.s32.totalorder %s29, 1
      %p46 = por %p44, %p45
      %p47 = scmp.ne.s32.totalorder %s39, %s42
      %p48 = scmp.eq.s32.totalorder %s29, 0
      %p49 = por %p47, %p48
      %p50 = scmp.ne.s32.totalorder %s39, %s42
      %p51 = scmp.eq.s32.totalorder %s34, 1
      %p52 = por %p50, %p51
      %p53 = scmp.ne.s32.totalorder %s42, %s43
      %p54 = scmp.eq.s32.totalorder %s34, 0
      %p55 = por %p53, %p54
      %p56 = scmp.ne.s32.totalorder %s42, %s43
      %p57 = scmp.eq.s32.totalorder %s35, 1
      %p58 = por %p56, %p57
      %p60 = scmp.ne.s32.totalorder %s43, %s59
      %p61 = scmp.eq.s32.totalorder %s35, 0
      %p62 = por %p60, %p61
      %s63 = ssub.s32 %s29, %s36
      %p64 = scmp.eq.s32.totalorder %s63, 0
      %s66 = sadd.s32 %s65, 1
      %s67 = scalar_select %p64, %s65, %s66
      %p70 = pneg %p64
      %p71 = scmp.eq.s32.totalorder %s29, 1
      %p72 = por %p70, %p71
      %p73 = scmp.ne.s32.totalorder %s65, %s68
      %p74 = scmp.eq.s32.totalorder %s29, 0
      %p75 = por %p73, %p74
      %p76 = scmp.ne.s32.totalorder %s65, %s68
      %p77 = scmp.eq.s32.totalorder %s34, 1
      %p78 = por %p76, %p77
      %p79 = scmp.ne.s32.totalorder %s68, %s69
      %p80 = scmp.eq.s32.totalorder %s34, 0
      %p81 = por %p79, %p80
      %p82 = scmp.ne.s32.totalorder %s68, %s69
      %p83 = scmp.eq.s32.totalorder %s35, 1
      %p84 = por %p82, %p83
      %p86 = scmp.ne.s32.totalorder %s69, %s85
      %p87 = scmp.eq.s32.totalorder %s35, 0
      %p88 = por %p86, %p87
      %s89 = ssub.s32 %s29, %s36
      %p90 = scmp.eq.s32.totalorder %s89, 0
      %s92 = sadd.s32 %s91, 1
      %s93 = scalar_select %p90, %s91, %s92
      %p96 = pneg %p90
      %p97 = scmp.eq.s32.totalorder %s29, 1
      %p98 = por %p96, %p97
      %p99 = scmp.ne.s32.totalorder %s91, %s94
      %p100 = scmp.eq.s32.totalorder %s29, 0
      %p101 = por %p99, %p100
      %p102 = scmp.ne.s32.totalorder %s91, %s94
      %p103 = scmp.eq.s32.totalorder %s34, 1
      %p104 = por %p102, %p103
      %p105 = scmp.ne.s32.totalorder %s94, %s95
      %p106 = scmp.eq.s32.totalorder %s34, 0
      %p107 = por %p105, %p106
      %p108 = scmp.ne.s32.totalorder %s94, %s95
      %p109 = scmp.eq.s32.totalorder %s35, 1
      %p110 = por %p108, %p109
      %p112 = scmp.ne.s32.totalorder %s95, %s111
      %p113 = scmp.eq.s32.totalorder %s35, 0
      %p114 = por %p112, %p113
      %s116 = sadd.s32 %s115, 1
      %p119 = scmp.eq.s32.totalorder %s29, 1
      %p120 = scmp.ne.s32.totalorder %s115, %s117
      %p121 = scmp.eq.s32.totalorder %s29, 0
      %p122 = por %p120, %p121
      %p123 = scmp.ne.s32.totalorder %s115, %s117
      %p124 = scmp.eq.s32.totalorder %s34, 1
      %p125 = por %p123, %p124
      %p126 = scmp.ne.s32.totalorder %s117, %s118
      %p127 = scmp.eq.s32.totalorder %s34, 0
      %p128 = por %p126, %p127
      %p129 = scmp.ne.s32.totalorder %s117, %s118
      %p130 = scmp.eq.s32.totalorder %s35, 1
      %p131 = por %p129, %p130
      %p133 = scmp.ne.s32.totalorder %s118, %s132
      %p134 = scmp.eq.s32.totalorder %s35, 0
      %p135 = por %p133, %p134
      %s137 = sadd.s32 %s136, 1
      %p140 = scmp.eq.s32.totalorder %s29, 1
      %p141 = scmp.ne.s32.totalorder %s136, %s138
      %p142 = scmp.eq.s32.totalorder %s29, 0
      %p143 = por %p141, %p142
      %p144 = scmp.ne.s32.totalorder %s136, %s138
      %p145 = scmp.eq.s32.totalorder %s34, 1
      %p146 = por %p144, %p145
      %p147 = scmp.ne.s32.totalorder %s138, %s139
      %p148 = scmp.eq.s32.totalorder %s34, 0
      %p149 = por %p147, %p148
      %p150 = scmp.ne.s32.totalorder %s138, %s139
      %p151 = scmp.eq.s32.totalorder %s35, 1
      %p152 = por %p150, %p151
      %p154 = scmp.ne.s32.totalorder %s139, %s153
      %p155 = scmp.eq.s32.totalorder %s35, 0
      %p156 = por %p154, %p155
      %s158 = sadd.s32 %s157, 1
      %p161 = scmp.eq.s32.totalorder %s29, 1
      %p162 = scmp.ne.s32.totalorder %s157, %s159
      %p163 = scmp.eq.s32.totalorder %s29, 0
      %p164 = por %p162, %p163
      %p165 = scmp.ne.s32.totalorder %s157, %s159
      %p166 = scmp.eq.s32.totalorder %s34, 1
      %p167 = por %p165, %p166
      %p168 = scmp.ne.s32.totalorder %s159, %s160
      %p169 = scmp.eq.s32.totalorder %s34, 0
      %p170 = por %p168, %p169
      %p171 = scmp.ne.s32.totalorder %s159, %s160
      %p172 = scmp.eq.s32.totalorder %s35, 1
      %p173 = por %p171, %p172
      %p175 = scmp.ne.s32.totalorder %s160, %s174
      %p176 = scmp.eq.s32.totalorder %s35, 0
      %p177 = por %p175, %p176
      %s179 = sadd.s32 %s178, 1
      %p182 = scmp.eq.s32.totalorder %s29, 1
      %p183 = scmp.ne.s32.totalorder %s178, %s180
      %p184 = scmp.eq.s32.totalorder %s29, 0
      %p185 = por %p183, %p184
      %p186 = scmp.ne.s32.totalorder %s178, %s180
      %p187 = scmp.eq.s32.totalorder %s34, 1
      %p188 = por %p186, %p187
      %p189 = scmp.ne.s32.totalorder %s180, %s181
      %p190 = scmp.eq.s32.totalorder %s34, 0
      %p191 = por %p189, %p190
      %p192 = scmp.ne.s32.totalorder %s180, %s181
      %p193 = scmp.eq.s32.totalorder %s35, 1
      %p194 = por %p192, %p193
      %p196 = scmp.ne.s32.totalorder %s181, %s195
      %p197 = scmp.eq.s32.totalorder %s35, 0
      %p198 = por %p196, %p197
      %s200 = sadd.s32 %s199, 1
      %p203 = scmp.eq.s32.totalorder %s29, 1
      %p204 = scmp.ne.s32.totalorder %s199, %s201
      %p205 = scmp.eq.s32.totalorder %s29, 0
      %p206 = por %p204, %p205
      %p207 = scmp.ne.s32.totalorder %s199, %s201
      %p208 = scmp.eq.s32.totalorder %s34, 1
      %p209 = por %p207, %p208
      %p210 = scmp.ne.s32.totalorder %s201, %s202
      %p211 = scmp.eq.s32.totalorder %s34, 0
      %p212 = por %p210, %p211
      %p213 = scmp.ne.s32.totalorder %s201, %s202
      %p214 = scmp.eq.s32.totalorder %s35, 1
      %p215 = por %p213, %p214
      %p217 = scmp.ne.s32.totalorder %s202, %s216
      %p218 = scmp.eq.s32.totalorder %s35, 0
      %p219 = por %p217, %p218
      %s221 = sadd.s32 %s220, 1
      %p224 = scmp.eq.s32.totalorder %s29, 1
      %p225 = scmp.ne.s32.totalorder %s220, %s222
      %p226 = scmp.eq.s32.totalorder %s29, 0
      %p227 = por %p225, %p226
      %p228 = scmp.ne.s32.totalorder %s220, %s222
      %p229 = scmp.eq.s32.totalorder %s34, 1
      %p230 = por %p228, %p229
      %p231 = scmp.ne.s32.totalorder %s222, %s223
      %p232 = scmp.eq.s32.totalorder %s34, 0
      %p233 = por %p231, %p232
      %p234 = scmp.ne.s32.totalorder %s222, %s223
      %p235 = scmp.eq.s32.totalorder %s35, 1
      %p236 = por %p234, %p235
      %p238 = scmp.ne.s32.totalorder %s223, %s237
      %p239 = scmp.eq.s32.totalorder %s35, 0
      %p240 = por %p238, %p239
      %s242 = sadd.s32 %s241, 1
      %p245 = scmp.eq.s32.totalorder %s29, 1
      %p246 = scmp.ne.s32.totalorder %s241, %s243
      %p247 = scmp.eq.s32.totalorder %s29, 0
      %p248 = por %p246, %p247
      %p249 = scmp.ne.s32.totalorder %s241, %s243
      %p250 = scmp.eq.s32.totalorder %s34, 1
      %p251 = por %p249, %p250
      %p252 = scmp.ne.s32.totalorder %s243, %s244
      %p253 = scmp.eq.s32.totalorder %s34, 0
      %p254 = por %p252, %p253
      %p255 = scmp.ne.s32.totalorder %s243, %s244
      %p256 = scmp.eq.s32.totalorder %s35, 1
      %p257 = por %p255, %p256
      %p259 = scmp.ne.s32.totalorder %s244, %s258
      %p260 = scmp.eq.s32.totalorder %s35, 0
      %p261 = por %p259, %p260
      %s263 = sadd.s32 %s262, 1
      %p266 = scmp.eq.s32.totalorder %s29, 1
      %p267 = scmp.ne.s32.totalorder %s262, %s264
      %p268 = scmp.eq.s32.totalorder %s29, 0
      %p269 = por %p267, %p268
      %p270 = scmp.ne.s32.totalorder %s262, %s264
      %p271 = scmp.eq.s32.totalorder %s34, 1
      %p272 = por %p270, %p271
      %p273 = scmp.ne.s32.totalorder %s264, %s265
      %p274 = scmp.eq.s32.totalorder %s34, 0
      %p275 = por %p273, %p274
      %p276 = scmp.ne.s32.totalorder %s264, %s265
      %p277 = scmp.eq.s32.totalorder %s35, 1
      %p278 = por %p276, %p277
      %p280 = scmp.ne.s32.totalorder %s265, %s279
      %p281 = scmp.eq.s32.totalorder %s35, 0
      %p282 = por %p280, %p281
      %s284 = sadd.s32 %s283, 1
      %p287 = scmp.eq.s32.totalorder %s29, 1
      %p288 = scmp.ne.s32.totalorder %s283, %s285
      %p289 = scmp.eq.s32.totalorder %s29, 0
      %p290 = por %p288, %p289
      %p291 = scmp.ne.s32.totalorder %s283, %s285
      %p292 = scmp.eq.s32.totalorder %s34, 1
      %p293 = por %p291, %p292
      %p294 = scmp.ne.s32.totalorder %s285, %s286
      %p295 = scmp.eq.s32.totalorder %s34, 0
      %p296 = por %p294, %p295
      %p297 = scmp.ne.s32.totalorder %s285, %s286
      %p298 = scmp.eq.s32.totalorder %s35, 1
      %p299 = por %p297, %p298
      %p301 = scmp.ne.s32.totalorder %s286, %s300
      %p302 = scmp.eq.s32.totalorder %s35, 0
      %p303 = por %p301, %p302
      %s305 = sadd.s32 %s304, 1
      %p308 = scmp.eq.s32.totalorder %s29, 1
      %p309 = scmp.ne.s32.totalorder %s304, %s306
      %p310 = scmp.eq.s32.totalorder %s29, 0
      %p311 = por %p309, %p310
      %p312 = scmp.ne.s32.totalorder %s304, %s306
      %p313 = scmp.eq.s32.totalorder %s34, 1
      %p314 = por %p312, %p313
      %p315 = scmp.ne.s32.totalorder %s306, %s307
      %p316 = scmp.eq.s32.totalorder %s34, 0
      %p317 = por %p315, %p316
      %p318 = scmp.ne.s32.totalorder %s306, %s307
      %p319 = scmp.eq.s32.totalorder %s35, 1
      %p320 = por %p318, %p319
      %p322 = scmp.ne.s32.totalorder %s307, %s321
      %p323 = scmp.eq.s32.totalorder %s35, 0
      %p324 = por %p322, %p323
      %s326 = sadd.s32 %s325, 1
      %p329 = scmp.eq.s32.totalorder %s29, 1
      %p330 = scmp.ne.s32.totalorder %s325, %s327
      %p331 = scmp.eq.s32.totalorder %s29, 0
      %p332 = por %p330, %p331
      %p333 = scmp.ne.s32.totalorder %s325, %s327
      %p334 = scmp.eq.s32.totalorder %s34, 1
      %p335 = por %p333, %p334
      %p336 = scmp.ne.s32.totalorder %s327, %s328
      %p337 = scmp.eq.s32.totalorder %s34, 0
      %p338 = por %p336, %p337
      %p339 = scmp.ne.s32.totalorder %s327, %s328
      %p340 = scmp.eq.s32.totalorder %s35, 1
      %p341 = por %p339, %p340
      %p343 = scmp.ne.s32.totalorder %s328, %s342
      %p344 = scmp.eq.s32.totalorder %s35, 0
      %p345 = por %p343, %p344
      %s347 = sadd.s32 %s346, 1
      %p350 = scmp.eq.s32.totalorder %s29, 1
      %p351 = scmp.ne.s32.totalorder %s346, %s348
      %p352 = scmp.eq.s32.totalorder %s29, 0
      %p353 = por %p351, %p352
      %p354 = scmp.ne.s32.totalorder %s346, %s348
      %p355 = scmp.eq.s32.totalorder %s34, 1
      %p356 = por %p354, %p355
      %p357 = scmp.ne.s32.totalorder %s348, %s349
      %p358 = scmp.eq.s32.totalorder %s34, 0
      %p359 = por %p357, %p358
      %p360 = scmp.ne.s32.totalorder %s348, %s349
      %p361 = scmp.eq.s32.totalorder %s35, 1
      %p362 = por %p360, %p361
      %p364 = scmp.ne.s32.totalorder %s349, %s363
      %p365 = scmp.eq.s32.totalorder %s35, 0
      %p366 = por %p364, %p365
      %s368 = sadd.s32 %s367, 1
      %p371 = scmp.eq.s32.totalorder %s29, 1
      %p372 = scmp.ne.s32.totalorder %s367, %s369
      %p373 = scmp.eq.s32.totalorder %s29, 0
      %p374 = por %p372, %p373
      %p375 = scmp.ne.s32.totalorder %s367, %s369
      %p376 = scmp.eq.s32.totalorder %s34, 1
      %p377 = por %p375, %p376
      %p378 = scmp.ne.s32.totalorder %s369, %s370
      %p379 = scmp.eq.s32.totalorder %s34, 0
      %p380 = por %p378, %p379
      %p381 = scmp.ne.s32.totalorder %s369, %s370
      %p382 = scmp.eq.s32.totalorder %s35, 1
      %p383 = por %p381, %p382
      %p385 = scmp.ne.s32.totalorder %s370, %s384
      %p386 = scmp.eq.s32.totalorder %s35, 0
      %p387 = por %p385, %p386
      %s389 = sadd.s32 %s388, 1
      %p392 = scmp.eq.s32.totalorder %s29, 1
      %p393 = scmp.ne.s32.totalorder %s388, %s390
      %p394 = scmp.eq.s32.totalorder %s29, 0
      %p395 = por %p393, %p394
      %p396 = scmp.ne.s32.totalorder %s388, %s390
      %p397 = scmp.eq.s32.totalorder %s34, 1
      %p398 = por %p396, %p397
      %p399 = scmp.ne.s32.totalorder %s390, %s391
      %p400 = scmp.eq.s32.totalorder %s34, 0
      %p401 = por %p399, %p400
      %p402 = scmp.ne.s32.totalorder %s390, %s391
      %p403 = scmp.eq.s32.totalorder %s35, 1
      %p404 = por %p402, %p403
      %p406 = scmp.ne.s32.totalorder %s391, %s405
      %p407 = scmp.eq.s32.totalorder %s35, 0
      %p408 = por %p406, %p407
      %s410 = sadd.s32 %s409, 1
      %p413 = scmp.eq.s32.totalorder %s29, 1
      %p414 = scmp.ne.s32.totalorder %s409, %s411
      %p415 = scmp.eq.s32.totalorder %s29, 0
      %p416 = por %p414, %p415
      %p417 = scmp.ne.s32.totalorder %s409, %s411
      %p418 = scmp.eq.s32.totalorder %s34, 1
      %p419 = por %p417, %p418
      %p420 = scmp.ne.s32.totalorder %s411, %s412
      %p421 = scmp.eq.s32.totalorder %s34, 0
      %p422 = por %p420, %p421
      %p423 = scmp.ne.s32.totalorder %s411, %s412
      %p424 = scmp.eq.s32.totalorder %s35, 1
      %p425 = por %p423, %p424
      %p427 = scmp.ne.s32.totalorder %s412, %s426
      %p428 = scmp.eq.s32.totalorder %s35, 0
      %p429 = por %p427, %p428
      %s431 = sadd.s32 %s430, 1
      %p434 = scmp.eq.s32.totalorder %s29, 1
      %p435 = scmp.ne.s32.totalorder %s430, %s432
      %p436 = scmp.eq.s32.totalorder %s29, 0
      %p437 = por %p435, %p436
      %p438 = scmp.ne.s32.totalorder %s430, %s432
      %p439 = scmp.eq.s32.totalorder %s34, 1
      %p440 = por %p438, %p439
      %p441 = scmp.ne.s32.totalorder %s432, %s433
      %p442 = scmp.eq.s32.totalorder %s34, 0
      %p443 = por %p441, %p442
      %p444 = scmp.ne.s32.totalorder %s432, %s433
      %p445 = scmp.eq.s32.totalorder %s35, 1
      %p446 = por %p444, %p445
      %p448 = scmp.ne.s32.totalorder %s433, %s447
      %p449 = scmp.eq.s32.totalorder %s35, 0
      %p450 = por %p448, %p449
      %s452 = sadd.s32 %s451, 1
      %p455 = scmp.eq.s32.totalorder %s29, 1
      %p456 = scmp.ne.s32.totalorder %s451, %s453
      %p457 = scmp.eq.s32.totalorder %s29, 0
      %p458 = por %p456, %p457
      %p459 = scmp.ne.s32.totalorder %s451, %s453
      %p460 = scmp.eq.s32.totalorder %s34, 1
      %p461 = por %p459, %p460
      %p462 = scmp.ne.s32.totalorder %s453, %s454
      %p463 = scmp.eq.s32.totalorder %s34, 0
      %p464 = por %p462, %p463
      %p465 = scmp.ne.s32.totalorder %s453, %s454
      %p466 = scmp.eq.s32.totalorder %s35, 1
      %p467 = por %p465, %p466
      %p469 = scmp.ne.s32.totalorder %s454, %s468
      %p470 = scmp.eq.s32.totalorder %s35, 0
      %p471 = por %p469, %p470
      %s473 = sadd.s32 %s472, 1
      %p476 = scmp.eq.s32.totalorder %s29, 1
      %p477 = scmp.ne.s32.totalorder %s472, %s474
      %p478 = scmp.eq.s32.totalorder %s29, 0
      %p479 = por %p477, %p478
      %p480 = scmp.ne.s32.totalorder %s472, %s474
      %p481 = scmp.eq.s32.totalorder %s34, 1
      %p482 = por %p480, %p481
      %p483 = scmp.ne.s32.totalorder %s474, %s475
      %p484 = scmp.eq.s32.totalorder %s34, 0
      %p485 = por %p483, %p484
      %p486 = scmp.ne.s32.totalorder %s474, %s475
      %p487 = scmp.eq.s32.totalorder %s35, 1
      %p488 = por %p486, %p487
      %p490 = scmp.ne.s32.totalorder %s475, %s489
      %p491 = scmp.eq.s32.totalorder %s35, 0
      %p492 = por %p490, %p491
      %s494 = sadd.s32 %s493, 1
      %p497 = scmp.eq.s32.totalorder %s29, 1
      %p498 = scmp.ne.s32.totalorder %s493, %s495
      %p499 = scmp.eq.s32.totalorder %s29, 0
      %p500 = por %p498, %p499
      %p501 = scmp.ne.s32.totalorder %s493, %s495
      %p502 = scmp.eq.s32.totalorder %s34, 1
      %p503 = por %p501, %p502
      %p504 = scmp.ne.s32.totalorder %s495, %s496
      %p505 = scmp.eq.s32.totalorder %s34, 0
      %p506 = por %p504, %p505
      %p507 = scmp.ne.s32.totalorder %s495, %s496
      %p508 = scmp.eq.s32.totalorder %s35, 1
      %p509 = por %p507, %p508
      %p511 = scmp.ne.s32.totalorder %s496, %s510
      %p512 = scmp.eq.s32.totalorder %s35, 0
      %p513 = por %p511, %p512
      %s515 = sadd.s32 %s514, 1
      %p518 = scmp.eq.s32.totalorder %s29, 1
      %p519 = scmp.ne.s32.totalorder %s514, %s516
      %p520 = scmp.eq.s32.totalorder %s29, 0
      %p521 = por %p519, %p520
      %p522 = scmp.ne.s32.totalorder %s514, %s516
      %p523 = scmp.eq.s32.totalorder %s34, 1
      %p524 = por %p522, %p523
      %p525 = scmp.ne.s32.totalorder %s516, %s517
      %p526 = scmp.eq.s32.totalorder %s34, 0
      %p527 = por %p525, %p526
      %p528 = scmp.ne.s32.totalorder %s516, %s517
      %p529 = scmp.eq.s32.totalorder %s35, 1
      %p530 = por %p528, %p529
      %p532 = scmp.ne.s32.totalorder %s517, %s531
      %p533 = scmp.eq.s32.totalorder %s35, 0
      %p534 = por %p532, %p533
      %s535 = ssub.s32 %s29, %s36
      %p536 = scmp.eq.s32.totalorder %s535, 0
      %s538 = sadd.s32 %s537, 1
      %s539 = scalar_select %p536, %s537, %s538
      %p542 = pneg %p536
      %p543 = scmp.eq.s32.totalorder %s29, 1
      %p544 = por %p542, %p543
      %p545 = scmp.ne.s32.totalorder %s537, %s540
      %p546 = scmp.eq.s32.totalorder %s29, 0
      %p547 = por %p545, %p546
      %p548 = scmp.ne.s32.totalorder %s537, %s540
      %p549 = scmp.eq.s32.totalorder %s34, 1
      %p550 = por %p548, %p549
      %p551 = scmp.ne.s32.totalorder %s540, %s541
      %p552 = scmp.eq.s32.totalorder %s34, 0
      %p553 = por %p551, %p552
      %p554 = scmp.ne.s32.totalorder %s540, %s541
      %p555 = scmp.eq.s32.totalorder %s35, 1
      %p556 = por %p554, %p555
      %p558 = scmp.ne.s32.totalorder %s541, %s557
      %p559 = scmp.eq.s32.totalorder %s35, 0
      %p560 = por %p558, %p559
      %p561 = scmp.le.s32.totalorder 1, %s29
      %p562 = scmp.lt.s32.totalorder %s29, 3
      %p563 = pnand %p561, %p562
      %p564 = pneg %p563
      // Predicated region
      $region9: #{hierarchical_motion_decoder.1} parent=5 // pred_check
        _
      $region10: #{hierarchical_motion_decoder.1} parent=5 // pred_check_branch
        %566 = sbr.rel (%p563) target = $region12
      $region11: #{hierarchical_motion_decoder.1} parent=5 // pred_region
        %s567 = ssub.s32 %s29, 1
        // Predicated region
        $region13: #{hierarchical_motion_decoder.1} parent=11 // pred_check
          %p568 = pneg %p128
        $region14: #{hierarchical_motion_decoder.1} parent=11 // pred_check_branch
          %570 = sbr.rel (%p568) target = $region16
        $region15: #{hierarchical_motion_decoder.1} parent=11 // pred_region
          _
        $region16: #{hierarchical_motion_decoder.1} parent=11 // pred_fallthru
          _
        // Predicated region
        $region17: #{hierarchical_motion_decoder.1} parent=11 // pred_check
          %p571 = pneg %p149
        $region18: #{hierarchical_motion_decoder.1} parent=11 // pred_check_branch
          %573 = sbr.rel (%p571) target = $region20
        $region19: #{hierarchical_motion_decoder.1} parent=11 // pred_region
          _
        $region20: #{hierarchical_motion_decoder.1} parent=11 // pred_fallthru
          _
        // Predicated region
        $region21: #{hierarchical_motion_decoder.1} parent=11 // pred_check
          %p574 = pneg %p170
        $region22: #{hierarchical_motion_decoder.1} parent=11 // pred_check_branch
          %576 = sbr.rel (%p574) target = $region24
        $region23: #{hierarchical_motion_decoder.1} parent=11 // pred_region
          _
        $region24: #{hierarchical_motion_decoder.1} parent=11 // pred_fallthru
          _
        // Predicated region
        $region25: #{hierarchical_motion_decoder.1} parent=11 // pred_check
          %p577 = pneg %p191
        $region26: #{hierarchical_motion_decoder.1} parent=11 // pred_check_branch
          %579 = sbr.rel (%p577) target = $region28
        $region27: #{hierarchical_motion_decoder.1} parent=11 // pred_region
          _
        $region28: #{hierarchical_motion_decoder.1} parent=11 // pred_fallthru
          _
        // Predicated region
        $region29: #{hierarchical_motion_decoder.1} parent=11 // pred_check
          %p580 = pneg %p212
        $region30: #{hierarchical_motion_decoder.1} parent=11 // pred_check_branch
          %582 = sbr.rel (%p580) target = $region32
        $region31: #{hierarchical_motion_decoder.1} parent=11 // pred_region
          _
        $region32: #{hierarchical_motion_decoder.1} parent=11 // pred_fallthru
          _
        // Predicated region
        $region33: #{hierarchical_motion_decoder.1} parent=11 // pred_check
          %p583 = pneg %p233
        $region34: #{hierarchical_motion_decoder.1} parent=11 // pred_check_branch
          %585 = sbr.rel (%p583) target = $region36
        $region35: #{hierarchical_motion_decoder.1} parent=11 // pred_region
          _
        $region36: #{hierarchical_motion_decoder.1} parent=11 // pred_fallthru
          _
        // Predicated region
        $region37: #{hierarchical_motion_decoder.1} parent=11 // pred_check
          %p586 = pneg %p254
        $region38: #{hierarchical_motion_decoder.1} parent=11 // pred_check_branch
          %588 = sbr.rel (%p586) target = $region40
        $region39: #{hierarchical_motion_decoder.1} parent=11 // pred_region
          _
        $region40: #{hierarchical_motion_decoder.1} parent=11 // pred_fallthru
          _
        // Predicated region
        $region41: #{hierarchical_motion_decoder.1} parent=11 // pred_check
          %p589 = pneg %p275
        $region42: #{hierarchical_motion_decoder.1} parent=11 // pred_check_branch
          %591 = sbr.rel (%p589) target = $region44
        $region43: #{hierarchical_motion_decoder.1} parent=11 // pred_region
          _
        $region44: #{hierarchical_motion_decoder.1} parent=11 // pred_fallthru
          _
        // Predicated region
        $region45: #{hierarchical_motion_decoder.1} parent=11 // pred_check
          %p592 = pneg %p296
        $region46: #{hierarchical_motion_decoder.1} parent=11 // pred_check_branch
          %594 = sbr.rel (%p592) target = $region48
        $region47: #{hierarchical_motion_decoder.1} parent=11 // pred_region
          _
        $region48: #{hierarchical_motion_decoder.1} parent=11 // pred_fallthru
          _
        // Predicated region
        $region49: #{hierarchical_motion_decoder.1} parent=11 // pred_check
          %p595 = pneg %p317
        $region50: #{hierarchical_motion_decoder.1} parent=11 // pred_check_branch
          %597 = sbr.rel (%p595) target = $region52
        $region51: #{hierarchical_motion_decoder.1} parent=11 // pred_region
          _
        $region52: #{hierarchical_motion_decoder.1} parent=11 // pred_fallthru
          _
        // Predicated region
        $region53: #{hierarchical_motion_decoder.1} parent=11 // pred_check
          %p598 = pneg %p338
        $region54: #{hierarchical_motion_decoder.1} parent=11 // pred_check_branch
          %600 = sbr.rel (%p598) target = $region56
        $region55: #{hierarchical_motion_decoder.1} parent=11 // pred_region
          _
        $region56: #{hierarchical_motion_decoder.1} parent=11 // pred_fallthru
          _
        // Predicated region
        $region57: #{hierarchical_motion_decoder.1} parent=11 // pred_check
          %p601 = pneg %p359
        $region58: #{hierarchical_motion_decoder.1} parent=11 // pred_check_branch
          %603 = sbr.rel (%p601) target = $region60
        $region59: #{hierarchical_motion_decoder.1} parent=11 // pred_region
          _
        $region60: #{hierarchical_motion_decoder.1} parent=11 // pred_fallthru
          _
        // Predicated region
        $region61: #{hierarchical_motion_decoder.1} parent=11 // pred_check
          %p604 = pneg %p380
        $region62: #{hierarchical_motion_decoder.1} parent=11 // pred_check_branch
          %606 = sbr.rel (%p604) target = $region64
        $region63: #{hierarchical_motion_decoder.1} parent=11 // pred_region
          _
        $region64: #{hierarchical_motion_decoder.1} parent=11 // pred_fallthru
          _
        // Predicated region
        $region65: #{hierarchical_motion_decoder.1} parent=11 // pred_check
          %p607 = pneg %p401
        $region66: #{hierarchical_motion_decoder.1} parent=11 // pred_check_branch
          %609 = sbr.rel (%p607) target = $region68
        $region67: #{hierarchical_motion_decoder.1} parent=11 // pred_region
          _
        $region68: #{hierarchical_motion_decoder.1} parent=11 // pred_fallthru
          _
        // Predicated region
        $region69: #{hierarchical_motion_decoder.1} parent=11 // pred_check
          %p610 = pneg %p422
        $region70: #{hierarchical_motion_decoder.1} parent=11 // pred_check_branch
          %612 = sbr.rel (%p610) target = $region72
        $region71: #{hierarchical_motion_decoder.1} parent=11 // pred_region
          _
        $region72: #{hierarchical_motion_decoder.1} parent=11 // pred_fallthru
          _
        // Predicated region
        $region73: #{hierarchical_motion_decoder.1} parent=11 // pred_check
          %p613 = pneg %p443
        $region74: #{hierarchical_motion_decoder.1} parent=11 // pred_check_branch
          %615 = sbr.rel (%p613) target = $region76
        $region75: #{hierarchical_motion_decoder.1} parent=11 // pred_region
          _
        $region76: #{hierarchical_motion_decoder.1} parent=11 // pred_fallthru
          _
        // Predicated region
        $region77: #{hierarchical_motion_decoder.1} parent=11 // pred_check
          %p616 = pneg %p464
        $region78: #{hierarchical_motion_decoder.1} parent=11 // pred_check_branch
          %618 = sbr.rel (%p616) target = $region80
        $region79: #{hierarchical_motion_decoder.1} parent=11 // pred_region
          _
        $region80: #{hierarchical_motion_decoder.1} parent=11 // pred_fallthru
          _
        // Predicated region
        $region81: #{hierarchical_motion_decoder.1} parent=11 // pred_check
          %p619 = pneg %p485
        $region82: #{hierarchical_motion_decoder.1} parent=11 // pred_check_branch
          %621 = sbr.rel (%p619) target = $region84
        $region83: #{hierarchical_motion_decoder.1} parent=11 // pred_region
          _
        $region84: #{hierarchical_motion_decoder.1} parent=11 // pred_fallthru
          _
        // Predicated region
        $region85: #{hierarchical_motion_decoder.1} parent=11 // pred_check
          %p622 = pneg %p506
        $region86: #{hierarchical_motion_decoder.1} parent=11 // pred_check_branch
          %624 = sbr.rel (%p622) target = $region88
        $region87: #{hierarchical_motion_decoder.1} parent=11 // pred_region
          _
        $region88: #{hierarchical_motion_decoder.1} parent=11 // pred_fallthru
          _
        // Predicated region
        $region89: #{hierarchical_motion_decoder.1} parent=11 // pred_check
          %p625 = pneg %p527
        $region90: #{hierarchical_motion_decoder.1} parent=11 // pred_check_branch
          %627 = sbr.rel (%p625) target = $region92
        $region91: #{hierarchical_motion_decoder.1} parent=11 // pred_region
          _
        $region92: #{hierarchical_motion_decoder.1} parent=11 // pred_fallthru
          _
      $region12: #{hierarchical_motion_decoder.1} parent=5 // pred_fallthru
        _
      %p628 = scmp.lt.s32.totalorder %s29, 2
      // Predicated region
      $region93: #{hierarchical_motion_decoder.1} parent=5 // pred_check
        %p629 = pneg %p628
      $region94: #{hierarchical_motion_decoder.1} parent=5 // pred_check_branch
        %631 = sbr.rel (%p629) target = $region96
      $region95: #{hierarchical_motion_decoder.1} parent=5 // pred_region
        // Predicated region
        $region97: #{hierarchical_motion_decoder.1} parent=95 // pred_check
          %p632 = pneg %p49
        $region98: #{hierarchical_motion_decoder.1} parent=95 // pred_check_branch
          %634 = sbr.rel (%p632) target = $region100
        $region99: #{hierarchical_motion_decoder.1} parent=95 // pred_region
          %s635 = smul.u32 2, %s29
          %s636 = ssub.s32 3, %s635
          %p637 = scmp.lt.s32.totalorder %s636, 2
          %s638 = scalar_select %p637, %s636, 2
          %s639 = smul.u32 128, %s638
          %p640 = scmp.lt.s32.totalorder %s635, 2
          %s641 = scalar_select %p640, %s635, 2
          %s642 = smul.addr %s641, 8
          %s643 = scalar_lea.vmem %s0, %s642
          %s644 = smul.u32 2, %s29
          %s645 = ssub.s32 3, %s644
          %p646 = scmp.lt.s32.totalorder %s645, 2
          %s647 = scalar_select %p646, %s645, 2
          %s648 = smul.u32 128, %s647
        $region100: #{hierarchical_motion_decoder.1} parent=95 // pred_fallthru
          _
        // Predicated region
        $region101: #{hierarchical_motion_decoder.1} parent=95 // pred_check
          %p649 = pneg %p75
        $region102: #{hierarchical_motion_decoder.1} parent=95 // pred_check_branch
          %651 = sbr.rel (%p649) target = $region104
        $region103: #{hierarchical_motion_decoder.1} parent=95 // pred_region
          %s652 = smul.u32 2, %s29
          %s653 = ssub.s32 3, %s652
          %p654 = scmp.lt.s32.totalorder %s653, 2
          %s655 = scalar_select %p654, %s653, 2
          %s656 = smul.u32 128, %s655
          %p657 = scmp.lt.s32.totalorder %s652, 2
          %s658 = scalar_select %p657, %s652, 2
          %s659 = smul.addr %s658, 8
          %s660 = scalar_lea.vmem %s1, %s659
          %s661 = smul.u32 2, %s29
          %s662 = ssub.s32 3, %s661
          %p663 = scmp.lt.s32.totalorder %s662, 2
          %s664 = scalar_select %p663, %s662, 2
          %s665 = smul.u32 128, %s664
        $region104: #{hierarchical_motion_decoder.1} parent=95 // pred_fallthru
          _
        // Predicated region
        $region105: #{hierarchical_motion_decoder.1} parent=95 // pred_check
          %p666 = pneg %p101
        $region106: #{hierarchical_motion_decoder.1} parent=95 // pred_check_branch
          %668 = sbr.rel (%p666) target = $region108
        $region107: #{hierarchical_motion_decoder.1} parent=95 // pred_region
          %s669 = smul.u32 2, %s29
          %s670 = ssub.s32 3, %s669
          %p671 = scmp.lt.s32.totalorder %s670, 2
          %s672 = scalar_select %p671, %s670, 2
          %s673 = smul.u32 128, %s672
          %p674 = scmp.lt.s32.totalorder %s669, 2
          %s675 = scalar_select %p674, %s669, 2
          %s676 = smul.addr %s675, 8
          %s677 = scalar_lea.vmem %s2, %s676
          %s678 = smul.u32 2, %s29
          %s679 = ssub.s32 3, %s678
          %p680 = scmp.lt.s32.totalorder %s679, 2
          %s681 = scalar_select %p680, %s679, 2
          %s682 = smul.u32 128, %s681
        $region108: #{hierarchical_motion_decoder.1} parent=95 // pred_fallthru
          _
      $region96: #{hierarchical_motion_decoder.1} parent=5 // pred_fallthru
        _
      %p683 = scmp.le.s32.totalorder 1, %s29
      %p684 = scmp.lt.s32.totalorder %s29, 3
      %p685 = pnand %p683, %p684
      %p686 = pneg %p685
      // Predicated region
      $region109: #{hierarchical_motion_decoder.1} parent=5 // pred_check
        _
      $region110: #{hierarchical_motion_decoder.1} parent=5 // pred_check_branch
        %688 = sbr.rel (%p685) target = $region112
      $region111: #{hierarchical_motion_decoder.1} parent=5 // pred_region
        %s689 = ssub.s32 %s29, 1
        %s690 = smul.u32 2, %s34
        %s691 = ssub.s32 3, %s690
        %p692 = scmp.lt.s32.totalorder %s691, 2
        %s693 = scalar_select %p692, %s691, 2
        %s694 = smul.u32 128, %s693
        %p695 = scmp.lt.s32.totalorder %s690, 2
        %s696 = scalar_select %p695, %s690, 2
        %s697 = smul.addr %s696, 8
        %s698 = scalar_lea.vmem %s0, %s697
        %p699 = pneg %p55
        %p700 = pneg %p52
        %s701 = smul.u32 2, %s34
        %s702 = ssub.s32 3, %s701
        %p703 = scmp.lt.s32.totalorder %s702, 2
        %s704 = scalar_select %p703, %s702, 2
        %s705 = smul.u32 128, %s704
        %p706 = scmp.lt.s32.totalorder %s701, 2
        %s707 = scalar_select %p706, %s701, 2
        %s708 = smul.addr %s707, 8
        %s709 = scalar_lea.vmem %s1, %s708
        %p710 = pneg %p81
        %p711 = pneg %p78
        %s712 = smul.u32 2, %s34
        %s713 = ssub.s32 3, %s712
        %p714 = scmp.lt.s32.totalorder %s713, 2
        %s715 = scalar_select %p714, %s713, 2
        %s716 = smul.u32 128, %s715
        %p717 = scmp.lt.s32.totalorder %s712, 2
        %s718 = scalar_select %p717, %s712, 2
        %s719 = smul.addr %s718, 8
        %s720 = scalar_lea.vmem %s2, %s719
        %p721 = pneg %p107
        %p722 = pneg %p104
        %p723 = pneg %p128
        %p724 = pneg %p125
        %p725 = pneg %p149
        %p726 = pneg %p146
        %p727 = pneg %p170
        %p728 = pneg %p167
        %p729 = pneg %p191
        %p730 = pneg %p188
        %p731 = pneg %p212
        %p732 = pneg %p209
        %p733 = pneg %p233
        %p734 = pneg %p230
        %p735 = pneg %p254
        %p736 = pneg %p251
        %p737 = pneg %p275
        %p738 = pneg %p272
        %p739 = pneg %p296
        %p740 = pneg %p293
        %p741 = pneg %p317
        %p742 = pneg %p314
        %p743 = pneg %p338
        %p744 = pneg %p335
        %p745 = pneg %p359
        %p746 = pneg %p356
        %p747 = pneg %p380
        %p748 = pneg %p377
        %p749 = pneg %p401
        %p750 = pneg %p398
        %p751 = pneg %p422
        %p752 = pneg %p419
        %p753 = pneg %p443
        %p754 = pneg %p440
        %p755 = pneg %p464
        %p756 = pneg %p461
        %p757 = pneg %p485
        %p758 = pneg %p482
        %p759 = pneg %p506
        %p760 = pneg %p503
        %p761 = pneg %p527
        %p762 = pneg %p524
        %p763 = pneg %p553
        %p764 = pneg %p550
        %s765 = sand.u32 %s540, 1
        %s766 = sand.u32 %s540, 1
        %s767 = smul.addr %s766, 16
        %s768 = scalar_lea.vmem [#allocation2], %s767
        %s769 = smul.u32 2, %s34
        %s770 = ssub.s32 3, %s769
        %p771 = scmp.lt.s32.totalorder %s770, 2
        %s772 = scalar_select %p771, %s770, 2
        %s773 = smul.u32 128, %s772
        %p774 = scmp.lt.s32.totalorder %s769, 2
        %s775 = scalar_select %p774, %s769, 2
        %s776 = smul.addr %s775, 8
        %s777 = scalar_lea.vmem %s0, %s776
        %s778 = smul.u32 2, %s34
        %s779 = ssub.s32 3, %s778
        %p780 = scmp.lt.s32.totalorder %s779, 2
        %s781 = scalar_select %p780, %s779, 2
        %s782 = smul.u32 128, %s781
        %s783 = smul.u32 2, %s34
        %s784 = ssub.s32 3, %s783
        %p785 = scmp.lt.s32.totalorder %s784, 2
        %s786 = scalar_select %p785, %s784, 2
        %s787 = smul.u32 128, %s786
        %p788 = scmp.lt.s32.totalorder %s783, 2
        %s789 = scalar_select %p788, %s783, 2
        %s790 = smul.addr %s789, 8
        %s791 = scalar_lea.vmem %s1, %s790
        %s792 = smul.u32 2, %s34
        %s793 = ssub.s32 3, %s792
        %p794 = scmp.lt.s32.totalorder %s793, 2
        %s795 = scalar_select %p794, %s793, 2
        %s796 = smul.u32 128, %s795
        %s797 = smul.u32 2, %s34
        %s798 = ssub.s32 3, %s797
        %p799 = scmp.lt.s32.totalorder %s798, 2
        %s800 = scalar_select %p799, %s798, 2
        %s801 = smul.u32 128, %s800
        %p802 = scmp.lt.s32.totalorder %s797, 2
        %s803 = scalar_select %p802, %s797, 2
        %s804 = smul.addr %s803, 8
        %s805 = scalar_lea.vmem %s2, %s804
        %s806 = smul.u32 2, %s34
        %s807 = ssub.s32 3, %s806
        %p808 = scmp.lt.s32.totalorder %s807, 2
        %s809 = scalar_select %p808, %s807, 2
        %s810 = smul.u32 128, %s809
        %s811 = smul.u32 2, %s34
        %s812 = ssub.s32 3, %s811
        %p813 = scmp.lt.s32.totalorder %s812, 2
        %s814 = scalar_select %p813, %s812, 2
        %s815 = smul.u32 128, %s814
        %v817 = vld [vmem:[%s777] sm:$0xff]
        %v818 = vld [vmem:[%s791] sm:$0xff]
        %v819 = vxor.u32 %v818, 2147483648
        %v820 = vmul.f32 %v819, 1.442695
        %v821 = vpow.pop %v820
        %v822 = vadd.f32 %v821, 1.0
        %v823 = vrcp.pop %v822
        %v824 = vmul.f32 1.0, %v823
        %v825 = vmul.f32 %v817, %v824
        %v826 = vpack.c.bf16 %v825, %v825
        %v827 = vld [vmem:[%s3] sm:$0xff]
        %v828 = vld [vmem:[%s3 + $0x8] sm:$0xff]
        %v829 = vld [vmem:[%s3 + $0x10] sm:$0xff]
        %v830 = vld [vmem:[%s3 + $0x18] sm:$0xff]
        %v831 = vld [vmem:[%s4] sm:$0x3]
        %v833 = vlaneseq
        %v834 = vshrl.u32 %v833, 7
        %v835 = vsub.s32 0, %v834
        %v836 = vrot.slane %v831, %v835
        %v837 = vlaneseq
        %v838 = vshrl.u32 %v837, 7
        %v839 = vsub.s32 1, %v838
        %v840 = vrot.slane %v831, %v839
        %v847 = vunpack.c.l.b16 %v827
        %v848 = vunpack.c.h.b16 %v827
        %v849 = vunpack.c.l.b16 %v828
        %v850 = vunpack.c.h.b16 %v828
        %v851 = vunpack.c.l.b16 %v829
        %v852 = vunpack.c.h.b16 %v829
        %v853 = vunpack.c.l.b16 %v830
        %v854 = vunpack.c.h.b16 %v830
        %v855 = vpack.c.b16 %v849, %v847
        %v856 = vpack.c.b16 %v850, %v848
        %v857 = vpack.c.b16 %v853, %v851
        %v858 = vpack.c.b16 %v854, %v852
        %vm863 = vcmask 261120
        %v865 = vsel %vm863, %v826, 0
        %867 = vmatprep.subr.bf16.mxu0 0
        %868 = vmatpush1.bf16.msra.mxu0 0
        %869 = vmatprep.subr.bf16.mxu0 0
        %870 = vmatpush1.bf16.msra.mxu0 0
        %871 = vmatprep.subr.bf16.mxu0 0
        %872 = vmatpush1.bf16.msra.mxu0 0
        %873 = vmatprep.subr.bf16.mxu0 0
        %874 = vmatpush1.bf16.msra.mxu0 0
        %875 = vmatprep.subr.bf16.mxu0 0
        %876 = vmatpush1.bf16.msra.mxu0 0
        %877 = vmatprep.subr.bf16.mxu0 0
        %878 = vmatpush1.bf16.msra.mxu0 0
        %879 = vmatprep.subr.bf16.mxu0 %v858
        %880 = vmatpush1.bf16.msra.mxu0 %v857
        %881 = vmatprep.subr.bf16.mxu0 %v856
        %882 = vmatpush1.bf16.msra.mxu0 %v855
        %883 = vmatprep.subr.bf16.mxu0 0
        %884 = vmatpush2.bf16.msra.mxu0 0
        %885 = vmatprep.subr.bf16.mxu0 0
        %886 = vmatpush2.bf16.msra.mxu0 0
        %887 = vmatprep.subr.bf16.mxu0 0
        %888 = vmatpush2.bf16.msra.mxu0 0
        %889 = vmatprep.subr.bf16.mxu0 0
        %890 = vmatpush2.bf16.msra.mxu0 0
        %891 = vmatprep.subr.bf16.mxu0 0
        %892 = vmatpush2.bf16.msra.mxu0 0
        %893 = vmatprep.subr.bf16.mxu0 0
        %894 = vmatpush2.bf16.msra.mxu0 0
        %895 = vmatprep.subr.bf16.mxu0 0
        %896 = vmatpush2.bf16.msra.mxu0 0
        %897 = vmatprep.subr.bf16.mxu0 0
        %898 = vmatpush2.bf16.msra.mxu0 0
        %899 = vmatprep.mubr.bf16.mxu0 0
        %900 = vmatmul.mubr.bf16.gmra.mxu0 %v865
        %v901 = vpop.f32.mrf.mxu0
        %v902 = vadd.f32 %v836, %v901
        %v903 = vpop.f32.mrf.mxu0
        %v904 = vadd.f32 %v840, %v903
        %v905 = vpop.f32.mrf.mxu0
        %v906 = vpop.f32.mrf.mxu0
        %907 = vdwg.mxu0
        %v908 = vld [vmem:[%s5] sm:$0x3]
        %v909 = vld [vmem:[%s6] sm:$0x3]
        %v910 = vadd.f32 %v902, %v904
        %911 = vadd.xlane.f32.xlu0 %v910
        %v912 = vpop.xlane.xlu0 %911
        %v913 = vrcp.pop 256.0
        %v914 = vmul.f32 %v912, %v913
        %v915 = vsub.f32 %v902, %v914
        %v916 = vsub.f32 %v904, %v914
        %v917 = vmul.f32 %v915, %v915
        %v918 = vmul.f32 %v916, %v916
        %v919 = vadd.f32 %v917, %v918
        %920 = vadd.xlane.f32.xlu0 %v919
        %v921 = vpop.xlane.xlu0 %920
        %v922 = vmul.f32 %v921, %v913
        %v923 = vadd.f32 %v922, 1e-05
        %v924 = vrsqrt.pop %v923
        %v925 = vmul.f32 %v915, %v924
        %v926 = vmul.f32 %v916, %v924
        %v928 = vlaneseq
        %v929 = vshrl.u32 %v928, 7
        %v930 = vsub.s32 0, %v929
        %v931 = vrot.slane %v908, %v930
        %v932 = vlaneseq
        %v933 = vshrl.u32 %v932, 7
        %v934 = vsub.s32 1, %v933
        %v935 = vrot.slane %v908, %v934
        %v938 = vmul.f32 %v925, %v931
        %v939 = vmul.f32 %v926, %v935
        %v941 = vlaneseq
        %v942 = vshrl.u32 %v941, 7
        %v943 = vsub.s32 0, %v942
        %v944 = vrot.slane %v909, %v943
        %v945 = vlaneseq
        %v946 = vshrl.u32 %v945, 7
        %v947 = vsub.s32 1, %v946
        %v948 = vrot.slane %v909, %v947
        %v951 = vadd.f32 %v938, %v944
        %v952 = vadd.f32 %v939, %v948
        %v953 = vxor.u32 %v951, 2147483648
        %v954 = vxor.u32 %v952, 2147483648
        %v955 = vmul.f32 %v953, 1.442695
        %v956 = vpow.pop %v955
        %v957 = vmul.f32 %v954, 1.442695
        %v958 = vpow.pop %v957
        %v959 = vadd.f32 %v956, 1.0
        %v960 = vadd.f32 %v958, 1.0
        %v961 = vrcp.pop %v959
        %v962 = vmul.f32 1.0, %v961
        %v963 = vrcp.pop %v960
        %v964 = vmul.f32 1.0, %v963
        %v965 = vmul.f32 %v951, %v962
        %v966 = vmul.f32 %v952, %v964
        %v967 = vpack.c.bf16 %v965, %v965
        %v968 = vpack.c.bf16 %v966, %v966
        %v969 = vld [vmem:[%s7] sm:$0xff]
        %v970 = vld [vmem:[%s7 + $0x8] sm:$0xff]
        %v971 = vld [vmem:[%s7 + $0x10] sm:$0xff]
        %v972 = vld [vmem:[%s7 + $0x18] sm:$0xff]
        %v973 = vld [vmem:[%s7 + $0x20] sm:$0xff]
        %v974 = vld [vmem:[%s7 + $0x28] sm:$0xff]
        %v975 = vld [vmem:[%s7 + $0x30] sm:$0xff]
        %v976 = vld [vmem:[%s7 + $0x38] sm:$0xff]
        %v977 = vld [vmem:[%s7 + $0x40] sm:$0xff]
        %v978 = vld [vmem:[%s7 + $0x48] sm:$0xff]
        %v979 = vld [vmem:[%s7 + $0x50] sm:$0xff]
        %v980 = vld [vmem:[%s7 + $0x58] sm:$0xff]
        %v981 = vld [vmem:[%s7 + $0x60] sm:$0xff]
        %v982 = vld [vmem:[%s7 + $0x68] sm:$0xff]
        %v983 = vld [vmem:[%s7 + $0x70] sm:$0xff]
        %v984 = vld [vmem:[%s7 + $0x78] sm:$0xff]
        %v985 = vld [vmem:[%s7 + $0x80] sm:$0xff]
        %v986 = vld [vmem:[%s7 + $0x88] sm:$0xff]
        %v987 = vld [vmem:[%s7 + $0x90] sm:$0xff]
        %v988 = vld [vmem:[%s7 + $0x98] sm:$0xff]
        %v989 = vld [vmem:[%s7 + $0xa0] sm:$0xff]
        %v990 = vld [vmem:[%s7 + $0xa8] sm:$0xff]
        %v991 = vld [vmem:[%s7 + $0xb0] sm:$0xff]
        %v992 = vld [vmem:[%s7 + $0xb8] sm:$0xff]
        %v993 = vld [vmem:[%s7 + $0xc0] sm:$0xff]
        %v994 = vld [vmem:[%s7 + $0xc8] sm:$0xff]
        %v995 = vld [vmem:[%s7 + $0xd0] sm:$0xff]
        %v996 = vld [vmem:[%s7 + $0xd8] sm:$0xff]
        %v997 = vld [vmem:[%s7 + $0xe0] sm:$0xff]
        %v998 = vld [vmem:[%s7 + $0xe8] sm:$0xff]
        %v999 = vld [vmem:[%s7 + $0xf0] sm:$0xff]
        %v1000 = vld [vmem:[%s7 + $0xf8] sm:$0xff]
        %v1001 = vld [vmem:[%s7 + $0x100] sm:$0xff]
        %v1002 = vld [vmem:[%s7 + $0x108] sm:$0xff]
        %v1003 = vld [vmem:[%s7 + $0x110] sm:$0xff]
        %v1004 = vld [vmem:[%s7 + $0x118] sm:$0xff]
        %v1005 = vld [vmem:[%s7 + $0x120] sm:$0xff]
        %v1006 = vld [vmem:[%s7 + $0x128] sm:$0xff]
        %v1007 = vld [vmem:[%s7 + $0x130] sm:$0xff]
        %v1008 = vld [vmem:[%s7 + $0x138] sm:$0xff]
        %v1009 = vld [vmem:[%s7 + $0x140] sm:$0xff]
        %v1010 = vld [vmem:[%s7 + $0x148] sm:$0xff]
        %v1011 = vld [vmem:[%s7 + $0x150] sm:$0xff]
        %v1012 = vld [vmem:[%s7 + $0x158] sm:$0xff]
        %v1013 = vld [vmem:[%s7 + $0x160] sm:$0xff]
        %v1014 = vld [vmem:[%s7 + $0x168] sm:$0xff]
        %v1015 = vld [vmem:[%s7 + $0x170] sm:$0xff]
        %v1016 = vld [vmem:[%s7 + $0x178] sm:$0xff]
        %v1017 = vld [vmem:[%s7 + $0x180] sm:$0xff]
        %v1018 = vld [vmem:[%s7 + $0x188] sm:$0xff]
        %v1019 = vld [vmem:[%s7 + $0x190] sm:$0xff]
        %v1020 = vld [vmem:[%s7 + $0x198] sm:$0xff]
        %v1021 = vld [vmem:[%s7 + $0x1a0] sm:$0xff]
        %v1022 = vld [vmem:[%s7 + $0x1a8] sm:$0xff]
        %v1023 = vld [vmem:[%s7 + $0x1b0] sm:$0xff]
        %v1024 = vld [vmem:[%s7 + $0x1b8] sm:$0xff]
        %v1025 = vld [vmem:[%s7 + $0x1c0] sm:$0xff]
        %v1026 = vld [vmem:[%s7 + $0x1c8] sm:$0xff]
        %v1027 = vld [vmem:[%s7 + $0x1d0] sm:$0xff]
        %v1028 = vld [vmem:[%s7 + $0x1d8] sm:$0xff]
        %v1029 = vld [vmem:[%s7 + $0x1e0] sm:$0xff]
        %v1030 = vld [vmem:[%s7 + $0x1e8] sm:$0xff]
        %v1031 = vld [vmem:[%s7 + $0x1f0] sm:$0xff]
        %v1032 = vld [vmem:[%s7 + $0x1f8] sm:$0xff]
        %v1033 = vld [vmem:[%s8] sm:$0xf]
        %v1035 = vlaneseq
        %v1036 = vshrl.u32 %v1035, 7
        %v1037 = vsub.s32 0, %v1036
        %v1038 = vrot.slane %v1033, %v1037
        %v1039 = vlaneseq
        %v1040 = vshrl.u32 %v1039, 7
        %v1041 = vsub.s32 1, %v1040
        %v1042 = vrot.slane %v1033, %v1041
        %v1043 = vlaneseq
        %v1044 = vshrl.u32 %v1043, 7
        %v1045 = vsub.s32 2, %v1044
        %v1046 = vrot.slane %v1033, %v1045
        %v1047 = vlaneseq
        %v1048 = vshrl.u32 %v1047, 7
        %v1049 = vsub.s32 3, %v1048
        %v1050 = vrot.slane %v1033, %v1049
        %v1119 = vunpack.c.l.b16 %v969
        %v1120 = vunpack.c.h.b16 %v969
        %v1121 = vunpack.c.l.b16 %v970
        %v1122 = vunpack.c.h.b16 %v970
        %v1123 = vunpack.c.l.b16 %v971
        %v1124 = vunpack.c.h.b16 %v971
        %v1125 = vunpack.c.l.b16 %v972
        %v1126 = vunpack.c.h.b16 %v972
        %v1127 = vunpack.c.l.b16 %v973
        %v1128 = vunpack.c.h.b16 %v973
        %v1129 = vunpack.c.l.b16 %v974
        %v1130 = vunpack.c.h.b16 %v974
        %v1131 = vunpack.c.l.b16 %v975
        %v1132 = vunpack.c.h.b16 %v975
        %v1133 = vunpack.c.l.b16 %v976
        %v1134 = vunpack.c.h.b16 %v976
        %v1135 = vunpack.c.l.b16 %v977
        %v1136 = vunpack.c.h.b16 %v977
        %v1137 = vunpack.c.l.b16 %v978
        %v1138 = vunpack.c.h.b16 %v978
        %v1139 = vunpack.c.l.b16 %v979
        %v1140 = vunpack.c.h.b16 %v979
        %v1141 = vunpack.c.l.b16 %v980
        %v1142 = vunpack.c.h.b16 %v980
        %v1143 = vunpack.c.l.b16 %v981
        %v1144 = vunpack.c.h.b16 %v981
        %v1145 = vunpack.c.l.b16 %v982
        %v1146 = vunpack.c.h.b16 %v982
        %v1147 = vunpack.c.l.b16 %v983
        %v1148 = vunpack.c.h.b16 %v983
        %v1149 = vunpack.c.l.b16 %v984
        %v1150 = vunpack.c.h.b16 %v984
        %v1151 = vunpack.c.l.b16 %v985
        %v1152 = vunpack.c.h.b16 %v985
        %v1153 = vunpack.c.l.b16 %v986
        %v1154 = vunpack.c.h.b16 %v986
        %v1155 = vunpack.c.l.b16 %v987
        %v1156 = vunpack.c.h.b16 %v987
        %v1157 = vunpack.c.l.b16 %v988
        %v1158 = vunpack.c.h.b16 %v988
        %v1159 = vunpack.c.l.b16 %v989
        %v1160 = vunpack.c.h.b16 %v989
        %v1161 = vunpack.c.l.b16 %v990
        %v1162 = vunpack.c.h.b16 %v990
        %v1163 = vunpack.c.l.b16 %v991
        %v1164 = vunpack.c.h.b16 %v991
        %v1165 = vunpack.c.l.b16 %v992
        %v1166 = vunpack.c.h.b16 %v992
        %v1167 = vunpack.c.l.b16 %v993
        %v1168 = vunpack.c.h.b16 %v993
        %v1169 = vunpack.c.l.b16 %v994
        %v1170 = vunpack.c.h.b16 %v994
        %v1171 = vunpack.c.l.b16 %v995
        %v1172 = vunpack.c.h.b16 %v995
        %v1173 = vunpack.c.l.b16 %v996
        %v1174 = vunpack.c.h.b16 %v996
        %v1175 = vunpack.c.l.b16 %v997
        %v1176 = vunpack.c.h.b16 %v997
        %v1177 = vunpack.c.l.b16 %v998
        %v1178 = vunpack.c.h.b16 %v998
        %v1179 = vunpack.c.l.b16 %v999
        %v1180 = vunpack.c.h.b16 %v999
        %v1181 = vunpack.c.l.b16 %v1000
        %v1182 = vunpack.c.h.b16 %v1000
        %v1183 = vunpack.c.l.b16 %v1001
        %v1184 = vunpack.c.h.b16 %v1001
        %v1185 = vunpack.c.l.b16 %v1002
        %v1186 = vunpack.c.h.b16 %v1002
        %v1187 = vunpack.c.l.b16 %v1003
        %v1188 = vunpack.c.h.b16 %v1003
        %v1189 = vunpack.c.l.b16 %v1004
        %v1190 = vunpack.c.h.b16 %v1004
        %v1191 = vunpack.c.l.b16 %v1005
        %v1192 = vunpack.c.h.b16 %v1005
        %v1193 = vunpack.c.l.b16 %v1006
        %v1194 = vunpack.c.h.b16 %v1006
        %v1195 = vunpack.c.l.b16 %v1007
        %v1196 = vunpack.c.h.b16 %v1007
        %v1197 = vunpack.c.l.b16 %v1008
        %v1198 = vunpack.c.h.b16 %v1008
        %v1199 = vunpack.c.l.b16 %v1009
        %v1200 = vunpack.c.h.b16 %v1009
        %v1201 = vunpack.c.l.b16 %v1010
        %v1202 = vunpack.c.h.b16 %v1010
        %v1203 = vunpack.c.l.b16 %v1011
        %v1204 = vunpack.c.h.b16 %v1011
        %v1205 = vunpack.c.l.b16 %v1012
        %v1206 = vunpack.c.h.b16 %v1012
        %v1207 = vunpack.c.l.b16 %v1013
        %v1208 = vunpack.c.h.b16 %v1013
        %v1209 = vunpack.c.l.b16 %v1014
        %v1210 = vunpack.c.h.b16 %v1014
        %v1211 = vunpack.c.l.b16 %v1015
        %v1212 = vunpack.c.h.b16 %v1015
        %v1213 = vunpack.c.l.b16 %v1016
        %v1214 = vunpack.c.h.b16 %v1016
        %v1215 = vunpack.c.l.b16 %v1017
        %v1216 = vunpack.c.h.b16 %v1017
        %v1217 = vunpack.c.l.b16 %v1018
        %v1218 = vunpack.c.h.b16 %v1018
        %v1219 = vunpack.c.l.b16 %v1019
        %v1220 = vunpack.c.h.b16 %v1019
        %v1221 = vunpack.c.l.b16 %v1020
        %v1222 = vunpack.c.h.b16 %v1020
        %v1223 = vunpack.c.l.b16 %v1021
        %v1224 = vunpack.c.h.b16 %v1021
        %v1225 = vunpack.c.l.b16 %v1022
        %v1226 = vunpack.c.h.b16 %v1022
        %v1227 = vunpack.c.l.b16 %v1023
        %v1228 = vunpack.c.h.b16 %v1023
        %v1229 = vunpack.c.l.b16 %v1024
        %v1230 = vunpack.c.h.b16 %v1024
        %v1231 = vunpack.c.l.b16 %v1025
        %v1232 = vunpack.c.h.b16 %v1025
        %v1233 = vunpack.c.l.b16 %v1026
        %v1234 = vunpack.c.h.b16 %v1026
        %v1235 = vunpack.c.l.b16 %v1027
        %v1236 = vunpack.c.h.b16 %v1027
        %v1237 = vunpack.c.l.b16 %v1028
        %v1238 = vunpack.c.h.b16 %v1028
        %v1239 = vunpack.c.l.b16 %v1029
        %v1240 = vunpack.c.h.b16 %v1029
        %v1241 = vunpack.c.l.b16 %v1030
        %v1242 = vunpack.c.h.b16 %v1030
        %v1243 = vunpack.c.l.b16 %v1031
        %v1244 = vunpack.c.h.b16 %v1031
        %v1245 = vunpack.c.l.b16 %v1032
        %v1246 = vunpack.c.h.b16 %v1032
        %v1247 = vpack.c.b16 %v1123, %v1119
        %v1248 = vpack.c.b16 %v1124, %v1120
        %v1249 = vpack.c.b16 %v1125, %v1121
        %v1250 = vpack.c.b16 %v1126, %v1122
        %v1251 = vpack.c.b16 %v1131, %v1127
        %v1252 = vpack.c.b16 %v1132, %v1128
        %v1253 = vpack.c.b16 %v1133, %v1129
        %v1254 = vpack.c.b16 %v1134, %v1130
        %v1255 = vpack.c.b16 %v1139, %v1135
        %v1256 = vpack.c.b16 %v1140, %v1136
        %v1257 = vpack.c.b16 %v1141, %v1137
        %v1258 = vpack.c.b16 %v1142, %v1138
        %v1259 = vpack.c.b16 %v1147, %v1143
        %v1260 = vpack.c.b16 %v1148, %v1144
        %v1261 = vpack.c.b16 %v1149, %v1145
        %v1262 = vpack.c.b16 %v1150, %v1146
        %v1263 = vpack.c.b16 %v1155, %v1151
        %v1264 = vpack.c.b16 %v1156, %v1152
        %v1265 = vpack.c.b16 %v1157, %v1153
        %v1266 = vpack.c.b16 %v1158, %v1154
        %v1267 = vpack.c.b16 %v1163, %v1159
        %v1268 = vpack.c.b16 %v1164, %v1160
        %v1269 = vpack.c.b16 %v1165, %v1161
        %v1270 = vpack.c.b16 %v1166, %v1162
        %v1271 = vpack.c.b16 %v1171, %v1167
        %v1272 = vpack.c.b16 %v1172, %v1168
        %v1273 = vpack.c.b16 %v1173, %v1169
        %v1274 = vpack.c.b16 %v1174, %v1170
        %v1275 = vpack.c.b16 %v1179, %v1175
        %v1276 = vpack.c.b16 %v1180, %v1176
        %v1277 = vpack.c.b16 %v1181, %v1177
        %v1278 = vpack.c.b16 %v1182, %v1178
        %v1279 = vpack.c.b16 %v1187, %v1183
        %v1280 = vpack.c.b16 %v1188, %v1184
        %v1281 = vpack.c.b16 %v1189, %v1185
        %v1282 = vpack.c.b16 %v1190, %v1186
        %v1283 = vpack.c.b16 %v1195, %v1191
        %v1284 = vpack.c.b16 %v1196, %v1192
        %v1285 = vpack.c.b16 %v1197, %v1193
        %v1286 = vpack.c.b16 %v1198, %v1194
        %v1287 = vpack.c.b16 %v1203, %v1199
        %v1288 = vpack.c.b16 %v1204, %v1200
        %v1289 = vpack.c.b16 %v1205, %v1201
        %v1290 = vpack.c.b16 %v1206, %v1202
        %v1291 = vpack.c.b16 %v1211, %v1207
        %v1292 = vpack.c.b16 %v1212, %v1208
        %v1293 = vpack.c.b16 %v1213, %v1209
        %v1294 = vpack.c.b16 %v1214, %v1210
        %v1295 = vpack.c.b16 %v1219, %v1215
        %v1296 = vpack.c.b16 %v1220, %v1216
        %v1297 = vpack.c.b16 %v1221, %v1217
        %v1298 = vpack.c.b16 %v1222, %v1218
        %v1299 = vpack.c.b16 %v1227, %v1223
        %v1300 = vpack.c.b16 %v1228, %v1224
        %v1301 = vpack.c.b16 %v1229, %v1225
        %v1302 = vpack.c.b16 %v1230, %v1226
        %v1303 = vpack.c.b16 %v1235, %v1231
        %v1304 = vpack.c.b16 %v1236, %v1232
        %v1305 = vpack.c.b16 %v1237, %v1233
        %v1306 = vpack.c.b16 %v1238, %v1234
        %v1307 = vpack.c.b16 %v1243, %v1239
        %v1308 = vpack.c.b16 %v1244, %v1240
        %v1309 = vpack.c.b16 %v1245, %v1241
        %v1310 = vpack.c.b16 %v1246, %v1242
        %1375 = vmatprep.subr.bf16.mxu0 %v1276
        %1376 = vmatpush1.bf16.msra.mxu0 %v1275
        %1377 = vmatprep.subr.bf16.mxu0 %v1272
        %1378 = vmatpush1.bf16.msra.mxu0 %v1271
        %1379 = vmatprep.subr.bf16.mxu0 %v1268
        %1380 = vmatpush1.bf16.msra.mxu0 %v1267
        %1381 = vmatprep.subr.bf16.mxu0 %v1264
        %1382 = vmatpush1.bf16.msra.mxu0 %v1263
        %1383 = vmatprep.subr.bf16.mxu0 %v1260
        %1384 = vmatpush1.bf16.msra.mxu0 %v1259
        %1385 = vmatprep.subr.bf16.mxu0 %v1256
        %1386 = vmatpush1.bf16.msra.mxu0 %v1255
        %1387 = vmatprep.subr.bf16.mxu0 %v1252
        %1388 = vmatpush1.bf16.msra.mxu0 %v1251
        %1389 = vmatprep.subr.bf16.mxu0 %v1248
        %1390 = vmatpush1.bf16.msra.mxu0 %v1247
        %1391 = vmatprep.subr.bf16.mxu0 %v1308
        %1392 = vmatpush2.bf16.msra.mxu0 %v1307
        %1393 = vmatprep.subr.bf16.mxu0 %v1304
        %1394 = vmatpush2.bf16.msra.mxu0 %v1303
        %1395 = vmatprep.subr.bf16.mxu0 %v1300
        %1396 = vmatpush2.bf16.msra.mxu0 %v1299
        %1397 = vmatprep.subr.bf16.mxu0 %v1296
        %1398 = vmatpush2.bf16.msra.mxu0 %v1295
        %1399 = vmatprep.subr.bf16.mxu0 %v1292
        %1400 = vmatpush2.bf16.msra.mxu0 %v1291
        %1401 = vmatprep.subr.bf16.mxu0 %v1288
        %1402 = vmatpush2.bf16.msra.mxu0 %v1287
        %1403 = vmatprep.subr.bf16.mxu0 %v1284
        %1404 = vmatpush2.bf16.msra.mxu0 %v1283
        %1405 = vmatprep.subr.bf16.mxu0 %v1280
        %1406 = vmatpush2.bf16.msra.mxu0 %v1279
        %1407 = vmatprep.mubr.bf16.mxu0 %v968
        %1408 = vmatmul.mubr.bf16.gmra.mxu0 %v967
        %v1409 = vpop.f32.mrf.mxu0
        %v1410 = vadd.f32 %v1038, %v1409
        %v1411 = vpop.f32.mrf.mxu0
        %v1412 = vadd.f32 %v1042, %v1411
        %v1413 = vpop.f32.mrf.mxu0
        %v1414 = vpop.f32.mrf.mxu0
        %1415 = vdwg.mxu0
        %1416 = vmatprep.subr.bf16.mxu0 %v1278
        %1417 = vmatpush1.bf16.msra.mxu0 %v1277
        %1418 = vmatprep.subr.bf16.mxu0 %v1274
        %1419 = vmatpush1.bf16.msra.mxu0 %v1273
        %1420 = vmatprep.subr.bf16.mxu0 %v1270
        %1421 = vmatpush1.bf16.msra.mxu0 %v1269
        %1422 = vmatprep.subr.bf16.mxu0 %v1266
        %1423 = vmatpush1.bf16.msra.mxu0 %v1265
        %1424 = vmatprep.subr.bf16.mxu0 %v1262
        %1425 = vmatpush1.bf16.msra.mxu0 %v1261
        %1426 = vmatprep.subr.bf16.mxu0 %v1258
        %1427 = vmatpush1.bf16.msra.mxu0 %v1257
        %1428 = vmatprep.subr.bf16.mxu0 %v1254
        %1429 = vmatpush1.bf16.msra.mxu0 %v1253
        %1430 = vmatprep.subr.bf16.mxu0 %v1250
        %1431 = vmatpush1.bf16.msra.mxu0 %v1249
        %1432 = vmatprep.subr.bf16.mxu0 %v1310
        %1433 = vmatpush2.bf16.msra.mxu0 %v1309
        %1434 = vmatprep.subr.bf16.mxu0 %v1306
        %1435 = vmatpush2.bf16.msra.mxu0 %v1305
        %1436 = vmatprep.subr.bf16.mxu0 %v1302
        %1437 = vmatpush2.bf16.msra.mxu0 %v1301
        %1438 = vmatprep.subr.bf16.mxu0 %v1298
        %1439 = vmatpush2.bf16.msra.mxu0 %v1297
        %1440 = vmatprep.subr.bf16.mxu0 %v1294
        %1441 = vmatpush2.bf16.msra.mxu0 %v1293
        %1442 = vmatprep.subr.bf16.mxu0 %v1290
        %1443 = vmatpush2.bf16.msra.mxu0 %v1289
        %1444 = vmatprep.subr.bf16.mxu0 %v1286
        %1445 = vmatpush2.bf16.msra.mxu0 %v1285
        %1446 = vmatprep.subr.bf16.mxu0 %v1282
        %1447 = vmatpush2.bf16.msra.mxu0 %v1281
        %1448 = vmatprep.mubr.bf16.mxu0 %v968
        %1449 = vmatmul.mubr.bf16.gmra.mxu0 %v967
        %v1450 = vpop.f32.mrf.mxu0
        %v1451 = vadd.f32 %v1046, %v1450
        %v1452 = vpop.f32.mrf.mxu0
        %v1453 = vadd.f32 %v1050, %v1452
        %v1454 = vpop.f32.mrf.mxu0
        %v1455 = vpop.f32.mrf.mxu0
        %1456 = vdwg.mxu0
        %v1457 = vld [vmem:[%s9] sm:$0xf]
        %v1458 = vld [vmem:[%s10] sm:$0xf]
        %v1459 = vadd.f32 %v1410, %v1412
        %v1460 = vadd.f32 %v1459, %v1451
        %v1461 = vadd.f32 %v1460, %v1453
        %1462 = vadd.xlane.f32.xlu0 %v1461
        %v1463 = vpop.xlane.xlu0 %1462
        %v1464 = vrcp.pop 512.0
        %v1465 = vmul.f32 %v1463, %v1464
        %v1466 = vsub.f32 %v1410, %v1465
        %v1467 = vsub.f32 %v1412, %v1465
        %v1468 = vsub.f32 %v1451, %v1465
        %v1469 = vsub.f32 %v1453, %v1465
        %v1470 = vmul.f32 %v1466, %v1466
        %v1471 = vmul.f32 %v1467, %v1467
        %v1472 = vmul.f32 %v1468, %v1468
        %v1473 = vmul.f32 %v1469, %v1469
        %v1474 = vadd.f32 %v1470, %v1471
        %v1475 = vadd.f32 %v1474, %v1472
        %v1476 = vadd.f32 %v1475, %v1473
        %1477 = vadd.xlane.f32.xlu0 %v1476
        %v1478 = vpop.xlane.xlu0 %1477
        %v1479 = vmul.f32 %v1478, %v1464
        %v1480 = vadd.f32 %v1479, 1e-05
        %v1481 = vrsqrt.pop %v1480
        %v1482 = vmul.f32 %v1466, %v1481
        %v1483 = vmul.f32 %v1467, %v1481
        %v1484 = vmul.f32 %v1468, %v1481
        %v1485 = vmul.f32 %v1469, %v1481
        %v1487 = vlaneseq
        %v1488 = vshrl.u32 %v1487, 7
        %v1489 = vsub.s32 0, %v1488
        %v1490 = vrot.slane %v1457, %v1489
        %v1491 = vlaneseq
        %v1492 = vshrl.u32 %v1491, 7
        %v1493 = vsub.s32 1, %v1492
        %v1494 = vrot.slane %v1457, %v1493
        %v1495 = vlaneseq
        %v1496 = vshrl.u32 %v1495, 7
        %v1497 = vsub.s32 2, %v1496
        %v1498 = vrot.slane %v1457, %v1497
        %v1499 = vlaneseq
        %v1500 = vshrl.u32 %v1499, 7
        %v1501 = vsub.s32 3, %v1500
        %v1502 = vrot.slane %v1457, %v1501
        %v1507 = vmul.f32 %v1482, %v1490
        %v1508 = vmul.f32 %v1483, %v1494
        %v1509 = vmul.f32 %v1484, %v1498
        %v1510 = vmul.f32 %v1485, %v1502
        %v1512 = vlaneseq
        %v1513 = vshrl.u32 %v1512, 7
        %v1514 = vsub.s32 0, %v1513
        %v1515 = vrot.slane %v1458, %v1514
        %v1516 = vlaneseq
        %v1517 = vshrl.u32 %v1516, 7
        %v1518 = vsub.s32 1, %v1517
        %v1519 = vrot.slane %v1458, %v1518
        %v1520 = vlaneseq
        %v1521 = vshrl.u32 %v1520, 7
        %v1522 = vsub.s32 2, %v1521
        %v1523 = vrot.slane %v1458, %v1522
        %v1524 = vlaneseq
        %v1525 = vshrl.u32 %v1524, 7
        %v1526 = vsub.s32 3, %v1525
        %v1527 = vrot.slane %v1458, %v1526
        %v1532 = vadd.f32 %v1507, %v1515
        %v1533 = vadd.f32 %v1508, %v1519
        %v1534 = vadd.f32 %v1509, %v1523
        %v1535 = vadd.f32 %v1510, %v1527
        %v1536 = vxor.u32 %v1532, 2147483648
        %v1537 = vxor.u32 %v1533, 2147483648
        %v1538 = vxor.u32 %v1534, 2147483648
        %v1539 = vxor.u32 %v1535, 2147483648
        %v1540 = vmul.f32 %v1536, 1.442695
        %v1541 = vpow.pop %v1540
        %v1542 = vmul.f32 %v1537, 1.442695
        %v1543 = vpow.pop %v1542
        %v1544 = vmul.f32 %v1538, 1.442695
        %v1545 = vpow.pop %v1544
        %v1546 = vmul.f32 %v1539, 1.442695
        %v1547 = vpow.pop %v1546
        %v1548 = vadd.f32 %v1541, 1.0
        %v1549 = vadd.f32 %v1543, 1.0
        %v1550 = vadd.f32 %v1545, 1.0
        %v1551 = vadd.f32 %v1547, 1.0
        %v1552 = vrcp.pop %v1548
        %v1553 = vmul.f32 1.0, %v1552
        %v1554 = vrcp.pop %v1549
        %v1555 = vmul.f32 1.0, %v1554
        %v1556 = vrcp.pop %v1550
        %v1557 = vmul.f32 1.0, %v1556
        %v1558 = vrcp.pop %v1551
        %v1559 = vmul.f32 1.0, %v1558
        %v1560 = vmul.f32 %v1532, %v1553
        %v1561 = vmul.f32 %v1533, %v1555
        %v1562 = vmul.f32 %v1534, %v1557
        %v1563 = vmul.f32 %v1535, %v1559
        %v1564 = vpack.c.bf16 %v1560, %v1560
        %v1565 = vpack.c.bf16 %v1561, %v1561
        %v1566 = vpack.c.bf16 %v1562, %v1562
        %v1567 = vpack.c.bf16 %v1563, %v1563
        %v1568 = vld [vmem:[%s11] sm:$0xf]
        %v1569 = vld [vmem:[%s11 + $0x4] sm:$0xf]
        %v1570 = vld [vmem:[%s11 + $0x8] sm:$0xf]
        %v1571 = vld [vmem:[%s11 + $0xc] sm:$0xf]
        %v1572 = vld [vmem:[%s11 + $0x10] sm:$0xf]
        %v1573 = vld [vmem:[%s11 + $0x14] sm:$0xf]
        %v1574 = vld [vmem:[%s11 + $0x18] sm:$0xf]
        %v1575 = vld [vmem:[%s11 + $0x1c] sm:$0xf]
        %v1576 = vld [vmem:[%s11 + $0x20] sm:$0xf]
        %v1577 = vld [vmem:[%s11 + $0x24] sm:$0xf]
        %v1578 = vld [vmem:[%s11 + $0x28] sm:$0xf]
        %v1579 = vld [vmem:[%s11 + $0x2c] sm:$0xf]
        %v1580 = vld [vmem:[%s11 + $0x30] sm:$0xf]
        %v1581 = vld [vmem:[%s11 + $0x34] sm:$0xf]
        %v1582 = vld [vmem:[%s11 + $0x38] sm:$0xf]
        %v1583 = vld [vmem:[%s11 + $0x3c] sm:$0xf]
        %v1584 = vld [vmem:[%s11 + $0x40] sm:$0xf]
        %v1585 = vld [vmem:[%s11 + $0x44] sm:$0xf]
        %v1586 = vld [vmem:[%s11 + $0x48] sm:$0xf]
        %v1587 = vld [vmem:[%s11 + $0x4c] sm:$0xf]
        %v1588 = vld [vmem:[%s11 + $0x50] sm:$0xf]
        %v1589 = vld [vmem:[%s11 + $0x54] sm:$0xf]
        %v1590 = vld [vmem:[%s11 + $0x58] sm:$0xf]
        %v1591 = vld [vmem:[%s11 + $0x5c] sm:$0xf]
        %v1592 = vld [vmem:[%s11 + $0x60] sm:$0xf]
        %v1593 = vld [vmem:[%s11 + $0x64] sm:$0xf]
        %v1594 = vld [vmem:[%s11 + $0x68] sm:$0xf]
        %v1595 = vld [vmem:[%s11 + $0x6c] sm:$0xf]
        %v1596 = vld [vmem:[%s11 + $0x70] sm:$0xf]
        %v1597 = vld [vmem:[%s11 + $0x74] sm:$0xf]
        %v1598 = vld [vmem:[%s11 + $0x78] sm:$0xf]
        %v1599 = vld [vmem:[%s11 + $0x7c] sm:$0xf]
        %v1600 = vld [vmem:[%s11 + $0x80] sm:$0xf]
        %v1601 = vld [vmem:[%s11 + $0x84] sm:$0xf]
        %v1602 = vld [vmem:[%s11 + $0x88] sm:$0xf]
        %v1603 = vld [vmem:[%s11 + $0x8c] sm:$0xf]
        %v1604 = vld [vmem:[%s11 + $0x90] sm:$0xf]
        %v1605 = vld [vmem:[%s11 + $0x94] sm:$0xf]
        %v1606 = vld [vmem:[%s11 + $0x98] sm:$0xf]
        %v1607 = vld [vmem:[%s11 + $0x9c] sm:$0xf]
        %v1608 = vld [vmem:[%s11 + $0xa0] sm:$0xf]
        %v1609 = vld [vmem:[%s11 + $0xa4] sm:$0xf]
        %v1610 = vld [vmem:[%s11 + $0xa8] sm:$0xf]
        %v1611 = vld [vmem:[%s11 + $0xac] sm:$0xf]
        %v1612 = vld [vmem:[%s11 + $0xb0] sm:$0xf]
        %v1613 = vld [vmem:[%s11 + $0xb4] sm:$0xf]
        %v1614 = vld [vmem:[%s11 + $0xb8] sm:$0xf]
        %v1615 = vld [vmem:[%s11 + $0xbc] sm:$0xf]
        %v1616 = vld [vmem:[%s11 + $0xc0] sm:$0xf]
        %v1617 = vld [vmem:[%s11 + $0xc4] sm:$0xf]
        %v1618 = vld [vmem:[%s11 + $0xc8] sm:$0xf]
        %v1619 = vld [vmem:[%s11 + $0xcc] sm:$0xf]
        %v1620 = vld [vmem:[%s11 + $0xd0] sm:$0xf]
        %v1621 = vld [vmem:[%s11 + $0xd4] sm:$0xf]
        %v1622 = vld [vmem:[%s11 + $0xd8] sm:$0xf]
        %v1623 = vld [vmem:[%s11 + $0xdc] sm:$0xf]
        %v1624 = vld [vmem:[%s11 + $0xe0] sm:$0xf]
        %v1625 = vld [vmem:[%s11 + $0xe4] sm:$0xf]
        %v1626 = vld [vmem:[%s11 + $0xe8] sm:$0xf]
        %v1627 = vld [vmem:[%s11 + $0xec] sm:$0xf]
        %v1628 = vld [vmem:[%s11 + $0xf0] sm:$0xf]
        %v1629 = vld [vmem:[%s11 + $0xf4] sm:$0xf]
        %v1630 = vld [vmem:[%s11 + $0xf8] sm:$0xf]
        %v1631 = vld [vmem:[%s11 + $0xfc] sm:$0xf]
        %v1632 = vld [vmem:[%s12] sm:$0x1]
        %v1634 = vlaneseq
        %v1635 = vshrl.u32 %v1634, 7
        %v1636 = vsub.s32 0, %v1635
        %v1637 = vrot.slane %v1632, %v1636
        %v1703 = vunpack.c.l.b16 %v1568
        %v1704 = vunpack.c.l.b16 %v1569
        %v1705 = vunpack.c.l.b16 %v1570
        %v1706 = vunpack.c.l.b16 %v1571
        %v1707 = vunpack.c.l.b16 %v1572
        %v1708 = vunpack.c.l.b16 %v1573
        %v1709 = vunpack.c.l.b16 %v1574
        %v1710 = vunpack.c.l.b16 %v1575
        %v1711 = vunpack.c.l.b16 %v1576
        %v1712 = vunpack.c.l.b16 %v1577
        %v1713 = vunpack.c.l.b16 %v1578
        %v1714 = vunpack.c.l.b16 %v1579
        %v1715 = vunpack.c.l.b16 %v1580
        %v1716 = vunpack.c.l.b16 %v1581
        %v1717 = vunpack.c.l.b16 %v1582
        %v1718 = vunpack.c.l.b16 %v1583
        %v1719 = vunpack.c.l.b16 %v1584
        %v1720 = vunpack.c.l.b16 %v1585
        %v1721 = vunpack.c.l.b16 %v1586
        %v1722 = vunpack.c.l.b16 %v1587
        %v1723 = vunpack.c.l.b16 %v1588
        %v1724 = vunpack.c.l.b16 %v1589
        %v1725 = vunpack.c.l.b16 %v1590
        %v1726 = vunpack.c.l.b16 %v1591
        %v1727 = vunpack.c.l.b16 %v1592
        %v1728 = vunpack.c.l.b16 %v1593
        %v1729 = vunpack.c.l.b16 %v1594
        %v1730 = vunpack.c.l.b16 %v1595
        %v1731 = vunpack.c.l.b16 %v1596
        %v1732 = vunpack.c.l.b16 %v1597
        %v1733 = vunpack.c.l.b16 %v1598
        %v1734 = vunpack.c.l.b16 %v1599
        %v1735 = vunpack.c.l.b16 %v1600
        %v1736 = vunpack.c.l.b16 %v1601
        %v1737 = vunpack.c.l.b16 %v1602
        %v1738 = vunpack.c.l.b16 %v1603
        %v1739 = vunpack.c.l.b16 %v1604
        %v1740 = vunpack.c.l.b16 %v1605
        %v1741 = vunpack.c.l.b16 %v1606
        %v1742 = vunpack.c.l.b16 %v1607
        %v1743 = vunpack.c.l.b16 %v1608
        %v1744 = vunpack.c.l.b16 %v1609
        %v1745 = vunpack.c.l.b16 %v1610
        %v1746 = vunpack.c.l.b16 %v1611
        %v1747 = vunpack.c.l.b16 %v1612
        %v1748 = vunpack.c.l.b16 %v1613
        %v1749 = vunpack.c.l.b16 %v1614
        %v1750 = vunpack.c.l.b16 %v1615
        %v1751 = vunpack.c.l.b16 %v1616
        %v1752 = vunpack.c.l.b16 %v1617
        %v1753 = vunpack.c.l.b16 %v1618
        %v1754 = vunpack.c.l.b16 %v1619
        %v1755 = vunpack.c.l.b16 %v1620
        %v1756 = vunpack.c.l.b16 %v1621
        %v1757 = vunpack.c.l.b16 %v1622
        %v1758 = vunpack.c.l.b16 %v1623
        %v1759 = vunpack.c.l.b16 %v1624
        %v1760 = vunpack.c.l.b16 %v1625
        %v1761 = vunpack.c.l.b16 %v1626
        %v1762 = vunpack.c.l.b16 %v1627
        %v1763 = vunpack.c.l.b16 %v1628
        %v1764 = vunpack.c.l.b16 %v1629
        %v1765 = vunpack.c.l.b16 %v1630
        %v1766 = vunpack.c.l.b16 %v1631
        %v1767 = vpack.c.b16 %v1704, %v1703
        %v1768 = vpack.c.b16 %v1706, %v1705
        %v1769 = vpack.c.b16 %v1708, %v1707
        %v1770 = vpack.c.b16 %v1710, %v1709
        %v1771 = vpack.c.b16 %v1712, %v1711
        %v1772 = vpack.c.b16 %v1714, %v1713
        %v1773 = vpack.c.b16 %v1716, %v1715
        %v1774 = vpack.c.b16 %v1718, %v1717
        %v1775 = vpack.c.b16 %v1720, %v1719
        %v1776 = vpack.c.b16 %v1722, %v1721
        %v1777 = vpack.c.b16 %v1724, %v1723
        %v1778 = vpack.c.b16 %v1726, %v1725
        %v1779 = vpack.c.b16 %v1728, %v1727
        %v1780 = vpack.c.b16 %v1730, %v1729
        %v1781 = vpack.c.b16 %v1732, %v1731
        %v1782 = vpack.c.b16 %v1734, %v1733
        %v1783 = vpack.c.b16 %v1736, %v1735
        %v1784 = vpack.c.b16 %v1738, %v1737
        %v1785 = vpack.c.b16 %v1740, %v1739
        %v1786 = vpack.c.b16 %v1742, %v1741
        %v1787 = vpack.c.b16 %v1744, %v1743
        %v1788 = vpack.c.b16 %v1746, %v1745
        %v1789 = vpack.c.b16 %v1748, %v1747
        %v1790 = vpack.c.b16 %v1750, %v1749
        %v1791 = vpack.c.b16 %v1752, %v1751
        %v1792 = vpack.c.b16 %v1754, %v1753
        %v1793 = vpack.c.b16 %v1756, %v1755
        %v1794 = vpack.c.b16 %v1758, %v1757
        %v1795 = vpack.c.b16 %v1760, %v1759
        %v1796 = vpack.c.b16 %v1762, %v1761
        %v1797 = vpack.c.b16 %v1764, %v1763
        %v1798 = vpack.c.b16 %v1766, %v1765
        %1831 = vmatprep.subr.bf16.mxu0 0
        %1832 = vmatpush1.bf16.msra.mxu0 %v1774
        %1833 = vmatprep.subr.bf16.mxu0 0
        %1834 = vmatpush1.bf16.msra.mxu0 %v1773
        %1835 = vmatprep.subr.bf16.mxu0 0
        %1836 = vmatpush1.bf16.msra.mxu0 %v1772
        %1837 = vmatprep.subr.bf16.mxu0 0
        %1838 = vmatpush1.bf16.msra.mxu0 %v1771
        %1839 = vmatprep.subr.bf16.mxu0 0
        %1840 = vmatpush1.bf16.msra.mxu0 %v1770
        %1841 = vmatprep.subr.bf16.mxu0 0
        %1842 = vmatpush1.bf16.msra.mxu0 %v1769
        %1843 = vmatprep.subr.bf16.mxu0 0
        %1844 = vmatpush1.bf16.msra.mxu0 %v1768
        %1845 = vmatprep.subr.bf16.mxu0 0
        %1846 = vmatpush1.bf16.msra.mxu0 %v1767
        %1847 = vmatprep.subr.bf16.mxu0 0
        %1848 = vmatpush2.bf16.msra.mxu0 %v1782
        %1849 = vmatprep.subr.bf16.mxu0 0
        %1850 = vmatpush2.bf16.msra.mxu0 %v1781
        %1851 = vmatprep.subr.bf16.mxu0 0
        %1852 = vmatpush2.bf16.msra.mxu0 %v1780
        %1853 = vmatprep.subr.bf16.mxu0 0
        %1854 = vmatpush2.bf16.msra.mxu0 %v1779
        %1855 = vmatprep.subr.bf16.mxu0 0
        %1856 = vmatpush2.bf16.msra.mxu0 %v1778
        %1857 = vmatprep.subr.bf16.mxu0 0
        %1858 = vmatpush2.bf16.msra.mxu0 %v1777
        %1859 = vmatprep.subr.bf16.mxu0 0
        %1860 = vmatpush2.bf16.msra.mxu0 %v1776
        %1861 = vmatprep.subr.bf16.mxu0 0
        %1862 = vmatpush2.bf16.msra.mxu0 %v1775
        %1863 = vmatprep.mubr.bf16.mxu0 %v1565
        %1864 = vmatmul.mubr.bf16.gmra.mxu0 %v1564
        %v1865 = vpop.f32.mrf.mxu0
        %v1866 = vadd.f32 %v1637, %v1865
        %v1867 = vpop.f32.mrf.mxu0
        %v1868 = vpop.f32.mrf.mxu0
        %v1869 = vpop.f32.mrf.mxu0
        %1870 = vdwg.mxu0
        %1871 = vmatprep.subr.bf16.mxu0 0
        %1872 = vmatpush1.bf16.msra.mxu0 %v1790
        %1873 = vmatprep.subr.bf16.mxu0 0
        %1874 = vmatpush1.bf16.msra.mxu0 %v1789
        %1875 = vmatprep.subr.bf16.mxu0 0
        %1876 = vmatpush1.bf16.msra.mxu0 %v1788
        %1877 = vmatprep.subr.bf16.mxu0 0
        %1878 = vmatpush1.bf16.msra.mxu0 %v1787
        %1879 = vmatprep.subr.bf16.mxu0 0
        %1880 = vmatpush1.bf16.msra.mxu0 %v1786
        %1881 = vmatprep.subr.bf16.mxu0 0
        %1882 = vmatpush1.bf16.msra.mxu0 %v1785
        %1883 = vmatprep.subr.bf16.mxu0 0
        %1884 = vmatpush1.bf16.msra.mxu0 %v1784
        %1885 = vmatprep.subr.bf16.mxu0 0
        %1886 = vmatpush1.bf16.msra.mxu0 %v1783
        %1887 = vmatprep.subr.bf16.mxu0 0
        %1888 = vmatpush2.bf16.msra.mxu0 %v1798
        %1889 = vmatprep.subr.bf16.mxu0 0
        %1890 = vmatpush2.bf16.msra.mxu0 %v1797
        %1891 = vmatprep.subr.bf16.mxu0 0
        %1892 = vmatpush2.bf16.msra.mxu0 %v1796
        %1893 = vmatprep.subr.bf16.mxu0 0
        %1894 = vmatpush2.bf16.msra.mxu0 %v1795
        %1895 = vmatprep.subr.bf16.mxu0 0
        %1896 = vmatpush2.bf16.msra.mxu0 %v1794
        %1897 = vmatprep.subr.bf16.mxu0 0
        %1898 = vmatpush2.bf16.msra.mxu0 %v1793
        %1899 = vmatprep.subr.bf16.mxu0 0
        %1900 = vmatpush2.bf16.msra.mxu0 %v1792
        %1901 = vmatprep.subr.bf16.mxu0 0
        %1902 = vmatpush2.bf16.msra.mxu0 %v1791
        %1903 = vmatprep.mubr.bf16.mxu0 %v1567
        %1904 = vmatmul.mubr.bf16.gmra.mxu0 %v1566
        %v1905 = vpop.f32.mrf.mxu0
        %v1906 = vadd.f32 %v1866, %v1905
        %v1907 = vpop.f32.mrf.mxu0
        %v1908 = vpop.f32.mrf.mxu0
        %v1909 = vpop.f32.mrf.mxu0
        %1910 = vdwg.mxu0
        %v1911 = vld [vmem:[%s805] sm:$0xff]
        %v1912 = vmul.f32 %v1906, %v1911
        %v1913 = vpack.c.bf16 %v1912, %v1912
        %v1914 = vld [vmem:[%s13] sm:$0xff]
        %v1915 = vld [vmem:[%s13 + $0x8] sm:$0xff]
        %v1916 = vld [vmem:[%s13 + $0x10] sm:$0xff]
        %v1917 = vld [vmem:[%s13 + $0x18] sm:$0xff]
        %v1918 = vld [vmem:[%s14] sm:$0xf]
        %v1920 = vlaneseq
        %v1921 = vshrl.u32 %v1920, 7
        %v1922 = vsub.s32 0, %v1921
        %v1923 = vrot.slane %v1918, %v1922
        %v1924 = vlaneseq
        %v1925 = vshrl.u32 %v1924, 7
        %v1926 = vsub.s32 1, %v1925
        %v1927 = vrot.slane %v1918, %v1926
        %v1928 = vlaneseq
        %v1929 = vshrl.u32 %v1928, 7
        %v1930 = vsub.s32 2, %v1929
        %v1931 = vrot.slane %v1918, %v1930
        %v1932 = vlaneseq
        %v1933 = vshrl.u32 %v1932, 7
        %v1934 = vsub.s32 3, %v1933
        %v1935 = vrot.slane %v1918, %v1934
        %v1944 = vunpack.c.l.b16 %v1914
        %v1945 = vunpack.c.h.b16 %v1914
        %v1946 = vunpack.c.l.b16 %v1915
        %v1947 = vunpack.c.h.b16 %v1915
        %v1948 = vunpack.c.l.b16 %v1916
        %v1949 = vunpack.c.h.b16 %v1916
        %v1950 = vunpack.c.l.b16 %v1917
        %v1951 = vunpack.c.h.b16 %v1917
        %v1952 = vpack.c.b16 %v1948, %v1944
        %v1953 = vpack.c.b16 %v1949, %v1945
        %v1954 = vpack.c.b16 %v1950, %v1946
        %v1955 = vpack.c.b16 %v1951, %v1947
        %vm1960 = vcmask 130048
        %v1962 = vsel %vm1960, %v1913, 0
        %1964 = vmatprep.subr.bf16.mxu0 0
        %1965 = vmatpush1.bf16.msra.mxu0 0
        %1966 = vmatprep.subr.bf16.mxu0 0
        %1967 = vmatpush1.bf16.msra.mxu0 0
        %1968 = vmatprep.subr.bf16.mxu0 0
        %1969 = vmatpush1.bf16.msra.mxu0 0
        %1970 = vmatprep.subr.bf16.mxu0 0
        %1971 = vmatpush1.bf16.msra.mxu0 0
        %1972 = vmatprep.subr.bf16.mxu0 0
        %1973 = vmatpush1.bf16.msra.mxu0 0
        %1974 = vmatprep.subr.bf16.mxu0 0
        %1975 = vmatpush1.bf16.msra.mxu0 0
        %1976 = vmatprep.subr.bf16.mxu0 0
        %1977 = vmatpush1.bf16.msra.mxu0 0
        %1978 = vmatprep.subr.bf16.mxu0 %v1953
        %1979 = vmatpush1.bf16.msra.mxu0 %v1952
        %1980 = vmatprep.subr.bf16.mxu0 0
        %1981 = vmatpush2.bf16.msra.mxu0 0
        %1982 = vmatprep.subr.bf16.mxu0 0
        %1983 = vmatpush2.bf16.msra.mxu0 0
        %1984 = vmatprep.subr.bf16.mxu0 0
        %1985 = vmatpush2.bf16.msra.mxu0 0
        %1986 = vmatprep.subr.bf16.mxu0 0
        %1987 = vmatpush2.bf16.msra.mxu0 0
        %1988 = vmatprep.subr.bf16.mxu0 0
        %1989 = vmatpush2.bf16.msra.mxu0 0
        %1990 = vmatprep.subr.bf16.mxu0 0
        %1991 = vmatpush2.bf16.msra.mxu0 0
        %1992 = vmatprep.subr.bf16.mxu0 0
        %1993 = vmatpush2.bf16.msra.mxu0 0
        %1994 = vmatprep.subr.bf16.mxu0 0
        %1995 = vmatpush2.bf16.msra.mxu0 0
        %1996 = vmatprep.mubr.bf16.mxu0 0
        %1997 = vmatmul.mubr.bf16.gmra.mxu0 %v1962
        %v1998 = vpop.f32.mrf.mxu0
        %v1999 = vadd.f32 %v1923, %v1998
        %v2000 = vpop.f32.mrf.mxu0
        %v2001 = vadd.f32 %v1927, %v2000
        %v2002 = vpop.f32.mrf.mxu0
        %v2003 = vpop.f32.mrf.mxu0
        %2004 = vdwg.mxu0
        %2005 = vmatprep.subr.bf16.mxu0 0
        %2006 = vmatpush1.bf16.msra.mxu0 0
        %2007 = vmatprep.subr.bf16.mxu0 0
        %2008 = vmatpush1.bf16.msra.mxu0 0
        %2009 = vmatprep.subr.bf16.mxu0 0
        %2010 = vmatpush1.bf16.msra.mxu0 0
        %2011 = vmatprep.subr.bf16.mxu0 0
        %2012 = vmatpush1.bf16.msra.mxu0 0
        %2013 = vmatprep.subr.bf16.mxu0 0
        %2014 = vmatpush1.bf16.msra.mxu0 0
        %2015 = vmatprep.subr.bf16.mxu0 0
        %2016 = vmatpush1.bf16.msra.mxu0 0
        %2017 = vmatprep.subr.bf16.mxu0 0
        %2018 = vmatpush1.bf16.msra.mxu0 0
        %2019 = vmatprep.subr.bf16.mxu0 %v1955
        %2020 = vmatpush1.bf16.msra.mxu0 %v1954
        %2021 = vmatprep.subr.bf16.mxu0 0
        %2022 = vmatpush2.bf16.msra.mxu0 0
        %2023 = vmatprep.subr.bf16.mxu0 0
        %2024 = vmatpush2.bf16.msra.mxu0 0
        %2025 = vmatprep.subr.bf16.mxu0 0
        %2026 = vmatpush2.bf16.msra.mxu0 0
        %2027 = vmatprep.subr.bf16.mxu0 0
        %2028 = vmatpush2.bf16.msra.mxu0 0
        %2029 = vmatprep.subr.bf16.mxu0 0
        %2030 = vmatpush2.bf16.msra.mxu0 0
        %2031 = vmatprep.subr.bf16.mxu0 0
        %2032 = vmatpush2.bf16.msra.mxu0 0
        %2033 = vmatprep.subr.bf16.mxu0 0
        %2034 = vmatpush2.bf16.msra.mxu0 0
        %2035 = vmatprep.subr.bf16.mxu0 0
        %2036 = vmatpush2.bf16.msra.mxu0 0
        %2037 = vmatprep.mubr.bf16.mxu0 0
        %2038 = vmatmul.mubr.bf16.gmra.mxu0 %v1962
        %v2039 = vpop.f32.mrf.mxu0
        %v2040 = vadd.f32 %v1931, %v2039
        %v2041 = vpop.f32.mrf.mxu0
        %v2042 = vadd.f32 %v1935, %v2041
        %v2043 = vpop.f32.mrf.mxu0
        %v2044 = vpop.f32.mrf.mxu0
        %2045 = vdwg.mxu0
        %v2046 = vld [vmem:[%s15] sm:$0xf]
        %v2047 = vld [vmem:[%s16] sm:$0xf]
        %v2048 = vadd.f32 %v1999, %v2001
        %v2049 = vadd.f32 %v2048, %v2040
        %v2050 = vadd.f32 %v2049, %v2042
        %2051 = vadd.xlane.f32.xlu0 %v2050
        %v2052 = vpop.xlane.xlu0 %2051
        %v2053 = vmul.f32 %v2052, %v1464
        %v2054 = vsub.f32 %v1999, %v2053
        %v2055 = vsub.f32 %v2001, %v2053
        %v2056 = vsub.f32 %v2040, %v2053
        %v2057 = vsub.f32 %v2042, %v2053
        %v2058 = vmul.f32 %v2054, %v2054
        %v2059 = vmul.f32 %v2055, %v2055
        %v2060 = vmul.f32 %v2056, %v2056
        %v2061 = vmul.f32 %v2057, %v2057
        %v2062 = vadd.f32 %v2058, %v2059
        %v2063 = vadd.f32 %v2062, %v2060
        %v2064 = vadd.f32 %v2063, %v2061
        %2065 = vadd.xlane.f32.xlu0 %v2064
        %v2066 = vpop.xlane.xlu0 %2065
        %v2067 = vmul.f32 %v2066, %v1464
        %v2068 = vadd.f32 %v2067, 1e-05
        %v2069 = vrsqrt.pop %v2068
        %v2070 = vmul.f32 %v2054, %v2069
        %v2071 = vmul.f32 %v2055, %v2069
        %v2072 = vmul.f32 %v2056, %v2069
        %v2073 = vmul.f32 %v2057, %v2069
        %v2075 = vlaneseq
        %v2076 = vshrl.u32 %v2075, 7
        %v2077 = vsub.s32 0, %v2076
        %v2078 = vrot.slane %v2046, %v2077
        %v2079 = vlaneseq
        %v2080 = vshrl.u32 %v2079, 7
        %v2081 = vsub.s32 1, %v2080
        %v2082 = vrot.slane %v2046, %v2081
        %v2083 = vlaneseq
        %v2084 = vshrl.u32 %v2083, 7
        %v2085 = vsub.s32 2, %v2084
        %v2086 = vrot.slane %v2046, %v2085
        %v2087 = vlaneseq
        %v2088 = vshrl.u32 %v2087, 7
        %v2089 = vsub.s32 3, %v2088
        %v2090 = vrot.slane %v2046, %v2089
        %v2095 = vmul.f32 %v2070, %v2078
        %v2096 = vmul.f32 %v2071, %v2082
        %v2097 = vmul.f32 %v2072, %v2086
        %v2098 = vmul.f32 %v2073, %v2090
        %v2100 = vlaneseq
        %v2101 = vshrl.u32 %v2100, 7
        %v2102 = vsub.s32 0, %v2101
        %v2103 = vrot.slane %v2047, %v2102
        %v2104 = vlaneseq
        %v2105 = vshrl.u32 %v2104, 7
        %v2106 = vsub.s32 1, %v2105
        %v2107 = vrot.slane %v2047, %v2106
        %v2108 = vlaneseq
        %v2109 = vshrl.u32 %v2108, 7
        %v2110 = vsub.s32 2, %v2109
        %v2111 = vrot.slane %v2047, %v2110
        %v2112 = vlaneseq
        %v2113 = vshrl.u32 %v2112, 7
        %v2114 = vsub.s32 3, %v2113
        %v2115 = vrot.slane %v2047, %v2114
        %v2120 = vadd.f32 %v2095, %v2103
        %v2121 = vadd.f32 %v2096, %v2107
        %v2122 = vadd.f32 %v2097, %v2111
        %v2123 = vadd.f32 %v2098, %v2115
        %v2124 = vxor.u32 %v2120, 2147483648
        %v2125 = vxor.u32 %v2121, 2147483648
        %v2126 = vxor.u32 %v2122, 2147483648
        %v2127 = vxor.u32 %v2123, 2147483648
        %v2128 = vmul.f32 %v2124, 1.442695
        %v2129 = vpow.pop %v2128
        %v2130 = vmul.f32 %v2125, 1.442695
        %v2131 = vpow.pop %v2130
        %v2132 = vmul.f32 %v2126, 1.442695
        %v2133 = vpow.pop %v2132
        %v2134 = vmul.f32 %v2127, 1.442695
        %v2135 = vpow.pop %v2134
        %v2136 = vadd.f32 %v2129, 1.0
        %v2137 = vadd.f32 %v2131, 1.0
        %v2138 = vadd.f32 %v2133, 1.0
        %v2139 = vadd.f32 %v2135, 1.0
        %v2140 = vrcp.pop %v2136
        %v2141 = vmul.f32 1.0, %v2140
        %v2142 = vrcp.pop %v2137
        %v2143 = vmul.f32 1.0, %v2142
        %v2144 = vrcp.pop %v2138
        %v2145 = vmul.f32 1.0, %v2144
        %v2146 = vrcp.pop %v2139
        %v2147 = vmul.f32 1.0, %v2146
        %v2148 = vmul.f32 %v2120, %v2141
        %v2149 = vmul.f32 %v2121, %v2143
        %v2150 = vmul.f32 %v2122, %v2145
        %v2151 = vmul.f32 %v2123, %v2147
        %v2152 = vpack.c.bf16 %v2148, %v2148
        %v2153 = vpack.c.bf16 %v2149, %v2149
        %v2154 = vpack.c.bf16 %v2150, %v2150
        %v2155 = vpack.c.bf16 %v2151, %v2151
        %v2156 = vld [vmem:[%s17] sm:$0xff]
        %v2157 = vld [vmem:[%s17 + $0x8] sm:$0xff]
        %v2158 = vld [vmem:[%s17 + $0x10] sm:$0xff]
        %v2159 = vld [vmem:[%s17 + $0x18] sm:$0xff]
        %v2160 = vld [vmem:[%s17 + $0x20] sm:$0xff]
        %v2161 = vld [vmem:[%s17 + $0x28] sm:$0xff]
        %v2162 = vld [vmem:[%s17 + $0x30] sm:$0xff]
        %v2163 = vld [vmem:[%s17 + $0x38] sm:$0xff]
        %v2164 = vld [vmem:[%s17 + $0x40] sm:$0xff]
        %v2165 = vld [vmem:[%s17 + $0x48] sm:$0xff]
        %v2166 = vld [vmem:[%s17 + $0x50] sm:$0xff]
        %v2167 = vld [vmem:[%s17 + $0x58] sm:$0xff]
        %v2168 = vld [vmem:[%s17 + $0x60] sm:$0xff]
        %v2169 = vld [vmem:[%s17 + $0x68] sm:$0xff]
        %v2170 = vld [vmem:[%s17 + $0x70] sm:$0xff]
        %v2171 = vld [vmem:[%s17 + $0x78] sm:$0xff]
        %v2172 = vld [vmem:[%s17 + $0x80] sm:$0xff]
        %v2173 = vld [vmem:[%s17 + $0x88] sm:$0xff]
        %v2174 = vld [vmem:[%s17 + $0x90] sm:$0xff]
        %v2175 = vld [vmem:[%s17 + $0x98] sm:$0xff]
        %v2176 = vld [vmem:[%s17 + $0xa0] sm:$0xff]
        %v2177 = vld [vmem:[%s17 + $0xa8] sm:$0xff]
        %v2178 = vld [vmem:[%s17 + $0xb0] sm:$0xff]
        %v2179 = vld [vmem:[%s17 + $0xb8] sm:$0xff]
        %v2180 = vld [vmem:[%s17 + $0xc0] sm:$0xff]
        %v2181 = vld [vmem:[%s17 + $0xc8] sm:$0xff]
        %v2182 = vld [vmem:[%s17 + $0xd0] sm:$0xff]
        %v2183 = vld [vmem:[%s17 + $0xd8] sm:$0xff]
        %v2184 = vld [vmem:[%s17 + $0xe0] sm:$0xff]
        %v2185 = vld [vmem:[%s17 + $0xe8] sm:$0xff]
        %v2186 = vld [vmem:[%s17 + $0xf0] sm:$0xff]
        %v2187 = vld [vmem:[%s17 + $0xf8] sm:$0xff]
        %v2188 = vld [vmem:[%s17 + $0x100] sm:$0xff]
        %v2189 = vld [vmem:[%s17 + $0x108] sm:$0xff]
        %v2190 = vld [vmem:[%s17 + $0x110] sm:$0xff]
        %v2191 = vld [vmem:[%s17 + $0x118] sm:$0xff]
        %v2192 = vld [vmem:[%s17 + $0x120] sm:$0xff]
        %v2193 = vld [vmem:[%s17 + $0x128] sm:$0xff]
        %v2194 = vld [vmem:[%s17 + $0x130] sm:$0xff]
        %v2195 = vld [vmem:[%s17 + $0x138] sm:$0xff]
        %v2196 = vld [vmem:[%s17 + $0x140] sm:$0xff]
        %v2197 = vld [vmem:[%s17 + $0x148] sm:$0xff]
        %v2198 = vld [vmem:[%s17 + $0x150] sm:$0xff]
        %v2199 = vld [vmem:[%s17 + $0x158] sm:$0xff]
        %v2200 = vld [vmem:[%s17 + $0x160] sm:$0xff]
        %v2201 = vld [vmem:[%s17 + $0x168] sm:$0xff]
        %v2202 = vld [vmem:[%s17 + $0x170] sm:$0xff]
        %v2203 = vld [vmem:[%s17 + $0x178] sm:$0xff]
        %v2204 = vld [vmem:[%s17 + $0x180] sm:$0xff]
        %v2205 = vld [vmem:[%s17 + $0x188] sm:$0xff]
        %v2206 = vld [vmem:[%s17 + $0x190] sm:$0xff]
        %v2207 = vld [vmem:[%s17 + $0x198] sm:$0xff]
        %v2208 = vld [vmem:[%s17 + $0x1a0] sm:$0xff]
        %v2209 = vld [vmem:[%s17 + $0x1a8] sm:$0xff]
        %v2210 = vld [vmem:[%s17 + $0x1b0] sm:$0xff]
        %v2211 = vld [vmem:[%s17 + $0x1b8] sm:$0xff]
        %v2212 = vld [vmem:[%s17 + $0x1c0] sm:$0xff]
        %v2213 = vld [vmem:[%s17 + $0x1c8] sm:$0xff]
        %v2214 = vld [vmem:[%s17 + $0x1d0] sm:$0xff]
        %v2215 = vld [vmem:[%s17 + $0x1d8] sm:$0xff]
        %v2216 = vld [vmem:[%s17 + $0x1e0] sm:$0xff]
        %v2217 = vld [vmem:[%s17 + $0x1e8] sm:$0xff]
        %v2218 = vld [vmem:[%s17 + $0x1f0] sm:$0xff]
        %v2219 = vld [vmem:[%s17 + $0x1f8] sm:$0xff]
        %v2220 = vld [vmem:[%s17 + $0x200] sm:$0xff]
        %v2221 = vld [vmem:[%s17 + $0x208] sm:$0xff]
        %v2222 = vld [vmem:[%s17 + $0x210] sm:$0xff]
        %v2223 = vld [vmem:[%s17 + $0x218] sm:$0xff]
        %v2224 = vld [vmem:[%s17 + $0x220] sm:$0xff]
        %v2225 = vld [vmem:[%s17 + $0x228] sm:$0xff]
        %v2226 = vld [vmem:[%s17 + $0x230] sm:$0xff]
        %v2227 = vld [vmem:[%s17 + $0x238] sm:$0xff]
        %v2228 = vld [vmem:[%s17 + $0x240] sm:$0xff]
        %v2229 = vld [vmem:[%s17 + $0x248] sm:$0xff]
        %v2230 = vld [vmem:[%s17 + $0x250] sm:$0xff]
        %v2231 = vld [vmem:[%s17 + $0x258] sm:$0xff]
        %v2232 = vld [vmem:[%s17 + $0x260] sm:$0xff]
        %v2233 = vld [vmem:[%s17 + $0x268] sm:$0xff]
        %v2234 = vld [vmem:[%s17 + $0x270] sm:$0xff]
        %v2235 = vld [vmem:[%s17 + $0x278] sm:$0xff]
        %v2236 = vld [vmem:[%s17 + $0x280] sm:$0xff]
        %v2237 = vld [vmem:[%s17 + $0x288] sm:$0xff]
        %v2238 = vld [vmem:[%s17 + $0x290] sm:$0xff]
        %v2239 = vld [vmem:[%s17 + $0x298] sm:$0xff]
        %v2240 = vld [vmem:[%s17 + $0x2a0] sm:$0xff]
        %v2241 = vld [vmem:[%s17 + $0x2a8] sm:$0xff]
        %v2242 = vld [vmem:[%s17 + $0x2b0] sm:$0xff]
        %v2243 = vld [vmem:[%s17 + $0x2b8] sm:$0xff]
        %v2244 = vld [vmem:[%s17 + $0x2c0] sm:$0xff]
        %v2245 = vld [vmem:[%s17 + $0x2c8] sm:$0xff]
        %v2246 = vld [vmem:[%s17 + $0x2d0] sm:$0xff]
        %v2247 = vld [vmem:[%s17 + $0x2d8] sm:$0xff]
        %v2248 = vld [vmem:[%s17 + $0x2e0] sm:$0xff]
        %v2249 = vld [vmem:[%s17 + $0x2e8] sm:$0xff]
        %v2250 = vld [vmem:[%s17 + $0x2f0] sm:$0xff]
        %v2251 = vld [vmem:[%s17 + $0x2f8] sm:$0xff]
        %v2252 = vld [vmem:[%s17 + $0x300] sm:$0xff]
        %v2253 = vld [vmem:[%s17 + $0x308] sm:$0xff]
        %v2254 = vld [vmem:[%s17 + $0x310] sm:$0xff]
        %v2255 = vld [vmem:[%s17 + $0x318] sm:$0xff]
        %v2256 = vld [vmem:[%s17 + $0x320] sm:$0xff]
        %v2257 = vld [vmem:[%s17 + $0x328] sm:$0xff]
        %v2258 = vld [vmem:[%s17 + $0x330] sm:$0xff]
        %v2259 = vld [vmem:[%s17 + $0x338] sm:$0xff]
        %v2260 = vld [vmem:[%s17 + $0x340] sm:$0xff]
        %v2261 = vld [vmem:[%s17 + $0x348] sm:$0xff]
        %v2262 = vld [vmem:[%s17 + $0x350] sm:$0xff]
        %v2263 = vld [vmem:[%s17 + $0x358] sm:$0xff]
        %v2264 = vld [vmem:[%s17 + $0x360] sm:$0xff]
        %v2265 = vld [vmem:[%s17 + $0x368] sm:$0xff]
        %v2266 = vld [vmem:[%s17 + $0x370] sm:$0xff]
        %v2267 = vld [vmem:[%s17 + $0x378] sm:$0xff]
        %v2268 = vld [vmem:[%s17 + $0x380] sm:$0xff]
        %v2269 = vld [vmem:[%s17 + $0x388] sm:$0xff]
        %v2270 = vld [vmem:[%s17 + $0x390] sm:$0xff]
        %v2271 = vld [vmem:[%s17 + $0x398] sm:$0xff]
        %v2272 = vld [vmem:[%s17 + $0x3a0] sm:$0xff]
        %v2273 = vld [vmem:[%s17 + $0x3a8] sm:$0xff]
        %v2274 = vld [vmem:[%s17 + $0x3b0] sm:$0xff]
        %v2275 = vld [vmem:[%s17 + $0x3b8] sm:$0xff]
        %v2276 = vld [vmem:[%s17 + $0x3c0] sm:$0xff]
        %v2277 = vld [vmem:[%s17 + $0x3c8] sm:$0xff]
        %v2278 = vld [vmem:[%s17 + $0x3d0] sm:$0xff]
        %v2279 = vld [vmem:[%s17 + $0x3d8] sm:$0xff]
        %v2280 = vld [vmem:[%s17 + $0x3e0] sm:$0xff]
        %v2281 = vld [vmem:[%s17 + $0x3e8] sm:$0xff]
        %v2282 = vld [vmem:[%s17 + $0x3f0] sm:$0xff]
        %v2283 = vld [vmem:[%s17 + $0x3f8] sm:$0xff]
        %v2284 = vld [vmem:[%s17 + $0x400] sm:$0xff]
        %v2285 = vld [vmem:[%s17 + $0x408] sm:$0xff]
        %v2286 = vld [vmem:[%s17 + $0x410] sm:$0xff]
        %v2287 = vld [vmem:[%s17 + $0x418] sm:$0xff]
        %v2288 = vld [vmem:[%s17 + $0x420] sm:$0xff]
        %v2289 = vld [vmem:[%s17 + $0x428] sm:$0xff]
        %v2290 = vld [vmem:[%s17 + $0x430] sm:$0xff]
        %v2291 = vld [vmem:[%s17 + $0x438] sm:$0xff]
        %v2292 = vld [vmem:[%s17 + $0x440] sm:$0xff]
        %v2293 = vld [vmem:[%s17 + $0x448] sm:$0xff]
        %v2294 = vld [vmem:[%s17 + $0x450] sm:$0xff]
        %v2295 = vld [vmem:[%s17 + $0x458] sm:$0xff]
        %v2296 = vld [vmem:[%s17 + $0x460] sm:$0xff]
        %v2297 = vld [vmem:[%s17 + $0x468] sm:$0xff]
        %v2298 = vld [vmem:[%s17 + $0x470] sm:$0xff]
        %v2299 = vld [vmem:[%s17 + $0x478] sm:$0xff]
        %v2300 = vld [vmem:[%s17 + $0x480] sm:$0xff]
        %v2301 = vld [vmem:[%s17 + $0x488] sm:$0xff]
        %v2302 = vld [vmem:[%s17 + $0x490] sm:$0xff]
        %v2303 = vld [vmem:[%s17 + $0x498] sm:$0xff]
        %v2304 = vld [vmem:[%s17 + $0x4a0] sm:$0xff]
        %v2305 = vld [vmem:[%s17 + $0x4a8] sm:$0xff]
        %v2306 = vld [vmem:[%s17 + $0x4b0] sm:$0xff]
        %v2307 = vld [vmem:[%s17 + $0x4b8] sm:$0xff]
        %v2308 = vld [vmem:[%s17 + $0x4c0] sm:$0xff]
        %v2309 = vld [vmem:[%s17 + $0x4c8] sm:$0xff]
        %v2310 = vld [vmem:[%s17 + $0x4d0] sm:$0xff]
        %v2311 = vld [vmem:[%s17 + $0x4d8] sm:$0xff]
        %v2312 = vld [vmem:[%s17 + $0x4e0] sm:$0xff]
        %v2313 = vld [vmem:[%s17 + $0x4e8] sm:$0xff]
        %v2314 = vld [vmem:[%s17 + $0x4f0] sm:$0xff]
        %v2315 = vld [vmem:[%s17 + $0x4f8] sm:$0xff]
        %v2316 = vld [vmem:[%s17 + $0x500] sm:$0xff]
        %v2317 = vld [vmem:[%s17 + $0x508] sm:$0xff]
        %v2318 = vld [vmem:[%s17 + $0x510] sm:$0xff]
        %v2319 = vld [vmem:[%s17 + $0x518] sm:$0xff]
        %v2320 = vld [vmem:[%s17 + $0x520] sm:$0xff]
        %v2321 = vld [vmem:[%s17 + $0x528] sm:$0xff]
        %v2322 = vld [vmem:[%s17 + $0x530] sm:$0xff]
        %v2323 = vld [vmem:[%s17 + $0x538] sm:$0xff]
        %v2324 = vld [vmem:[%s17 + $0x540] sm:$0xff]
        %v2325 = vld [vmem:[%s17 + $0x548] sm:$0xff]
        %v2326 = vld [vmem:[%s17 + $0x550] sm:$0xff]
        %v2327 = vld [vmem:[%s17 + $0x558] sm:$0xff]
        %v2328 = vld [vmem:[%s17 + $0x560] sm:$0xff]
        %v2329 = vld [vmem:[%s17 + $0x568] sm:$0xff]
        %v2330 = vld [vmem:[%s17 + $0x570] sm:$0xff]
        %v2331 = vld [vmem:[%s17 + $0x578] sm:$0xff]
        %v2332 = vld [vmem:[%s17 + $0x580] sm:$0xff]
        %v2333 = vld [vmem:[%s17 + $0x588] sm:$0xff]
        %v2334 = vld [vmem:[%s17 + $0x590] sm:$0xff]
        %v2335 = vld [vmem:[%s17 + $0x598] sm:$0xff]
        %v2336 = vld [vmem:[%s17 + $0x5a0] sm:$0xff]
        %v2337 = vld [vmem:[%s17 + $0x5a8] sm:$0xff]
        %v2338 = vld [vmem:[%s17 + $0x5b0] sm:$0xff]
        %v2339 = vld [vmem:[%s17 + $0x5b8] sm:$0xff]
        %v2340 = vld [vmem:[%s17 + $0x5c0] sm:$0xff]
        %v2341 = vld [vmem:[%s17 + $0x5c8] sm:$0xff]
        %v2342 = vld [vmem:[%s17 + $0x5d0] sm:$0xff]
        %v2343 = vld [vmem:[%s17 + $0x5d8] sm:$0xff]
        %v2344 = vld [vmem:[%s17 + $0x5e0] sm:$0xff]
        %v2345 = vld [vmem:[%s17 + $0x5e8] sm:$0xff]
        %v2346 = vld [vmem:[%s17 + $0x5f0] sm:$0xff]
        %v2347 = vld [vmem:[%s17 + $0x5f8] sm:$0xff]
        %v2348 = vld [vmem:[%s17 + $0x600] sm:$0xff]
        %v2349 = vld [vmem:[%s17 + $0x608] sm:$0xff]
        %v2350 = vld [vmem:[%s17 + $0x610] sm:$0xff]
        %v2351 = vld [vmem:[%s17 + $0x618] sm:$0xff]
        %v2352 = vld [vmem:[%s17 + $0x620] sm:$0xff]
        %v2353 = vld [vmem:[%s17 + $0x628] sm:$0xff]
        %v2354 = vld [vmem:[%s17 + $0x630] sm:$0xff]
        %v2355 = vld [vmem:[%s17 + $0x638] sm:$0xff]
        %v2356 = vld [vmem:[%s17 + $0x640] sm:$0xff]
        %v2357 = vld [vmem:[%s17 + $0x648] sm:$0xff]
        %v2358 = vld [vmem:[%s17 + $0x650] sm:$0xff]
        %v2359 = vld [vmem:[%s17 + $0x658] sm:$0xff]
        %v2360 = vld [vmem:[%s17 + $0x660] sm:$0xff]
        %v2361 = vld [vmem:[%s17 + $0x668] sm:$0xff]
        %v2362 = vld [vmem:[%s17 + $0x670] sm:$0xff]
        %v2363 = vld [vmem:[%s17 + $0x678] sm:$0xff]
        %v2364 = vld [vmem:[%s17 + $0x680] sm:$0xff]
        %v2365 = vld [vmem:[%s17 + $0x688] sm:$0xff]
        %v2366 = vld [vmem:[%s17 + $0x690] sm:$0xff]
        %v2367 = vld [vmem:[%s17 + $0x698] sm:$0xff]
        %v2368 = vld [vmem:[%s17 + $0x6a0] sm:$0xff]
        %v2369 = vld [vmem:[%s17 + $0x6a8] sm:$0xff]
        %v2370 = vld [vmem:[%s17 + $0x6b0] sm:$0xff]
        %v2371 = vld [vmem:[%s17 + $0x6b8] sm:$0xff]
        %v2372 = vld [vmem:[%s17 + $0x6c0] sm:$0xff]
        %v2373 = vld [vmem:[%s17 + $0x6c8] sm:$0xff]
        %v2374 = vld [vmem:[%s17 + $0x6d0] sm:$0xff]
        %v2375 = vld [vmem:[%s17 + $0x6d8] sm:$0xff]
        %v2376 = vld [vmem:[%s17 + $0x6e0] sm:$0xff]
        %v2377 = vld [vmem:[%s17 + $0x6e8] sm:$0xff]
        %v2378 = vld [vmem:[%s17 + $0x6f0] sm:$0xff]
        %v2379 = vld [vmem:[%s17 + $0x6f8] sm:$0xff]
        %v2380 = vld [vmem:[%s17 + $0x700] sm:$0xff]
        %v2381 = vld [vmem:[%s17 + $0x708] sm:$0xff]
        %v2382 = vld [vmem:[%s17 + $0x710] sm:$0xff]
        %v2383 = vld [vmem:[%s17 + $0x718] sm:$0xff]
        %v2384 = vld [vmem:[%s17 + $0x720] sm:$0xff]
        %v2385 = vld [vmem:[%s17 + $0x728] sm:$0xff]
        %v2386 = vld [vmem:[%s17 + $0x730] sm:$0xff]
        %v2387 = vld [vmem:[%s17 + $0x738] sm:$0xff]
        %v2388 = vld [vmem:[%s17 + $0x740] sm:$0xff]
        %v2389 = vld [vmem:[%s17 + $0x748] sm:$0xff]
        %v2390 = vld [vmem:[%s17 + $0x750] sm:$0xff]
        %v2391 = vld [vmem:[%s17 + $0x758] sm:$0xff]
        %v2392 = vld [vmem:[%s17 + $0x760] sm:$0xff]
        %v2393 = vld [vmem:[%s17 + $0x768] sm:$0xff]
        %v2394 = vld [vmem:[%s17 + $0x770] sm:$0xff]
        %v2395 = vld [vmem:[%s17 + $0x778] sm:$0xff]
        %v2396 = vld [vmem:[%s17 + $0x780] sm:$0xff]
        %v2397 = vld [vmem:[%s17 + $0x788] sm:$0xff]
        %v2398 = vld [vmem:[%s17 + $0x790] sm:$0xff]
        %v2399 = vld [vmem:[%s17 + $0x798] sm:$0xff]
        %v2400 = vld [vmem:[%s17 + $0x7a0] sm:$0xff]
        %v2401 = vld [vmem:[%s17 + $0x7a8] sm:$0xff]
        %v2402 = vld [vmem:[%s17 + $0x7b0] sm:$0xff]
        %v2403 = vld [vmem:[%s17 + $0x7b8] sm:$0xff]
        %v2404 = vld [vmem:[%s17 + $0x7c0] sm:$0xff]
        %v2405 = vld [vmem:[%s17 + $0x7c8] sm:$0xff]
        %v2406 = vld [vmem:[%s17 + $0x7d0] sm:$0xff]
        %v2407 = vld [vmem:[%s17 + $0x7d8] sm:$0xff]
        %v2408 = vld [vmem:[%s17 + $0x7e0] sm:$0xff]
        %v2409 = vld [vmem:[%s17 + $0x7e8] sm:$0xff]
        %v2410 = vld [vmem:[%s17 + $0x7f0] sm:$0xff]
        %v2411 = vld [vmem:[%s17 + $0x7f8] sm:$0xff]
        %v2412 = vld [vmem:[%s18] sm:$0xff]
        %v2414 = vlaneseq
        %v2415 = vshrl.u32 %v2414, 7
        %v2416 = vsub.s32 0, %v2415
        %v2417 = vrot.slane %v2412, %v2416
        %v2418 = vlaneseq
        %v2419 = vshrl.u32 %v2418, 7
        %v2420 = vsub.s32 1, %v2419
        %v2421 = vrot.slane %v2412, %v2420
        %v2422 = vlaneseq
        %v2423 = vshrl.u32 %v2422, 7
        %v2424 = vsub.s32 2, %v2423
        %v2425 = vrot.slane %v2412, %v2424
        %v2426 = vlaneseq
        %v2427 = vshrl.u32 %v2426, 7
        %v2428 = vsub.s32 3, %v2427
        %v2429 = vrot.slane %v2412, %v2428
        %v2430 = vlaneseq
        %v2431 = vshrl.u32 %v2430, 7
        %v2432 = vsub.s32 4, %v2431
        %v2433 = vrot.slane %v2412, %v2432
        %v2434 = vlaneseq
        %v2435 = vshrl.u32 %v2434, 7
        %v2436 = vsub.s32 5, %v2435
        %v2437 = vrot.slane %v2412, %v2436
        %v2438 = vlaneseq
        %v2439 = vshrl.u32 %v2438, 7
        %v2440 = vsub.s32 6, %v2439
        %v2441 = vrot.slane %v2412, %v2440
        %v2442 = vlaneseq
        %v2443 = vshrl.u32 %v2442, 7
        %v2444 = vsub.s32 7, %v2443
        %v2445 = vrot.slane %v2412, %v2444
        %v2710 = vunpack.c.l.b16 %v2156
        %v2711 = vunpack.c.h.b16 %v2156
        %v2712 = vunpack.c.l.b16 %v2157
        %v2713 = vunpack.c.h.b16 %v2157
        %v2714 = vunpack.c.l.b16 %v2158
        %v2715 = vunpack.c.h.b16 %v2158
        %v2716 = vunpack.c.l.b16 %v2159
        %v2717 = vunpack.c.h.b16 %v2159
        %v2718 = vunpack.c.l.b16 %v2160
        %v2719 = vunpack.c.h.b16 %v2160
        %v2720 = vunpack.c.l.b16 %v2161
        %v2721 = vunpack.c.h.b16 %v2161
        %v2722 = vunpack.c.l.b16 %v2162
        %v2723 = vunpack.c.h.b16 %v2162
        %v2724 = vunpack.c.l.b16 %v2163
        %v2725 = vunpack.c.h.b16 %v2163
        %v2726 = vunpack.c.l.b16 %v2164
        %v2727 = vunpack.c.h.b16 %v2164
        %v2728 = vunpack.c.l.b16 %v2165
        %v2729 = vunpack.c.h.b16 %v2165
        %v2730 = vunpack.c.l.b16 %v2166
        %v2731 = vunpack.c.h.b16 %v2166
        %v2732 = vunpack.c.l.b16 %v2167
        %v2733 = vunpack.c.h.b16 %v2167
        %v2734 = vunpack.c.l.b16 %v2168
        %v2735 = vunpack.c.h.b16 %v2168
        %v2736 = vunpack.c.l.b16 %v2169
        %v2737 = vunpack.c.h.b16 %v2169
        %v2738 = vunpack.c.l.b16 %v2170
        %v2739 = vunpack.c.h.b16 %v2170
        %v2740 = vunpack.c.l.b16 %v2171
        %v2741 = vunpack.c.h.b16 %v2171
        %v2742 = vunpack.c.l.b16 %v2172
        %v2743 = vunpack.c.h.b16 %v2172
        %v2744 = vunpack.c.l.b16 %v2173
        %v2745 = vunpack.c.h.b16 %v2173
        %v2746 = vunpack.c.l.b16 %v2174
        %v2747 = vunpack.c.h.b16 %v2174
        %v2748 = vunpack.c.l.b16 %v2175
        %v2749 = vunpack.c.h.b16 %v2175
        %v2750 = vunpack.c.l.b16 %v2176
        %v2751 = vunpack.c.h.b16 %v2176
        %v2752 = vunpack.c.l.b16 %v2177
        %v2753 = vunpack.c.h.b16 %v2177
        %v2754 = vunpack.c.l.b16 %v2178
        %v2755 = vunpack.c.h.b16 %v2178
        %v2756 = vunpack.c.l.b16 %v2179
        %v2757 = vunpack.c.h.b16 %v2179
        %v2758 = vunpack.c.l.b16 %v2180
        %v2759 = vunpack.c.h.b16 %v2180
        %v2760 = vunpack.c.l.b16 %v2181
        %v2761 = vunpack.c.h.b16 %v2181
        %v2762 = vunpack.c.l.b16 %v2182
        %v2763 = vunpack.c.h.b16 %v2182
        %v2764 = vunpack.c.l.b16 %v2183
        %v2765 = vunpack.c.h.b16 %v2183
        %v2766 = vunpack.c.l.b16 %v2184
        %v2767 = vunpack.c.h.b16 %v2184
        %v2768 = vunpack.c.l.b16 %v2185
        %v2769 = vunpack.c.h.b16 %v2185
        %v2770 = vunpack.c.l.b16 %v2186
        %v2771 = vunpack.c.h.b16 %v2186
        %v2772 = vunpack.c.l.b16 %v2187
        %v2773 = vunpack.c.h.b16 %v2187
        %v2774 = vunpack.c.l.b16 %v2188
        %v2775 = vunpack.c.h.b16 %v2188
        %v2776 = vunpack.c.l.b16 %v2189
        %v2777 = vunpack.c.h.b16 %v2189
        %v2778 = vunpack.c.l.b16 %v2190
        %v2779 = vunpack.c.h.b16 %v2190
        %v2780 = vunpack.c.l.b16 %v2191
        %v2781 = vunpack.c.h.b16 %v2191
        %v2782 = vunpack.c.l.b16 %v2192
        %v2783 = vunpack.c.h.b16 %v2192
        %v2784 = vunpack.c.l.b16 %v2193
        %v2785 = vunpack.c.h.b16 %v2193
        %v2786 = vunpack.c.l.b16 %v2194
        %v2787 = vunpack.c.h.b16 %v2194
        %v2788 = vunpack.c.l.b16 %v2195
        %v2789 = vunpack.c.h.b16 %v2195
        %v2790 = vunpack.c.l.b16 %v2196
        %v2791 = vunpack.c.h.b16 %v2196
        %v2792 = vunpack.c.l.b16 %v2197
        %v2793 = vunpack.c.h.b16 %v2197
        %v2794 = vunpack.c.l.b16 %v2198
        %v2795 = vunpack.c.h.b16 %v2198
        %v2796 = vunpack.c.l.b16 %v2199
        %v2797 = vunpack.c.h.b16 %v2199
        %v2798 = vunpack.c.l.b16 %v2200
        %v2799 = vunpack.c.h.b16 %v2200
        %v2800 = vunpack.c.l.b16 %v2201
        %v2801 = vunpack.c.h.b16 %v2201
        %v2802 = vunpack.c.l.b16 %v2202
        %v2803 = vunpack.c.h.b16 %v2202
        %v2804 = vunpack.c.l.b16 %v2203
        %v2805 = vunpack.c.h.b16 %v2203
        %v2806 = vunpack.c.l.b16 %v2204
        %v2807 = vunpack.c.h.b16 %v2204
        %v2808 = vunpack.c.l.b16 %v2205
        %v2809 = vunpack.c.h.b16 %v2205
        %v2810 = vunpack.c.l.b16 %v2206
        %v2811 = vunpack.c.h.b16 %v2206
        %v2812 = vunpack.c.l.b16 %v2207
        %v2813 = vunpack.c.h.b16 %v2207
        %v2814 = vunpack.c.l.b16 %v2208
        %v2815 = vunpack.c.h.b16 %v2208
        %v2816 = vunpack.c.l.b16 %v2209
        %v2817 = vunpack.c.h.b16 %v2209
        %v2818 = vunpack.c.l.b16 %v2210
        %v2819 = vunpack.c.h.b16 %v2210
        %v2820 = vunpack.c.l.b16 %v2211
        %v2821 = vunpack.c.h.b16 %v2211
        %v2822 = vunpack.c.l.b16 %v2212
        %v2823 = vunpack.c.h.b16 %v2212
        %v2824 = vunpack.c.l.b16 %v2213
        %v2825 = vunpack.c.h.b16 %v2213
        %v2826 = vunpack.c.l.b16 %v2214
        %v2827 = vunpack.c.h.b16 %v2214
        %v2828 = vunpack.c.l.b16 %v2215
        %v2829 = vunpack.c.h.b16 %v2215
        %v2830 = vunpack.c.l.b16 %v2216
        %v2831 = vunpack.c.h.b16 %v2216
        %v2832 = vunpack.c.l.b16 %v2217
        %v2833 = vunpack.c.h.b16 %v2217
        %v2834 = vunpack.c.l.b16 %v2218
        %v2835 = vunpack.c.h.b16 %v2218
        %v2836 = vunpack.c.l.b16 %v2219
        %v2837 = vunpack.c.h.b16 %v2219
        %v2838 = vunpack.c.l.b16 %v2220
        %v2839 = vunpack.c.h.b16 %v2220
        %v2840 = vunpack.c.l.b16 %v2221
        %v2841 = vunpack.c.h.b16 %v2221
        %v2842 = vunpack.c.l.b16 %v2222
        %v2843 = vunpack.c.h.b16 %v2222
        %v2844 = vunpack.c.l.b16 %v2223
        %v2845 = vunpack.c.h.b16 %v2223
        %v2846 = vunpack.c.l.b16 %v2224
        %v2847 = vunpack.c.h.b16 %v2224
        %v2848 = vunpack.c.l.b16 %v2225
        %v2849 = vunpack.c.h.b16 %v2225
        %v2850 = vunpack.c.l.b16 %v2226
        %v2851 = vunpack.c.h.b16 %v2226
        %v2852 = vunpack.c.l.b16 %v2227
        %v2853 = vunpack.c.h.b16 %v2227
        %v2854 = vunpack.c.l.b16 %v2228
        %v2855 = vunpack.c.h.b16 %v2228
        %v2856 = vunpack.c.l.b16 %v2229
        %v2857 = vunpack.c.h.b16 %v2229
        %v2858 = vunpack.c.l.b16 %v2230
        %v2859 = vunpack.c.h.b16 %v2230
        %v2860 = vunpack.c.l.b16 %v2231
        %v2861 = vunpack.c.h.b16 %v2231
        %v2862 = vunpack.c.l.b16 %v2232
        %v2863 = vunpack.c.h.b16 %v2232
        %v2864 = vunpack.c.l.b16 %v2233
        %v2865 = vunpack.c.h.b16 %v2233
        %v2866 = vunpack.c.l.b16 %v2234
        %v2867 = vunpack.c.h.b16 %v2234
        %v2868 = vunpack.c.l.b16 %v2235
        %v2869 = vunpack.c.h.b16 %v2235
        %v2870 = vunpack.c.l.b16 %v2236
        %v2871 = vunpack.c.h.b16 %v2236
        %v2872 = vunpack.c.l.b16 %v2237
        %v2873 = vunpack.c.h.b16 %v2237
        %v2874 = vunpack.c.l.b16 %v2238
        %v2875 = vunpack.c.h.b16 %v2238
        %v2876 = vunpack.c.l.b16 %v2239
        %v2877 = vunpack.c.h.b16 %v2239
        %v2878 = vunpack.c.l.b16 %v2240
        %v2879 = vunpack.c.h.b16 %v2240
        %v2880 = vunpack.c.l.b16 %v2241
        %v2881 = vunpack.c.h.b16 %v2241
        %v2882 = vunpack.c.l.b16 %v2242
        %v2883 = vunpack.c.h.b16 %v2242
        %v2884 = vunpack.c.l.b16 %v2243
        %v2885 = vunpack.c.h.b16 %v2243
        %v2886 = vunpack.c.l.b16 %v2244
        %v2887 = vunpack.c.h.b16 %v2244
        %v2888 = vunpack.c.l.b16 %v2245
        %v2889 = vunpack.c.h.b16 %v2245
        %v2890 = vunpack.c.l.b16 %v2246
        %v2891 = vunpack.c.h.b16 %v2246
        %v2892 = vunpack.c.l.b16 %v2247
        %v2893 = vunpack.c.h.b16 %v2247
        %v2894 = vunpack.c.l.b16 %v2248
        %v2895 = vunpack.c.h.b16 %v2248
        %v2896 = vunpack.c.l.b16 %v2249
        %v2897 = vunpack.c.h.b16 %v2249
        %v2898 = vunpack.c.l.b16 %v2250
        %v2899 = vunpack.c.h.b16 %v2250
        %v2900 = vunpack.c.l.b16 %v2251
        %v2901 = vunpack.c.h.b16 %v2251
        %v2902 = vunpack.c.l.b16 %v2252
        %v2903 = vunpack.c.h.b16 %v2252
        %v2904 = vunpack.c.l.b16 %v2253
        %v2905 = vunpack.c.h.b16 %v2253
        %v2906 = vunpack.c.l.b16 %v2254
        %v2907 = vunpack.c.h.b16 %v2254
        %v2908 = vunpack.c.l.b16 %v2255
        %v2909 = vunpack.c.h.b16 %v2255
        %v2910 = vunpack.c.l.b16 %v2256
        %v2911 = vunpack.c.h.b16 %v2256
        %v2912 = vunpack.c.l.b16 %v2257
        %v2913 = vunpack.c.h.b16 %v2257
        %v2914 = vunpack.c.l.b16 %v2258
        %v2915 = vunpack.c.h.b16 %v2258
        %v2916 = vunpack.c.l.b16 %v2259
        %v2917 = vunpack.c.h.b16 %v2259
        %v2918 = vunpack.c.l.b16 %v2260
        %v2919 = vunpack.c.h.b16 %v2260
        %v2920 = vunpack.c.l.b16 %v2261
        %v2921 = vunpack.c.h.b16 %v2261
        %v2922 = vunpack.c.l.b16 %v2262
        %v2923 = vunpack.c.h.b16 %v2262
        %v2924 = vunpack.c.l.b16 %v2263
        %v2925 = vunpack.c.h.b16 %v2263
        %v2926 = vunpack.c.l.b16 %v2264
        %v2927 = vunpack.c.h.b16 %v2264
        %v2928 = vunpack.c.l.b16 %v2265
        %v2929 = vunpack.c.h.b16 %v2265
        %v2930 = vunpack.c.l.b16 %v2266
        %v2931 = vunpack.c.h.b16 %v2266
        %v2932 = vunpack.c.l.b16 %v2267
        %v2933 = vunpack.c.h.b16 %v2267
        %v2934 = vunpack.c.l.b16 %v2268
        %v2935 = vunpack.c.h.b16 %v2268
        %v2936 = vunpack.c.l.b16 %v2269
        %v2937 = vunpack.c.h.b16 %v2269
        %v2938 = vunpack.c.l.b16 %v2270
        %v2939 = vunpack.c.h.b16 %v2270
        %v2940 = vunpack.c.l.b16 %v2271
        %v2941 = vunpack.c.h.b16 %v2271
        %v2942 = vunpack.c.l.b16 %v2272
        %v2943 = vunpack.c.h.b16 %v2272
        %v2944 = vunpack.c.l.b16 %v2273
        %v2945 = vunpack.c.h.b16 %v2273
        %v2946 = vunpack.c.l.b16 %v2274
        %v2947 = vunpack.c.h.b16 %v2274
        %v2948 = vunpack.c.l.b16 %v2275
        %v2949 = vunpack.c.h.b16 %v2275
        %v2950 = vunpack.c.l.b16 %v2276
        %v2951 = vunpack.c.h.b16 %v2276
        %v2952 = vunpack.c.l.b16 %v2277
        %v2953 = vunpack.c.h.b16 %v2277
        %v2954 = vunpack.c.l.b16 %v2278
        %v2955 = vunpack.c.h.b16 %v2278
        %v2956 = vunpack.c.l.b16 %v2279
        %v2957 = vunpack.c.h.b16 %v2279
        %v2958 = vunpack.c.l.b16 %v2280
        %v2959 = vunpack.c.h.b16 %v2280
        %v2960 = vunpack.c.l.b16 %v2281
        %v2961 = vunpack.c.h.b16 %v2281
        %v2962 = vunpack.c.l.b16 %v2282
        %v2963 = vunpack.c.h.b16 %v2282
        %v2964 = vunpack.c.l.b16 %v2283
        %v2965 = vunpack.c.h.b16 %v2283
        %v2966 = vunpack.c.l.b16 %v2284
        %v2967 = vunpack.c.h.b16 %v2284
        %v2968 = vunpack.c.l.b16 %v2285
        %v2969 = vunpack.c.h.b16 %v2285
        %v2970 = vunpack.c.l.b16 %v2286
        %v2971 = vunpack.c.h.b16 %v2286
        %v2972 = vunpack.c.l.b16 %v2287
        %v2973 = vunpack.c.h.b16 %v2287
        %v2974 = vunpack.c.l.b16 %v2288
        %v2975 = vunpack.c.h.b16 %v2288
        %v2976 = vunpack.c.l.b16 %v2289
        %v2977 = vunpack.c.h.b16 %v2289
        %v2978 = vunpack.c.l.b16 %v2290
        %v2979 = vunpack.c.h.b16 %v2290
        %v2980 = vunpack.c.l.b16 %v2291
        %v2981 = vunpack.c.h.b16 %v2291
        %v2982 = vunpack.c.l.b16 %v2292
        %v2983 = vunpack.c.h.b16 %v2292
        %v2984 = vunpack.c.l.b16 %v2293
        %v2985 = vunpack.c.h.b16 %v2293
        %v2986 = vunpack.c.l.b16 %v2294
        %v2987 = vunpack.c.h.b16 %v2294
        %v2988 = vunpack.c.l.b16 %v2295
        %v2989 = vunpack.c.h.b16 %v2295
        %v2990 = vunpack.c.l.b16 %v2296
        %v2991 = vunpack.c.h.b16 %v2296
        %v2992 = vunpack.c.l.b16 %v2297
        %v2993 = vunpack.c.h.b16 %v2297
        %v2994 = vunpack.c.l.b16 %v2298
        %v2995 = vunpack.c.h.b16 %v2298
        %v2996 = vunpack.c.l.b16 %v2299
        %v2997 = vunpack.c.h.b16 %v2299
        %v2998 = vunpack.c.l.b16 %v2300
        %v2999 = vunpack.c.h.b16 %v2300
        %v3000 = vunpack.c.l.b16 %v2301
        %v3001 = vunpack.c.h.b16 %v2301
        %v3002 = vunpack.c.l.b16 %v2302
        %v3003 = vunpack.c.h.b16 %v2302
        %v3004 = vunpack.c.l.b16 %v2303
        %v3005 = vunpack.c.h.b16 %v2303
        %v3006 = vunpack.c.l.b16 %v2304
        %v3007 = vunpack.c.h.b16 %v2304
        %v3008 = vunpack.c.l.b16 %v2305
        %v3009 = vunpack.c.h.b16 %v2305
        %v3010 = vunpack.c.l.b16 %v2306
        %v3011 = vunpack.c.h.b16 %v2306
        %v3012 = vunpack.c.l.b16 %v2307
        %v3013 = vunpack.c.h.b16 %v2307
        %v3014 = vunpack.c.l.b16 %v2308
        %v3015 = vunpack.c.h.b16 %v2308
        %v3016 = vunpack.c.l.b16 %v2309
        %v3017 = vunpack.c.h.b16 %v2309
        %v3018 = vunpack.c.l.b16 %v2310
        %v3019 = vunpack.c.h.b16 %v2310
        %v3020 = vunpack.c.l.b16 %v2311
        %v3021 = vunpack.c.h.b16 %v2311
        %v3022 = vunpack.c.l.b16 %v2312
        %v3023 = vunpack.c.h.b16 %v2312
        %v3024 = vunpack.c.l.b16 %v2313
        %v3025 = vunpack.c.h.b16 %v2313
        %v3026 = vunpack.c.l.b16 %v2314
        %v3027 = vunpack.c.h.b16 %v2314
        %v3028 = vunpack.c.l.b16 %v2315
        %v3029 = vunpack.c.h.b16 %v2315
        %v3030 = vunpack.c.l.b16 %v2316
        %v3031 = vunpack.c.h.b16 %v2316
        %v3032 = vunpack.c.l.b16 %v2317
        %v3033 = vunpack.c.h.b16 %v2317
        %v3034 = vunpack.c.l.b16 %v2318
        %v3035 = vunpack.c.h.b16 %v2318
        %v3036 = vunpack.c.l.b16 %v2319
        %v3037 = vunpack.c.h.b16 %v2319
        %v3038 = vunpack.c.l.b16 %v2320
        %v3039 = vunpack.c.h.b16 %v2320
        %v3040 = vunpack.c.l.b16 %v2321
        %v3041 = vunpack.c.h.b16 %v2321
        %v3042 = vunpack.c.l.b16 %v2322
        %v3043 = vunpack.c.h.b16 %v2322
        %v3044 = vunpack.c.l.b16 %v2323
        %v3045 = vunpack.c.h.b16 %v2323
        %v3046 = vunpack.c.l.b16 %v2324
        %v3047 = vunpack.c.h.b16 %v2324
        %v3048 = vunpack.c.l.b16 %v2325
        %v3049 = vunpack.c.h.b16 %v2325
        %v3050 = vunpack.c.l.b16 %v2326
        %v3051 = vunpack.c.h.b16 %v2326
        %v3052 = vunpack.c.l.b16 %v2327
        %v3053 = vunpack.c.h.b16 %v2327
        %v3054 = vunpack.c.l.b16 %v2328
        %v3055 = vunpack.c.h.b16 %v2328
        %v3056 = vunpack.c.l.b16 %v2329
        %v3057 = vunpack.c.h.b16 %v2329
        %v3058 = vunpack.c.l.b16 %v2330
        %v3059 = vunpack.c.h.b16 %v2330
        %v3060 = vunpack.c.l.b16 %v2331
        %v3061 = vunpack.c.h.b16 %v2331
        %v3062 = vunpack.c.l.b16 %v2332
        %v3063 = vunpack.c.h.b16 %v2332
        %v3064 = vunpack.c.l.b16 %v2333
        %v3065 = vunpack.c.h.b16 %v2333
        %v3066 = vunpack.c.l.b16 %v2334
        %v3067 = vunpack.c.h.b16 %v2334
        %v3068 = vunpack.c.l.b16 %v2335
        %v3069 = vunpack.c.h.b16 %v2335
        %v3070 = vunpack.c.l.b16 %v2336
        %v3071 = vunpack.c.h.b16 %v2336
        %v3072 = vunpack.c.l.b16 %v2337
        %v3073 = vunpack.c.h.b16 %v2337
        %v3074 = vunpack.c.l.b16 %v2338
        %v3075 = vunpack.c.h.b16 %v2338
        %v3076 = vunpack.c.l.b16 %v2339
        %v3077 = vunpack.c.h.b16 %v2339
        %v3078 = vunpack.c.l.b16 %v2340
        %v3079 = vunpack.c.h.b16 %v2340
        %v3080 = vunpack.c.l.b16 %v2341
        %v3081 = vunpack.c.h.b16 %v2341
        %v3082 = vunpack.c.l.b16 %v2342
        %v3083 = vunpack.c.h.b16 %v2342
        %v3084 = vunpack.c.l.b16 %v2343
        %v3085 = vunpack.c.h.b16 %v2343
        %v3086 = vunpack.c.l.b16 %v2344
        %v3087 = vunpack.c.h.b16 %v2344
        %v3088 = vunpack.c.l.b16 %v2345
        %v3089 = vunpack.c.h.b16 %v2345
        %v3090 = vunpack.c.l.b16 %v2346
        %v3091 = vunpack.c.h.b16 %v2346
        %v3092 = vunpack.c.l.b16 %v2347
        %v3093 = vunpack.c.h.b16 %v2347
        %v3094 = vunpack.c.l.b16 %v2348
        %v3095 = vunpack.c.h.b16 %v2348
        %v3096 = vunpack.c.l.b16 %v2349
        %v3097 = vunpack.c.h.b16 %v2349
        %v3098 = vunpack.c.l.b16 %v2350
        %v3099 = vunpack.c.h.b16 %v2350
        %v3100 = vunpack.c.l.b16 %v2351
        %v3101 = vunpack.c.h.b16 %v2351
        %v3102 = vunpack.c.l.b16 %v2352
        %v3103 = vunpack.c.h.b16 %v2352
        %v3104 = vunpack.c.l.b16 %v2353
        %v3105 = vunpack.c.h.b16 %v2353
        %v3106 = vunpack.c.l.b16 %v2354
        %v3107 = vunpack.c.h.b16 %v2354
        %v3108 = vunpack.c.l.b16 %v2355
        %v3109 = vunpack.c.h.b16 %v2355
        %v3110 = vunpack.c.l.b16 %v2356
        %v3111 = vunpack.c.h.b16 %v2356
        %v3112 = vunpack.c.l.b16 %v2357
        %v3113 = vunpack.c.h.b16 %v2357
        %v3114 = vunpack.c.l.b16 %v2358
        %v3115 = vunpack.c.h.b16 %v2358
        %v3116 = vunpack.c.l.b16 %v2359
        %v3117 = vunpack.c.h.b16 %v2359
        %v3118 = vunpack.c.l.b16 %v2360
        %v3119 = vunpack.c.h.b16 %v2360
        %v3120 = vunpack.c.l.b16 %v2361
        %v3121 = vunpack.c.h.b16 %v2361
        %v3122 = vunpack.c.l.b16 %v2362
        %v3123 = vunpack.c.h.b16 %v2362
        %v3124 = vunpack.c.l.b16 %v2363
        %v3125 = vunpack.c.h.b16 %v2363
        %v3126 = vunpack.c.l.b16 %v2364
        %v3127 = vunpack.c.h.b16 %v2364
        %v3128 = vunpack.c.l.b16 %v2365
        %v3129 = vunpack.c.h.b16 %v2365
        %v3130 = vunpack.c.l.b16 %v2366
        %v3131 = vunpack.c.h.b16 %v2366
        %v3132 = vunpack.c.l.b16 %v2367
        %v3133 = vunpack.c.h.b16 %v2367
        %v3134 = vunpack.c.l.b16 %v2368
        %v3135 = vunpack.c.h.b16 %v2368
        %v3136 = vunpack.c.l.b16 %v2369
        %v3137 = vunpack.c.h.b16 %v2369
        %v3138 = vunpack.c.l.b16 %v2370
        %v3139 = vunpack.c.h.b16 %v2370
        %v3140 = vunpack.c.l.b16 %v2371
        %v3141 = vunpack.c.h.b16 %v2371
        %v3142 = vunpack.c.l.b16 %v2372
        %v3143 = vunpack.c.h.b16 %v2372
        %v3144 = vunpack.c.l.b16 %v2373
        %v3145 = vunpack.c.h.b16 %v2373
        %v3146 = vunpack.c.l.b16 %v2374
        %v3147 = vunpack.c.h.b16 %v2374
        %v3148 = vunpack.c.l.b16 %v2375
        %v3149 = vunpack.c.h.b16 %v2375
        %v3150 = vunpack.c.l.b16 %v2376
        %v3151 = vunpack.c.h.b16 %v2376
        %v3152 = vunpack.c.l.b16 %v2377
        %v3153 = vunpack.c.h.b16 %v2377
        %v3154 = vunpack.c.l.b16 %v2378
        %v3155 = vunpack.c.h.b16 %v2378
        %v3156 = vunpack.c.l.b16 %v2379
        %v3157 = vunpack.c.h.b16 %v2379
        %v3158 = vunpack.c.l.b16 %v2380
        %v3159 = vunpack.c.h.b16 %v2380
        %v3160 = vunpack.c.l.b16 %v2381
        %v3161 = vunpack.c.h.b16 %v2381
        %v3162 = vunpack.c.l.b16 %v2382
        %v3163 = vunpack.c.h.b16 %v2382
        %v3164 = vunpack.c.l.b16 %v2383
        %v3165 = vunpack.c.h.b16 %v2383
        %v3166 = vunpack.c.l.b16 %v2384
        %v3167 = vunpack.c.h.b16 %v2384
        %v3168 = vunpack.c.l.b16 %v2385
        %v3169 = vunpack.c.h.b16 %v2385
        %v3170 = vunpack.c.l.b16 %v2386
        %v3171 = vunpack.c.h.b16 %v2386
        %v3172 = vunpack.c.l.b16 %v2387
        %v3173 = vunpack.c.h.b16 %v2387
        %v3174 = vunpack.c.l.b16 %v2388
        %v3175 = vunpack.c.h.b16 %v2388
        %v3176 = vunpack.c.l.b16 %v2389
        %v3177 = vunpack.c.h.b16 %v2389
        %v3178 = vunpack.c.l.b16 %v2390
        %v3179 = vunpack.c.h.b16 %v2390
        %v3180 = vunpack.c.l.b16 %v2391
        %v3181 = vunpack.c.h.b16 %v2391
        %v3182 = vunpack.c.l.b16 %v2392
        %v3183 = vunpack.c.h.b16 %v2392
        %v3184 = vunpack.c.l.b16 %v2393
        %v3185 = vunpack.c.h.b16 %v2393
        %v3186 = vunpack.c.l.b16 %v2394
        %v3187 = vunpack.c.h.b16 %v2394
        %v3188 = vunpack.c.l.b16 %v2395
        %v3189 = vunpack.c.h.b16 %v2395
        %v3190 = vunpack.c.l.b16 %v2396
        %v3191 = vunpack.c.h.b16 %v2396
        %v3192 = vunpack.c.l.b16 %v2397
        %v3193 = vunpack.c.h.b16 %v2397
        %v3194 = vunpack.c.l.b16 %v2398
        %v3195 = vunpack.c.h.b16 %v2398
        %v3196 = vunpack.c.l.b16 %v2399
        %v3197 = vunpack.c.h.b16 %v2399
        %v3198 = vunpack.c.l.b16 %v2400
        %v3199 = vunpack.c.h.b16 %v2400
        %v3200 = vunpack.c.l.b16 %v2401
        %v3201 = vunpack.c.h.b16 %v2401
        %v3202 = vunpack.c.l.b16 %v2402
        %v3203 = vunpack.c.h.b16 %v2402
        %v3204 = vunpack.c.l.b16 %v2403
        %v3205 = vunpack.c.h.b16 %v2403
        %v3206 = vunpack.c.l.b16 %v2404
        %v3207 = vunpack.c.h.b16 %v2404
        %v3208 = vunpack.c.l.b16 %v2405
        %v3209 = vunpack.c.h.b16 %v2405
        %v3210 = vunpack.c.l.b16 %v2406
        %v3211 = vunpack.c.h.b16 %v2406
        %v3212 = vunpack.c.l.b16 %v2407
        %v3213 = vunpack.c.h.b16 %v2407
        %v3214 = vunpack.c.l.b16 %v2408
        %v3215 = vunpack.c.h.b16 %v2408
        %v3216 = vunpack.c.l.b16 %v2409
        %v3217 = vunpack.c.h.b16 %v2409
        %v3218 = vunpack.c.l.b16 %v2410
        %v3219 = vunpack.c.h.b16 %v2410
        %v3220 = vunpack.c.l.b16 %v2411
        %v3221 = vunpack.c.h.b16 %v2411
        %v3222 = vpack.c.b16 %v2718, %v2710
        %v3223 = vpack.c.b16 %v2719, %v2711
        %v3224 = vpack.c.b16 %v2720, %v2712
        %v3225 = vpack.c.b16 %v2721, %v2713
        %v3226 = vpack.c.b16 %v2722, %v2714
        %v3227 = vpack.c.b16 %v2723, %v2715
        %v3228 = vpack.c.b16 %v2724, %v2716
        %v3229 = vpack.c.b16 %v2725, %v2717
        %v3230 = vpack.c.b16 %v2734, %v2726
        %v3231 = vpack.c.b16 %v2735, %v2727
        %v3232 = vpack.c.b16 %v2736, %v2728
        %v3233 = vpack.c.b16 %v2737, %v2729
        %v3234 = vpack.c.b16 %v2738, %v2730
        %v3235 = vpack.c.b16 %v2739, %v2731
        %v3236 = vpack.c.b16 %v2740, %v2732
        %v3237 = vpack.c.b16 %v2741, %v2733
        %v3238 = vpack.c.b16 %v2750, %v2742
        %v3239 = vpack.c.b16 %v2751, %v2743
        %v3240 = vpack.c.b16 %v2752, %v2744
        %v3241 = vpack.c.b16 %v2753, %v2745
        %v3242 = vpack.c.b16 %v2754, %v2746
        %v3243 = vpack.c.b16 %v2755, %v2747
        %v3244 = vpack.c.b16 %v2756, %v2748
        %v3245 = vpack.c.b16 %v2757, %v2749
        %v3246 = vpack.c.b16 %v2766, %v2758
        %v3247 = vpack.c.b16 %v2767, %v2759
        %v3248 = vpack.c.b16 %v2768, %v2760
        %v3249 = vpack.c.b16 %v2769, %v2761
        %v3250 = vpack.c.b16 %v2770, %v2762
        %v3251 = vpack.c.b16 %v2771, %v2763
        %v3252 = vpack.c.b16 %v2772, %v2764
        %v3253 = vpack.c.b16 %v2773, %v2765
        %v3254 = vpack.c.b16 %v2782, %v2774
        %v3255 = vpack.c.b16 %v2783, %v2775
        %v3256 = vpack.c.b16 %v2784, %v2776
        %v3257 = vpack.c.b16 %v2785, %v2777
        %v3258 = vpack.c.b16 %v2786, %v2778
        %v3259 = vpack.c.b16 %v2787, %v2779
        %v3260 = vpack.c.b16 %v2788, %v2780
        %v3261 = vpack.c.b16 %v2789, %v2781
        %v3262 = vpack.c.b16 %v2798, %v2790
        %v3263 = vpack.c.b16 %v2799, %v2791
        %v3264 = vpack.c.b16 %v2800, %v2792
        %v3265 = vpack.c.b16 %v2801, %v2793
        %v3266 = vpack.c.b16 %v2802, %v2794
        %v3267 = vpack.c.b16 %v2803, %v2795
        %v3268 = vpack.c.b16 %v2804, %v2796
        %v3269 = vpack.c.b16 %v2805, %v2797
        %v3270 = vpack.c.b16 %v2814, %v2806
        %v3271 = vpack.c.b16 %v2815, %v2807
        %v3272 = vpack.c.b16 %v2816, %v2808
        %v3273 = vpack.c.b16 %v2817, %v2809
        %v3274 = vpack.c.b16 %v2818, %v2810
        %v3275 = vpack.c.b16 %v2819, %v2811
        %v3276 = vpack.c.b16 %v2820, %v2812
        %v3277 = vpack.c.b16 %v2821, %v2813
        %v3278 = vpack.c.b16 %v2830, %v2822
        %v3279 = vpack.c.b16 %v2831, %v2823
        %v3280 = vpack.c.b16 %v2832, %v2824
        %v3281 = vpack.c.b16 %v2833, %v2825
        %v3282 = vpack.c.b16 %v2834, %v2826
        %v3283 = vpack.c.b16 %v2835, %v2827
        %v3284 = vpack.c.b16 %v2836, %v2828
        %v3285 = vpack.c.b16 %v2837, %v2829
        %v3286 = vpack.c.b16 %v2846, %v2838
        %v3287 = vpack.c.b16 %v2847, %v2839
        %v3288 = vpack.c.b16 %v2848, %v2840
        %v3289 = vpack.c.b16 %v2849, %v2841
        %v3290 = vpack.c.b16 %v2850, %v2842
        %v3291 = vpack.c.b16 %v2851, %v2843
        %v3292 = vpack.c.b16 %v2852, %v2844
        %v3293 = vpack.c.b16 %v2853, %v2845
        %v3294 = vpack.c.b16 %v2862, %v2854
        %v3295 = vpack.c.b16 %v2863, %v2855
        %v3296 = vpack.c.b16 %v2864, %v2856
        %v3297 = vpack.c.b16 %v2865, %v2857
        %v3298 = vpack.c.b16 %v2866, %v2858
        %v3299 = vpack.c.b16 %v2867, %v2859
        %v3300 = vpack.c.b16 %v2868, %v2860
        %v3301 = vpack.c.b16 %v2869, %v2861
        %v3302 = vpack.c.b16 %v2878, %v2870
        %v3303 = vpack.c.b16 %v2879, %v2871
        %v3304 = vpack.c.b16 %v2880, %v2872
        %v3305 = vpack.c.b16 %v2881, %v2873
        %v3306 = vpack.c.b16 %v2882, %v2874
        %v3307 = vpack.c.b16 %v2883, %v2875
        %v3308 = vpack.c.b16 %v2884, %v2876
        %v3309 = vpack.c.b16 %v2885, %v2877
        %v3310 = vpack.c.b16 %v2894, %v2886
        %v3311 = vpack.c.b16 %v2895, %v2887
        %v3312 = vpack.c.b16 %v2896, %v2888
        %v3313 = vpack.c.b16 %v2897, %v2889
        %v3314 = vpack.c.b16 %v2898, %v2890
        %v3315 = vpack.c.b16 %v2899, %v2891
        %v3316 = vpack.c.b16 %v2900, %v2892
        %v3317 = vpack.c.b16 %v2901, %v2893
        %v3318 = vpack.c.b16 %v2910, %v2902
        %v3319 = vpack.c.b16 %v2911, %v2903
        %v3320 = vpack.c.b16 %v2912, %v2904
        %v3321 = vpack.c.b16 %v2913, %v2905
        %v3322 = vpack.c.b16 %v2914, %v2906
        %v3323 = vpack.c.b16 %v2915, %v2907
        %v3324 = vpack.c.b16 %v2916, %v2908
        %v3325 = vpack.c.b16 %v2917, %v2909
        %v3326 = vpack.c.b16 %v2926, %v2918
        %v3327 = vpack.c.b16 %v2927, %v2919
        %v3328 = vpack.c.b16 %v2928, %v2920
        %v3329 = vpack.c.b16 %v2929, %v2921
        %v3330 = vpack.c.b16 %v2930, %v2922
        %v3331 = vpack.c.b16 %v2931, %v2923
        %v3332 = vpack.c.b16 %v2932, %v2924
        %v3333 = vpack.c.b16 %v2933, %v2925
        %v3334 = vpack.c.b16 %v2942, %v2934
        %v3335 = vpack.c.b16 %v2943, %v2935
        %v3336 = vpack.c.b16 %v2944, %v2936
        %v3337 = vpack.c.b16 %v2945, %v2937
        %v3338 = vpack.c.b16 %v2946, %v2938
        %v3339 = vpack.c.b16 %v2947, %v2939
        %v3340 = vpack.c.b16 %v2948, %v2940
        %v3341 = vpack.c.b16 %v2949, %v2941
        %v3342 = vpack.c.b16 %v2958, %v2950
        %v3343 = vpack.c.b16 %v2959, %v2951
        %v3344 = vpack.c.b16 %v2960, %v2952
        %v3345 = vpack.c.b16 %v2961, %v2953
        %v3346 = vpack.c.b16 %v2962, %v2954
        %v3347 = vpack.c.b16 %v2963, %v2955
        %v3348 = vpack.c.b16 %v2964, %v2956
        %v3349 = vpack.c.b16 %v2965, %v2957
        %v3350 = vpack.c.b16 %v2974, %v2966
        %v3351 = vpack.c.b16 %v2975, %v2967
        %v3352 = vpack.c.b16 %v2976, %v2968
        %v3353 = vpack.c.b16 %v2977, %v2969
        %v3354 = vpack.c.b16 %v2978, %v2970
        %v3355 = vpack.c.b16 %v2979, %v2971
        %v3356 = vpack.c.b16 %v2980, %v2972
        %v3357 = vpack.c.b16 %v2981, %v2973
        %v3358 = vpack.c.b16 %v2990, %v2982
        %v3359 = vpack.c.b16 %v2991, %v2983
        %v3360 = vpack.c.b16 %v2992, %v2984
        %v3361 = vpack.c.b16 %v2993, %v2985
        %v3362 = vpack.c.b16 %v2994, %v2986
        %v3363 = vpack.c.b16 %v2995, %v2987
        %v3364 = vpack.c.b16 %v2996, %v2988
        %v3365 = vpack.c.b16 %v2997, %v2989
        %v3366 = vpack.c.b16 %v3006, %v2998
        %v3367 = vpack.c.b16 %v3007, %v2999
        %v3368 = vpack.c.b16 %v3008, %v3000
        %v3369 = vpack.c.b16 %v3009, %v3001
        %v3370 = vpack.c.b16 %v3010, %v3002
        %v3371 = vpack.c.b16 %v3011, %v3003
        %v3372 = vpack.c.b16 %v3012, %v3004
        %v3373 = vpack.c.b16 %v3013, %v3005
        %v3374 = vpack.c.b16 %v3022, %v3014
        %v3375 = vpack.c.b16 %v3023, %v3015
        %v3376 = vpack.c.b16 %v3024, %v3016
        %v3377 = vpack.c.b16 %v3025, %v3017
        %v3378 = vpack.c.b16 %v3026, %v3018
        %v3379 = vpack.c.b16 %v3027, %v3019
        %v3380 = vpack.c.b16 %v3028, %v3020
        %v3381 = vpack.c.b16 %v3029, %v3021
        %v3382 = vpack.c.b16 %v3038, %v3030
        %v3383 = vpack.c.b16 %v3039, %v3031
        %v3384 = vpack.c.b16 %v3040, %v3032
        %v3385 = vpack.c.b16 %v3041, %v3033
        %v3386 = vpack.c.b16 %v3042, %v3034
        %v3387 = vpack.c.b16 %v3043, %v3035
        %v3388 = vpack.c.b16 %v3044, %v3036
        %v3389 = vpack.c.b16 %v3045, %v3037
        %v3390 = vpack.c.b16 %v3054, %v3046
        %v3391 = vpack.c.b16 %v3055, %v3047
        %v3392 = vpack.c.b16 %v3056, %v3048
        %v3393 = vpack.c.b16 %v3057, %v3049
        %v3394 = vpack.c.b16 %v3058, %v3050
        %v3395 = vpack.c.b16 %v3059, %v3051
        %v3396 = vpack.c.b16 %v3060, %v3052
        %v3397 = vpack.c.b16 %v3061, %v3053
        %v3398 = vpack.c.b16 %v3070, %v3062
        %v3399 = vpack.c.b16 %v3071, %v3063
        %v3400 = vpack.c.b16 %v3072, %v3064
        %v3401 = vpack.c.b16 %v3073, %v3065
        %v3402 = vpack.c.b16 %v3074, %v3066
        %v3403 = vpack.c.b16 %v3075, %v3067
        %v3404 = vpack.c.b16 %v3076, %v3068
        %v3405 = vpack.c.b16 %v3077, %v3069
        %v3406 = vpack.c.b16 %v3086, %v3078
        %v3407 = vpack.c.b16 %v3087, %v3079
        %v3408 = vpack.c.b16 %v3088, %v3080
        %v3409 = vpack.c.b16 %v3089, %v3081
        %v3410 = vpack.c.b16 %v3090, %v3082
        %v3411 = vpack.c.b16 %v3091, %v3083
        %v3412 = vpack.c.b16 %v3092, %v3084
        %v3413 = vpack.c.b16 %v3093, %v3085
        %v3414 = vpack.c.b16 %v3102, %v3094
        %v3415 = vpack.c.b16 %v3103, %v3095
        %v3416 = vpack.c.b16 %v3104, %v3096
        %v3417 = vpack.c.b16 %v3105, %v3097
        %v3418 = vpack.c.b16 %v3106, %v3098
        %v3419 = vpack.c.b16 %v3107, %v3099
        %v3420 = vpack.c.b16 %v3108, %v3100
        %v3421 = vpack.c.b16 %v3109, %v3101
        %v3422 = vpack.c.b16 %v3118, %v3110
        %v3423 = vpack.c.b16 %v3119, %v3111
        %v3424 = vpack.c.b16 %v3120, %v3112
        %v3425 = vpack.c.b16 %v3121, %v3113
        %v3426 = vpack.c.b16 %v3122, %v3114
        %v3427 = vpack.c.b16 %v3123, %v3115
        %v3428 = vpack.c.b16 %v3124, %v3116
        %v3429 = vpack.c.b16 %v3125, %v3117
        %v3430 = vpack.c.b16 %v3134, %v3126
        %v3431 = vpack.c.b16 %v3135, %v3127
        %v3432 = vpack.c.b16 %v3136, %v3128
        %v3433 = vpack.c.b16 %v3137, %v3129
        %v3434 = vpack.c.b16 %v3138, %v3130
        %v3435 = vpack.c.b16 %v3139, %v3131
        %v3436 = vpack.c.b16 %v3140, %v3132
        %v3437 = vpack.c.b16 %v3141, %v3133
        %v3438 = vpack.c.b16 %v3150, %v3142
        %v3439 = vpack.c.b16 %v3151, %v3143
        %v3440 = vpack.c.b16 %v3152, %v3144
        %v3441 = vpack.c.b16 %v3153, %v3145
        %v3442 = vpack.c.b16 %v3154, %v3146
        %v3443 = vpack.c.b16 %v3155, %v3147
        %v3444 = vpack.c.b16 %v3156, %v3148
        %v3445 = vpack.c.b16 %v3157, %v3149
        %v3446 = vpack.c.b16 %v3166, %v3158
        %v3447 = vpack.c.b16 %v3167, %v3159
        %v3448 = vpack.c.b16 %v3168, %v3160
        %v3449 = vpack.c.b16 %v3169, %v3161
        %v3450 = vpack.c.b16 %v3170, %v3162
        %v3451 = vpack.c.b16 %v3171, %v3163
        %v3452 = vpack.c.b16 %v3172, %v3164
        %v3453 = vpack.c.b16 %v3173, %v3165
        %v3454 = vpack.c.b16 %v3182, %v3174
        %v3455 = vpack.c.b16 %v3183, %v3175
        %v3456 = vpack.c.b16 %v3184, %v3176
        %v3457 = vpack.c.b16 %v3185, %v3177
        %v3458 = vpack.c.b16 %v3186, %v3178
        %v3459 = vpack.c.b16 %v3187, %v3179
        %v3460 = vpack.c.b16 %v3188, %v3180
        %v3461 = vpack.c.b16 %v3189, %v3181
        %v3462 = vpack.c.b16 %v3198, %v3190
        %v3463 = vpack.c.b16 %v3199, %v3191
        %v3464 = vpack.c.b16 %v3200, %v3192
        %v3465 = vpack.c.b16 %v3201, %v3193
        %v3466 = vpack.c.b16 %v3202, %v3194
        %v3467 = vpack.c.b16 %v3203, %v3195
        %v3468 = vpack.c.b16 %v3204, %v3196
        %v3469 = vpack.c.b16 %v3205, %v3197
        %v3470 = vpack.c.b16 %v3214, %v3206
        %v3471 = vpack.c.b16 %v3215, %v3207
        %v3472 = vpack.c.b16 %v3216, %v3208
        %v3473 = vpack.c.b16 %v3217, %v3209
        %v3474 = vpack.c.b16 %v3218, %v3210
        %v3475 = vpack.c.b16 %v3219, %v3211
        %v3476 = vpack.c.b16 %v3220, %v3212
        %v3477 = vpack.c.b16 %v3221, %v3213
        %3734 = vmatprep.subr.bf16.mxu0 %v3279
        %3735 = vmatpush1.bf16.msra.mxu0 %v3278
        %3736 = vmatprep.subr.bf16.mxu0 %v3271
        %3737 = vmatpush1.bf16.msra.mxu0 %v3270
        %3738 = vmatprep.subr.bf16.mxu0 %v3263
        %3739 = vmatpush1.bf16.msra.mxu0 %v3262
        %3740 = vmatprep.subr.bf16.mxu0 %v3255
        %3741 = vmatpush1.bf16.msra.mxu0 %v3254
        %3742 = vmatprep.subr.bf16.mxu0 %v3247
        %3743 = vmatpush1.bf16.msra.mxu0 %v3246
        %3744 = vmatprep.subr.bf16.mxu0 %v3239
        %3745 = vmatpush1.bf16.msra.mxu0 %v3238
        %3746 = vmatprep.subr.bf16.mxu0 %v3231
        %3747 = vmatpush1.bf16.msra.mxu0 %v3230
        %3748 = vmatprep.subr.bf16.mxu0 %v3223
        %3749 = vmatpush1.bf16.msra.mxu0 %v3222
        %3750 = vmatprep.subr.bf16.mxu0 %v3343
        %3751 = vmatpush2.bf16.msra.mxu0 %v3342
        %3752 = vmatprep.subr.bf16.mxu0 %v3335
        %3753 = vmatpush2.bf16.msra.mxu0 %v3334
        %3754 = vmatprep.subr.bf16.mxu0 %v3327
        %3755 = vmatpush2.bf16.msra.mxu0 %v3326
        %3756 = vmatprep.subr.bf16.mxu0 %v3319
        %3757 = vmatpush2.bf16.msra.mxu0 %v3318
        %3758 = vmatprep.subr.bf16.mxu0 %v3311
        %3759 = vmatpush2.bf16.msra.mxu0 %v3310
        %3760 = vmatprep.subr.bf16.mxu0 %v3303
        %3761 = vmatpush2.bf16.msra.mxu0 %v3302
        %3762 = vmatprep.subr.bf16.mxu0 %v3295
        %3763 = vmatpush2.bf16.msra.mxu0 %v3294
        %3764 = vmatprep.subr.bf16.mxu0 %v3287
        %3765 = vmatpush2.bf16.msra.mxu0 %v3286
        %3766 = vmatprep.mubr.bf16.mxu0 %v2153
        %3767 = vmatmul.mubr.bf16.gmra.mxu0 %v2152
        %v3768 = vpop.f32.mrf.mxu0
        %v3769 = vadd.f32 %v2417, %v3768
        %v3770 = vpop.f32.mrf.mxu0
        %v3771 = vadd.f32 %v2421, %v3770
        %v3772 = vpop.f32.mrf.mxu0
        %v3773 = vpop.f32.mrf.mxu0
        %3774 = vdwg.mxu0
        %3775 = vmatprep.subr.bf16.mxu0 %v3407
        %3776 = vmatpush1.bf16.msra.mxu0 %v3406
        %3777 = vmatprep.subr.bf16.mxu0 %v3399
        %3778 = vmatpush1.bf16.msra.mxu0 %v3398
        %3779 = vmatprep.subr.bf16.mxu0 %v3391
        %3780 = vmatpush1.bf16.msra.mxu0 %v3390
        %3781 = vmatprep.subr.bf16.mxu0 %v3383
        %3782 = vmatpush1.bf16.msra.mxu0 %v3382
        %3783 = vmatprep.subr.bf16.mxu0 %v3375
        %3784 = vmatpush1.bf16.msra.mxu0 %v3374
        %3785 = vmatprep.subr.bf16.mxu0 %v3367
        %3786 = vmatpush1.bf16.msra.mxu0 %v3366
        %3787 = vmatprep.subr.bf16.mxu0 %v3359
        %3788 = vmatpush1.bf16.msra.mxu0 %v3358
        %3789 = vmatprep.subr.bf16.mxu0 %v3351
        %3790 = vmatpush1.bf16.msra.mxu0 %v3350
        %3791 = vmatprep.subr.bf16.mxu0 %v3471
        %3792 = vmatpush2.bf16.msra.mxu0 %v3470
        %3793 = vmatprep.subr.bf16.mxu0 %v3463
        %3794 = vmatpush2.bf16.msra.mxu0 %v3462
        %3795 = vmatprep.subr.bf16.mxu0 %v3455
        %3796 = vmatpush2.bf16.msra.mxu0 %v3454
        %3797 = vmatprep.subr.bf16.mxu0 %v3447
        %3798 = vmatpush2.bf16.msra.mxu0 %v3446
        %3799 = vmatprep.subr.bf16.mxu0 %v3439
        %3800 = vmatpush2.bf16.msra.mxu0 %v3438
        %3801 = vmatprep.subr.bf16.mxu0 %v3431
        %3802 = vmatpush2.bf16.msra.mxu0 %v3430
        %3803 = vmatprep.subr.bf16.mxu0 %v3423
        %3804 = vmatpush2.bf16.msra.mxu0 %v3422
        %3805 = vmatprep.subr.bf16.mxu0 %v3415
        %3806 = vmatpush2.bf16.msra.mxu0 %v3414
        %3807 = vmatprep.mubr.bf16.mxu0 %v2155
        %3808 = vmatmul.mubr.bf16.gmra.mxu0 %v2154
        %v3809 = vpop.f32.mrf.mxu0
        %v3810 = vadd.f32 %v3769, %v3809
        %v3811 = vpop.f32.mrf.mxu0
        %v3812 = vadd.f32 %v3771, %v3811
        %v3813 = vpop.f32.mrf.mxu0
        %v3814 = vpop.f32.mrf.mxu0
        %3815 = vdwg.mxu0
        %3816 = vmatprep.subr.bf16.mxu0 %v3281
        %3817 = vmatpush1.bf16.msra.mxu0 %v3280
        %3818 = vmatprep.subr.bf16.mxu0 %v3273
        %3819 = vmatpush1.bf16.msra.mxu0 %v3272
        %3820 = vmatprep.subr.bf16.mxu0 %v3265
        %3821 = vmatpush1.bf16.msra.mxu0 %v3264
        %3822 = vmatprep.subr.bf16.mxu0 %v3257
        %3823 = vmatpush1.bf16.msra.mxu0 %v3256
        %3824 = vmatprep.subr.bf16.mxu0 %v3249
        %3825 = vmatpush1.bf16.msra.mxu0 %v3248
        %3826 = vmatprep.subr.bf16.mxu0 %v3241
        %3827 = vmatpush1.bf16.msra.mxu0 %v3240
        %3828 = vmatprep.subr.bf16.mxu0 %v3233
        %3829 = vmatpush1.bf16.msra.mxu0 %v3232
        %3830 = vmatprep.subr.bf16.mxu0 %v3225
        %3831 = vmatpush1.bf16.msra.mxu0 %v3224
        %3832 = vmatprep.subr.bf16.mxu0 %v3345
        %3833 = vmatpush2.bf16.msra.mxu0 %v3344
        %3834 = vmatprep.subr.bf16.mxu0 %v3337
        %3835 = vmatpush2.bf16.msra.mxu0 %v3336
        %3836 = vmatprep.subr.bf16.mxu0 %v3329
        %3837 = vmatpush2.bf16.msra.mxu0 %v3328
        %3838 = vmatprep.subr.bf16.mxu0 %v3321
        %3839 = vmatpush2.bf16.msra.mxu0 %v3320
        %3840 = vmatprep.subr.bf16.mxu0 %v3313
        %3841 = vmatpush2.bf16.msra.mxu0 %v3312
        %3842 = vmatprep.subr.bf16.mxu0 %v3305
        %3843 = vmatpush2.bf16.msra.mxu0 %v3304
        %3844 = vmatprep.subr.bf16.mxu0 %v3297
        %3845 = vmatpush2.bf16.msra.mxu0 %v3296
        %3846 = vmatprep.subr.bf16.mxu0 %v3289
        %3847 = vmatpush2.bf16.msra.mxu0 %v3288
        %3848 = vmatprep.mubr.bf16.mxu0 %v2153
        %3849 = vmatmul.mubr.bf16.gmra.mxu0 %v2152
        %v3850 = vpop.f32.mrf.mxu0
        %v3851 = vadd.f32 %v2425, %v3850
        %v3852 = vpop.f32.mrf.mxu0
        %v3853 = vadd.f32 %v2429, %v3852
        %v3854 = vpop.f32.mrf.mxu0
        %v3855 = vpop.f32.mrf.mxu0
        %3856 = vdwg.mxu0
        %3857 = vmatprep.subr.bf16.mxu0 %v3409
        %3858 = vmatpush1.bf16.msra.mxu0 %v3408
        %3859 = vmatprep.subr.bf16.mxu0 %v3401
        %3860 = vmatpush1.bf16.msra.mxu0 %v3400
        %3861 = vmatprep.subr.bf16.mxu0 %v3393
        %3862 = vmatpush1.bf16.msra.mxu0 %v3392
        %3863 = vmatprep.subr.bf16.mxu0 %v3385
        %3864 = vmatpush1.bf16.msra.mxu0 %v3384
        %3865 = vmatprep.subr.bf16.mxu0 %v3377
        %3866 = vmatpush1.bf16.msra.mxu0 %v3376
        %3867 = vmatprep.subr.bf16.mxu0 %v3369
        %3868 = vmatpush1.bf16.msra.mxu0 %v3368
        %3869 = vmatprep.subr.bf16.mxu0 %v3361
        %3870 = vmatpush1.bf16.msra.mxu0 %v3360
        %3871 = vmatprep.subr.bf16.mxu0 %v3353
        %3872 = vmatpush1.bf16.msra.mxu0 %v3352
        %3873 = vmatprep.subr.bf16.mxu0 %v3473
        %3874 = vmatpush2.bf16.msra.mxu0 %v3472
        %3875 = vmatprep.subr.bf16.mxu0 %v3465
        %3876 = vmatpush2.bf16.msra.mxu0 %v3464
        %3877 = vmatprep.subr.bf16.mxu0 %v3457
        %3878 = vmatpush2.bf16.msra.mxu0 %v3456
        %3879 = vmatprep.subr.bf16.mxu0 %v3449
        %3880 = vmatpush2.bf16.msra.mxu0 %v3448
        %3881 = vmatprep.subr.bf16.mxu0 %v3441
        %3882 = vmatpush2.bf16.msra.mxu0 %v3440
        %3883 = vmatprep.subr.bf16.mxu0 %v3433
        %3884 = vmatpush2.bf16.msra.mxu0 %v3432
        %3885 = vmatprep.subr.bf16.mxu0 %v3425
        %3886 = vmatpush2.bf16.msra.mxu0 %v3424
        %3887 = vmatprep.subr.bf16.mxu0 %v3417
        %3888 = vmatpush2.bf16.msra.mxu0 %v3416
        %3889 = vmatprep.mubr.bf16.mxu0 %v2155
        %3890 = vmatmul.mubr.bf16.gmra.mxu0 %v2154
        %v3891 = vpop.f32.mrf.mxu0
        %v3892 = vadd.f32 %v3851, %v3891
        %v3893 = vpop.f32.mrf.mxu0
        %v3894 = vadd.f32 %v3853, %v3893
        %v3895 = vpop.f32.mrf.mxu0
        %v3896 = vpop.f32.mrf.mxu0
        %3897 = vdwg.mxu0
        %3898 = vmatprep.subr.bf16.mxu0 %v3283
        %3899 = vmatpush1.bf16.msra.mxu0 %v3282
        %3900 = vmatprep.subr.bf16.mxu0 %v3275
        %3901 = vmatpush1.bf16.msra.mxu0 %v3274
        %3902 = vmatprep.subr.bf16.mxu0 %v3267
        %3903 = vmatpush1.bf16.msra.mxu0 %v3266
        %3904 = vmatprep.subr.bf16.mxu0 %v3259
        %3905 = vmatpush1.bf16.msra.mxu0 %v3258
        %3906 = vmatprep.subr.bf16.mxu0 %v3251
        %3907 = vmatpush1.bf16.msra.mxu0 %v3250
        %3908 = vmatprep.subr.bf16.mxu0 %v3243
        %3909 = vmatpush1.bf16.msra.mxu0 %v3242
        %3910 = vmatprep.subr.bf16.mxu0 %v3235
        %3911 = vmatpush1.bf16.msra.mxu0 %v3234
        %3912 = vmatprep.subr.bf16.mxu0 %v3227
        %3913 = vmatpush1.bf16.msra.mxu0 %v3226
        %3914 = vmatprep.subr.bf16.mxu0 %v3347
        %3915 = vmatpush2.bf16.msra.mxu0 %v3346
        %3916 = vmatprep.subr.bf16.mxu0 %v3339
        %3917 = vmatpush2.bf16.msra.mxu0 %v3338
        %3918 = vmatprep.subr.bf16.mxu0 %v3331
        %3919 = vmatpush2.bf16.msra.mxu0 %v3330
        %3920 = vmatprep.subr.bf16.mxu0 %v3323
        %3921 = vmatpush2.bf16.msra.mxu0 %v3322
        %3922 = vmatprep.subr.bf16.mxu0 %v3315
        %3923 = vmatpush2.bf16.msra.mxu0 %v3314
        %3924 = vmatprep.subr.bf16.mxu0 %v3307
        %3925 = vmatpush2.bf16.msra.mxu0 %v3306
        %3926 = vmatprep.subr.bf16.mxu0 %v3299
        %3927 = vmatpush2.bf16.msra.mxu0 %v3298
        %3928 = vmatprep.subr.bf16.mxu0 %v3291
        %3929 = vmatpush2.bf16.msra.mxu0 %v3290
        %3930 = vmatprep.mubr.bf16.mxu0 %v2153
        %3931 = vmatmul.mubr.bf16.gmra.mxu0 %v2152
        %v3932 = vpop.f32.mrf.mxu0
        %v3933 = vadd.f32 %v2433, %v3932
        %v3934 = vpop.f32.mrf.mxu0
        %v3935 = vadd.f32 %v2437, %v3934
        %v3936 = vpop.f32.mrf.mxu0
        %v3937 = vpop.f32.mrf.mxu0
        %3938 = vdwg.mxu0
        %3939 = vmatprep.subr.bf16.mxu0 %v3411
        %3940 = vmatpush1.bf16.msra.mxu0 %v3410
        %3941 = vmatprep.subr.bf16.mxu0 %v3403
        %3942 = vmatpush1.bf16.msra.mxu0 %v3402
        %3943 = vmatprep.subr.bf16.mxu0 %v3395
        %3944 = vmatpush1.bf16.msra.mxu0 %v3394
        %3945 = vmatprep.subr.bf16.mxu0 %v3387
        %3946 = vmatpush1.bf16.msra.mxu0 %v3386
        %3947 = vmatprep.subr.bf16.mxu0 %v3379
        %3948 = vmatpush1.bf16.msra.mxu0 %v3378
        %3949 = vmatprep.subr.bf16.mxu0 %v3371
        %3950 = vmatpush1.bf16.msra.mxu0 %v3370
        %3951 = vmatprep.subr.bf16.mxu0 %v3363
        %3952 = vmatpush1.bf16.msra.mxu0 %v3362
        %3953 = vmatprep.subr.bf16.mxu0 %v3355
        %3954 = vmatpush1.bf16.msra.mxu0 %v3354
        %3955 = vmatprep.subr.bf16.mxu0 %v3475
        %3956 = vmatpush2.bf16.msra.mxu0 %v3474
        %3957 = vmatprep.subr.bf16.mxu0 %v3467
        %3958 = vmatpush2.bf16.msra.mxu0 %v3466
        %3959 = vmatprep.subr.bf16.mxu0 %v3459
        %3960 = vmatpush2.bf16.msra.mxu0 %v3458
        %3961 = vmatprep.subr.bf16.mxu0 %v3451
        %3962 = vmatpush2.bf16.msra.mxu0 %v3450
        %3963 = vmatprep.subr.bf16.mxu0 %v3443
        %3964 = vmatpush2.bf16.msra.mxu0 %v3442
        %3965 = vmatprep.subr.bf16.mxu0 %v3435
        %3966 = vmatpush2.bf16.msra.mxu0 %v3434
        %3967 = vmatprep.subr.bf16.mxu0 %v3427
        %3968 = vmatpush2.bf16.msra.mxu0 %v3426
        %3969 = vmatprep.subr.bf16.mxu0 %v3419
        %3970 = vmatpush2.bf16.msra.mxu0 %v3418
        %3971 = vmatprep.mubr.bf16.mxu0 %v2155
        %3972 = vmatmul.mubr.bf16.gmra.mxu0 %v2154
        %v3973 = vpop.f32.mrf.mxu0
        %v3974 = vadd.f32 %v3933, %v3973
        %v3975 = vpop.f32.mrf.mxu0
        %v3976 = vadd.f32 %v3935, %v3975
        %v3977 = vpop.f32.mrf.mxu0
        %v3978 = vpop.f32.mrf.mxu0
        %3979 = vdwg.mxu0
        %3980 = vmatprep.subr.bf16.mxu0 %v3285
        %3981 = vmatpush1.bf16.msra.mxu0 %v3284
        %3982 = vmatprep.subr.bf16.mxu0 %v3277
        %3983 = vmatpush1.bf16.msra.mxu0 %v3276
        %3984 = vmatprep.subr.bf16.mxu0 %v3269
        %3985 = vmatpush1.bf16.msra.mxu0 %v3268
        %3986 = vmatprep.subr.bf16.mxu0 %v3261
        %3987 = vmatpush1.bf16.msra.mxu0 %v3260
        %3988 = vmatprep.subr.bf16.mxu0 %v3253
        %3989 = vmatpush1.bf16.msra.mxu0 %v3252
        %3990 = vmatprep.subr.bf16.mxu0 %v3245
        %3991 = vmatpush1.bf16.msra.mxu0 %v3244
        %3992 = vmatprep.subr.bf16.mxu0 %v3237
        %3993 = vmatpush1.bf16.msra.mxu0 %v3236
        %3994 = vmatprep.subr.bf16.mxu0 %v3229
        %3995 = vmatpush1.bf16.msra.mxu0 %v3228
        %3996 = vmatprep.subr.bf16.mxu0 %v3349
        %3997 = vmatpush2.bf16.msra.mxu0 %v3348
        %3998 = vmatprep.subr.bf16.mxu0 %v3341
        %3999 = vmatpush2.bf16.msra.mxu0 %v3340
        %4000 = vmatprep.subr.bf16.mxu0 %v3333
        %4001 = vmatpush2.bf16.msra.mxu0 %v3332
        %4002 = vmatprep.subr.bf16.mxu0 %v3325
        %4003 = vmatpush2.bf16.msra.mxu0 %v3324
        %4004 = vmatprep.subr.bf16.mxu0 %v3317
        %4005 = vmatpush2.bf16.msra.mxu0 %v3316
        %4006 = vmatprep.subr.bf16.mxu0 %v3309
        %4007 = vmatpush2.bf16.msra.mxu0 %v3308
        %4008 = vmatprep.subr.bf16.mxu0 %v3301
        %4009 = vmatpush2.bf16.msra.mxu0 %v3300
        %4010 = vmatprep.subr.bf16.mxu0 %v3293
        %4011 = vmatpush2.bf16.msra.mxu0 %v3292
        %4012 = vmatprep.mubr.bf16.mxu0 %v2153
        %4013 = vmatmul.mubr.bf16.gmra.mxu0 %v2152
        %v4014 = vpop.f32.mrf.mxu0
        %v4015 = vadd.f32 %v2441, %v4014
        %v4016 = vpop.f32.mrf.mxu0
        %v4017 = vadd.f32 %v2445, %v4016
        %v4018 = vpop.f32.mrf.mxu0
        %v4019 = vpop.f32.mrf.mxu0
        %4020 = vdwg.mxu0
        %4021 = vmatprep.subr.bf16.mxu0 %v3413
        %4022 = vmatpush1.bf16.msra.mxu0 %v3412
        %4023 = vmatprep.subr.bf16.mxu0 %v3405
        %4024 = vmatpush1.bf16.msra.mxu0 %v3404
        %4025 = vmatprep.subr.bf16.mxu0 %v3397
        %4026 = vmatpush1.bf16.msra.mxu0 %v3396
        %4027 = vmatprep.subr.bf16.mxu0 %v3389
        %4028 = vmatpush1.bf16.msra.mxu0 %v3388
        %4029 = vmatprep.subr.bf16.mxu0 %v3381
        %4030 = vmatpush1.bf16.msra.mxu0 %v3380
        %4031 = vmatprep.subr.bf16.mxu0 %v3373
        %4032 = vmatpush1.bf16.msra.mxu0 %v3372
        %4033 = vmatprep.subr.bf16.mxu0 %v3365
        %4034 = vmatpush1.bf16.msra.mxu0 %v3364
        %4035 = vmatprep.subr.bf16.mxu0 %v3357
        %4036 = vmatpush1.bf16.msra.mxu0 %v3356
        %4037 = vmatprep.subr.bf16.mxu0 %v3477
        %4038 = vmatpush2.bf16.msra.mxu0 %v3476
        %4039 = vmatprep.subr.bf16.mxu0 %v3469
        %4040 = vmatpush2.bf16.msra.mxu0 %v3468
        %4041 = vmatprep.subr.bf16.mxu0 %v3461
        %4042 = vmatpush2.bf16.msra.mxu0 %v3460
        %4043 = vmatprep.subr.bf16.mxu0 %v3453
        %4044 = vmatpush2.bf16.msra.mxu0 %v3452
        %4045 = vmatprep.subr.bf16.mxu0 %v3445
        %4046 = vmatpush2.bf16.msra.mxu0 %v3444
        %4047 = vmatprep.subr.bf16.mxu0 %v3437
        %4048 = vmatpush2.bf16.msra.mxu0 %v3436
        %4049 = vmatprep.subr.bf16.mxu0 %v3429
        %4050 = vmatpush2.bf16.msra.mxu0 %v3428
        %4051 = vmatprep.subr.bf16.mxu0 %v3421
        %4052 = vmatpush2.bf16.msra.mxu0 %v3420
        %4053 = vmatprep.mubr.bf16.mxu0 %v2155
        %4054 = vmatmul.mubr.bf16.gmra.mxu0 %v2154
        %v4055 = vpop.f32.mrf.mxu0
        %v4056 = vadd.f32 %v4015, %v4055
        %v4057 = vpop.f32.mrf.mxu0
        %v4058 = vadd.f32 %v4017, %v4057
        %v4059 = vpop.f32.mrf.mxu0
        %v4060 = vpop.f32.mrf.mxu0
        %4061 = vdwg.mxu0
        %v4062 = vld [vmem:[%s19] sm:$0xff]
        %v4063 = vld [vmem:[%s20] sm:$0xff]
        %v4064 = vadd.f32 %v3810, %v3812
        %v4065 = vadd.f32 %v4064, %v3892
        %v4066 = vadd.f32 %v4065, %v3894
        %v4067 = vadd.f32 %v4066, %v3974
        %v4068 = vadd.f32 %v4067, %v3976
        %v4069 = vadd.f32 %v4068, %v4056
        %v4070 = vadd.f32 %v4069, %v4058
        %4071 = vadd.xlane.f32.xlu0 %v4070
        %v4072 = vpop.xlane.xlu0 %4071
        %v4073 = vrcp.pop 1024.0
        %v4074 = vmul.f32 %v4072, %v4073
        %v4075 = vsub.f32 %v3810, %v4074
        %v4076 = vsub.f32 %v3812, %v4074
        %v4077 = vsub.f32 %v3892, %v4074
        %v4078 = vsub.f32 %v3894, %v4074
        %v4079 = vsub.f32 %v3974, %v4074
        %v4080 = vsub.f32 %v3976, %v4074
        %v4081 = vsub.f32 %v4056, %v4074
        %v4082 = vsub.f32 %v4058, %v4074
        %v4083 = vmul.f32 %v4075, %v4075
        %v4084 = vmul.f32 %v4076, %v4076
        %v4085 = vmul.f32 %v4077, %v4077
        %v4086 = vmul.f32 %v4078, %v4078
        %v4087 = vmul.f32 %v4079, %v4079
        %v4088 = vmul.f32 %v4080, %v4080
        %v4089 = vmul.f32 %v4081, %v4081
        %v4090 = vmul.f32 %v4082, %v4082
        %v4091 = vadd.f32 %v4083, %v4084
        %v4092 = vadd.f32 %v4091, %v4085
        %v4093 = vadd.f32 %v4092, %v4086
        %v4094 = vadd.f32 %v4093, %v4087
        %v4095 = vadd.f32 %v4094, %v4088
        %v4096 = vadd.f32 %v4095, %v4089
        %v4097 = vadd.f32 %v4096, %v4090
        %4098 = vadd.xlane.f32.xlu0 %v4097
        %v4099 = vpop.xlane.xlu0 %4098
        %v4100 = vmul.f32 %v4099, %v4073
        %v4101 = vadd.f32 %v4100, 1e-05
        %v4102 = vrsqrt.pop %v4101
        %v4103 = vmul.f32 %v4075, %v4102
        %v4104 = vmul.f32 %v4076, %v4102
        %v4105 = vmul.f32 %v4077, %v4102
        %v4106 = vmul.f32 %v4078, %v4102
        %v4107 = vmul.f32 %v4079, %v4102
        %v4108 = vmul.f32 %v4080, %v4102
        %v4109 = vmul.f32 %v4081, %v4102
        %v4110 = vmul.f32 %v4082, %v4102
        %v4112 = vlaneseq
        %v4113 = vshrl.u32 %v4112, 7
        %v4114 = vsub.s32 0, %v4113
        %v4115 = vrot.slane %v4062, %v4114
        %v4116 = vlaneseq
        %v4117 = vshrl.u32 %v4116, 7
        %v4118 = vsub.s32 1, %v4117
        %v4119 = vrot.slane %v4062, %v4118
        %v4120 = vlaneseq
        %v4121 = vshrl.u32 %v4120, 7
        %v4122 = vsub.s32 2, %v4121
        %v4123 = vrot.slane %v4062, %v4122
        %v4124 = vlaneseq
        %v4125 = vshrl.u32 %v4124, 7
        %v4126 = vsub.s32 3, %v4125
        %v4127 = vrot.slane %v4062, %v4126
        %v4128 = vlaneseq
        %v4129 = vshrl.u32 %v4128, 7
        %v4130 = vsub.s32 4, %v4129
        %v4131 = vrot.slane %v4062, %v4130
        %v4132 = vlaneseq
        %v4133 = vshrl.u32 %v4132, 7
        %v4134 = vsub.s32 5, %v4133
        %v4135 = vrot.slane %v4062, %v4134
        %v4136 = vlaneseq
        %v4137 = vshrl.u32 %v4136, 7
        %v4138 = vsub.s32 6, %v4137
        %v4139 = vrot.slane %v4062, %v4138
        %v4140 = vlaneseq
        %v4141 = vshrl.u32 %v4140, 7
        %v4142 = vsub.s32 7, %v4141
        %v4143 = vrot.slane %v4062, %v4142
        %v4152 = vmul.f32 %v4103, %v4115
        %v4153 = vmul.f32 %v4104, %v4119
        %v4154 = vmul.f32 %v4105, %v4123
        %v4155 = vmul.f32 %v4106, %v4127
        %v4156 = vmul.f32 %v4107, %v4131
        %v4157 = vmul.f32 %v4108, %v4135
        %v4158 = vmul.f32 %v4109, %v4139
        %v4159 = vmul.f32 %v4110, %v4143
        %v4161 = vlaneseq
        %v4162 = vshrl.u32 %v4161, 7
        %v4163 = vsub.s32 0, %v4162
        %v4164 = vrot.slane %v4063, %v4163
        %v4165 = vlaneseq
        %v4166 = vshrl.u32 %v4165, 7
        %v4167 = vsub.s32 1, %v4166
        %v4168 = vrot.slane %v4063, %v4167
        %v4169 = vlaneseq
        %v4170 = vshrl.u32 %v4169, 7
        %v4171 = vsub.s32 2, %v4170
        %v4172 = vrot.slane %v4063, %v4171
        %v4173 = vlaneseq
        %v4174 = vshrl.u32 %v4173, 7
        %v4175 = vsub.s32 3, %v4174
        %v4176 = vrot.slane %v4063, %v4175
        %v4177 = vlaneseq
        %v4178 = vshrl.u32 %v4177, 7
        %v4179 = vsub.s32 4, %v4178
        %v4180 = vrot.slane %v4063, %v4179
        %v4181 = vlaneseq
        %v4182 = vshrl.u32 %v4181, 7
        %v4183 = vsub.s32 5, %v4182
        %v4184 = vrot.slane %v4063, %v4183
        %v4185 = vlaneseq
        %v4186 = vshrl.u32 %v4185, 7
        %v4187 = vsub.s32 6, %v4186
        %v4188 = vrot.slane %v4063, %v4187
        %v4189 = vlaneseq
        %v4190 = vshrl.u32 %v4189, 7
        %v4191 = vsub.s32 7, %v4190
        %v4192 = vrot.slane %v4063, %v4191
        %v4201 = vadd.f32 %v4152, %v4164
        %v4202 = vadd.f32 %v4153, %v4168
        %v4203 = vadd.f32 %v4154, %v4172
        %v4204 = vadd.f32 %v4155, %v4176
        %v4205 = vadd.f32 %v4156, %v4180
        %v4206 = vadd.f32 %v4157, %v4184
        %v4207 = vadd.f32 %v4158, %v4188
        %v4208 = vadd.f32 %v4159, %v4192
        %v4209 = vxor.u32 %v4201, 2147483648
        %v4210 = vxor.u32 %v4202, 2147483648
        %v4211 = vxor.u32 %v4203, 2147483648
        %v4212 = vxor.u32 %v4204, 2147483648
        %v4213 = vxor.u32 %v4205, 2147483648
        %v4214 = vxor.u32 %v4206, 2147483648
        %v4215 = vxor.u32 %v4207, 2147483648
        %v4216 = vxor.u32 %v4208, 2147483648
        %v4217 = vmul.f32 %v4209, 1.442695
        %v4218 = vpow.pop %v4217
        %v4219 = vmul.f32 %v4210, 1.442695
        %v4220 = vpow.pop %v4219
        %v4221 = vmul.f32 %v4211, 1.442695
        %v4222 = vpow.pop %v4221
        %v4223 = vmul.f32 %v4212, 1.442695
        %v4224 = vpow.pop %v4223
        %v4225 = vmul.f32 %v4213, 1.442695
        %v4226 = vpow.pop %v4225
        %v4227 = vmul.f32 %v4214, 1.442695
        %v4228 = vpow.pop %v4227
        %v4229 = vmul.f32 %v4215, 1.442695
        %v4230 = vpow.pop %v4229
        %v4231 = vmul.f32 %v4216, 1.442695
        %v4232 = vpow.pop %v4231
        %v4233 = vadd.f32 %v4218, 1.0
        %v4234 = vadd.f32 %v4220, 1.0
        %v4235 = vadd.f32 %v4222, 1.0
        %v4236 = vadd.f32 %v4224, 1.0
        %v4237 = vadd.f32 %v4226, 1.0
        %v4238 = vadd.f32 %v4228, 1.0
        %v4239 = vadd.f32 %v4230, 1.0
        %v4240 = vadd.f32 %v4232, 1.0
        %v4241 = vrcp.pop %v4233
        %v4242 = vmul.f32 1.0, %v4241
        %v4243 = vrcp.pop %v4234
        %v4244 = vmul.f32 1.0, %v4243
        %v4245 = vrcp.pop %v4235
        %v4246 = vmul.f32 1.0, %v4245
        %v4247 = vrcp.pop %v4236
        %v4248 = vmul.f32 1.0, %v4247
        %v4249 = vrcp.pop %v4237
        %v4250 = vmul.f32 1.0, %v4249
        %v4251 = vrcp.pop %v4238
        %v4252 = vmul.f32 1.0, %v4251
        %v4253 = vrcp.pop %v4239
        %v4254 = vmul.f32 1.0, %v4253
        %v4255 = vrcp.pop %v4240
        %v4256 = vmul.f32 1.0, %v4255
        %v4257 = vmul.f32 %v4201, %v4242
        %v4258 = vmul.f32 %v4202, %v4244
        %v4259 = vmul.f32 %v4203, %v4246
        %v4260 = vmul.f32 %v4204, %v4248
        %v4261 = vmul.f32 %v4205, %v4250
        %v4262 = vmul.f32 %v4206, %v4252
        %v4263 = vmul.f32 %v4207, %v4254
        %v4264 = vmul.f32 %v4208, %v4256
        %v4265 = vpack.c.bf16 %v4257, %v4257
        %v4266 = vpack.c.bf16 %v4258, %v4258
        %v4267 = vpack.c.bf16 %v4259, %v4259
        %v4268 = vpack.c.bf16 %v4260, %v4260
        %v4269 = vpack.c.bf16 %v4261, %v4261
        %v4270 = vpack.c.bf16 %v4262, %v4262
        %v4271 = vpack.c.bf16 %v4263, %v4263
        %v4272 = vpack.c.bf16 %v4264, %v4264
        %v4273 = vld [vmem:[%s21] sm:$0xf]
        %v4274 = vld [vmem:[%s21 + $0x4] sm:$0xf]
        %v4275 = vld [vmem:[%s21 + $0x8] sm:$0xf]
        %v4276 = vld [vmem:[%s21 + $0xc] sm:$0xf]
        %v4277 = vld [vmem:[%s21 + $0x10] sm:$0xf]
        %v4278 = vld [vmem:[%s21 + $0x14] sm:$0xf]
        %v4279 = vld [vmem:[%s21 + $0x18] sm:$0xf]
        %v4280 = vld [vmem:[%s21 + $0x1c] sm:$0xf]
        %v4281 = vld [vmem:[%s21 + $0x20] sm:$0xf]
        %v4282 = vld [vmem:[%s21 + $0x24] sm:$0xf]
        %v4283 = vld [vmem:[%s21 + $0x28] sm:$0xf]
        %v4284 = vld [vmem:[%s21 + $0x2c] sm:$0xf]
        %v4285 = vld [vmem:[%s21 + $0x30] sm:$0xf]
        %v4286 = vld [vmem:[%s21 + $0x34] sm:$0xf]
        %v4287 = vld [vmem:[%s21 + $0x38] sm:$0xf]
        %v4288 = vld [vmem:[%s21 + $0x3c] sm:$0xf]
        %v4289 = vld [vmem:[%s21 + $0x40] sm:$0xf]
        %v4290 = vld [vmem:[%s21 + $0x44] sm:$0xf]
        %v4291 = vld [vmem:[%s21 + $0x48] sm:$0xf]
        %v4292 = vld [vmem:[%s21 + $0x4c] sm:$0xf]
        %v4293 = vld [vmem:[%s21 + $0x50] sm:$0xf]
        %v4294 = vld [vmem:[%s21 + $0x54] sm:$0xf]
        %v4295 = vld [vmem:[%s21 + $0x58] sm:$0xf]
        %v4296 = vld [vmem:[%s21 + $0x5c] sm:$0xf]
        %v4297 = vld [vmem:[%s21 + $0x60] sm:$0xf]
        %v4298 = vld [vmem:[%s21 + $0x64] sm:$0xf]
        %v4299 = vld [vmem:[%s21 + $0x68] sm:$0xf]
        %v4300 = vld [vmem:[%s21 + $0x6c] sm:$0xf]
        %v4301 = vld [vmem:[%s21 + $0x70] sm:$0xf]
        %v4302 = vld [vmem:[%s21 + $0x74] sm:$0xf]
        %v4303 = vld [vmem:[%s21 + $0x78] sm:$0xf]
        %v4304 = vld [vmem:[%s21 + $0x7c] sm:$0xf]
        %v4305 = vld [vmem:[%s21 + $0x80] sm:$0xf]
        %v4306 = vld [vmem:[%s21 + $0x84] sm:$0xf]
        %v4307 = vld [vmem:[%s21 + $0x88] sm:$0xf]
        %v4308 = vld [vmem:[%s21 + $0x8c] sm:$0xf]
        %v4309 = vld [vmem:[%s21 + $0x90] sm:$0xf]
        %v4310 = vld [vmem:[%s21 + $0x94] sm:$0xf]
        %v4311 = vld [vmem:[%s21 + $0x98] sm:$0xf]
        %v4312 = vld [vmem:[%s21 + $0x9c] sm:$0xf]
        %v4313 = vld [vmem:[%s21 + $0xa0] sm:$0xf]
        %v4314 = vld [vmem:[%s21 + $0xa4] sm:$0xf]
        %v4315 = vld [vmem:[%s21 + $0xa8] sm:$0xf]
        %v4316 = vld [vmem:[%s21 + $0xac] sm:$0xf]
        %v4317 = vld [vmem:[%s21 + $0xb0] sm:$0xf]
        %v4318 = vld [vmem:[%s21 + $0xb4] sm:$0xf]
        %v4319 = vld [vmem:[%s21 + $0xb8] sm:$0xf]
        %v4320 = vld [vmem:[%s21 + $0xbc] sm:$0xf]
        %v4321 = vld [vmem:[%s21 + $0xc0] sm:$0xf]
        %v4322 = vld [vmem:[%s21 + $0xc4] sm:$0xf]
        %v4323 = vld [vmem:[%s21 + $0xc8] sm:$0xf]
        %v4324 = vld [vmem:[%s21 + $0xcc] sm:$0xf]
        %v4325 = vld [vmem:[%s21 + $0xd0] sm:$0xf]
        %v4326 = vld [vmem:[%s21 + $0xd4] sm:$0xf]
        %v4327 = vld [vmem:[%s21 + $0xd8] sm:$0xf]
        %v4328 = vld [vmem:[%s21 + $0xdc] sm:$0xf]
        %v4329 = vld [vmem:[%s21 + $0xe0] sm:$0xf]
        %v4330 = vld [vmem:[%s21 + $0xe4] sm:$0xf]
        %v4331 = vld [vmem:[%s21 + $0xe8] sm:$0xf]
        %v4332 = vld [vmem:[%s21 + $0xec] sm:$0xf]
        %v4333 = vld [vmem:[%s21 + $0xf0] sm:$0xf]
        %v4334 = vld [vmem:[%s21 + $0xf4] sm:$0xf]
        %v4335 = vld [vmem:[%s21 + $0xf8] sm:$0xf]
        %v4336 = vld [vmem:[%s21 + $0xfc] sm:$0xf]
        %v4337 = vld [vmem:[%s21 + $0x100] sm:$0xf]
        %v4338 = vld [vmem:[%s21 + $0x104] sm:$0xf]
        %v4339 = vld [vmem:[%s21 + $0x108] sm:$0xf]
        %v4340 = vld [vmem:[%s21 + $0x10c] sm:$0xf]
        %v4341 = vld [vmem:[%s21 + $0x110] sm:$0xf]
        %v4342 = vld [vmem:[%s21 + $0x114] sm:$0xf]
        %v4343 = vld [vmem:[%s21 + $0x118] sm:$0xf]
        %v4344 = vld [vmem:[%s21 + $0x11c] sm:$0xf]
        %v4345 = vld [vmem:[%s21 + $0x120] sm:$0xf]
        %v4346 = vld [vmem:[%s21 + $0x124] sm:$0xf]
        %v4347 = vld [vmem:[%s21 + $0x128] sm:$0xf]
        %v4348 = vld [vmem:[%s21 + $0x12c] sm:$0xf]
        %v4349 = vld [vmem:[%s21 + $0x130] sm:$0xf]
        %v4350 = vld [vmem:[%s21 + $0x134] sm:$0xf]
        %v4351 = vld [vmem:[%s21 + $0x138] sm:$0xf]
        %v4352 = vld [vmem:[%s21 + $0x13c] sm:$0xf]
        %v4353 = vld [vmem:[%s21 + $0x140] sm:$0xf]
        %v4354 = vld [vmem:[%s21 + $0x144] sm:$0xf]
        %v4355 = vld [vmem:[%s21 + $0x148] sm:$0xf]
        %v4356 = vld [vmem:[%s21 + $0x14c] sm:$0xf]
        %v4357 = vld [vmem:[%s21 + $0x150] sm:$0xf]
        %v4358 = vld [vmem:[%s21 + $0x154] sm:$0xf]
        %v4359 = vld [vmem:[%s21 + $0x158] sm:$0xf]
        %v4360 = vld [vmem:[%s21 + $0x15c] sm:$0xf]
        %v4361 = vld [vmem:[%s21 + $0x160] sm:$0xf]
        %v4362 = vld [vmem:[%s21 + $0x164] sm:$0xf]
        %v4363 = vld [vmem:[%s21 + $0x168] sm:$0xf]
        %v4364 = vld [vmem:[%s21 + $0x16c] sm:$0xf]
        %v4365 = vld [vmem:[%s21 + $0x170] sm:$0xf]
        %v4366 = vld [vmem:[%s21 + $0x174] sm:$0xf]
        %v4367 = vld [vmem:[%s21 + $0x178] sm:$0xf]
        %v4368 = vld [vmem:[%s21 + $0x17c] sm:$0xf]
        %v4369 = vld [vmem:[%s21 + $0x180] sm:$0xf]
        %v4370 = vld [vmem:[%s21 + $0x184] sm:$0xf]
        %v4371 = vld [vmem:[%s21 + $0x188] sm:$0xf]
        %v4372 = vld [vmem:[%s21 + $0x18c] sm:$0xf]
        %v4373 = vld [vmem:[%s21 + $0x190] sm:$0xf]
        %v4374 = vld [vmem:[%s21 + $0x194] sm:$0xf]
        %v4375 = vld [vmem:[%s21 + $0x198] sm:$0xf]
        %v4376 = vld [vmem:[%s21 + $0x19c] sm:$0xf]
        %v4377 = vld [vmem:[%s21 + $0x1a0] sm:$0xf]
        %v4378 = vld [vmem:[%s21 + $0x1a4] sm:$0xf]
        %v4379 = vld [vmem:[%s21 + $0x1a8] sm:$0xf]
        %v4380 = vld [vmem:[%s21 + $0x1ac] sm:$0xf]
        %v4381 = vld [vmem:[%s21 + $0x1b0] sm:$0xf]
        %v4382 = vld [vmem:[%s21 + $0x1b4] sm:$0xf]
        %v4383 = vld [vmem:[%s21 + $0x1b8] sm:$0xf]
        %v4384 = vld [vmem:[%s21 + $0x1bc] sm:$0xf]
        %v4385 = vld [vmem:[%s21 + $0x1c0] sm:$0xf]
        %v4386 = vld [vmem:[%s21 + $0x1c4] sm:$0xf]
        %v4387 = vld [vmem:[%s21 + $0x1c8] sm:$0xf]
        %v4388 = vld [vmem:[%s21 + $0x1cc] sm:$0xf]
        %v4389 = vld [vmem:[%s21 + $0x1d0] sm:$0xf]
        %v4390 = vld [vmem:[%s21 + $0x1d4] sm:$0xf]
        %v4391 = vld [vmem:[%s21 + $0x1d8] sm:$0xf]
        %v4392 = vld [vmem:[%s21 + $0x1dc] sm:$0xf]
        %v4393 = vld [vmem:[%s21 + $0x1e0] sm:$0xf]
        %v4394 = vld [vmem:[%s21 + $0x1e4] sm:$0xf]
        %v4395 = vld [vmem:[%s21 + $0x1e8] sm:$0xf]
        %v4396 = vld [vmem:[%s21 + $0x1ec] sm:$0xf]
        %v4397 = vld [vmem:[%s21 + $0x1f0] sm:$0xf]
        %v4398 = vld [vmem:[%s21 + $0x1f4] sm:$0xf]
        %v4399 = vld [vmem:[%s21 + $0x1f8] sm:$0xf]
        %v4400 = vld [vmem:[%s21 + $0x1fc] sm:$0xf]
        %v4401 = vld [vmem:[%s22] sm:$0x1]
        %v4403 = vlaneseq
        %v4404 = vshrl.u32 %v4403, 7
        %v4405 = vsub.s32 0, %v4404
        %v4406 = vrot.slane %v4401, %v4405
        %v4536 = vunpack.c.l.b16 %v4273
        %v4537 = vunpack.c.l.b16 %v4274
        %v4538 = vunpack.c.l.b16 %v4275
        %v4539 = vunpack.c.l.b16 %v4276
        %v4540 = vunpack.c.l.b16 %v4277
        %v4541 = vunpack.c.l.b16 %v4278
        %v4542 = vunpack.c.l.b16 %v4279
        %v4543 = vunpack.c.l.b16 %v4280
        %v4544 = vunpack.c.l.b16 %v4281
        %v4545 = vunpack.c.l.b16 %v4282
        %v4546 = vunpack.c.l.b16 %v4283
        %v4547 = vunpack.c.l.b16 %v4284
        %v4548 = vunpack.c.l.b16 %v4285
        %v4549 = vunpack.c.l.b16 %v4286
        %v4550 = vunpack.c.l.b16 %v4287
        %v4551 = vunpack.c.l.b16 %v4288
        %v4552 = vunpack.c.l.b16 %v4289
        %v4553 = vunpack.c.l.b16 %v4290
        %v4554 = vunpack.c.l.b16 %v4291
        %v4555 = vunpack.c.l.b16 %v4292
        %v4556 = vunpack.c.l.b16 %v4293
        %v4557 = vunpack.c.l.b16 %v4294
        %v4558 = vunpack.c.l.b16 %v4295
        %v4559 = vunpack.c.l.b16 %v4296
        %v4560 = vunpack.c.l.b16 %v4297
        %v4561 = vunpack.c.l.b16 %v4298
        %v4562 = vunpack.c.l.b16 %v4299
        %v4563 = vunpack.c.l.b16 %v4300
        %v4564 = vunpack.c.l.b16 %v4301
        %v4565 = vunpack.c.l.b16 %v4302
        %v4566 = vunpack.c.l.b16 %v4303
        %v4567 = vunpack.c.l.b16 %v4304
        %v4568 = vunpack.c.l.b16 %v4305
        %v4569 = vunpack.c.l.b16 %v4306
        %v4570 = vunpack.c.l.b16 %v4307
        %v4571 = vunpack.c.l.b16 %v4308
        %v4572 = vunpack.c.l.b16 %v4309
        %v4573 = vunpack.c.l.b16 %v4310
        %v4574 = vunpack.c.l.b16 %v4311
        %v4575 = vunpack.c.l.b16 %v4312
        %v4576 = vunpack.c.l.b16 %v4313
        %v4577 = vunpack.c.l.b16 %v4314
        %v4578 = vunpack.c.l.b16 %v4315
        %v4579 = vunpack.c.l.b16 %v4316
        %v4580 = vunpack.c.l.b16 %v4317
        %v4581 = vunpack.c.l.b16 %v4318
        %v4582 = vunpack.c.l.b16 %v4319
        %v4583 = vunpack.c.l.b16 %v4320
        %v4584 = vunpack.c.l.b16 %v4321
        %v4585 = vunpack.c.l.b16 %v4322
        %v4586 = vunpack.c.l.b16 %v4323
        %v4587 = vunpack.c.l.b16 %v4324
        %v4588 = vunpack.c.l.b16 %v4325
        %v4589 = vunpack.c.l.b16 %v4326
        %v4590 = vunpack.c.l.b16 %v4327
        %v4591 = vunpack.c.l.b16 %v4328
        %v4592 = vunpack.c.l.b16 %v4329
        %v4593 = vunpack.c.l.b16 %v4330
        %v4594 = vunpack.c.l.b16 %v4331
        %v4595 = vunpack.c.l.b16 %v4332
        %v4596 = vunpack.c.l.b16 %v4333
        %v4597 = vunpack.c.l.b16 %v4334
        %v4598 = vunpack.c.l.b16 %v4335
        %v4599 = vunpack.c.l.b16 %v4336
        %v4600 = vunpack.c.l.b16 %v4337
        %v4601 = vunpack.c.l.b16 %v4338
        %v4602 = vunpack.c.l.b16 %v4339
        %v4603 = vunpack.c.l.b16 %v4340
        %v4604 = vunpack.c.l.b16 %v4341
        %v4605 = vunpack.c.l.b16 %v4342
        %v4606 = vunpack.c.l.b16 %v4343
        %v4607 = vunpack.c.l.b16 %v4344
        %v4608 = vunpack.c.l.b16 %v4345
        %v4609 = vunpack.c.l.b16 %v4346
        %v4610 = vunpack.c.l.b16 %v4347
        %v4611 = vunpack.c.l.b16 %v4348
        %v4612 = vunpack.c.l.b16 %v4349
        %v4613 = vunpack.c.l.b16 %v4350
        %v4614 = vunpack.c.l.b16 %v4351
        %v4615 = vunpack.c.l.b16 %v4352
        %v4616 = vunpack.c.l.b16 %v4353
        %v4617 = vunpack.c.l.b16 %v4354
        %v4618 = vunpack.c.l.b16 %v4355
        %v4619 = vunpack.c.l.b16 %v4356
        %v4620 = vunpack.c.l.b16 %v4357
        %v4621 = vunpack.c.l.b16 %v4358
        %v4622 = vunpack.c.l.b16 %v4359
        %v4623 = vunpack.c.l.b16 %v4360
        %v4624 = vunpack.c.l.b16 %v4361
        %v4625 = vunpack.c.l.b16 %v4362
        %v4626 = vunpack.c.l.b16 %v4363
        %v4627 = vunpack.c.l.b16 %v4364
        %v4628 = vunpack.c.l.b16 %v4365
        %v4629 = vunpack.c.l.b16 %v4366
        %v4630 = vunpack.c.l.b16 %v4367
        %v4631 = vunpack.c.l.b16 %v4368
        %v4632 = vunpack.c.l.b16 %v4369
        %v4633 = vunpack.c.l.b16 %v4370
        %v4634 = vunpack.c.l.b16 %v4371
        %v4635 = vunpack.c.l.b16 %v4372
        %v4636 = vunpack.c.l.b16 %v4373
        %v4637 = vunpack.c.l.b16 %v4374
        %v4638 = vunpack.c.l.b16 %v4375
        %v4639 = vunpack.c.l.b16 %v4376
        %v4640 = vunpack.c.l.b16 %v4377
        %v4641 = vunpack.c.l.b16 %v4378
        %v4642 = vunpack.c.l.b16 %v4379
        %v4643 = vunpack.c.l.b16 %v4380
        %v4644 = vunpack.c.l.b16 %v4381
        %v4645 = vunpack.c.l.b16 %v4382
        %v4646 = vunpack.c.l.b16 %v4383
        %v4647 = vunpack.c.l.b16 %v4384
        %v4648 = vunpack.c.l.b16 %v4385
        %v4649 = vunpack.c.l.b16 %v4386
        %v4650 = vunpack.c.l.b16 %v4387
        %v4651 = vunpack.c.l.b16 %v4388
        %v4652 = vunpack.c.l.b16 %v4389
        %v4653 = vunpack.c.l.b16 %v4390
        %v4654 = vunpack.c.l.b16 %v4391
        %v4655 = vunpack.c.l.b16 %v4392
        %v4656 = vunpack.c.l.b16 %v4393
        %v4657 = vunpack.c.l.b16 %v4394
        %v4658 = vunpack.c.l.b16 %v4395
        %v4659 = vunpack.c.l.b16 %v4396
        %v4660 = vunpack.c.l.b16 %v4397
        %v4661 = vunpack.c.l.b16 %v4398
        %v4662 = vunpack.c.l.b16 %v4399
        %v4663 = vunpack.c.l.b16 %v4400
        %v4664 = vpack.c.b16 %v4537, %v4536
        %v4665 = vpack.c.b16 %v4539, %v4538
        %v4666 = vpack.c.b16 %v4541, %v4540
        %v4667 = vpack.c.b16 %v4543, %v4542
        %v4668 = vpack.c.b16 %v4545, %v4544
        %v4669 = vpack.c.b16 %v4547, %v4546
        %v4670 = vpack.c.b16 %v4549, %v4548
        %v4671 = vpack.c.b16 %v4551, %v4550
        %v4672 = vpack.c.b16 %v4553, %v4552
        %v4673 = vpack.c.b16 %v4555, %v4554
        %v4674 = vpack.c.b16 %v4557, %v4556
        %v4675 = vpack.c.b16 %v4559, %v4558
        %v4676 = vpack.c.b16 %v4561, %v4560
        %v4677 = vpack.c.b16 %v4563, %v4562
        %v4678 = vpack.c.b16 %v4565, %v4564
        %v4679 = vpack.c.b16 %v4567, %v4566
        %v4680 = vpack.c.b16 %v4569, %v4568
        %v4681 = vpack.c.b16 %v4571, %v4570
        %v4682 = vpack.c.b16 %v4573, %v4572
        %v4683 = vpack.c.b16 %v4575, %v4574
        %v4684 = vpack.c.b16 %v4577, %v4576
        %v4685 = vpack.c.b16 %v4579, %v4578
        %v4686 = vpack.c.b16 %v4581, %v4580
        %v4687 = vpack.c.b16 %v4583, %v4582
        %v4688 = vpack.c.b16 %v4585, %v4584
        %v4689 = vpack.c.b16 %v4587, %v4586
        %v4690 = vpack.c.b16 %v4589, %v4588
        %v4691 = vpack.c.b16 %v4591, %v4590
        %v4692 = vpack.c.b16 %v4593, %v4592
        %v4693 = vpack.c.b16 %v4595, %v4594
        %v4694 = vpack.c.b16 %v4597, %v4596
        %v4695 = vpack.c.b16 %v4599, %v4598
        %v4696 = vpack.c.b16 %v4601, %v4600
        %v4697 = vpack.c.b16 %v4603, %v4602
        %v4698 = vpack.c.b16 %v4605, %v4604
        %v4699 = vpack.c.b16 %v4607, %v4606
        %v4700 = vpack.c.b16 %v4609, %v4608
        %v4701 = vpack.c.b16 %v4611, %v4610
        %v4702 = vpack.c.b16 %v4613, %v4612
        %v4703 = vpack.c.b16 %v4615, %v4614
        %v4704 = vpack.c.b16 %v4617, %v4616
        %v4705 = vpack.c.b16 %v4619, %v4618
        %v4706 = vpack.c.b16 %v4621, %v4620
        %v4707 = vpack.c.b16 %v4623, %v4622
        %v4708 = vpack.c.b16 %v4625, %v4624
        %v4709 = vpack.c.b16 %v4627, %v4626
        %v4710 = vpack.c.b16 %v4629, %v4628
        %v4711 = vpack.c.b16 %v4631, %v4630
        %v4712 = vpack.c.b16 %v4633, %v4632
        %v4713 = vpack.c.b16 %v4635, %v4634
        %v4714 = vpack.c.b16 %v4637, %v4636
        %v4715 = vpack.c.b16 %v4639, %v4638
        %v4716 = vpack.c.b16 %v4641, %v4640
        %v4717 = vpack.c.b16 %v4643, %v4642
        %v4718 = vpack.c.b16 %v4645, %v4644
        %v4719 = vpack.c.b16 %v4647, %v4646
        %v4720 = vpack.c.b16 %v4649, %v4648
        %v4721 = vpack.c.b16 %v4651, %v4650
        %v4722 = vpack.c.b16 %v4653, %v4652
        %v4723 = vpack.c.b16 %v4655, %v4654
        %v4724 = vpack.c.b16 %v4657, %v4656
        %v4725 = vpack.c.b16 %v4659, %v4658
        %v4726 = vpack.c.b16 %v4661, %v4660
        %v4727 = vpack.c.b16 %v4663, %v4662
        %4792 = vmatprep.subr.bf16.mxu0 0
        %4793 = vmatpush1.bf16.msra.mxu0 %v4671
        %4794 = vmatprep.subr.bf16.mxu0 0
        %4795 = vmatpush1.bf16.msra.mxu0 %v4670
        %4796 = vmatprep.subr.bf16.mxu0 0
        %4797 = vmatpush1.bf16.msra.mxu0 %v4669
        %4798 = vmatprep.subr.bf16.mxu0 0
        %4799 = vmatpush1.bf16.msra.mxu0 %v4668
        %4800 = vmatprep.subr.bf16.mxu0 0
        %4801 = vmatpush1.bf16.msra.mxu0 %v4667
        %4802 = vmatprep.subr.bf16.mxu0 0
        %4803 = vmatpush1.bf16.msra.mxu0 %v4666
        %4804 = vmatprep.subr.bf16.mxu0 0
        %4805 = vmatpush1.bf16.msra.mxu0 %v4665
        %4806 = vmatprep.subr.bf16.mxu0 0
        %4807 = vmatpush1.bf16.msra.mxu0 %v4664
        %4808 = vmatprep.subr.bf16.mxu0 0
        %4809 = vmatpush2.bf16.msra.mxu0 %v4679
        %4810 = vmatprep.subr.bf16.mxu0 0
        %4811 = vmatpush2.bf16.msra.mxu0 %v4678
        %4812 = vmatprep.subr.bf16.mxu0 0
        %4813 = vmatpush2.bf16.msra.mxu0 %v4677
        %4814 = vmatprep.subr.bf16.mxu0 0
        %4815 = vmatpush2.bf16.msra.mxu0 %v4676
        %4816 = vmatprep.subr.bf16.mxu0 0
        %4817 = vmatpush2.bf16.msra.mxu0 %v4675
        %4818 = vmatprep.subr.bf16.mxu0 0
        %4819 = vmatpush2.bf16.msra.mxu0 %v4674
        %4820 = vmatprep.subr.bf16.mxu0 0
        %4821 = vmatpush2.bf16.msra.mxu0 %v4673
        %4822 = vmatprep.subr.bf16.mxu0 0
        %4823 = vmatpush2.bf16.msra.mxu0 %v4672
        %4824 = vmatprep.mubr.bf16.mxu0 %v4266
        %4825 = vmatmul.mubr.bf16.gmra.mxu0 %v4265
        %v4826 = vpop.f32.mrf.mxu0
        %v4827 = vadd.f32 %v4406, %v4826
        %v4828 = vpop.f32.mrf.mxu0
        %v4829 = vpop.f32.mrf.mxu0
        %v4830 = vpop.f32.mrf.mxu0
        %4831 = vdwg.mxu0
        %4832 = vmatprep.subr.bf16.mxu0 0
        %4833 = vmatpush1.bf16.msra.mxu0 %v4687
        %4834 = vmatprep.subr.bf16.mxu0 0
        %4835 = vmatpush1.bf16.msra.mxu0 %v4686
        %4836 = vmatprep.subr.bf16.mxu0 0
        %4837 = vmatpush1.bf16.msra.mxu0 %v4685
        %4838 = vmatprep.subr.bf16.mxu0 0
        %4839 = vmatpush1.bf16.msra.mxu0 %v4684
        %4840 = vmatprep.subr.bf16.mxu0 0
        %4841 = vmatpush1.bf16.msra.mxu0 %v4683
        %4842 = vmatprep.subr.bf16.mxu0 0
        %4843 = vmatpush1.bf16.msra.mxu0 %v4682
        %4844 = vmatprep.subr.bf16.mxu0 0
        %4845 = vmatpush1.bf16.msra.mxu0 %v4681
        %4846 = vmatprep.subr.bf16.mxu0 0
        %4847 = vmatpush1.bf16.msra.mxu0 %v4680
        %4848 = vmatprep.subr.bf16.mxu0 0
        %4849 = vmatpush2.bf16.msra.mxu0 %v4695
        %4850 = vmatprep.subr.bf16.mxu0 0
        %4851 = vmatpush2.bf16.msra.mxu0 %v4694
        %4852 = vmatprep.subr.bf16.mxu0 0
        %4853 = vmatpush2.bf16.msra.mxu0 %v4693
        %4854 = vmatprep.subr.bf16.mxu0 0
        %4855 = vmatpush2.bf16.msra.mxu0 %v4692
        %4856 = vmatprep.subr.bf16.mxu0 0
        %4857 = vmatpush2.bf16.msra.mxu0 %v4691
        %4858 = vmatprep.subr.bf16.mxu0 0
        %4859 = vmatpush2.bf16.msra.mxu0 %v4690
        %4860 = vmatprep.subr.bf16.mxu0 0
        %4861 = vmatpush2.bf16.msra.mxu0 %v4689
        %4862 = vmatprep.subr.bf16.mxu0 0
        %4863 = vmatpush2.bf16.msra.mxu0 %v4688
        %4864 = vmatprep.mubr.bf16.mxu0 %v4268
        %4865 = vmatmul.mubr.bf16.gmra.mxu0 %v4267
        %v4866 = vpop.f32.mrf.mxu0
        %v4867 = vadd.f32 %v4827, %v4866
        %v4868 = vpop.f32.mrf.mxu0
        %v4869 = vpop.f32.mrf.mxu0
        %v4870 = vpop.f32.mrf.mxu0
        %4871 = vdwg.mxu0
        %4872 = vmatprep.subr.bf16.mxu0 0
        %4873 = vmatpush1.bf16.msra.mxu0 %v4703
        %4874 = vmatprep.subr.bf16.mxu0 0
        %4875 = vmatpush1.bf16.msra.mxu0 %v4702
        %4876 = vmatprep.subr.bf16.mxu0 0
        %4877 = vmatpush1.bf16.msra.mxu0 %v4701
        %4878 = vmatprep.subr.bf16.mxu0 0
        %4879 = vmatpush1.bf16.msra.mxu0 %v4700
        %4880 = vmatprep.subr.bf16.mxu0 0
        %4881 = vmatpush1.bf16.msra.mxu0 %v4699
        %4882 = vmatprep.subr.bf16.mxu0 0
        %4883 = vmatpush1.bf16.msra.mxu0 %v4698
        %4884 = vmatprep.subr.bf16.mxu0 0
        %4885 = vmatpush1.bf16.msra.mxu0 %v4697
        %4886 = vmatprep.subr.bf16.mxu0 0
        %4887 = vmatpush1.bf16.msra.mxu0 %v4696
        %4888 = vmatprep.subr.bf16.mxu0 0
        %4889 = vmatpush2.bf16.msra.mxu0 %v4711
        %4890 = vmatprep.subr.bf16.mxu0 0
        %4891 = vmatpush2.bf16.msra.mxu0 %v4710
        %4892 = vmatprep.subr.bf16.mxu0 0
        %4893 = vmatpush2.bf16.msra.mxu0 %v4709
        %4894 = vmatprep.subr.bf16.mxu0 0
        %4895 = vmatpush2.bf16.msra.mxu0 %v4708
        %4896 = vmatprep.subr.bf16.mxu0 0
        %4897 = vmatpush2.bf16.msra.mxu0 %v4707
        %4898 = vmatprep.subr.bf16.mxu0 0
        %4899 = vmatpush2.bf16.msra.mxu0 %v4706
        %4900 = vmatprep.subr.bf16.mxu0 0
        %4901 = vmatpush2.bf16.msra.mxu0 %v4705
        %4902 = vmatprep.subr.bf16.mxu0 0
        %4903 = vmatpush2.bf16.msra.mxu0 %v4704
        %4904 = vmatprep.mubr.bf16.mxu0 %v4270
        %4905 = vmatmul.mubr.bf16.gmra.mxu0 %v4269
        %v4906 = vpop.f32.mrf.mxu0
        %v4907 = vadd.f32 %v4867, %v4906
        %v4908 = vpop.f32.mrf.mxu0
        %v4909 = vpop.f32.mrf.mxu0
        %v4910 = vpop.f32.mrf.mxu0
        %4911 = vdwg.mxu0
        %4912 = vmatprep.subr.bf16.mxu0 0
        %4913 = vmatpush1.bf16.msra.mxu0 %v4719
        %4914 = vmatprep.subr.bf16.mxu0 0
        %4915 = vmatpush1.bf16.msra.mxu0 %v4718
        %4916 = vmatprep.subr.bf16.mxu0 0
        %4917 = vmatpush1.bf16.msra.mxu0 %v4717
        %4918 = vmatprep.subr.bf16.mxu0 0
        %4919 = vmatpush1.bf16.msra.mxu0 %v4716
        %4920 = vmatprep.subr.bf16.mxu0 0
        %4921 = vmatpush1.bf16.msra.mxu0 %v4715
        %4922 = vmatprep.subr.bf16.mxu0 0
        %4923 = vmatpush1.bf16.msra.mxu0 %v4714
        %4924 = vmatprep.subr.bf16.mxu0 0
        %4925 = vmatpush1.bf16.msra.mxu0 %v4713
        %4926 = vmatprep.subr.bf16.mxu0 0
        %4927 = vmatpush1.bf16.msra.mxu0 %v4712
        %4928 = vmatprep.subr.bf16.mxu0 0
        %4929 = vmatpush2.bf16.msra.mxu0 %v4727
        %4930 = vmatprep.subr.bf16.mxu0 0
        %4931 = vmatpush2.bf16.msra.mxu0 %v4726
        %4932 = vmatprep.subr.bf16.mxu0 0
        %4933 = vmatpush2.bf16.msra.mxu0 %v4725
        %4934 = vmatprep.subr.bf16.mxu0 0
        %4935 = vmatpush2.bf16.msra.mxu0 %v4724
        %4936 = vmatprep.subr.bf16.mxu0 0
        %4937 = vmatpush2.bf16.msra.mxu0 %v4723
        %4938 = vmatprep.subr.bf16.mxu0 0
        %4939 = vmatpush2.bf16.msra.mxu0 %v4722
        %4940 = vmatprep.subr.bf16.mxu0 0
        %4941 = vmatpush2.bf16.msra.mxu0 %v4721
        %4942 = vmatprep.subr.bf16.mxu0 0
        %4943 = vmatpush2.bf16.msra.mxu0 %v4720
        %4944 = vmatprep.mubr.bf16.mxu0 %v4272
        %4945 = vmatmul.mubr.bf16.gmra.mxu0 %v4271
        %v4946 = vpop.f32.mrf.mxu0
        %v4947 = vadd.f32 %v4907, %v4946
        %v4948 = vpop.f32.mrf.mxu0
        %v4949 = vpop.f32.mrf.mxu0
        %v4950 = vpop.f32.mrf.mxu0
        %4951 = vdwg.mxu0
        %4952 = vst [vmem:[%s768] sm:$0xff] %v4947
        %s4953 = scalar_lea.vmem %s777, 8
        %v4954 = vld [vmem:[%s4953] sm:$0xff]
        %s4955 = scalar_lea.vmem %s791, 8
        %v4956 = vld [vmem:[%s4955] sm:$0xff]
        %v4957 = vxor.u32 %v4956, 2147483648
        %v4958 = vmul.f32 %v4957, 1.442695
        %v4959 = vpow.pop %v4958
        %v4960 = vadd.f32 %v4959, 1.0
        %v4961 = vrcp.pop %v4960
        %v4962 = vmul.f32 1.0, %v4961
        %v4963 = vmul.f32 %v4954, %v4962
        %v4964 = vpack.c.bf16 %v4963, %v4963
        %v4965 = vld [vmem:[%s3] sm:$0xff]
        %v4966 = vld [vmem:[%s3 + $0x8] sm:$0xff]
        %v4967 = vld [vmem:[%s3 + $0x10] sm:$0xff]
        %v4968 = vld [vmem:[%s3 + $0x18] sm:$0xff]
        %v4969 = vld [vmem:[%s4] sm:$0x3]
        %v4971 = vlaneseq
        %v4972 = vshrl.u32 %v4971, 7
        %v4973 = vsub.s32 0, %v4972
        %v4974 = vrot.slane %v4969, %v4973
        %v4975 = vlaneseq
        %v4976 = vshrl.u32 %v4975, 7
        %v4977 = vsub.s32 1, %v4976
        %v4978 = vrot.slane %v4969, %v4977
        %v4985 = vunpack.c.l.b16 %v4965
        %v4986 = vunpack.c.h.b16 %v4965
        %v4987 = vunpack.c.l.b16 %v4966
        %v4988 = vunpack.c.h.b16 %v4966
        %v4989 = vunpack.c.l.b16 %v4967
        %v4990 = vunpack.c.h.b16 %v4967
        %v4991 = vunpack.c.l.b16 %v4968
        %v4992 = vunpack.c.h.b16 %v4968
        %v4993 = vpack.c.b16 %v4987, %v4985
        %v4994 = vpack.c.b16 %v4988, %v4986
        %v4995 = vpack.c.b16 %v4991, %v4989
        %v4996 = vpack.c.b16 %v4992, %v4990
        %v5002 = vsel %vm863, %v4964, 0
        %5004 = vmatprep.subr.bf16.mxu0 0
        %5005 = vmatpush1.bf16.msra.mxu0 0
        %5006 = vmatprep.subr.bf16.mxu0 0
        %5007 = vmatpush1.bf16.msra.mxu0 0
        %5008 = vmatprep.subr.bf16.mxu0 0
        %5009 = vmatpush1.bf16.msra.mxu0 0
        %5010 = vmatprep.subr.bf16.mxu0 0
        %5011 = vmatpush1.bf16.msra.mxu0 0
        %5012 = vmatprep.subr.bf16.mxu0 0
        %5013 = vmatpush1.bf16.msra.mxu0 0
        %5014 = vmatprep.subr.bf16.mxu0 0
        %5015 = vmatpush1.bf16.msra.mxu0 0
        %5016 = vmatprep.subr.bf16.mxu0 %v4996
        %5017 = vmatpush1.bf16.msra.mxu0 %v4995
        %5018 = vmatprep.subr.bf16.mxu0 %v4994
        %5019 = vmatpush1.bf16.msra.mxu0 %v4993
        %5020 = vmatprep.subr.bf16.mxu0 0
        %5021 = vmatpush2.bf16.msra.mxu0 0
        %5022 = vmatprep.subr.bf16.mxu0 0
        %5023 = vmatpush2.bf16.msra.mxu0 0
        %5024 = vmatprep.subr.bf16.mxu0 0
        %5025 = vmatpush2.bf16.msra.mxu0 0
        %5026 = vmatprep.subr.bf16.mxu0 0
        %5027 = vmatpush2.bf16.msra.mxu0 0
        %5028 = vmatprep.subr.bf16.mxu0 0
        %5029 = vmatpush2.bf16.msra.mxu0 0
        %5030 = vmatprep.subr.bf16.mxu0 0
        %5031 = vmatpush2.bf16.msra.mxu0 0
        %5032 = vmatprep.subr.bf16.mxu0 0
        %5033 = vmatpush2.bf16.msra.mxu0 0
        %5034 = vmatprep.subr.bf16.mxu0 0
        %5035 = vmatpush2.bf16.msra.mxu0 0
        %5036 = vmatprep.mubr.bf16.mxu0 0
        %5037 = vmatmul.mubr.bf16.gmra.mxu0 %v5002
        %v5038 = vpop.f32.mrf.mxu0
        %v5039 = vadd.f32 %v4974, %v5038
        %v5040 = vpop.f32.mrf.mxu0
        %v5041 = vadd.f32 %v4978, %v5040
        %v5042 = vpop.f32.mrf.mxu0
        %v5043 = vpop.f32.mrf.mxu0
        %5044 = vdwg.mxu0
        %v5045 = vld [vmem:[%s5] sm:$0x3]
        %v5046 = vld [vmem:[%s6] sm:$0x3]
        %v5047 = vadd.f32 %v5039, %v5041
        %5048 = vadd.xlane.f32.xlu0 %v5047
        %v5049 = vpop.xlane.xlu0 %5048
        %v5050 = vmul.f32 %v5049, %v913
        %v5051 = vsub.f32 %v5039, %v5050
        %v5052 = vsub.f32 %v5041, %v5050
        %v5053 = vmul.f32 %v5051, %v5051
        %v5054 = vmul.f32 %v5052, %v5052
        %v5055 = vadd.f32 %v5053, %v5054
        %5056 = vadd.xlane.f32.xlu0 %v5055
        %v5057 = vpop.xlane.xlu0 %5056
        %v5058 = vmul.f32 %v5057, %v913
        %v5059 = vadd.f32 %v5058, 1e-05
        %v5060 = vrsqrt.pop %v5059
        %v5061 = vmul.f32 %v5051, %v5060
        %v5062 = vmul.f32 %v5052, %v5060
        %v5064 = vlaneseq
        %v5065 = vshrl.u32 %v5064, 7
        %v5066 = vsub.s32 0, %v5065
        %v5067 = vrot.slane %v5045, %v5066
        %v5068 = vlaneseq
        %v5069 = vshrl.u32 %v5068, 7
        %v5070 = vsub.s32 1, %v5069
        %v5071 = vrot.slane %v5045, %v5070
        %v5074 = vmul.f32 %v5061, %v5067
        %v5075 = vmul.f32 %v5062, %v5071
        %v5077 = vlaneseq
        %v5078 = vshrl.u32 %v5077, 7
        %v5079 = vsub.s32 0, %v5078
        %v5080 = vrot.slane %v5046, %v5079
        %v5081 = vlaneseq
        %v5082 = vshrl.u32 %v5081, 7
        %v5083 = vsub.s32 1, %v5082
        %v5084 = vrot.slane %v5046, %v5083
        %v5087 = vadd.f32 %v5074, %v5080
        %v5088 = vadd.f32 %v5075, %v5084
        %v5089 = vxor.u32 %v5087, 2147483648
        %v5090 = vxor.u32 %v5088, 2147483648
        %v5091 = vmul.f32 %v5089, 1.442695
        %v5092 = vpow.pop %v5091
        %v5093 = vmul.f32 %v5090, 1.442695
        %v5094 = vpow.pop %v5093
        %v5095 = vadd.f32 %v5092, 1.0
        %v5096 = vadd.f32 %v5094, 1.0
        %v5097 = vrcp.pop %v5095
        %v5098 = vmul.f32 1.0, %v5097
        %v5099 = vrcp.pop %v5096
        %v5100 = vmul.f32 1.0, %v5099
        %v5101 = vmul.f32 %v5087, %v5098
        %v5102 = vmul.f32 %v5088, %v5100
        %v5103 = vpack.c.bf16 %v5101, %v5101
        %v5104 = vpack.c.bf16 %v5102, %v5102
        %v5105 = vld [vmem:[%s7] sm:$0xff]
        %v5106 = vld [vmem:[%s7 + $0x8] sm:$0xff]
        %v5107 = vld [vmem:[%s7 + $0x10] sm:$0xff]
        %v5108 = vld [vmem:[%s7 + $0x18] sm:$0xff]
        %v5109 = vld [vmem:[%s7 + $0x20] sm:$0xff]
        %v5110 = vld [vmem:[%s7 + $0x28] sm:$0xff]
        %v5111 = vld [vmem:[%s7 + $0x30] sm:$0xff]
        %v5112 = vld [vmem:[%s7 + $0x38] sm:$0xff]
        %v5113 = vld [vmem:[%s7 + $0x40] sm:$0xff]
        %v5114 = vld [vmem:[%s7 + $0x48] sm:$0xff]
        %v5115 = vld [vmem:[%s7 + $0x50] sm:$0xff]
        %v5116 = vld [vmem:[%s7 + $0x58] sm:$0xff]
        %v5117 = vld [vmem:[%s7 + $0x60] sm:$0xff]
        %v5118 = vld [vmem:[%s7 + $0x68] sm:$0xff]
        %v5119 = vld [vmem:[%s7 + $0x70] sm:$0xff]
        %v5120 = vld [vmem:[%s7 + $0x78] sm:$0xff]
        %v5121 = vld [vmem:[%s7 + $0x80] sm:$0xff]
        %v5122 = vld [vmem:[%s7 + $0x88] sm:$0xff]
        %v5123 = vld [vmem:[%s7 + $0x90] sm:$0xff]
        %v5124 = vld [vmem:[%s7 + $0x98] sm:$0xff]
        %v5125 = vld [vmem:[%s7 + $0xa0] sm:$0xff]
        %v5126 = vld [vmem:[%s7 + $0xa8] sm:$0xff]
        %v5127 = vld [vmem:[%s7 + $0xb0] sm:$0xff]
        %v5128 = vld [vmem:[%s7 + $0xb8] sm:$0xff]
        %v5129 = vld [vmem:[%s7 + $0xc0] sm:$0xff]
        %v5130 = vld [vmem:[%s7 + $0xc8] sm:$0xff]
        %v5131 = vld [vmem:[%s7 + $0xd0] sm:$0xff]
        %v5132 = vld [vmem:[%s7 + $0xd8] sm:$0xff]
        %v5133 = vld [vmem:[%s7 + $0xe0] sm:$0xff]
        %v5134 = vld [vmem:[%s7 + $0xe8] sm:$0xff]
        %v5135 = vld [vmem:[%s7 + $0xf0] sm:$0xff]
        %v5136 = vld [vmem:[%s7 + $0xf8] sm:$0xff]
        %v5137 = vld [vmem:[%s7 + $0x100] sm:$0xff]
        %v5138 = vld [vmem:[%s7 + $0x108] sm:$0xff]
        %v5139 = vld [vmem:[%s7 + $0x110] sm:$0xff]
        %v5140 = vld [vmem:[%s7 + $0x118] sm:$0xff]
        %v5141 = vld [vmem:[%s7 + $0x120] sm:$0xff]
        %v5142 = vld [vmem:[%s7 + $0x128] sm:$0xff]
        %v5143 = vld [vmem:[%s7 + $0x130] sm:$0xff]
        %v5144 = vld [vmem:[%s7 + $0x138] sm:$0xff]
        %v5145 = vld [vmem:[%s7 + $0x140] sm:$0xff]
        %v5146 = vld [vmem:[%s7 + $0x148] sm:$0xff]
        %v5147 = vld [vmem:[%s7 + $0x150] sm:$0xff]
        %v5148 = vld [vmem:[%s7 + $0x158] sm:$0xff]
        %v5149 = vld [vmem:[%s7 + $0x160] sm:$0xff]
        %v5150 = vld [vmem:[%s7 + $0x168] sm:$0xff]
        %v5151 = vld [vmem:[%s7 + $0x170] sm:$0xff]
        %v5152 = vld [vmem:[%s7 + $0x178] sm:$0xff]
        %v5153 = vld [vmem:[%s7 + $0x180] sm:$0xff]
        %v5154 = vld [vmem:[%s7 + $0x188] sm:$0xff]
        %v5155 = vld [vmem:[%s7 + $0x190] sm:$0xff]
        %v5156 = vld [vmem:[%s7 + $0x198] sm:$0xff]
        %v5157 = vld [vmem:[%s7 + $0x1a0] sm:$0xff]
        %v5158 = vld [vmem:[%s7 + $0x1a8] sm:$0xff]
        %v5159 = vld [vmem:[%s7 + $0x1b0] sm:$0xff]
        %v5160 = vld [vmem:[%s7 + $0x1b8] sm:$0xff]
        %v5161 = vld [vmem:[%s7 + $0x1c0] sm:$0xff]
        %v5162 = vld [vmem:[%s7 + $0x1c8] sm:$0xff]
        %v5163 = vld [vmem:[%s7 + $0x1d0] sm:$0xff]
        %v5164 = vld [vmem:[%s7 + $0x1d8] sm:$0xff]
        %v5165 = vld [vmem:[%s7 + $0x1e0] sm:$0xff]
        %v5166 = vld [vmem:[%s7 + $0x1e8] sm:$0xff]
        %v5167 = vld [vmem:[%s7 + $0x1f0] sm:$0xff]
        %v5168 = vld [vmem:[%s7 + $0x1f8] sm:$0xff]
        %v5169 = vld [vmem:[%s8] sm:$0xf]
        %v5171 = vlaneseq
        %v5172 = vshrl.u32 %v5171, 7
        %v5173 = vsub.s32 0, %v5172
        %v5174 = vrot.slane %v5169, %v5173
        %v5175 = vlaneseq
        %v5176 = vshrl.u32 %v5175, 7
        %v5177 = vsub.s32 1, %v5176
        %v5178 = vrot.slane %v5169, %v5177
        %v5179 = vlaneseq
        %v5180 = vshrl.u32 %v5179, 7
        %v5181 = vsub.s32 2, %v5180
        %v5182 = vrot.slane %v5169, %v5181
        %v5183 = vlaneseq
        %v5184 = vshrl.u32 %v5183, 7
        %v5185 = vsub.s32 3, %v5184
        %v5186 = vrot.slane %v5169, %v5185
        %v5255 = vunpack.c.l.b16 %v5105
        %v5256 = vunpack.c.h.b16 %v5105
        %v5257 = vunpack.c.l.b16 %v5106
        %v5258 = vunpack.c.h.b16 %v5106
        %v5259 = vunpack.c.l.b16 %v5107
        %v5260 = vunpack.c.h.b16 %v5107
        %v5261 = vunpack.c.l.b16 %v5108
        %v5262 = vunpack.c.h.b16 %v5108
        %v5263 = vunpack.c.l.b16 %v5109
        %v5264 = vunpack.c.h.b16 %v5109
        %v5265 = vunpack.c.l.b16 %v5110
        %v5266 = vunpack.c.h.b16 %v5110
        %v5267 = vunpack.c.l.b16 %v5111
        %v5268 = vunpack.c.h.b16 %v5111
        %v5269 = vunpack.c.l.b16 %v5112
        %v5270 = vunpack.c.h.b16 %v5112
        %v5271 = vunpack.c.l.b16 %v5113
        %v5272 = vunpack.c.h.b16 %v5113
        %v5273 = vunpack.c.l.b16 %v5114
        %v5274 = vunpack.c.h.b16 %v5114
        %v5275 = vunpack.c.l.b16 %v5115
        %v5276 = vunpack.c.h.b16 %v5115
        %v5277 = vunpack.c.l.b16 %v5116
        %v5278 = vunpack.c.h.b16 %v5116
        %v5279 = vunpack.c.l.b16 %v5117
        %v5280 = vunpack.c.h.b16 %v5117
        %v5281 = vunpack.c.l.b16 %v5118
        %v5282 = vunpack.c.h.b16 %v5118
        %v5283 = vunpack.c.l.b16 %v5119
        %v5284 = vunpack.c.h.b16 %v5119
        %v5285 = vunpack.c.l.b16 %v5120
        %v5286 = vunpack.c.h.b16 %v5120
        %v5287 = vunpack.c.l.b16 %v5121
        %v5288 = vunpack.c.h.b16 %v5121
        %v5289 = vunpack.c.l.b16 %v5122
        %v5290 = vunpack.c.h.b16 %v5122
        %v5291 = vunpack.c.l.b16 %v5123
        %v5292 = vunpack.c.h.b16 %v5123
        %v5293 = vunpack.c.l.b16 %v5124
        %v5294 = vunpack.c.h.b16 %v5124
        %v5295 = vunpack.c.l.b16 %v5125
        %v5296 = vunpack.c.h.b16 %v5125
        %v5297 = vunpack.c.l.b16 %v5126
        %v5298 = vunpack.c.h.b16 %v5126
        %v5299 = vunpack.c.l.b16 %v5127
        %v5300 = vunpack.c.h.b16 %v5127
        %v5301 = vunpack.c.l.b16 %v5128
        %v5302 = vunpack.c.h.b16 %v5128
        %v5303 = vunpack.c.l.b16 %v5129
        %v5304 = vunpack.c.h.b16 %v5129
        %v5305 = vunpack.c.l.b16 %v5130
        %v5306 = vunpack.c.h.b16 %v5130
        %v5307 = vunpack.c.l.b16 %v5131
        %v5308 = vunpack.c.h.b16 %v5131
        %v5309 = vunpack.c.l.b16 %v5132
        %v5310 = vunpack.c.h.b16 %v5132
        %v5311 = vunpack.c.l.b16 %v5133
        %v5312 = vunpack.c.h.b16 %v5133
        %v5313 = vunpack.c.l.b16 %v5134
        %v5314 = vunpack.c.h.b16 %v5134
        %v5315 = vunpack.c.l.b16 %v5135
        %v5316 = vunpack.c.h.b16 %v5135
        %v5317 = vunpack.c.l.b16 %v5136
        %v5318 = vunpack.c.h.b16 %v5136
        %v5319 = vunpack.c.l.b16 %v5137
        %v5320 = vunpack.c.h.b16 %v5137
        %v5321 = vunpack.c.l.b16 %v5138
        %v5322 = vunpack.c.h.b16 %v5138
        %v5323 = vunpack.c.l.b16 %v5139
        %v5324 = vunpack.c.h.b16 %v5139
        %v5325 = vunpack.c.l.b16 %v5140
        %v5326 = vunpack.c.h.b16 %v5140
        %v5327 = vunpack.c.l.b16 %v5141
        %v5328 = vunpack.c.h.b16 %v5141
        %v5329 = vunpack.c.l.b16 %v5142
        %v5330 = vunpack.c.h.b16 %v5142
        %v5331 = vunpack.c.l.b16 %v5143
        %v5332 = vunpack.c.h.b16 %v5143
        %v5333 = vunpack.c.l.b16 %v5144
        %v5334 = vunpack.c.h.b16 %v5144
        %v5335 = vunpack.c.l.b16 %v5145
        %v5336 = vunpack.c.h.b16 %v5145
        %v5337 = vunpack.c.l.b16 %v5146
        %v5338 = vunpack.c.h.b16 %v5146
        %v5339 = vunpack.c.l.b16 %v5147
        %v5340 = vunpack.c.h.b16 %v5147
        %v5341 = vunpack.c.l.b16 %v5148
        %v5342 = vunpack.c.h.b16 %v5148
        %v5343 = vunpack.c.l.b16 %v5149
        %v5344 = vunpack.c.h.b16 %v5149
        %v5345 = vunpack.c.l.b16 %v5150
        %v5346 = vunpack.c.h.b16 %v5150
        %v5347 = vunpack.c.l.b16 %v5151
        %v5348 = vunpack.c.h.b16 %v5151
        %v5349 = vunpack.c.l.b16 %v5152
        %v5350 = vunpack.c.h.b16 %v5152
        %v5351 = vunpack.c.l.b16 %v5153
        %v5352 = vunpack.c.h.b16 %v5153
        %v5353 = vunpack.c.l.b16 %v5154
        %v5354 = vunpack.c.h.b16 %v5154
        %v5355 = vunpack.c.l.b16 %v5155
        %v5356 = vunpack.c.h.b16 %v5155
        %v5357 = vunpack.c.l.b16 %v5156
        %v5358 = vunpack.c.h.b16 %v5156
        %v5359 = vunpack.c.l.b16 %v5157
        %v5360 = vunpack.c.h.b16 %v5157
        %v5361 = vunpack.c.l.b16 %v5158
        %v5362 = vunpack.c.h.b16 %v5158
        %v5363 = vunpack.c.l.b16 %v5159
        %v5364 = vunpack.c.h.b16 %v5159
        %v5365 = vunpack.c.l.b16 %v5160
        %v5366 = vunpack.c.h.b16 %v5160
        %v5367 = vunpack.c.l.b16 %v5161
        %v5368 = vunpack.c.h.b16 %v5161
        %v5369 = vunpack.c.l.b16 %v5162
        %v5370 = vunpack.c.h.b16 %v5162
        %v5371 = vunpack.c.l.b16 %v5163
        %v5372 = vunpack.c.h.b16 %v5163
        %v5373 = vunpack.c.l.b16 %v5164
        %v5374 = vunpack.c.h.b16 %v5164
        %v5375 = vunpack.c.l.b16 %v5165
        %v5376 = vunpack.c.h.b16 %v5165
        %v5377 = vunpack.c.l.b16 %v5166
        %v5378 = vunpack.c.h.b16 %v5166
        %v5379 = vunpack.c.l.b16 %v5167
        %v5380 = vunpack.c.h.b16 %v5167
        %v5381 = vunpack.c.l.b16 %v5168
        %v5382 = vunpack.c.h.b16 %v5168
        %v5383 = vpack.c.b16 %v5259, %v5255
        %v5384 = vpack.c.b16 %v5260, %v5256
        %v5385 = vpack.c.b16 %v5261, %v5257
        %v5386 = vpack.c.b16 %v5262, %v5258
        %v5387 = vpack.c.b16 %v5267, %v5263
        %v5388 = vpack.c.b16 %v5268, %v5264
        %v5389 = vpack.c.b16 %v5269, %v5265
        %v5390 = vpack.c.b16 %v5270, %v5266
        %v5391 = vpack.c.b16 %v5275, %v5271
        %v5392 = vpack.c.b16 %v5276, %v5272
        %v5393 = vpack.c.b16 %v5277, %v5273
        %v5394 = vpack.c.b16 %v5278, %v5274
        %v5395 = vpack.c.b16 %v5283, %v5279
        %v5396 = vpack.c.b16 %v5284, %v5280
        %v5397 = vpack.c.b16 %v5285, %v5281
        %v5398 = vpack.c.b16 %v5286, %v5282
        %v5399 = vpack.c.b16 %v5291, %v5287
        %v5400 = vpack.c.b16 %v5292, %v5288
        %v5401 = vpack.c.b16 %v5293, %v5289
        %v5402 = vpack.c.b16 %v5294, %v5290
        %v5403 = vpack.c.b16 %v5299, %v5295
        %v5404 = vpack.c.b16 %v5300, %v5296
        %v5405 = vpack.c.b16 %v5301, %v5297
        %v5406 = vpack.c.b16 %v5302, %v5298
        %v5407 = vpack.c.b16 %v5307, %v5303
        %v5408 = vpack.c.b16 %v5308, %v5304
        %v5409 = vpack.c.b16 %v5309, %v5305
        %v5410 = vpack.c.b16 %v5310, %v5306
        %v5411 = vpack.c.b16 %v5315, %v5311
        %v5412 = vpack.c.b16 %v5316, %v5312
        %v5413 = vpack.c.b16 %v5317, %v5313
        %v5414 = vpack.c.b16 %v5318, %v5314
        %v5415 = vpack.c.b16 %v5323, %v5319
        %v5416 = vpack.c.b16 %v5324, %v5320
        %v5417 = vpack.c.b16 %v5325, %v5321
        %v5418 = vpack.c.b16 %v5326, %v5322
        %v5419 = vpack.c.b16 %v5331, %v5327
        %v5420 = vpack.c.b16 %v5332, %v5328
        %v5421 = vpack.c.b16 %v5333, %v5329
        %v5422 = vpack.c.b16 %v5334, %v5330
        %v5423 = vpack.c.b16 %v5339, %v5335
        %v5424 = vpack.c.b16 %v5340, %v5336
        %v5425 = vpack.c.b16 %v5341, %v5337
        %v5426 = vpack.c.b16 %v5342, %v5338
        %v5427 = vpack.c.b16 %v5347, %v5343
        %v5428 = vpack.c.b16 %v5348, %v5344
        %v5429 = vpack.c.b16 %v5349, %v5345
        %v5430 = vpack.c.b16 %v5350, %v5346
        %v5431 = vpack.c.b16 %v5355, %v5351
        %v5432 = vpack.c.b16 %v5356, %v5352
        %v5433 = vpack.c.b16 %v5357, %v5353
        %v5434 = vpack.c.b16 %v5358, %v5354
        %v5435 = vpack.c.b16 %v5363, %v5359
        %v5436 = vpack.c.b16 %v5364, %v5360
        %v5437 = vpack.c.b16 %v5365, %v5361
        %v5438 = vpack.c.b16 %v5366, %v5362
        %v5439 = vpack.c.b16 %v5371, %v5367
        %v5440 = vpack.c.b16 %v5372, %v5368
        %v5441 = vpack.c.b16 %v5373, %v5369
        %v5442 = vpack.c.b16 %v5374, %v5370
        %v5443 = vpack.c.b16 %v5379, %v5375
        %v5444 = vpack.c.b16 %v5380, %v5376
        %v5445 = vpack.c.b16 %v5381, %v5377
        %v5446 = vpack.c.b16 %v5382, %v5378
        %5511 = vmatprep.subr.bf16.mxu0 %v5412
        %5512 = vmatpush1.bf16.msra.mxu0 %v5411
        %5513 = vmatprep.subr.bf16.mxu0 %v5408
        %5514 = vmatpush1.bf16.msra.mxu0 %v5407
        %5515 = vmatprep.subr.bf16.mxu0 %v5404
        %5516 = vmatpush1.bf16.msra.mxu0 %v5403
        %5517 = vmatprep.subr.bf16.mxu0 %v5400
        %5518 = vmatpush1.bf16.msra.mxu0 %v5399
        %5519 = vmatprep.subr.bf16.mxu0 %v5396
        %5520 = vmatpush1.bf16.msra.mxu0 %v5395
        %5521 = vmatprep.subr.bf16.mxu0 %v5392
        %5522 = vmatpush1.bf16.msra.mxu0 %v5391
        %5523 = vmatprep.subr.bf16.mxu0 %v5388
        %5524 = vmatpush1.bf16.msra.mxu0 %v5387
        %5525 = vmatprep.subr.bf16.mxu0 %v5384
        %5526 = vmatpush1.bf16.msra.mxu0 %v5383
        %5527 = vmatprep.subr.bf16.mxu0 %v5444
        %5528 = vmatpush2.bf16.msra.mxu0 %v5443
        %5529 = vmatprep.subr.bf16.mxu0 %v5440
        %5530 = vmatpush2.bf16.msra.mxu0 %v5439
        %5531 = vmatprep.subr.bf16.mxu0 %v5436
        %5532 = vmatpush2.bf16.msra.mxu0 %v5435
        %5533 = vmatprep.subr.bf16.mxu0 %v5432
        %5534 = vmatpush2.bf16.msra.mxu0 %v5431
        %5535 = vmatprep.subr.bf16.mxu0 %v5428
        %5536 = vmatpush2.bf16.msra.mxu0 %v5427
        %5537 = vmatprep.subr.bf16.mxu0 %v5424
        %5538 = vmatpush2.bf16.msra.mxu0 %v5423
        %5539 = vmatprep.subr.bf16.mxu0 %v5420
        %5540 = vmatpush2.bf16.msra.mxu0 %v5419
        %5541 = vmatprep.subr.bf16.mxu0 %v5416
        %5542 = vmatpush2.bf16.msra.mxu0 %v5415
        %5543 = vmatprep.mubr.bf16.mxu0 %v5104
        %5544 = vmatmul.mubr.bf16.gmra.mxu0 %v5103
        %v5545 = vpop.f32.mrf.mxu0
        %v5546 = vadd.f32 %v5174, %v5545
        %v5547 = vpop.f32.mrf.mxu0
        %v5548 = vadd.f32 %v5178, %v5547
        %v5549 = vpop.f32.mrf.mxu0
        %v5550 = vpop.f32.mrf.mxu0
        %5551 = vdwg.mxu0
        %5552 = vmatprep.subr.bf16.mxu0 %v5414
        %5553 = vmatpush1.bf16.msra.mxu0 %v5413
        %5554 = vmatprep.subr.bf16.mxu0 %v5410
        %5555 = vmatpush1.bf16.msra.mxu0 %v5409
        %5556 = vmatprep.subr.bf16.mxu0 %v5406
        %5557 = vmatpush1.bf16.msra.mxu0 %v5405
        %5558 = vmatprep.subr.bf16.mxu0 %v5402
        %5559 = vmatpush1.bf16.msra.mxu0 %v5401
        %5560 = vmatprep.subr.bf16.mxu0 %v5398
        %5561 = vmatpush1.bf16.msra.mxu0 %v5397
        %5562 = vmatprep.subr.bf16.mxu0 %v5394
        %5563 = vmatpush1.bf16.msra.mxu0 %v5393
        %5564 = vmatprep.subr.bf16.mxu0 %v5390
        %5565 = vmatpush1.bf16.msra.mxu0 %v5389
        %5566 = vmatprep.subr.bf16.mxu0 %v5386
        %5567 = vmatpush1.bf16.msra.mxu0 %v5385
        %5568 = vmatprep.subr.bf16.mxu0 %v5446
        %5569 = vmatpush2.bf16.msra.mxu0 %v5445
        %5570 = vmatprep.subr.bf16.mxu0 %v5442
        %5571 = vmatpush2.bf16.msra.mxu0 %v5441
        %5572 = vmatprep.subr.bf16.mxu0 %v5438
        %5573 = vmatpush2.bf16.msra.mxu0 %v5437
        %5574 = vmatprep.subr.bf16.mxu0 %v5434
        %5575 = vmatpush2.bf16.msra.mxu0 %v5433
        %5576 = vmatprep.subr.bf16.mxu0 %v5430
        %5577 = vmatpush2.bf16.msra.mxu0 %v5429
        %5578 = vmatprep.subr.bf16.mxu0 %v5426
        %5579 = vmatpush2.bf16.msra.mxu0 %v5425
        %5580 = vmatprep.subr.bf16.mxu0 %v5422
        %5581 = vmatpush2.bf16.msra.mxu0 %v5421
        %5582 = vmatprep.subr.bf16.mxu0 %v5418
        %5583 = vmatpush2.bf16.msra.mxu0 %v5417
        %5584 = vmatprep.mubr.bf16.mxu0 %v5104
        %5585 = vmatmul.mubr.bf16.gmra.mxu0 %v5103
        %v5586 = vpop.f32.mrf.mxu0
        %v5587 = vadd.f32 %v5182, %v5586
        %v5588 = vpop.f32.mrf.mxu0
        %v5589 = vadd.f32 %v5186, %v5588
        %v5590 = vpop.f32.mrf.mxu0
        %v5591 = vpop.f32.mrf.mxu0
        %5592 = vdwg.mxu0
        %v5593 = vld [vmem:[%s9] sm:$0xf]
        %v5594 = vld [vmem:[%s10] sm:$0xf]
        %v5595 = vadd.f32 %v5546, %v5548
        %v5596 = vadd.f32 %v5595, %v5587
        %v5597 = vadd.f32 %v5596, %v5589
        %5598 = vadd.xlane.f32.xlu0 %v5597
        %v5599 = vpop.xlane.xlu0 %5598
        %v5600 = vmul.f32 %v5599, %v1464
        %v5601 = vsub.f32 %v5546, %v5600
        %v5602 = vsub.f32 %v5548, %v5600
        %v5603 = vsub.f32 %v5587, %v5600
        %v5604 = vsub.f32 %v5589, %v5600
        %v5605 = vmul.f32 %v5601, %v5601
        %v5606 = vmul.f32 %v5602, %v5602
        %v5607 = vmul.f32 %v5603, %v5603
        %v5608 = vmul.f32 %v5604, %v5604
        %v5609 = vadd.f32 %v5605, %v5606
        %v5610 = vadd.f32 %v5609, %v5607
        %v5611 = vadd.f32 %v5610, %v5608
        %5612 = vadd.xlane.f32.xlu0 %v5611
        %v5613 = vpop.xlane.xlu0 %5612
        %v5614 = vmul.f32 %v5613, %v1464
        %v5615 = vadd.f32 %v5614, 1e-05
        %v5616 = vrsqrt.pop %v5615
        %v5617 = vmul.f32 %v5601, %v5616
        %v5618 = vmul.f32 %v5602, %v5616
        %v5619 = vmul.f32 %v5603, %v5616
        %v5620 = vmul.f32 %v5604, %v5616
        %v5622 = vlaneseq
        %v5623 = vshrl.u32 %v5622, 7
        %v5624 = vsub.s32 0, %v5623
        %v5625 = vrot.slane %v5593, %v5624
        %v5626 = vlaneseq
        %v5627 = vshrl.u32 %v5626, 7
        %v5628 = vsub.s32 1, %v5627
        %v5629 = vrot.slane %v5593, %v5628
        %v5630 = vlaneseq
        %v5631 = vshrl.u32 %v5630, 7
        %v5632 = vsub.s32 2, %v5631
        %v5633 = vrot.slane %v5593, %v5632
        %v5634 = vlaneseq
        %v5635 = vshrl.u32 %v5634, 7
        %v5636 = vsub.s32 3, %v5635
        %v5637 = vrot.slane %v5593, %v5636
        %v5642 = vmul.f32 %v5617, %v5625
        %v5643 = vmul.f32 %v5618, %v5629
        %v5644 = vmul.f32 %v5619, %v5633
        %v5645 = vmul.f32 %v5620, %v5637
        %v5647 = vlaneseq
        %v5648 = vshrl.u32 %v5647, 7
        %v5649 = vsub.s32 0, %v5648
        %v5650 = vrot.slane %v5594, %v5649
        %v5651 = vlaneseq
        %v5652 = vshrl.u32 %v5651, 7
        %v5653 = vsub.s32 1, %v5652
        %v5654 = vrot.slane %v5594, %v5653
        %v5655 = vlaneseq
        %v5656 = vshrl.u32 %v5655, 7
        %v5657 = vsub.s32 2, %v5656
        %v5658 = vrot.slane %v5594, %v5657
        %v5659 = vlaneseq
        %v5660 = vshrl.u32 %v5659, 7
        %v5661 = vsub.s32 3, %v5660
        %v5662 = vrot.slane %v5594, %v5661
        %v5667 = vadd.f32 %v5642, %v5650
        %v5668 = vadd.f32 %v5643, %v5654
        %v5669 = vadd.f32 %v5644, %v5658
        %v5670 = vadd.f32 %v5645, %v5662
        %v5671 = vxor.u32 %v5667, 2147483648
        %v5672 = vxor.u32 %v5668, 2147483648
        %v5673 = vxor.u32 %v5669, 2147483648
        %v5674 = vxor.u32 %v5670, 2147483648
        %v5675 = vmul.f32 %v5671, 1.442695
        %v5676 = vpow.pop %v5675
        %v5677 = vmul.f32 %v5672, 1.442695
        %v5678 = vpow.pop %v5677
        %v5679 = vmul.f32 %v5673, 1.442695
        %v5680 = vpow.pop %v5679
        %v5681 = vmul.f32 %v5674, 1.442695
        %v5682 = vpow.pop %v5681
        %v5683 = vadd.f32 %v5676, 1.0
        %v5684 = vadd.f32 %v5678, 1.0
        %v5685 = vadd.f32 %v5680, 1.0
        %v5686 = vadd.f32 %v5682, 1.0
        %v5687 = vrcp.pop %v5683
        %v5688 = vmul.f32 1.0, %v5687
        %v5689 = vrcp.pop %v5684
        %v5690 = vmul.f32 1.0, %v5689
        %v5691 = vrcp.pop %v5685
        %v5692 = vmul.f32 1.0, %v5691
        %v5693 = vrcp.pop %v5686
        %v5694 = vmul.f32 1.0, %v5693
        %v5695 = vmul.f32 %v5667, %v5688
        %v5696 = vmul.f32 %v5668, %v5690
        %v5697 = vmul.f32 %v5669, %v5692
        %v5698 = vmul.f32 %v5670, %v5694
        %v5699 = vpack.c.bf16 %v5695, %v5695
        %v5700 = vpack.c.bf16 %v5696, %v5696
        %v5701 = vpack.c.bf16 %v5697, %v5697
        %v5702 = vpack.c.bf16 %v5698, %v5698
        %v5703 = vld [vmem:[%s11] sm:$0xf]
        %v5704 = vld [vmem:[%s11 + $0x4] sm:$0xf]
        %v5705 = vld [vmem:[%s11 + $0x8] sm:$0xf]
        %v5706 = vld [vmem:[%s11 + $0xc] sm:$0xf]
        %v5707 = vld [vmem:[%s11 + $0x10] sm:$0xf]
        %v5708 = vld [vmem:[%s11 + $0x14] sm:$0xf]
        %v5709 = vld [vmem:[%s11 + $0x18] sm:$0xf]
        %v5710 = vld [vmem:[%s11 + $0x1c] sm:$0xf]
        %v5711 = vld [vmem:[%s11 + $0x20] sm:$0xf]
        %v5712 = vld [vmem:[%s11 + $0x24] sm:$0xf]
        %v5713 = vld [vmem:[%s11 + $0x28] sm:$0xf]
        %v5714 = vld [vmem:[%s11 + $0x2c] sm:$0xf]
        %v5715 = vld [vmem:[%s11 + $0x30] sm:$0xf]
        %v5716 = vld [vmem:[%s11 + $0x34] sm:$0xf]
        %v5717 = vld [vmem:[%s11 + $0x38] sm:$0xf]
        %v5718 = vld [vmem:[%s11 + $0x3c] sm:$0xf]
        %v5719 = vld [vmem:[%s11 + $0x40] sm:$0xf]
        %v5720 = vld [vmem:[%s11 + $0x44] sm:$0xf]
        %v5721 = vld [vmem:[%s11 + $0x48] sm:$0xf]
        %v5722 = vld [vmem:[%s11 + $0x4c] sm:$0xf]
        %v5723 = vld [vmem:[%s11 + $0x50] sm:$0xf]
        %v5724 = vld [vmem:[%s11 + $0x54] sm:$0xf]
        %v5725 = vld [vmem:[%s11 + $0x58] sm:$0xf]
        %v5726 = vld [vmem:[%s11 + $0x5c] sm:$0xf]
        %v5727 = vld [vmem:[%s11 + $0x60] sm:$0xf]
        %v5728 = vld [vmem:[%s11 + $0x64] sm:$0xf]
        %v5729 = vld [vmem:[%s11 + $0x68] sm:$0xf]
        %v5730 = vld [vmem:[%s11 + $0x6c] sm:$0xf]
        %v5731 = vld [vmem:[%s11 + $0x70] sm:$0xf]
        %v5732 = vld [vmem:[%s11 + $0x74] sm:$0xf]
        %v5733 = vld [vmem:[%s11 + $0x78] sm:$0xf]
        %v5734 = vld [vmem:[%s11 + $0x7c] sm:$0xf]
        %v5735 = vld [vmem:[%s11 + $0x80] sm:$0xf]
        %v5736 = vld [vmem:[%s11 + $0x84] sm:$0xf]
        %v5737 = vld [vmem:[%s11 + $0x88] sm:$0xf]
        %v5738 = vld [vmem:[%s11 + $0x8c] sm:$0xf]
        %v5739 = vld [vmem:[%s11 + $0x90] sm:$0xf]
        %v5740 = vld [vmem:[%s11 + $0x94] sm:$0xf]
        %v5741 = vld [vmem:[%s11 + $0x98] sm:$0xf]
        %v5742 = vld [vmem:[%s11 + $0x9c] sm:$0xf]
        %v5743 = vld [vmem:[%s11 + $0xa0] sm:$0xf]
        %v5744 = vld [vmem:[%s11 + $0xa4] sm:$0xf]
        %v5745 = vld [vmem:[%s11 + $0xa8] sm:$0xf]
        %v5746 = vld [vmem:[%s11 + $0xac] sm:$0xf]
        %v5747 = vld [vmem:[%s11 + $0xb0] sm:$0xf]
        %v5748 = vld [vmem:[%s11 + $0xb4] sm:$0xf]
        %v5749 = vld [vmem:[%s11 + $0xb8] sm:$0xf]
        %v5750 = vld [vmem:[%s11 + $0xbc] sm:$0xf]
        %v5751 = vld [vmem:[%s11 + $0xc0] sm:$0xf]
        %v5752 = vld [vmem:[%s11 + $0xc4] sm:$0xf]
        %v5753 = vld [vmem:[%s11 + $0xc8] sm:$0xf]
        %v5754 = vld [vmem:[%s11 + $0xcc] sm:$0xf]
        %v5755 = vld [vmem:[%s11 + $0xd0] sm:$0xf]
        %v5756 = vld [vmem:[%s11 + $0xd4] sm:$0xf]
        %v5757 = vld [vmem:[%s11 + $0xd8] sm:$0xf]
        %v5758 = vld [vmem:[%s11 + $0xdc] sm:$0xf]
        %v5759 = vld [vmem:[%s11 + $0xe0] sm:$0xf]
        %v5760 = vld [vmem:[%s11 + $0xe4] sm:$0xf]
        %v5761 = vld [vmem:[%s11 + $0xe8] sm:$0xf]
        %v5762 = vld [vmem:[%s11 + $0xec] sm:$0xf]
        %v5763 = vld [vmem:[%s11 + $0xf0] sm:$0xf]
        %v5764 = vld [vmem:[%s11 + $0xf4] sm:$0xf]
        %v5765 = vld [vmem:[%s11 + $0xf8] sm:$0xf]
        %v5766 = vld [vmem:[%s11 + $0xfc] sm:$0xf]
        %v5767 = vld [vmem:[%s12] sm:$0x1]
        %v5769 = vlaneseq
        %v5770 = vshrl.u32 %v5769, 7
        %v5771 = vsub.s32 0, %v5770
        %v5772 = vrot.slane %v5767, %v5771
        %v5838 = vunpack.c.l.b16 %v5703
        %v5839 = vunpack.c.l.b16 %v5704
        %v5840 = vunpack.c.l.b16 %v5705
        %v5841 = vunpack.c.l.b16 %v5706
        %v5842 = vunpack.c.l.b16 %v5707
        %v5843 = vunpack.c.l.b16 %v5708
        %v5844 = vunpack.c.l.b16 %v5709
        %v5845 = vunpack.c.l.b16 %v5710
        %v5846 = vunpack.c.l.b16 %v5711
        %v5847 = vunpack.c.l.b16 %v5712
        %v5848 = vunpack.c.l.b16 %v5713
        %v5849 = vunpack.c.l.b16 %v5714
        %v5850 = vunpack.c.l.b16 %v5715
        %v5851 = vunpack.c.l.b16 %v5716
        %v5852 = vunpack.c.l.b16 %v5717
        %v5853 = vunpack.c.l.b16 %v5718
        %v5854 = vunpack.c.l.b16 %v5719
        %v5855 = vunpack.c.l.b16 %v5720
        %v5856 = vunpack.c.l.b16 %v5721
        %v5857 = vunpack.c.l.b16 %v5722
        %v5858 = vunpack.c.l.b16 %v5723
        %v5859 = vunpack.c.l.b16 %v5724
        %v5860 = vunpack.c.l.b16 %v5725
        %v5861 = vunpack.c.l.b16 %v5726
        %v5862 = vunpack.c.l.b16 %v5727
        %v5863 = vunpack.c.l.b16 %v5728
        %v5864 = vunpack.c.l.b16 %v5729
        %v5865 = vunpack.c.l.b16 %v5730
        %v5866 = vunpack.c.l.b16 %v5731
        %v5867 = vunpack.c.l.b16 %v5732
        %v5868 = vunpack.c.l.b16 %v5733
        %v5869 = vunpack.c.l.b16 %v5734
        %v5870 = vunpack.c.l.b16 %v5735
        %v5871 = vunpack.c.l.b16 %v5736
        %v5872 = vunpack.c.l.b16 %v5737
        %v5873 = vunpack.c.l.b16 %v5738
        %v5874 = vunpack.c.l.b16 %v5739
        %v5875 = vunpack.c.l.b16 %v5740
        %v5876 = vunpack.c.l.b16 %v5741
        %v5877 = vunpack.c.l.b16 %v5742
        %v5878 = vunpack.c.l.b16 %v5743
        %v5879 = vunpack.c.l.b16 %v5744
        %v5880 = vunpack.c.l.b16 %v5745
        %v5881 = vunpack.c.l.b16 %v5746
        %v5882 = vunpack.c.l.b16 %v5747
        %v5883 = vunpack.c.l.b16 %v5748
        %v5884 = vunpack.c.l.b16 %v5749
        %v5885 = vunpack.c.l.b16 %v5750
        %v5886 = vunpack.c.l.b16 %v5751
        %v5887 = vunpack.c.l.b16 %v5752
        %v5888 = vunpack.c.l.b16 %v5753
        %v5889 = vunpack.c.l.b16 %v5754
        %v5890 = vunpack.c.l.b16 %v5755
        %v5891 = vunpack.c.l.b16 %v5756
        %v5892 = vunpack.c.l.b16 %v5757
        %v5893 = vunpack.c.l.b16 %v5758
        %v5894 = vunpack.c.l.b16 %v5759
        %v5895 = vunpack.c.l.b16 %v5760
        %v5896 = vunpack.c.l.b16 %v5761
        %v5897 = vunpack.c.l.b16 %v5762
        %v5898 = vunpack.c.l.b16 %v5763
        %v5899 = vunpack.c.l.b16 %v5764
        %v5900 = vunpack.c.l.b16 %v5765
        %v5901 = vunpack.c.l.b16 %v5766
        %v5902 = vpack.c.b16 %v5839, %v5838
        %v5903 = vpack.c.b16 %v5841, %v5840
        %v5904 = vpack.c.b16 %v5843, %v5842
        %v5905 = vpack.c.b16 %v5845, %v5844
        %v5906 = vpack.c.b16 %v5847, %v5846
        %v5907 = vpack.c.b16 %v5849, %v5848
        %v5908 = vpack.c.b16 %v5851, %v5850
        %v5909 = vpack.c.b16 %v5853, %v5852
        %v5910 = vpack.c.b16 %v5855, %v5854
        %v5911 = vpack.c.b16 %v5857, %v5856
        %v5912 = vpack.c.b16 %v5859, %v5858
        %v5913 = vpack.c.b16 %v5861, %v5860
        %v5914 = vpack.c.b16 %v5863, %v5862
        %v5915 = vpack.c.b16 %v5865, %v5864
        %v5916 = vpack.c.b16 %v5867, %v5866
        %v5917 = vpack.c.b16 %v5869, %v5868
        %v5918 = vpack.c.b16 %v5871, %v5870
        %v5919 = vpack.c.b16 %v5873, %v5872
        %v5920 = vpack.c.b16 %v5875, %v5874
        %v5921 = vpack.c.b16 %v5877, %v5876
        %v5922 = vpack.c.b16 %v5879, %v5878
        %v5923 = vpack.c.b16 %v5881, %v5880
        %v5924 = vpack.c.b16 %v5883, %v5882
        %v5925 = vpack.c.b16 %v5885, %v5884
        %v5926 = vpack.c.b16 %v5887, %v5886
        %v5927 = vpack.c.b16 %v5889, %v5888
        %v5928 = vpack.c.b16 %v5891, %v5890
        %v5929 = vpack.c.b16 %v5893, %v5892
        %v5930 = vpack.c.b16 %v5895, %v5894
        %v5931 = vpack.c.b16 %v5897, %v5896
        %v5932 = vpack.c.b16 %v5899, %v5898
        %v5933 = vpack.c.b16 %v5901, %v5900
        %5966 = vmatprep.subr.bf16.mxu0 0
        %5967 = vmatpush1.bf16.msra.mxu0 %v5909
        %5968 = vmatprep.subr.bf16.mxu0 0
        %5969 = vmatpush1.bf16.msra.mxu0 %v5908
        %5970 = vmatprep.subr.bf16.mxu0 0
        %5971 = vmatpush1.bf16.msra.mxu0 %v5907
        %5972 = vmatprep.subr.bf16.mxu0 0
        %5973 = vmatpush1.bf16.msra.mxu0 %v5906
        %5974 = vmatprep.subr.bf16.mxu0 0
        %5975 = vmatpush1.bf16.msra.mxu0 %v5905
        %5976 = vmatprep.subr.bf16.mxu0 0
        %5977 = vmatpush1.bf16.msra.mxu0 %v5904
        %5978 = vmatprep.subr.bf16.mxu0 0
        %5979 = vmatpush1.bf16.msra.mxu0 %v5903
        %5980 = vmatprep.subr.bf16.mxu0 0
        %5981 = vmatpush1.bf16.msra.mxu0 %v5902
        %5982 = vmatprep.subr.bf16.mxu0 0
        %5983 = vmatpush2.bf16.msra.mxu0 %v5917
        %5984 = vmatprep.subr.bf16.mxu0 0
        %5985 = vmatpush2.bf16.msra.mxu0 %v5916
        %5986 = vmatprep.subr.bf16.mxu0 0
        %5987 = vmatpush2.bf16.msra.mxu0 %v5915
        %5988 = vmatprep.subr.bf16.mxu0 0
        %5989 = vmatpush2.bf16.msra.mxu0 %v5914
        %5990 = vmatprep.subr.bf16.mxu0 0
        %5991 = vmatpush2.bf16.msra.mxu0 %v5913
        %5992 = vmatprep.subr.bf16.mxu0 0
        %5993 = vmatpush2.bf16.msra.mxu0 %v5912
        %5994 = vmatprep.subr.bf16.mxu0 0
        %5995 = vmatpush2.bf16.msra.mxu0 %v5911
        %5996 = vmatprep.subr.bf16.mxu0 0
        %5997 = vmatpush2.bf16.msra.mxu0 %v5910
        %5998 = vmatprep.mubr.bf16.mxu0 %v5700
        %5999 = vmatmul.mubr.bf16.gmra.mxu0 %v5699
        %v6000 = vpop.f32.mrf.mxu0
        %v6001 = vadd.f32 %v5772, %v6000
        %v6002 = vpop.f32.mrf.mxu0
        %v6003 = vpop.f32.mrf.mxu0
        %v6004 = vpop.f32.mrf.mxu0
        %6005 = vdwg.mxu0
        %6006 = vmatprep.subr.bf16.mxu0 0
        %6007 = vmatpush1.bf16.msra.mxu0 %v5925
        %6008 = vmatprep.subr.bf16.mxu0 0
        %6009 = vmatpush1.bf16.msra.mxu0 %v5924
        %6010 = vmatprep.subr.bf16.mxu0 0
        %6011 = vmatpush1.bf16.msra.mxu0 %v5923
        %6012 = vmatprep.subr.bf16.mxu0 0
        %6013 = vmatpush1.bf16.msra.mxu0 %v5922
        %6014 = vmatprep.subr.bf16.mxu0 0
        %6015 = vmatpush1.bf16.msra.mxu0 %v5921
        %6016 = vmatprep.subr.bf16.mxu0 0
        %6017 = vmatpush1.bf16.msra.mxu0 %v5920
        %6018 = vmatprep.subr.bf16.mxu0 0
        %6019 = vmatpush1.bf16.msra.mxu0 %v5919
        %6020 = vmatprep.subr.bf16.mxu0 0
        %6021 = vmatpush1.bf16.msra.mxu0 %v5918
        %6022 = vmatprep.subr.bf16.mxu0 0
        %6023 = vmatpush2.bf16.msra.mxu0 %v5933
        %6024 = vmatprep.subr.bf16.mxu0 0
        %6025 = vmatpush2.bf16.msra.mxu0 %v5932
        %6026 = vmatprep.subr.bf16.mxu0 0
        %6027 = vmatpush2.bf16.msra.mxu0 %v5931
        %6028 = vmatprep.subr.bf16.mxu0 0
        %6029 = vmatpush2.bf16.msra.mxu0 %v5930
        %6030 = vmatprep.subr.bf16.mxu0 0
        %6031 = vmatpush2.bf16.msra.mxu0 %v5929
        %6032 = vmatprep.subr.bf16.mxu0 0
        %6033 = vmatpush2.bf16.msra.mxu0 %v5928
        %6034 = vmatprep.subr.bf16.mxu0 0
        %6035 = vmatpush2.bf16.msra.mxu0 %v5927
        %6036 = vmatprep.subr.bf16.mxu0 0
        %6037 = vmatpush2.bf16.msra.mxu0 %v5926
        %6038 = vmatprep.mubr.bf16.mxu0 %v5702
        %6039 = vmatmul.mubr.bf16.gmra.mxu0 %v5701
        %v6040 = vpop.f32.mrf.mxu0
        %v6041 = vadd.f32 %v6001, %v6040
        %v6042 = vpop.f32.mrf.mxu0
        %v6043 = vpop.f32.mrf.mxu0
        %v6044 = vpop.f32.mrf.mxu0
        %6045 = vdwg.mxu0
        %s6046 = scalar_lea.vmem %s805, 8
        %v6047 = vld [vmem:[%s6046] sm:$0xff]
        %v6048 = vmul.f32 %v6041, %v6047
        %v6049 = vpack.c.bf16 %v6048, %v6048
        %v6050 = vld [vmem:[%s13] sm:$0xff]
        %v6051 = vld [vmem:[%s13 + $0x8] sm:$0xff]
        %v6052 = vld [vmem:[%s13 + $0x10] sm:$0xff]
        %v6053 = vld [vmem:[%s13 + $0x18] sm:$0xff]
        %v6054 = vld [vmem:[%s14] sm:$0xf]
        %v6056 = vlaneseq
        %v6057 = vshrl.u32 %v6056, 7
        %v6058 = vsub.s32 0, %v6057
        %v6059 = vrot.slane %v6054, %v6058
        %v6060 = vlaneseq
        %v6061 = vshrl.u32 %v6060, 7
        %v6062 = vsub.s32 1, %v6061
        %v6063 = vrot.slane %v6054, %v6062
        %v6064 = vlaneseq
        %v6065 = vshrl.u32 %v6064, 7
        %v6066 = vsub.s32 2, %v6065
        %v6067 = vrot.slane %v6054, %v6066
        %v6068 = vlaneseq
        %v6069 = vshrl.u32 %v6068, 7
        %v6070 = vsub.s32 3, %v6069
        %v6071 = vrot.slane %v6054, %v6070
        %v6080 = vunpack.c.l.b16 %v6050
        %v6081 = vunpack.c.h.b16 %v6050
        %v6082 = vunpack.c.l.b16 %v6051
        %v6083 = vunpack.c.h.b16 %v6051
        %v6084 = vunpack.c.l.b16 %v6052
        %v6085 = vunpack.c.h.b16 %v6052
        %v6086 = vunpack.c.l.b16 %v6053
        %v6087 = vunpack.c.h.b16 %v6053
        %v6088 = vpack.c.b16 %v6084, %v6080
        %v6089 = vpack.c.b16 %v6085, %v6081
        %v6090 = vpack.c.b16 %v6086, %v6082
        %v6091 = vpack.c.b16 %v6087, %v6083
        %v6097 = vsel %vm1960, %v6049, 0
        %6099 = vmatprep.subr.bf16.mxu0 0
        %6100 = vmatpush1.bf16.msra.mxu0 0
        %6101 = vmatprep.subr.bf16.mxu0 0
        %6102 = vmatpush1.bf16.msra.mxu0 0
        %6103 = vmatprep.subr.bf16.mxu0 0
        %6104 = vmatpush1.bf16.msra.mxu0 0
        %6105 = vmatprep.subr.bf16.mxu0 0
        %6106 = vmatpush1.bf16.msra.mxu0 0
        %6107 = vmatprep.subr.bf16.mxu0 0
        %6108 = vmatpush1.bf16.msra.mxu0 0
        %6109 = vmatprep.subr.bf16.mxu0 0
        %6110 = vmatpush1.bf16.msra.mxu0 0
        %6111 = vmatprep.subr.bf16.mxu0 0
        %6112 = vmatpush1.bf16.msra.mxu0 0
        %6113 = vmatprep.subr.bf16.mxu0 %v6089
        %6114 = vmatpush1.bf16.msra.mxu0 %v6088
        %6115 = vmatprep.subr.bf16.mxu0 0
        %6116 = vmatpush2.bf16.msra.mxu0 0
        %6117 = vmatprep.subr.bf16.mxu0 0
        %6118 = vmatpush2.bf16.msra.mxu0 0
        %6119 = vmatprep.subr.bf16.mxu0 0
        %6120 = vmatpush2.bf16.msra.mxu0 0
        %6121 = vmatprep.subr.bf16.mxu0 0
        %6122 = vmatpush2.bf16.msra.mxu0 0
        %6123 = vmatprep.subr.bf16.mxu0 0
        %6124 = vmatpush2.bf16.msra.mxu0 0
        %6125 = vmatprep.subr.bf16.mxu0 0
        %6126 = vmatpush2.bf16.msra.mxu0 0
        %6127 = vmatprep.subr.bf16.mxu0 0
        %6128 = vmatpush2.bf16.msra.mxu0 0
        %6129 = vmatprep.subr.bf16.mxu0 0
        %6130 = vmatpush2.bf16.msra.mxu0 0
        %6131 = vmatprep.mubr.bf16.mxu0 0
        %6132 = vmatmul.mubr.bf16.gmra.mxu0 %v6097
        %v6133 = vpop.f32.mrf.mxu0
        %v6134 = vadd.f32 %v6059, %v6133
        %v6135 = vpop.f32.mrf.mxu0
        %v6136 = vadd.f32 %v6063, %v6135
        %v6137 = vpop.f32.mrf.mxu0
        %v6138 = vpop.f32.mrf.mxu0
        %6139 = vdwg.mxu0
        %6140 = vmatprep.subr.bf16.mxu0 0
        %6141 = vmatpush1.bf16.msra.mxu0 0
        %6142 = vmatprep.subr.bf16.mxu0 0
        %6143 = vmatpush1.bf16.msra.mxu0 0
        %6144 = vmatprep.subr.bf16.mxu0 0
        %6145 = vmatpush1.bf16.msra.mxu0 0
        %6146 = vmatprep.subr.bf16.mxu0 0
        %6147 = vmatpush1.bf16.msra.mxu0 0
        %6148 = vmatprep.subr.bf16.mxu0 0
        %6149 = vmatpush1.bf16.msra.mxu0 0
        %6150 = vmatprep.subr.bf16.mxu0 0
        %6151 = vmatpush1.bf16.msra.mxu0 0
        %6152 = vmatprep.subr.bf16.mxu0 0
        %6153 = vmatpush1.bf16.msra.mxu0 0
        %6154 = vmatprep.subr.bf16.mxu0 %v6091
        %6155 = vmatpush1.bf16.msra.mxu0 %v6090
        %6156 = vmatprep.subr.bf16.mxu0 0
        %6157 = vmatpush2.bf16.msra.mxu0 0
        %6158 = vmatprep.subr.bf16.mxu0 0
        %6159 = vmatpush2.bf16.msra.mxu0 0
        %6160 = vmatprep.subr.bf16.mxu0 0
        %6161 = vmatpush2.bf16.msra.mxu0 0
        %6162 = vmatprep.subr.bf16.mxu0 0
        %6163 = vmatpush2.bf16.msra.mxu0 0
        %6164 = vmatprep.subr.bf16.mxu0 0
        %6165 = vmatpush2.bf16.msra.mxu0 0
        %6166 = vmatprep.subr.bf16.mxu0 0
        %6167 = vmatpush2.bf16.msra.mxu0 0
        %6168 = vmatprep.subr.bf16.mxu0 0
        %6169 = vmatpush2.bf16.msra.mxu0 0
        %6170 = vmatprep.subr.bf16.mxu0 0
        %6171 = vmatpush2.bf16.msra.mxu0 0
        %6172 = vmatprep.mubr.bf16.mxu0 0
        %6173 = vmatmul.mubr.bf16.gmra.mxu0 %v6097
        %v6174 = vpop.f32.mrf.mxu0
        %v6175 = vadd.f32 %v6067, %v6174
        %v6176 = vpop.f32.mrf.mxu0
        %v6177 = vadd.f32 %v6071, %v6176
        %v6178 = vpop.f32.mrf.mxu0
        %v6179 = vpop.f32.mrf.mxu0
        %6180 = vdwg.mxu0
        %v6181 = vld [vmem:[%s15] sm:$0xf]
        %v6182 = vld [vmem:[%s16] sm:$0xf]
        %v6183 = vadd.f32 %v6134, %v6136
        %v6184 = vadd.f32 %v6183, %v6175
        %v6185 = vadd.f32 %v6184, %v6177
        %6186 = vadd.xlane.f32.xlu0 %v6185
        %v6187 = vpop.xlane.xlu0 %6186
        %v6188 = vmul.f32 %v6187, %v1464
        %v6189 = vsub.f32 %v6134, %v6188
        %v6190 = vsub.f32 %v6136, %v6188
        %v6191 = vsub.f32 %v6175, %v6188
        %v6192 = vsub.f32 %v6177, %v6188
        %v6193 = vmul.f32 %v6189, %v6189
        %v6194 = vmul.f32 %v6190, %v6190
        %v6195 = vmul.f32 %v6191, %v6191
        %v6196 = vmul.f32 %v6192, %v6192
        %v6197 = vadd.f32 %v6193, %v6194
        %v6198 = vadd.f32 %v6197, %v6195
        %v6199 = vadd.f32 %v6198, %v6196
        %6200 = vadd.xlane.f32.xlu0 %v6199
        %v6201 = vpop.xlane.xlu0 %6200
        %v6202 = vmul.f32 %v6201, %v1464
        %v6203 = vadd.f32 %v6202, 1e-05
        %v6204 = vrsqrt.pop %v6203
        %v6205 = vmul.f32 %v6189, %v6204
        %v6206 = vmul.f32 %v6190, %v6204
        %v6207 = vmul.f32 %v6191, %v6204
        %v6208 = vmul.f32 %v6192, %v6204
        %v6210 = vlaneseq
        %v6211 = vshrl.u32 %v6210, 7
        %v6212 = vsub.s32 0, %v6211
        %v6213 = vrot.slane %v6181, %v6212
        %v6214 = vlaneseq
        %v6215 = vshrl.u32 %v6214, 7
        %v6216 = vsub.s32 1, %v6215
        %v6217 = vrot.slane %v6181, %v6216
        %v6218 = vlaneseq
        %v6219 = vshrl.u32 %v6218, 7
        %v6220 = vsub.s32 2, %v6219
        %v6221 = vrot.slane %v6181, %v6220
        %v6222 = vlaneseq
        %v6223 = vshrl.u32 %v6222, 7
        %v6224 = vsub.s32 3, %v6223
        %v6225 = vrot.slane %v6181, %v6224
        %v6230 = vmul.f32 %v6205, %v6213
        %v6231 = vmul.f32 %v6206, %v6217
        %v6232 = vmul.f32 %v6207, %v6221
        %v6233 = vmul.f32 %v6208, %v6225
        %v6235 = vlaneseq
        %v6236 = vshrl.u32 %v6235, 7
        %v6237 = vsub.s32 0, %v6236
        %v6238 = vrot.slane %v6182, %v6237
        %v6239 = vlaneseq
        %v6240 = vshrl.u32 %v6239, 7
        %v6241 = vsub.s32 1, %v6240
        %v6242 = vrot.slane %v6182, %v6241
        %v6243 = vlaneseq
        %v6244 = vshrl.u32 %v6243, 7
        %v6245 = vsub.s32 2, %v6244
        %v6246 = vrot.slane %v6182, %v6245
        %v6247 = vlaneseq
        %v6248 = vshrl.u32 %v6247, 7
        %v6249 = vsub.s32 3, %v6248
        %v6250 = vrot.slane %v6182, %v6249
        %v6255 = vadd.f32 %v6230, %v6238
        %v6256 = vadd.f32 %v6231, %v6242
        %v6257 = vadd.f32 %v6232, %v6246
        %v6258 = vadd.f32 %v6233, %v6250
        %v6259 = vxor.u32 %v6255, 2147483648
        %v6260 = vxor.u32 %v6256, 2147483648
        %v6261 = vxor.u32 %v6257, 2147483648
        %v6262 = vxor.u32 %v6258, 2147483648
        %v6263 = vmul.f32 %v6259, 1.442695
        %v6264 = vpow.pop %v6263
        %v6265 = vmul.f32 %v6260, 1.442695
        %v6266 = vpow.pop %v6265
        %v6267 = vmul.f32 %v6261, 1.442695
        %v6268 = vpow.pop %v6267
        %v6269 = vmul.f32 %v6262, 1.442695
        %v6270 = vpow.pop %v6269
        %v6271 = vadd.f32 %v6264, 1.0
        %v6272 = vadd.f32 %v6266, 1.0
        %v6273 = vadd.f32 %v6268, 1.0
        %v6274 = vadd.f32 %v6270, 1.0
        %v6275 = vrcp.pop %v6271
        %v6276 = vmul.f32 1.0, %v6275
        %v6277 = vrcp.pop %v6272
        %v6278 = vmul.f32 1.0, %v6277
        %v6279 = vrcp.pop %v6273
        %v6280 = vmul.f32 1.0, %v6279
        %v6281 = vrcp.pop %v6274
        %v6282 = vmul.f32 1.0, %v6281
        %v6283 = vmul.f32 %v6255, %v6276
        %v6284 = vmul.f32 %v6256, %v6278
        %v6285 = vmul.f32 %v6257, %v6280
        %v6286 = vmul.f32 %v6258, %v6282
        %v6287 = vpack.c.bf16 %v6283, %v6283
        %v6288 = vpack.c.bf16 %v6284, %v6284
        %v6289 = vpack.c.bf16 %v6285, %v6285
        %v6290 = vpack.c.bf16 %v6286, %v6286
        %v6291 = vld [vmem:[%s17] sm:$0xff]
        %v6292 = vld [vmem:[%s17 + $0x8] sm:$0xff]
        %v6293 = vld [vmem:[%s17 + $0x10] sm:$0xff]
        %v6294 = vld [vmem:[%s17 + $0x18] sm:$0xff]
        %v6295 = vld [vmem:[%s17 + $0x20] sm:$0xff]
        %v6296 = vld [vmem:[%s17 + $0x28] sm:$0xff]
        %v6297 = vld [vmem:[%s17 + $0x30] sm:$0xff]
        %v6298 = vld [vmem:[%s17 + $0x38] sm:$0xff]
        %v6299 = vld [vmem:[%s17 + $0x40] sm:$0xff]
        %v6300 = vld [vmem:[%s17 + $0x48] sm:$0xff]
        %v6301 = vld [vmem:[%s17 + $0x50] sm:$0xff]
        %v6302 = vld [vmem:[%s17 + $0x58] sm:$0xff]
        %v6303 = vld [vmem:[%s17 + $0x60] sm:$0xff]
        %v6304 = vld [vmem:[%s17 + $0x68] sm:$0xff]
        %v6305 = vld [vmem:[%s17 + $0x70] sm:$0xff]
        %v6306 = vld [vmem:[%s17 + $0x78] sm:$0xff]
        %v6307 = vld [vmem:[%s17 + $0x80] sm:$0xff]
        %v6308 = vld [vmem:[%s17 + $0x88] sm:$0xff]
        %v6309 = vld [vmem:[%s17 + $0x90] sm:$0xff]
        %v6310 = vld [vmem:[%s17 + $0x98] sm:$0xff]
        %v6311 = vld [vmem:[%s17 + $0xa0] sm:$0xff]
        %v6312 = vld [vmem:[%s17 + $0xa8] sm:$0xff]
        %v6313 = vld [vmem:[%s17 + $0xb0] sm:$0xff]
        %v6314 = vld [vmem:[%s17 + $0xb8] sm:$0xff]
        %v6315 = vld [vmem:[%s17 + $0xc0] sm:$0xff]
        %v6316 = vld [vmem:[%s17 + $0xc8] sm:$0xff]
        %v6317 = vld [vmem:[%s17 + $0xd0] sm:$0xff]
        %v6318 = vld [vmem:[%s17 + $0xd8] sm:$0xff]
        %v6319 = vld [vmem:[%s17 + $0xe0] sm:$0xff]
        %v6320 = vld [vmem:[%s17 + $0xe8] sm:$0xff]
        %v6321 = vld [vmem:[%s17 + $0xf0] sm:$0xff]
        %v6322 = vld [vmem:[%s17 + $0xf8] sm:$0xff]
        %v6323 = vld [vmem:[%s17 + $0x100] sm:$0xff]
        %v6324 = vld [vmem:[%s17 + $0x108] sm:$0xff]
        %v6325 = vld [vmem:[%s17 + $0x110] sm:$0xff]
        %v6326 = vld [vmem:[%s17 + $0x118] sm:$0xff]
        %v6327 = vld [vmem:[%s17 + $0x120] sm:$0xff]
        %v6328 = vld [vmem:[%s17 + $0x128] sm:$0xff]
        %v6329 = vld [vmem:[%s17 + $0x130] sm:$0xff]
        %v6330 = vld [vmem:[%s17 + $0x138] sm:$0xff]
        %v6331 = vld [vmem:[%s17 + $0x140] sm:$0xff]
        %v6332 = vld [vmem:[%s17 + $0x148] sm:$0xff]
        %v6333 = vld [vmem:[%s17 + $0x150] sm:$0xff]
        %v6334 = vld [vmem:[%s17 + $0x158] sm:$0xff]
        %v6335 = vld [vmem:[%s17 + $0x160] sm:$0xff]
        %v6336 = vld [vmem:[%s17 + $0x168] sm:$0xff]
        %v6337 = vld [vmem:[%s17 + $0x170] sm:$0xff]
        %v6338 = vld [vmem:[%s17 + $0x178] sm:$0xff]
        %v6339 = vld [vmem:[%s17 + $0x180] sm:$0xff]
        %v6340 = vld [vmem:[%s17 + $0x188] sm:$0xff]
        %v6341 = vld [vmem:[%s17 + $0x190] sm:$0xff]
        %v6342 = vld [vmem:[%s17 + $0x198] sm:$0xff]
        %v6343 = vld [vmem:[%s17 + $0x1a0] sm:$0xff]
        %v6344 = vld [vmem:[%s17 + $0x1a8] sm:$0xff]
        %v6345 = vld [vmem:[%s17 + $0x1b0] sm:$0xff]
        %v6346 = vld [vmem:[%s17 + $0x1b8] sm:$0xff]
        %v6347 = vld [vmem:[%s17 + $0x1c0] sm:$0xff]
        %v6348 = vld [vmem:[%s17 + $0x1c8] sm:$0xff]
        %v6349 = vld [vmem:[%s17 + $0x1d0] sm:$0xff]
        %v6350 = vld [vmem:[%s17 + $0x1d8] sm:$0xff]
        %v6351 = vld [vmem:[%s17 + $0x1e0] sm:$0xff]
        %v6352 = vld [vmem:[%s17 + $0x1e8] sm:$0xff]
        %v6353 = vld [vmem:[%s17 + $0x1f0] sm:$0xff]
        %v6354 = vld [vmem:[%s17 + $0x1f8] sm:$0xff]
        %v6355 = vld [vmem:[%s17 + $0x200] sm:$0xff]
        %v6356 = vld [vmem:[%s17 + $0x208] sm:$0xff]
        %v6357 = vld [vmem:[%s17 + $0x210] sm:$0xff]
        %v6358 = vld [vmem:[%s17 + $0x218] sm:$0xff]
        %v6359 = vld [vmem:[%s17 + $0x220] sm:$0xff]
        %v6360 = vld [vmem:[%s17 + $0x228] sm:$0xff]
        %v6361 = vld [vmem:[%s17 + $0x230] sm:$0xff]
        %v6362 = vld [vmem:[%s17 + $0x238] sm:$0xff]
        %v6363 = vld [vmem:[%s17 + $0x240] sm:$0xff]
        %v6364 = vld [vmem:[%s17 + $0x248] sm:$0xff]
        %v6365 = vld [vmem:[%s17 + $0x250] sm:$0xff]
        %v6366 = vld [vmem:[%s17 + $0x258] sm:$0xff]
        %v6367 = vld [vmem:[%s17 + $0x260] sm:$0xff]
        %v6368 = vld [vmem:[%s17 + $0x268] sm:$0xff]
        %v6369 = vld [vmem:[%s17 + $0x270] sm:$0xff]
        %v6370 = vld [vmem:[%s17 + $0x278] sm:$0xff]
        %v6371 = vld [vmem:[%s17 + $0x280] sm:$0xff]
        %v6372 = vld [vmem:[%s17 + $0x288] sm:$0xff]
        %v6373 = vld [vmem:[%s17 + $0x290] sm:$0xff]
        %v6374 = vld [vmem:[%s17 + $0x298] sm:$0xff]
        %v6375 = vld [vmem:[%s17 + $0x2a0] sm:$0xff]
        %v6376 = vld [vmem:[%s17 + $0x2a8] sm:$0xff]
        %v6377 = vld [vmem:[%s17 + $0x2b0] sm:$0xff]
        %v6378 = vld [vmem:[%s17 + $0x2b8] sm:$0xff]
        %v6379 = vld [vmem:[%s17 + $0x2c0] sm:$0xff]
        %v6380 = vld [vmem:[%s17 + $0x2c8] sm:$0xff]
        %v6381 = vld [vmem:[%s17 + $0x2d0] sm:$0xff]
        %v6382 = vld [vmem:[%s17 + $0x2d8] sm:$0xff]
        %v6383 = vld [vmem:[%s17 + $0x2e0] sm:$0xff]
        %v6384 = vld [vmem:[%s17 + $0x2e8] sm:$0xff]
        %v6385 = vld [vmem:[%s17 + $0x2f0] sm:$0xff]
        %v6386 = vld [vmem:[%s17 + $0x2f8] sm:$0xff]
        %v6387 = vld [vmem:[%s17 + $0x300] sm:$0xff]
        %v6388 = vld [vmem:[%s17 + $0x308] sm:$0xff]
        %v6389 = vld [vmem:[%s17 + $0x310] sm:$0xff]
        %v6390 = vld [vmem:[%s17 + $0x318] sm:$0xff]
        %v6391 = vld [vmem:[%s17 + $0x320] sm:$0xff]
        %v6392 = vld [vmem:[%s17 + $0x328] sm:$0xff]
        %v6393 = vld [vmem:[%s17 + $0x330] sm:$0xff]
        %v6394 = vld [vmem:[%s17 + $0x338] sm:$0xff]
        %v6395 = vld [vmem:[%s17 + $0x340] sm:$0xff]
        %v6396 = vld [vmem:[%s17 + $0x348] sm:$0xff]
        %v6397 = vld [vmem:[%s17 + $0x350] sm:$0xff]
        %v6398 = vld [vmem:[%s17 + $0x358] sm:$0xff]
        %v6399 = vld [vmem:[%s17 + $0x360] sm:$0xff]
        %v6400 = vld [vmem:[%s17 + $0x368] sm:$0xff]
        %v6401 = vld [vmem:[%s17 + $0x370] sm:$0xff]
        %v6402 = vld [vmem:[%s17 + $0x378] sm:$0xff]
        %v6403 = vld [vmem:[%s17 + $0x380] sm:$0xff]
        %v6404 = vld [vmem:[%s17 + $0x388] sm:$0xff]
        %v6405 = vld [vmem:[%s17 + $0x390] sm:$0xff]
        %v6406 = vld [vmem:[%s17 + $0x398] sm:$0xff]
        %v6407 = vld [vmem:[%s17 + $0x3a0] sm:$0xff]
        %v6408 = vld [vmem:[%s17 + $0x3a8] sm:$0xff]
        %v6409 = vld [vmem:[%s17 + $0x3b0] sm:$0xff]
        %v6410 = vld [vmem:[%s17 + $0x3b8] sm:$0xff]
        %v6411 = vld [vmem:[%s17 + $0x3c0] sm:$0xff]
        %v6412 = vld [vmem:[%s17 + $0x3c8] sm:$0xff]
        %v6413 = vld [vmem:[%s17 + $0x3d0] sm:$0xff]
        %v6414 = vld [vmem:[%s17 + $0x3d8] sm:$0xff]
        %v6415 = vld [vmem:[%s17 + $0x3e0] sm:$0xff]
        %v6416 = vld [vmem:[%s17 + $0x3e8] sm:$0xff]
        %v6417 = vld [vmem:[%s17 + $0x3f0] sm:$0xff]
        %v6418 = vld [vmem:[%s17 + $0x3f8] sm:$0xff]
        %v6419 = vld [vmem:[%s17 + $0x400] sm:$0xff]
        %v6420 = vld [vmem:[%s17 + $0x408] sm:$0xff]
        %v6421 = vld [vmem:[%s17 + $0x410] sm:$0xff]
        %v6422 = vld [vmem:[%s17 + $0x418] sm:$0xff]
        %v6423 = vld [vmem:[%s17 + $0x420] sm:$0xff]
        %v6424 = vld [vmem:[%s17 + $0x428] sm:$0xff]
        %v6425 = vld [vmem:[%s17 + $0x430] sm:$0xff]
        %v6426 = vld [vmem:[%s17 + $0x438] sm:$0xff]
        %v6427 = vld [vmem:[%s17 + $0x440] sm:$0xff]
        %v6428 = vld [vmem:[%s17 + $0x448] sm:$0xff]
        %v6429 = vld [vmem:[%s17 + $0x450] sm:$0xff]
        %v6430 = vld [vmem:[%s17 + $0x458] sm:$0xff]
        %v6431 = vld [vmem:[%s17 + $0x460] sm:$0xff]
        %v6432 = vld [vmem:[%s17 + $0x468] sm:$0xff]
        %v6433 = vld [vmem:[%s17 + $0x470] sm:$0xff]
        %v6434 = vld [vmem:[%s17 + $0x478] sm:$0xff]
        %v6435 = vld [vmem:[%s17 + $0x480] sm:$0xff]
        %v6436 = vld [vmem:[%s17 + $0x488] sm:$0xff]
        %v6437 = vld [vmem:[%s17 + $0x490] sm:$0xff]
        %v6438 = vld [vmem:[%s17 + $0x498] sm:$0xff]
        %v6439 = vld [vmem:[%s17 + $0x4a0] sm:$0xff]
        %v6440 = vld [vmem:[%s17 + $0x4a8] sm:$0xff]
        %v6441 = vld [vmem:[%s17 + $0x4b0] sm:$0xff]
        %v6442 = vld [vmem:[%s17 + $0x4b8] sm:$0xff]
        %v6443 = vld [vmem:[%s17 + $0x4c0] sm:$0xff]
        %v6444 = vld [vmem:[%s17 + $0x4c8] sm:$0xff]
        %v6445 = vld [vmem:[%s17 + $0x4d0] sm:$0xff]
        %v6446 = vld [vmem:[%s17 + $0x4d8] sm:$0xff]
        %v6447 = vld [vmem:[%s17 + $0x4e0] sm:$0xff]
        %v6448 = vld [vmem:[%s17 + $0x4e8] sm:$0xff]
        %v6449 = vld [vmem:[%s17 + $0x4f0] sm:$0xff]
        %v6450 = vld [vmem:[%s17 + $0x4f8] sm:$0xff]
        %v6451 = vld [vmem:[%s17 + $0x500] sm:$0xff]
        %v6452 = vld [vmem:[%s17 + $0x508] sm:$0xff]
        %v6453 = vld [vmem:[%s17 + $0x510] sm:$0xff]
        %v6454 = vld [vmem:[%s17 + $0x518] sm:$0xff]
        %v6455 = vld [vmem:[%s17 + $0x520] sm:$0xff]
        %v6456 = vld [vmem:[%s17 + $0x528] sm:$0xff]
        %v6457 = vld [vmem:[%s17 + $0x530] sm:$0xff]
        %v6458 = vld [vmem:[%s17 + $0x538] sm:$0xff]
        %v6459 = vld [vmem:[%s17 + $0x540] sm:$0xff]
        %v6460 = vld [vmem:[%s17 + $0x548] sm:$0xff]
        %v6461 = vld [vmem:[%s17 + $0x550] sm:$0xff]
        %v6462 = vld [vmem:[%s17 + $0x558] sm:$0xff]
        %v6463 = vld [vmem:[%s17 + $0x560] sm:$0xff]
        %v6464 = vld [vmem:[%s17 + $0x568] sm:$0xff]
        %v6465 = vld [vmem:[%s17 + $0x570] sm:$0xff]
        %v6466 = vld [vmem:[%s17 + $0x578] sm:$0xff]
        %v6467 = vld [vmem:[%s17 + $0x580] sm:$0xff]
        %v6468 = vld [vmem:[%s17 + $0x588] sm:$0xff]
        %v6469 = vld [vmem:[%s17 + $0x590] sm:$0xff]
        %v6470 = vld [vmem:[%s17 + $0x598] sm:$0xff]
        %v6471 = vld [vmem:[%s17 + $0x5a0] sm:$0xff]
        %v6472 = vld [vmem:[%s17 + $0x5a8] sm:$0xff]
        %v6473 = vld [vmem:[%s17 + $0x5b0] sm:$0xff]
        %v6474 = vld [vmem:[%s17 + $0x5b8] sm:$0xff]
        %v6475 = vld [vmem:[%s17 + $0x5c0] sm:$0xff]
        %v6476 = vld [vmem:[%s17 + $0x5c8] sm:$0xff]
        %v6477 = vld [vmem:[%s17 + $0x5d0] sm:$0xff]
        %v6478 = vld [vmem:[%s17 + $0x5d8] sm:$0xff]
        %v6479 = vld [vmem:[%s17 + $0x5e0] sm:$0xff]
        %v6480 = vld [vmem:[%s17 + $0x5e8] sm:$0xff]
        %v6481 = vld [vmem:[%s17 + $0x5f0] sm:$0xff]
        %v6482 = vld [vmem:[%s17 + $0x5f8] sm:$0xff]
        %v6483 = vld [vmem:[%s17 + $0x600] sm:$0xff]
        %v6484 = vld [vmem:[%s17 + $0x608] sm:$0xff]
        %v6485 = vld [vmem:[%s17 + $0x610] sm:$0xff]
        %v6486 = vld [vmem:[%s17 + $0x618] sm:$0xff]
        %v6487 = vld [vmem:[%s17 + $0x620] sm:$0xff]
        %v6488 = vld [vmem:[%s17 + $0x628] sm:$0xff]
        %v6489 = vld [vmem:[%s17 + $0x630] sm:$0xff]
        %v6490 = vld [vmem:[%s17 + $0x638] sm:$0xff]
        %v6491 = vld [vmem:[%s17 + $0x640] sm:$0xff]
        %v6492 = vld [vmem:[%s17 + $0x648] sm:$0xff]
        %v6493 = vld [vmem:[%s17 + $0x650] sm:$0xff]
        %v6494 = vld [vmem:[%s17 + $0x658] sm:$0xff]
        %v6495 = vld [vmem:[%s17 + $0x660] sm:$0xff]
        %v6496 = vld [vmem:[%s17 + $0x668] sm:$0xff]
        %v6497 = vld [vmem:[%s17 + $0x670] sm:$0xff]
        %v6498 = vld [vmem:[%s17 + $0x678] sm:$0xff]
        %v6499 = vld [vmem:[%s17 + $0x680] sm:$0xff]
        %v6500 = vld [vmem:[%s17 + $0x688] sm:$0xff]
        %v6501 = vld [vmem:[%s17 + $0x690] sm:$0xff]
        %v6502 = vld [vmem:[%s17 + $0x698] sm:$0xff]
        %v6503 = vld [vmem:[%s17 + $0x6a0] sm:$0xff]
        %v6504 = vld [vmem:[%s17 + $0x6a8] sm:$0xff]
        %v6505 = vld [vmem:[%s17 + $0x6b0] sm:$0xff]
        %v6506 = vld [vmem:[%s17 + $0x6b8] sm:$0xff]
        %v6507 = vld [vmem:[%s17 + $0x6c0] sm:$0xff]
        %v6508 = vld [vmem:[%s17 + $0x6c8] sm:$0xff]
        %v6509 = vld [vmem:[%s17 + $0x6d0] sm:$0xff]
        %v6510 = vld [vmem:[%s17 + $0x6d8] sm:$0xff]
        %v6511 = vld [vmem:[%s17 + $0x6e0] sm:$0xff]
        %v6512 = vld [vmem:[%s17 + $0x6e8] sm:$0xff]
        %v6513 = vld [vmem:[%s17 + $0x6f0] sm:$0xff]
        %v6514 = vld [vmem:[%s17 + $0x6f8] sm:$0xff]
        %v6515 = vld [vmem:[%s17 + $0x700] sm:$0xff]
        %v6516 = vld [vmem:[%s17 + $0x708] sm:$0xff]
        %v6517 = vld [vmem:[%s17 + $0x710] sm:$0xff]
        %v6518 = vld [vmem:[%s17 + $0x718] sm:$0xff]
        %v6519 = vld [vmem:[%s17 + $0x720] sm:$0xff]
        %v6520 = vld [vmem:[%s17 + $0x728] sm:$0xff]
        %v6521 = vld [vmem:[%s17 + $0x730] sm:$0xff]
        %v6522 = vld [vmem:[%s17 + $0x738] sm:$0xff]
        %v6523 = vld [vmem:[%s17 + $0x740] sm:$0xff]
        %v6524 = vld [vmem:[%s17 + $0x748] sm:$0xff]
        %v6525 = vld [vmem:[%s17 + $0x750] sm:$0xff]
        %v6526 = vld [vmem:[%s17 + $0x758] sm:$0xff]
        %v6527 = vld [vmem:[%s17 + $0x760] sm:$0xff]
        %v6528 = vld [vmem:[%s17 + $0x768] sm:$0xff]
        %v6529 = vld [vmem:[%s17 + $0x770] sm:$0xff]
        %v6530 = vld [vmem:[%s17 + $0x778] sm:$0xff]
        %v6531 = vld [vmem:[%s17 + $0x780] sm:$0xff]
        %v6532 = vld [vmem:[%s17 + $0x788] sm:$0xff]
        %v6533 = vld [vmem:[%s17 + $0x790] sm:$0xff]
        %v6534 = vld [vmem:[%s17 + $0x798] sm:$0xff]
        %v6535 = vld [vmem:[%s17 + $0x7a0] sm:$0xff]
        %v6536 = vld [vmem:[%s17 + $0x7a8] sm:$0xff]
        %v6537 = vld [vmem:[%s17 + $0x7b0] sm:$0xff]
        %v6538 = vld [vmem:[%s17 + $0x7b8] sm:$0xff]
        %v6539 = vld [vmem:[%s17 + $0x7c0] sm:$0xff]
        %v6540 = vld [vmem:[%s17 + $0x7c8] sm:$0xff]
        %v6541 = vld [vmem:[%s17 + $0x7d0] sm:$0xff]
        %v6542 = vld [vmem:[%s17 + $0x7d8] sm:$0xff]
        %v6543 = vld [vmem:[%s17 + $0x7e0] sm:$0xff]
        %v6544 = vld [vmem:[%s17 + $0x7e8] sm:$0xff]
        %v6545 = vld [vmem:[%s17 + $0x7f0] sm:$0xff]
        %v6546 = vld [vmem:[%s17 + $0x7f8] sm:$0xff]
        %v6547 = vld [vmem:[%s18] sm:$0xff]
        %v6549 = vlaneseq
        %v6550 = vshrl.u32 %v6549, 7
        %v6551 = vsub.s32 0, %v6550
        %v6552 = vrot.slane %v6547, %v6551
        %v6553 = vlaneseq
        %v6554 = vshrl.u32 %v6553, 7
        %v6555 = vsub.s32 1, %v6554
        %v6556 = vrot.slane %v6547, %v6555
        %v6557 = vlaneseq
        %v6558 = vshrl.u32 %v6557, 7
        %v6559 = vsub.s32 2, %v6558
        %v6560 = vrot.slane %v6547, %v6559
        %v6561 = vlaneseq
        %v6562 = vshrl.u32 %v6561, 7
        %v6563 = vsub.s32 3, %v6562
        %v6564 = vrot.slane %v6547, %v6563
        %v6565 = vlaneseq
        %v6566 = vshrl.u32 %v6565, 7
        %v6567 = vsub.s32 4, %v6566
        %v6568 = vrot.slane %v6547, %v6567
        %v6569 = vlaneseq
        %v6570 = vshrl.u32 %v6569, 7
        %v6571 = vsub.s32 5, %v6570
        %v6572 = vrot.slane %v6547, %v6571
        %v6573 = vlaneseq
        %v6574 = vshrl.u32 %v6573, 7
        %v6575 = vsub.s32 6, %v6574
        %v6576 = vrot.slane %v6547, %v6575
        %v6577 = vlaneseq
        %v6578 = vshrl.u32 %v6577, 7
        %v6579 = vsub.s32 7, %v6578
        %v6580 = vrot.slane %v6547, %v6579
        %v6845 = vunpack.c.l.b16 %v6291
        %v6846 = vunpack.c.h.b16 %v6291
        %v6847 = vunpack.c.l.b16 %v6292
        %v6848 = vunpack.c.h.b16 %v6292
        %v6849 = vunpack.c.l.b16 %v6293
        %v6850 = vunpack.c.h.b16 %v6293
        %v6851 = vunpack.c.l.b16 %v6294
        %v6852 = vunpack.c.h.b16 %v6294
        %v6853 = vunpack.c.l.b16 %v6295
        %v6854 = vunpack.c.h.b16 %v6295
        %v6855 = vunpack.c.l.b16 %v6296
        %v6856 = vunpack.c.h.b16 %v6296
        %v6857 = vunpack.c.l.b16 %v6297
        %v6858 = vunpack.c.h.b16 %v6297
        %v6859 = vunpack.c.l.b16 %v6298
        %v6860 = vunpack.c.h.b16 %v6298
        %v6861 = vunpack.c.l.b16 %v6299
        %v6862 = vunpack.c.h.b16 %v6299
        %v6863 = vunpack.c.l.b16 %v6300
        %v6864 = vunpack.c.h.b16 %v6300
        %v6865 = vunpack.c.l.b16 %v6301
        %v6866 = vunpack.c.h.b16 %v6301
        %v6867 = vunpack.c.l.b16 %v6302
        %v6868 = vunpack.c.h.b16 %v6302
        %v6869 = vunpack.c.l.b16 %v6303
        %v6870 = vunpack.c.h.b16 %v6303
        %v6871 = vunpack.c.l.b16 %v6304
        %v6872 = vunpack.c.h.b16 %v6304
        %v6873 = vunpack.c.l.b16 %v6305
        %v6874 = vunpack.c.h.b16 %v6305
        %v6875 = vunpack.c.l.b16 %v6306
        %v6876 = vunpack.c.h.b16 %v6306
        %v6877 = vunpack.c.l.b16 %v6307
        %v6878 = vunpack.c.h.b16 %v6307
        %v6879 = vunpack.c.l.b16 %v6308
        %v6880 = vunpack.c.h.b16 %v6308
        %v6881 = vunpack.c.l.b16 %v6309
        %v6882 = vunpack.c.h.b16 %v6309
        %v6883 = vunpack.c.l.b16 %v6310
        %v6884 = vunpack.c.h.b16 %v6310
        %v6885 = vunpack.c.l.b16 %v6311
        %v6886 = vunpack.c.h.b16 %v6311
        %v6887 = vunpack.c.l.b16 %v6312
        %v6888 = vunpack.c.h.b16 %v6312
        %v6889 = vunpack.c.l.b16 %v6313
        %v6890 = vunpack.c.h.b16 %v6313
        %v6891 = vunpack.c.l.b16 %v6314
        %v6892 = vunpack.c.h.b16 %v6314
        %v6893 = vunpack.c.l.b16 %v6315
        %v6894 = vunpack.c.h.b16 %v6315
        %v6895 = vunpack.c.l.b16 %v6316
        %v6896 = vunpack.c.h.b16 %v6316
        %v6897 = vunpack.c.l.b16 %v6317
        %v6898 = vunpack.c.h.b16 %v6317
        %v6899 = vunpack.c.l.b16 %v6318
        %v6900 = vunpack.c.h.b16 %v6318
        %v6901 = vunpack.c.l.b16 %v6319
        %v6902 = vunpack.c.h.b16 %v6319
        %v6903 = vunpack.c.l.b16 %v6320
        %v6904 = vunpack.c.h.b16 %v6320
        %v6905 = vunpack.c.l.b16 %v6321
        %v6906 = vunpack.c.h.b16 %v6321
        %v6907 = vunpack.c.l.b16 %v6322
        %v6908 = vunpack.c.h.b16 %v6322
        %v6909 = vunpack.c.l.b16 %v6323
        %v6910 = vunpack.c.h.b16 %v6323
        %v6911 = vunpack.c.l.b16 %v6324
        %v6912 = vunpack.c.h.b16 %v6324
        %v6913 = vunpack.c.l.b16 %v6325
        %v6914 = vunpack.c.h.b16 %v6325
        %v6915 = vunpack.c.l.b16 %v6326
        %v6916 = vunpack.c.h.b16 %v6326
        %v6917 = vunpack.c.l.b16 %v6327
        %v6918 = vunpack.c.h.b16 %v6327
        %v6919 = vunpack.c.l.b16 %v6328
        %v6920 = vunpack.c.h.b16 %v6328
        %v6921 = vunpack.c.l.b16 %v6329
        %v6922 = vunpack.c.h.b16 %v6329
        %v6923 = vunpack.c.l.b16 %v6330
        %v6924 = vunpack.c.h.b16 %v6330
        %v6925 = vunpack.c.l.b16 %v6331
        %v6926 = vunpack.c.h.b16 %v6331
        %v6927 = vunpack.c.l.b16 %v6332
        %v6928 = vunpack.c.h.b16 %v6332
        %v6929 = vunpack.c.l.b16 %v6333
        %v6930 = vunpack.c.h.b16 %v6333
        %v6931 = vunpack.c.l.b16 %v6334
        %v6932 = vunpack.c.h.b16 %v6334
        %v6933 = vunpack.c.l.b16 %v6335
        %v6934 = vunpack.c.h.b16 %v6335
        %v6935 = vunpack.c.l.b16 %v6336
        %v6936 = vunpack.c.h.b16 %v6336
        %v6937 = vunpack.c.l.b16 %v6337
        %v6938 = vunpack.c.h.b16 %v6337
        %v6939 = vunpack.c.l.b16 %v6338
        %v6940 = vunpack.c.h.b16 %v6338
        %v6941 = vunpack.c.l.b16 %v6339
        %v6942 = vunpack.c.h.b16 %v6339
        %v6943 = vunpack.c.l.b16 %v6340
        %v6944 = vunpack.c.h.b16 %v6340
        %v6945 = vunpack.c.l.b16 %v6341
        %v6946 = vunpack.c.h.b16 %v6341
        %v6947 = vunpack.c.l.b16 %v6342
        %v6948 = vunpack.c.h.b16 %v6342
        %v6949 = vunpack.c.l.b16 %v6343
        %v6950 = vunpack.c.h.b16 %v6343
        %v6951 = vunpack.c.l.b16 %v6344
        %v6952 = vunpack.c.h.b16 %v6344
        %v6953 = vunpack.c.l.b16 %v6345
        %v6954 = vunpack.c.h.b16 %v6345
        %v6955 = vunpack.c.l.b16 %v6346
        %v6956 = vunpack.c.h.b16 %v6346
        %v6957 = vunpack.c.l.b16 %v6347
        %v6958 = vunpack.c.h.b16 %v6347
        %v6959 = vunpack.c.l.b16 %v6348
        %v6960 = vunpack.c.h.b16 %v6348
        %v6961 = vunpack.c.l.b16 %v6349
        %v6962 = vunpack.c.h.b16 %v6349
        %v6963 = vunpack.c.l.b16 %v6350
        %v6964 = vunpack.c.h.b16 %v6350
        %v6965 = vunpack.c.l.b16 %v6351
        %v6966 = vunpack.c.h.b16 %v6351
        %v6967 = vunpack.c.l.b16 %v6352
        %v6968 = vunpack.c.h.b16 %v6352
        %v6969 = vunpack.c.l.b16 %v6353
        %v6970 = vunpack.c.h.b16 %v6353
        %v6971 = vunpack.c.l.b16 %v6354
        %v6972 = vunpack.c.h.b16 %v6354
        %v6973 = vunpack.c.l.b16 %v6355
        %v6974 = vunpack.c.h.b16 %v6355
        %v6975 = vunpack.c.l.b16 %v6356
        %v6976 = vunpack.c.h.b16 %v6356
        %v6977 = vunpack.c.l.b16 %v6357
        %v6978 = vunpack.c.h.b16 %v6357
        %v6979 = vunpack.c.l.b16 %v6358
        %v6980 = vunpack.c.h.b16 %v6358
        %v6981 = vunpack.c.l.b16 %v6359
        %v6982 = vunpack.c.h.b16 %v6359
        %v6983 = vunpack.c.l.b16 %v6360
        %v6984 = vunpack.c.h.b16 %v6360
        %v6985 = vunpack.c.l.b16 %v6361
        %v6986 = vunpack.c.h.b16 %v6361
        %v6987 = vunpack.c.l.b16 %v6362
        %v6988 = vunpack.c.h.b16 %v6362
        %v6989 = vunpack.c.l.b16 %v6363
        %v6990 = vunpack.c.h.b16 %v6363
        %v6991 = vunpack.c.l.b16 %v6364
        %v6992 = vunpack.c.h.b16 %v6364
        %v6993 = vunpack.c.l.b16 %v6365
        %v6994 = vunpack.c.h.b16 %v6365
        %v6995 = vunpack.c.l.b16 %v6366
        %v6996 = vunpack.c.h.b16 %v6366
        %v6997 = vunpack.c.l.b16 %v6367
        %v6998 = vunpack.c.h.b16 %v6367
        %v6999 = vunpack.c.l.b16 %v6368
        %v7000 = vunpack.c.h.b16 %v6368
        %v7001 = vunpack.c.l.b16 %v6369
        %v7002 = vunpack.c.h.b16 %v6369
        %v7003 = vunpack.c.l.b16 %v6370
        %v7004 = vunpack.c.h.b16 %v6370
        %v7005 = vunpack.c.l.b16 %v6371
        %v7006 = vunpack.c.h.b16 %v6371
        %v7007 = vunpack.c.l.b16 %v6372
        %v7008 = vunpack.c.h.b16 %v6372
        %v7009 = vunpack.c.l.b16 %v6373
        %v7010 = vunpack.c.h.b16 %v6373
        %v7011 = vunpack.c.l.b16 %v6374
        %v7012 = vunpack.c.h.b16 %v6374
        %v7013 = vunpack.c.l.b16 %v6375
        %v7014 = vunpack.c.h.b16 %v6375
        %v7015 = vunpack.c.l.b16 %v6376
        %v7016 = vunpack.c.h.b16 %v6376
        %v7017 = vunpack.c.l.b16 %v6377
        %v7018 = vunpack.c.h.b16 %v6377
        %v7019 = vunpack.c.l.b16 %v6378
        %v7020 = vunpack.c.h.b16 %v6378
        %v7021 = vunpack.c.l.b16 %v6379
        %v7022 = vunpack.c.h.b16 %v6379
        %v7023 = vunpack.c.l.b16 %v6380
        %v7024 = vunpack.c.h.b16 %v6380
        %v7025 = vunpack.c.l.b16 %v6381
        %v7026 = vunpack.c.h.b16 %v6381
        %v7027 = vunpack.c.l.b16 %v6382
        %v7028 = vunpack.c.h.b16 %v6382
        %v7029 = vunpack.c.l.b16 %v6383
        %v7030 = vunpack.c.h.b16 %v6383
        %v7031 = vunpack.c.l.b16 %v6384
        %v7032 = vunpack.c.h.b16 %v6384
        %v7033 = vunpack.c.l.b16 %v6385
        %v7034 = vunpack.c.h.b16 %v6385
        %v7035 = vunpack.c.l.b16 %v6386
        %v7036 = vunpack.c.h.b16 %v6386
        %v7037 = vunpack.c.l.b16 %v6387
        %v7038 = vunpack.c.h.b16 %v6387
        %v7039 = vunpack.c.l.b16 %v6388
        %v7040 = vunpack.c.h.b16 %v6388
        %v7041 = vunpack.c.l.b16 %v6389
        %v7042 = vunpack.c.h.b16 %v6389
        %v7043 = vunpack.c.l.b16 %v6390
        %v7044 = vunpack.c.h.b16 %v6390
        %v7045 = vunpack.c.l.b16 %v6391
        %v7046 = vunpack.c.h.b16 %v6391
        %v7047 = vunpack.c.l.b16 %v6392
        %v7048 = vunpack.c.h.b16 %v6392
        %v7049 = vunpack.c.l.b16 %v6393
        %v7050 = vunpack.c.h.b16 %v6393
        %v7051 = vunpack.c.l.b16 %v6394
        %v7052 = vunpack.c.h.b16 %v6394
        %v7053 = vunpack.c.l.b16 %v6395
        %v7054 = vunpack.c.h.b16 %v6395
        %v7055 = vunpack.c.l.b16 %v6396
        %v7056 = vunpack.c.h.b16 %v6396
        %v7057 = vunpack.c.l.b16 %v6397
        %v7058 = vunpack.c.h.b16 %v6397
        %v7059 = vunpack.c.l.b16 %v6398
        %v7060 = vunpack.c.h.b16 %v6398
        %v7061 = vunpack.c.l.b16 %v6399
        %v7062 = vunpack.c.h.b16 %v6399
        %v7063 = vunpack.c.l.b16 %v6400
        %v7064 = vunpack.c.h.b16 %v6400
        %v7065 = vunpack.c.l.b16 %v6401
        %v7066 = vunpack.c.h.b16 %v6401
        %v7067 = vunpack.c.l.b16 %v6402
        %v7068 = vunpack.c.h.b16 %v6402
        %v7069 = vunpack.c.l.b16 %v6403
        %v7070 = vunpack.c.h.b16 %v6403
        %v7071 = vunpack.c.l.b16 %v6404
        %v7072 = vunpack.c.h.b16 %v6404
        %v7073 = vunpack.c.l.b16 %v6405
        %v7074 = vunpack.c.h.b16 %v6405
        %v7075 = vunpack.c.l.b16 %v6406
        %v7076 = vunpack.c.h.b16 %v6406
        %v7077 = vunpack.c.l.b16 %v6407
        %v7078 = vunpack.c.h.b16 %v6407
        %v7079 = vunpack.c.l.b16 %v6408
        %v7080 = vunpack.c.h.b16 %v6408
        %v7081 = vunpack.c.l.b16 %v6409
        %v7082 = vunpack.c.h.b16 %v6409
        %v7083 = vunpack.c.l.b16 %v6410
        %v7084 = vunpack.c.h.b16 %v6410
        %v7085 = vunpack.c.l.b16 %v6411
        %v7086 = vunpack.c.h.b16 %v6411
        %v7087 = vunpack.c.l.b16 %v6412
        %v7088 = vunpack.c.h.b16 %v6412
        %v7089 = vunpack.c.l.b16 %v6413
        %v7090 = vunpack.c.h.b16 %v6413
        %v7091 = vunpack.c.l.b16 %v6414
        %v7092 = vunpack.c.h.b16 %v6414
        %v7093 = vunpack.c.l.b16 %v6415
        %v7094 = vunpack.c.h.b16 %v6415
        %v7095 = vunpack.c.l.b16 %v6416
        %v7096 = vunpack.c.h.b16 %v6416
        %v7097 = vunpack.c.l.b16 %v6417
        %v7098 = vunpack.c.h.b16 %v6417
        %v7099 = vunpack.c.l.b16 %v6418
        %v7100 = vunpack.c.h.b16 %v6418
        %v7101 = vunpack.c.l.b16 %v6419
        %v7102 = vunpack.c.h.b16 %v6419
        %v7103 = vunpack.c.l.b16 %v6420
        %v7104 = vunpack.c.h.b16 %v6420
        %v7105 = vunpack.c.l.b16 %v6421
        %v7106 = vunpack.c.h.b16 %v6421
        %v7107 = vunpack.c.l.b16 %v6422
        %v7108 = vunpack.c.h.b16 %v6422
        %v7109 = vunpack.c.l.b16 %v6423
        %v7110 = vunpack.c.h.b16 %v6423
        %v7111 = vunpack.c.l.b16 %v6424
        %v7112 = vunpack.c.h.b16 %v6424
        %v7113 = vunpack.c.l.b16 %v6425
        %v7114 = vunpack.c.h.b16 %v6425
        %v7115 = vunpack.c.l.b16 %v6426
        %v7116 = vunpack.c.h.b16 %v6426
        %v7117 = vunpack.c.l.b16 %v6427
        %v7118 = vunpack.c.h.b16 %v6427
        %v7119 = vunpack.c.l.b16 %v6428
        %v7120 = vunpack.c.h.b16 %v6428
        %v7121 = vunpack.c.l.b16 %v6429
        %v7122 = vunpack.c.h.b16 %v6429
        %v7123 = vunpack.c.l.b16 %v6430
        %v7124 = vunpack.c.h.b16 %v6430
        %v7125 = vunpack.c.l.b16 %v6431
        %v7126 = vunpack.c.h.b16 %v6431
        %v7127 = vunpack.c.l.b16 %v6432
        %v7128 = vunpack.c.h.b16 %v6432
        %v7129 = vunpack.c.l.b16 %v6433
        %v7130 = vunpack.c.h.b16 %v6433
        %v7131 = vunpack.c.l.b16 %v6434
        %v7132 = vunpack.c.h.b16 %v6434
        %v7133 = vunpack.c.l.b16 %v6435
        %v7134 = vunpack.c.h.b16 %v6435
        %v7135 = vunpack.c.l.b16 %v6436
        %v7136 = vunpack.c.h.b16 %v6436
        %v7137 = vunpack.c.l.b16 %v6437
        %v7138 = vunpack.c.h.b16 %v6437
        %v7139 = vunpack.c.l.b16 %v6438
        %v7140 = vunpack.c.h.b16 %v6438
        %v7141 = vunpack.c.l.b16 %v6439
        %v7142 = vunpack.c.h.b16 %v6439
        %v7143 = vunpack.c.l.b16 %v6440
        %v7144 = vunpack.c.h.b16 %v6440
        %v7145 = vunpack.c.l.b16 %v6441
        %v7146 = vunpack.c.h.b16 %v6441
        %v7147 = vunpack.c.l.b16 %v6442
        %v7148 = vunpack.c.h.b16 %v6442
        %v7149 = vunpack.c.l.b16 %v6443
        %v7150 = vunpack.c.h.b16 %v6443
        %v7151 = vunpack.c.l.b16 %v6444
        %v7152 = vunpack.c.h.b16 %v6444
        %v7153 = vunpack.c.l.b16 %v6445
        %v7154 = vunpack.c.h.b16 %v6445
        %v7155 = vunpack.c.l.b16 %v6446
        %v7156 = vunpack.c.h.b16 %v6446
        %v7157 = vunpack.c.l.b16 %v6447
        %v7158 = vunpack.c.h.b16 %v6447
        %v7159 = vunpack.c.l.b16 %v6448
        %v7160 = vunpack.c.h.b16 %v6448
        %v7161 = vunpack.c.l.b16 %v6449
        %v7162 = vunpack.c.h.b16 %v6449
        %v7163 = vunpack.c.l.b16 %v6450
        %v7164 = vunpack.c.h.b16 %v6450
        %v7165 = vunpack.c.l.b16 %v6451
        %v7166 = vunpack.c.h.b16 %v6451
        %v7167 = vunpack.c.l.b16 %v6452
        %v7168 = vunpack.c.h.b16 %v6452
        %v7169 = vunpack.c.l.b16 %v6453
        %v7170 = vunpack.c.h.b16 %v6453
        %v7171 = vunpack.c.l.b16 %v6454
        %v7172 = vunpack.c.h.b16 %v6454
        %v7173 = vunpack.c.l.b16 %v6455
        %v7174 = vunpack.c.h.b16 %v6455
        %v7175 = vunpack.c.l.b16 %v6456
        %v7176 = vunpack.c.h.b16 %v6456
        %v7177 = vunpack.c.l.b16 %v6457
        %v7178 = vunpack.c.h.b16 %v6457
        %v7179 = vunpack.c.l.b16 %v6458
        %v7180 = vunpack.c.h.b16 %v6458
        %v7181 = vunpack.c.l.b16 %v6459
        %v7182 = vunpack.c.h.b16 %v6459
        %v7183 = vunpack.c.l.b16 %v6460
        %v7184 = vunpack.c.h.b16 %v6460
        %v7185 = vunpack.c.l.b16 %v6461
        %v7186 = vunpack.c.h.b16 %v6461
        %v7187 = vunpack.c.l.b16 %v6462
        %v7188 = vunpack.c.h.b16 %v6462
        %v7189 = vunpack.c.l.b16 %v6463
        %v7190 = vunpack.c.h.b16 %v6463
        %v7191 = vunpack.c.l.b16 %v6464
        %v7192 = vunpack.c.h.b16 %v6464
        %v7193 = vunpack.c.l.b16 %v6465
        %v7194 = vunpack.c.h.b16 %v6465
        %v7195 = vunpack.c.l.b16 %v6466
        %v7196 = vunpack.c.h.b16 %v6466
        %v7197 = vunpack.c.l.b16 %v6467
        %v7198 = vunpack.c.h.b16 %v6467
        %v7199 = vunpack.c.l.b16 %v6468
        %v7200 = vunpack.c.h.b16 %v6468
        %v7201 = vunpack.c.l.b16 %v6469
        %v7202 = vunpack.c.h.b16 %v6469
        %v7203 = vunpack.c.l.b16 %v6470
        %v7204 = vunpack.c.h.b16 %v6470
        %v7205 = vunpack.c.l.b16 %v6471
        %v7206 = vunpack.c.h.b16 %v6471
        %v7207 = vunpack.c.l.b16 %v6472
        %v7208 = vunpack.c.h.b16 %v6472
        %v7209 = vunpack.c.l.b16 %v6473
        %v7210 = vunpack.c.h.b16 %v6473
        %v7211 = vunpack.c.l.b16 %v6474
        %v7212 = vunpack.c.h.b16 %v6474
        %v7213 = vunpack.c.l.b16 %v6475
        %v7214 = vunpack.c.h.b16 %v6475
        %v7215 = vunpack.c.l.b16 %v6476
        %v7216 = vunpack.c.h.b16 %v6476
        %v7217 = vunpack.c.l.b16 %v6477
        %v7218 = vunpack.c.h.b16 %v6477
        %v7219 = vunpack.c.l.b16 %v6478
        %v7220 = vunpack.c.h.b16 %v6478
        %v7221 = vunpack.c.l.b16 %v6479
        %v7222 = vunpack.c.h.b16 %v6479
        %v7223 = vunpack.c.l.b16 %v6480
        %v7224 = vunpack.c.h.b16 %v6480
        %v7225 = vunpack.c.l.b16 %v6481
        %v7226 = vunpack.c.h.b16 %v6481
        %v7227 = vunpack.c.l.b16 %v6482
        %v7228 = vunpack.c.h.b16 %v6482
        %v7229 = vunpack.c.l.b16 %v6483
        %v7230 = vunpack.c.h.b16 %v6483
        %v7231 = vunpack.c.l.b16 %v6484
        %v7232 = vunpack.c.h.b16 %v6484
        %v7233 = vunpack.c.l.b16 %v6485
        %v7234 = vunpack.c.h.b16 %v6485
        %v7235 = vunpack.c.l.b16 %v6486
        %v7236 = vunpack.c.h.b16 %v6486
        %v7237 = vunpack.c.l.b16 %v6487
        %v7238 = vunpack.c.h.b16 %v6487
        %v7239 = vunpack.c.l.b16 %v6488
        %v7240 = vunpack.c.h.b16 %v6488
        %v7241 = vunpack.c.l.b16 %v6489
        %v7242 = vunpack.c.h.b16 %v6489
        %v7243 = vunpack.c.l.b16 %v6490
        %v7244 = vunpack.c.h.b16 %v6490
        %v7245 = vunpack.c.l.b16 %v6491
        %v7246 = vunpack.c.h.b16 %v6491
        %v7247 = vunpack.c.l.b16 %v6492
        %v7248 = vunpack.c.h.b16 %v6492
        %v7249 = vunpack.c.l.b16 %v6493
        %v7250 = vunpack.c.h.b16 %v6493
        %v7251 = vunpack.c.l.b16 %v6494
        %v7252 = vunpack.c.h.b16 %v6494
        %v7253 = vunpack.c.l.b16 %v6495
        %v7254 = vunpack.c.h.b16 %v6495
        %v7255 = vunpack.c.l.b16 %v6496
        %v7256 = vunpack.c.h.b16 %v6496
        %v7257 = vunpack.c.l.b16 %v6497
        %v7258 = vunpack.c.h.b16 %v6497
        %v7259 = vunpack.c.l.b16 %v6498
        %v7260 = vunpack.c.h.b16 %v6498
        %v7261 = vunpack.c.l.b16 %v6499
        %v7262 = vunpack.c.h.b16 %v6499
        %v7263 = vunpack.c.l.b16 %v6500
        %v7264 = vunpack.c.h.b16 %v6500
        %v7265 = vunpack.c.l.b16 %v6501
        %v7266 = vunpack.c.h.b16 %v6501
        %v7267 = vunpack.c.l.b16 %v6502
        %v7268 = vunpack.c.h.b16 %v6502
        %v7269 = vunpack.c.l.b16 %v6503
        %v7270 = vunpack.c.h.b16 %v6503
        %v7271 = vunpack.c.l.b16 %v6504
        %v7272 = vunpack.c.h.b16 %v6504
        %v7273 = vunpack.c.l.b16 %v6505
        %v7274 = vunpack.c.h.b16 %v6505
        %v7275 = vunpack.c.l.b16 %v6506
        %v7276 = vunpack.c.h.b16 %v6506
        %v7277 = vunpack.c.l.b16 %v6507
        %v7278 = vunpack.c.h.b16 %v6507
        %v7279 = vunpack.c.l.b16 %v6508
        %v7280 = vunpack.c.h.b16 %v6508
        %v7281 = vunpack.c.l.b16 %v6509
        %v7282 = vunpack.c.h.b16 %v6509
        %v7283 = vunpack.c.l.b16 %v6510
        %v7284 = vunpack.c.h.b16 %v6510
        %v7285 = vunpack.c.l.b16 %v6511
        %v7286 = vunpack.c.h.b16 %v6511
        %v7287 = vunpack.c.l.b16 %v6512
        %v7288 = vunpack.c.h.b16 %v6512
        %v7289 = vunpack.c.l.b16 %v6513
        %v7290 = vunpack.c.h.b16 %v6513
        %v7291 = vunpack.c.l.b16 %v6514
        %v7292 = vunpack.c.h.b16 %v6514
        %v7293 = vunpack.c.l.b16 %v6515
        %v7294 = vunpack.c.h.b16 %v6515
        %v7295 = vunpack.c.l.b16 %v6516
        %v7296 = vunpack.c.h.b16 %v6516
        %v7297 = vunpack.c.l.b16 %v6517
        %v7298 = vunpack.c.h.b16 %v6517
        %v7299 = vunpack.c.l.b16 %v6518
        %v7300 = vunpack.c.h.b16 %v6518
        %v7301 = vunpack.c.l.b16 %v6519
        %v7302 = vunpack.c.h.b16 %v6519
        %v7303 = vunpack.c.l.b16 %v6520
        %v7304 = vunpack.c.h.b16 %v6520
        %v7305 = vunpack.c.l.b16 %v6521
        %v7306 = vunpack.c.h.b16 %v6521
        %v7307 = vunpack.c.l.b16 %v6522
        %v7308 = vunpack.c.h.b16 %v6522
        %v7309 = vunpack.c.l.b16 %v6523
        %v7310 = vunpack.c.h.b16 %v6523
        %v7311 = vunpack.c.l.b16 %v6524
        %v7312 = vunpack.c.h.b16 %v6524
        %v7313 = vunpack.c.l.b16 %v6525
        %v7314 = vunpack.c.h.b16 %v6525
        %v7315 = vunpack.c.l.b16 %v6526
        %v7316 = vunpack.c.h.b16 %v6526
        %v7317 = vunpack.c.l.b16 %v6527
        %v7318 = vunpack.c.h.b16 %v6527
        %v7319 = vunpack.c.l.b16 %v6528
        %v7320 = vunpack.c.h.b16 %v6528
        %v7321 = vunpack.c.l.b16 %v6529
        %v7322 = vunpack.c.h.b16 %v6529
        %v7323 = vunpack.c.l.b16 %v6530
        %v7324 = vunpack.c.h.b16 %v6530
        %v7325 = vunpack.c.l.b16 %v6531
        %v7326 = vunpack.c.h.b16 %v6531
        %v7327 = vunpack.c.l.b16 %v6532
        %v7328 = vunpack.c.h.b16 %v6532
        %v7329 = vunpack.c.l.b16 %v6533
        %v7330 = vunpack.c.h.b16 %v6533
        %v7331 = vunpack.c.l.b16 %v6534
        %v7332 = vunpack.c.h.b16 %v6534
        %v7333 = vunpack.c.l.b16 %v6535
        %v7334 = vunpack.c.h.b16 %v6535
        %v7335 = vunpack.c.l.b16 %v6536
        %v7336 = vunpack.c.h.b16 %v6536
        %v7337 = vunpack.c.l.b16 %v6537
        %v7338 = vunpack.c.h.b16 %v6537
        %v7339 = vunpack.c.l.b16 %v6538
        %v7340 = vunpack.c.h.b16 %v6538
        %v7341 = vunpack.c.l.b16 %v6539
        %v7342 = vunpack.c.h.b16 %v6539
        %v7343 = vunpack.c.l.b16 %v6540
        %v7344 = vunpack.c.h.b16 %v6540
        %v7345 = vunpack.c.l.b16 %v6541
        %v7346 = vunpack.c.h.b16 %v6541
        %v7347 = vunpack.c.l.b16 %v6542
        %v7348 = vunpack.c.h.b16 %v6542
        %v7349 = vunpack.c.l.b16 %v6543
        %v7350 = vunpack.c.h.b16 %v6543
        %v7351 = vunpack.c.l.b16 %v6544
        %v7352 = vunpack.c.h.b16 %v6544
        %v7353 = vunpack.c.l.b16 %v6545
        %v7354 = vunpack.c.h.b16 %v6545
        %v7355 = vunpack.c.l.b16 %v6546
        %v7356 = vunpack.c.h.b16 %v6546
        %v7357 = vpack.c.b16 %v6853, %v6845
        %v7358 = vpack.c.b16 %v6854, %v6846
        %v7359 = vpack.c.b16 %v6855, %v6847
        %v7360 = vpack.c.b16 %v6856, %v6848
        %v7361 = vpack.c.b16 %v6857, %v6849
        %v7362 = vpack.c.b16 %v6858, %v6850
        %v7363 = vpack.c.b16 %v6859, %v6851
        %v7364 = vpack.c.b16 %v6860, %v6852
        %v7365 = vpack.c.b16 %v6869, %v6861
        %v7366 = vpack.c.b16 %v6870, %v6862
        %v7367 = vpack.c.b16 %v6871, %v6863
        %v7368 = vpack.c.b16 %v6872, %v6864
        %v7369 = vpack.c.b16 %v6873, %v6865
        %v7370 = vpack.c.b16 %v6874, %v6866
        %v7371 = vpack.c.b16 %v6875, %v6867
        %v7372 = vpack.c.b16 %v6876, %v6868
        %v7373 = vpack.c.b16 %v6885, %v6877
        %v7374 = vpack.c.b16 %v6886, %v6878
        %v7375 = vpack.c.b16 %v6887, %v6879
        %v7376 = vpack.c.b16 %v6888, %v6880
        %v7377 = vpack.c.b16 %v6889, %v6881
        %v7378 = vpack.c.b16 %v6890, %v6882
        %v7379 = vpack.c.b16 %v6891, %v6883
        %v7380 = vpack.c.b16 %v6892, %v6884
        %v7381 = vpack.c.b16 %v6901, %v6893
        %v7382 = vpack.c.b16 %v6902, %v6894
        %v7383 = vpack.c.b16 %v6903, %v6895
        %v7384 = vpack.c.b16 %v6904, %v6896
        %v7385 = vpack.c.b16 %v6905, %v6897
        %v7386 = vpack.c.b16 %v6906, %v6898
        %v7387 = vpack.c.b16 %v6907, %v6899
        %v7388 = vpack.c.b16 %v6908, %v6900
        %v7389 = vpack.c.b16 %v6917, %v6909
        %v7390 = vpack.c.b16 %v6918, %v6910
        %v7391 = vpack.c.b16 %v6919, %v6911
        %v7392 = vpack.c.b16 %v6920, %v6912
        %v7393 = vpack.c.b16 %v6921, %v6913
        %v7394 = vpack.c.b16 %v6922, %v6914
        %v7395 = vpack.c.b16 %v6923, %v6915
        %v7396 = vpack.c.b16 %v6924, %v6916
        %v7397 = vpack.c.b16 %v6933, %v6925
        %v7398 = vpack.c.b16 %v6934, %v6926
        %v7399 = vpack.c.b16 %v6935, %v6927
        %v7400 = vpack.c.b16 %v6936, %v6928
        %v7401 = vpack.c.b16 %v6937, %v6929
        %v7402 = vpack.c.b16 %v6938, %v6930
        %v7403 = vpack.c.b16 %v6939, %v6931
        %v7404 = vpack.c.b16 %v6940, %v6932
        %v7405 = vpack.c.b16 %v6949, %v6941
        %v7406 = vpack.c.b16 %v6950, %v6942
        %v7407 = vpack.c.b16 %v6951, %v6943
        %v7408 = vpack.c.b16 %v6952, %v6944
        %v7409 = vpack.c.b16 %v6953, %v6945
        %v7410 = vpack.c.b16 %v6954, %v6946
        %v7411 = vpack.c.b16 %v6955, %v6947
        %v7412 = vpack.c.b16 %v6956, %v6948
        %v7413 = vpack.c.b16 %v6965, %v6957
        %v7414 = vpack.c.b16 %v6966, %v6958
        %v7415 = vpack.c.b16 %v6967, %v6959
        %v7416 = vpack.c.b16 %v6968, %v6960
        %v7417 = vpack.c.b16 %v6969, %v6961
        %v7418 = vpack.c.b16 %v6970, %v6962
        %v7419 = vpack.c.b16 %v6971, %v6963
        %v7420 = vpack.c.b16 %v6972, %v6964
        %v7421 = vpack.c.b16 %v6981, %v6973
        %v7422 = vpack.c.b16 %v6982, %v6974
        %v7423 = vpack.c.b16 %v6983, %v6975
        %v7424 = vpack.c.b16 %v6984, %v6976
        %v7425 = vpack.c.b16 %v6985, %v6977
        %v7426 = vpack.c.b16 %v6986, %v6978
        %v7427 = vpack.c.b16 %v6987, %v6979
        %v7428 = vpack.c.b16 %v6988, %v6980
        %v7429 = vpack.c.b16 %v6997, %v6989
        %v7430 = vpack.c.b16 %v6998, %v6990
        %v7431 = vpack.c.b16 %v6999, %v6991
        %v7432 = vpack.c.b16 %v7000, %v6992
        %v7433 = vpack.c.b16 %v7001, %v6993
        %v7434 = vpack.c.b16 %v7002, %v6994
        %v7435 = vpack.c.b16 %v7003, %v6995
        %v7436 = vpack.c.b16 %v7004, %v6996
        %v7437 = vpack.c.b16 %v7013, %v7005
        %v7438 = vpack.c.b16 %v7014, %v7006
        %v7439 = vpack.c.b16 %v7015, %v7007
        %v7440 = vpack.c.b16 %v7016, %v7008
        %v7441 = vpack.c.b16 %v7017, %v7009
        %v7442 = vpack.c.b16 %v7018, %v7010
        %v7443 = vpack.c.b16 %v7019, %v7011
        %v7444 = vpack.c.b16 %v7020, %v7012
        %v7445 = vpack.c.b16 %v7029, %v7021
        %v7446 = vpack.c.b16 %v7030, %v7022
        %v7447 = vpack.c.b16 %v7031, %v7023
        %v7448 = vpack.c.b16 %v7032, %v7024
        %v7449 = vpack.c.b16 %v7033, %v7025
        %v7450 = vpack.c.b16 %v7034, %v7026
        %v7451 = vpack.c.b16 %v7035, %v7027
        %v7452 = vpack.c.b16 %v7036, %v7028
        %v7453 = vpack.c.b16 %v7045, %v7037
        %v7454 = vpack.c.b16 %v7046, %v7038
        %v7455 = vpack.c.b16 %v7047, %v7039
        %v7456 = vpack.c.b16 %v7048, %v7040
        %v7457 = vpack.c.b16 %v7049, %v7041
        %v7458 = vpack.c.b16 %v7050, %v7042
        %v7459 = vpack.c.b16 %v7051, %v7043
        %v7460 = vpack.c.b16 %v7052, %v7044
        %v7461 = vpack.c.b16 %v7061, %v7053
        %v7462 = vpack.c.b16 %v7062, %v7054
        %v7463 = vpack.c.b16 %v7063, %v7055
        %v7464 = vpack.c.b16 %v7064, %v7056
        %v7465 = vpack.c.b16 %v7065, %v7057
        %v7466 = vpack.c.b16 %v7066, %v7058
        %v7467 = vpack.c.b16 %v7067, %v7059
        %v7468 = vpack.c.b16 %v7068, %v7060
        %v7469 = vpack.c.b16 %v7077, %v7069
        %v7470 = vpack.c.b16 %v7078, %v7070
        %v7471 = vpack.c.b16 %v7079, %v7071
        %v7472 = vpack.c.b16 %v7080, %v7072
        %v7473 = vpack.c.b16 %v7081, %v7073
        %v7474 = vpack.c.b16 %v7082, %v7074
        %v7475 = vpack.c.b16 %v7083, %v7075
        %v7476 = vpack.c.b16 %v7084, %v7076
        %v7477 = vpack.c.b16 %v7093, %v7085
        %v7478 = vpack.c.b16 %v7094, %v7086
        %v7479 = vpack.c.b16 %v7095, %v7087
        %v7480 = vpack.c.b16 %v7096, %v7088
        %v7481 = vpack.c.b16 %v7097, %v7089
        %v7482 = vpack.c.b16 %v7098, %v7090
        %v7483 = vpack.c.b16 %v7099, %v7091
        %v7484 = vpack.c.b16 %v7100, %v7092
        %v7485 = vpack.c.b16 %v7109, %v7101
        %v7486 = vpack.c.b16 %v7110, %v7102
        %v7487 = vpack.c.b16 %v7111, %v7103
        %v7488 = vpack.c.b16 %v7112, %v7104
        %v7489 = vpack.c.b16 %v7113, %v7105
        %v7490 = vpack.c.b16 %v7114, %v7106
        %v7491 = vpack.c.b16 %v7115, %v7107
        %v7492 = vpack.c.b16 %v7116, %v7108
        %v7493 = vpack.c.b16 %v7125, %v7117
        %v7494 = vpack.c.b16 %v7126, %v7118
        %v7495 = vpack.c.b16 %v7127, %v7119
        %v7496 = vpack.c.b16 %v7128, %v7120
        %v7497 = vpack.c.b16 %v7129, %v7121
        %v7498 = vpack.c.b16 %v7130, %v7122
        %v7499 = vpack.c.b16 %v7131, %v7123
        %v7500 = vpack.c.b16 %v7132, %v7124
        %v7501 = vpack.c.b16 %v7141, %v7133
        %v7502 = vpack.c.b16 %v7142, %v7134
        %v7503 = vpack.c.b16 %v7143, %v7135
        %v7504 = vpack.c.b16 %v7144, %v7136
        %v7505 = vpack.c.b16 %v7145, %v7137
        %v7506 = vpack.c.b16 %v7146, %v7138
        %v7507 = vpack.c.b16 %v7147, %v7139
        %v7508 = vpack.c.b16 %v7148, %v7140
        %v7509 = vpack.c.b16 %v7157, %v7149
        %v7510 = vpack.c.b16 %v7158, %v7150
        %v7511 = vpack.c.b16 %v7159, %v7151
        %v7512 = vpack.c.b16 %v7160, %v7152
        %v7513 = vpack.c.b16 %v7161, %v7153
        %v7514 = vpack.c.b16 %v7162, %v7154
        %v7515 = vpack.c.b16 %v7163, %v7155
        %v7516 = vpack.c.b16 %v7164, %v7156
        %v7517 = vpack.c.b16 %v7173, %v7165
        %v7518 = vpack.c.b16 %v7174, %v7166
        %v7519 = vpack.c.b16 %v7175, %v7167
        %v7520 = vpack.c.b16 %v7176, %v7168
        %v7521 = vpack.c.b16 %v7177, %v7169
        %v7522 = vpack.c.b16 %v7178, %v7170
        %v7523 = vpack.c.b16 %v7179, %v7171
        %v7524 = vpack.c.b16 %v7180, %v7172
        %v7525 = vpack.c.b16 %v7189, %v7181
        %v7526 = vpack.c.b16 %v7190, %v7182
        %v7527 = vpack.c.b16 %v7191, %v7183
        %v7528 = vpack.c.b16 %v7192, %v7184
        %v7529 = vpack.c.b16 %v7193, %v7185
        %v7530 = vpack.c.b16 %v7194, %v7186
        %v7531 = vpack.c.b16 %v7195, %v7187
        %v7532 = vpack.c.b16 %v7196, %v7188
        %v7533 = vpack.c.b16 %v7205, %v7197
        %v7534 = vpack.c.b16 %v7206, %v7198
        %v7535 = vpack.c.b16 %v7207, %v7199
        %v7536 = vpack.c.b16 %v7208, %v7200
        %v7537 = vpack.c.b16 %v7209, %v7201
        %v7538 = vpack.c.b16 %v7210, %v7202
        %v7539 = vpack.c.b16 %v7211, %v7203
        %v7540 = vpack.c.b16 %v7212, %v7204
        %v7541 = vpack.c.b16 %v7221, %v7213
        %v7542 = vpack.c.b16 %v7222, %v7214
        %v7543 = vpack.c.b16 %v7223, %v7215
        %v7544 = vpack.c.b16 %v7224, %v7216
        %v7545 = vpack.c.b16 %v7225, %v7217
        %v7546 = vpack.c.b16 %v7226, %v7218
        %v7547 = vpack.c.b16 %v7227, %v7219
        %v7548 = vpack.c.b16 %v7228, %v7220
        %v7549 = vpack.c.b16 %v7237, %v7229
        %v7550 = vpack.c.b16 %v7238, %v7230
        %v7551 = vpack.c.b16 %v7239, %v7231
        %v7552 = vpack.c.b16 %v7240, %v7232
        %v7553 = vpack.c.b16 %v7241, %v7233
        %v7554 = vpack.c.b16 %v7242, %v7234
        %v7555 = vpack.c.b16 %v7243, %v7235
        %v7556 = vpack.c.b16 %v7244, %v7236
        %v7557 = vpack.c.b16 %v7253, %v7245
        %v7558 = vpack.c.b16 %v7254, %v7246
        %v7559 = vpack.c.b16 %v7255, %v7247
        %v7560 = vpack.c.b16 %v7256, %v7248
        %v7561 = vpack.c.b16 %v7257, %v7249
        %v7562 = vpack.c.b16 %v7258, %v7250
        %v7563 = vpack.c.b16 %v7259, %v7251
        %v7564 = vpack.c.b16 %v7260, %v7252
        %v7565 = vpack.c.b16 %v7269, %v7261
        %v7566 = vpack.c.b16 %v7270, %v7262
        %v7567 = vpack.c.b16 %v7271, %v7263
        %v7568 = vpack.c.b16 %v7272, %v7264
        %v7569 = vpack.c.b16 %v7273, %v7265
        %v7570 = vpack.c.b16 %v7274, %v7266
        %v7571 = vpack.c.b16 %v7275, %v7267
        %v7572 = vpack.c.b16 %v7276, %v7268
        %v7573 = vpack.c.b16 %v7285, %v7277
        %v7574 = vpack.c.b16 %v7286, %v7278
        %v7575 = vpack.c.b16 %v7287, %v7279
        %v7576 = vpack.c.b16 %v7288, %v7280
        %v7577 = vpack.c.b16 %v7289, %v7281
        %v7578 = vpack.c.b16 %v7290, %v7282
        %v7579 = vpack.c.b16 %v7291, %v7283
        %v7580 = vpack.c.b16 %v7292, %v7284
        %v7581 = vpack.c.b16 %v7301, %v7293
        %v7582 = vpack.c.b16 %v7302, %v7294
        %v7583 = vpack.c.b16 %v7303, %v7295
        %v7584 = vpack.c.b16 %v7304, %v7296
        %v7585 = vpack.c.b16 %v7305, %v7297
        %v7586 = vpack.c.b16 %v7306, %v7298
        %v7587 = vpack.c.b16 %v7307, %v7299
        %v7588 = vpack.c.b16 %v7308, %v7300
        %v7589 = vpack.c.b16 %v7317, %v7309
        %v7590 = vpack.c.b16 %v7318, %v7310
        %v7591 = vpack.c.b16 %v7319, %v7311
        %v7592 = vpack.c.b16 %v7320, %v7312
        %v7593 = vpack.c.b16 %v7321, %v7313
        %v7594 = vpack.c.b16 %v7322, %v7314
        %v7595 = vpack.c.b16 %v7323, %v7315
        %v7596 = vpack.c.b16 %v7324, %v7316
        %v7597 = vpack.c.b16 %v7333, %v7325
        %v7598 = vpack.c.b16 %v7334, %v7326
        %v7599 = vpack.c.b16 %v7335, %v7327
        %v7600 = vpack.c.b16 %v7336, %v7328
        %v7601 = vpack.c.b16 %v7337, %v7329
        %v7602 = vpack.c.b16 %v7338, %v7330
        %v7603 = vpack.c.b16 %v7339, %v7331
        %v7604 = vpack.c.b16 %v7340, %v7332
        %v7605 = vpack.c.b16 %v7349, %v7341
        %v7606 = vpack.c.b16 %v7350, %v7342
        %v7607 = vpack.c.b16 %v7351, %v7343
        %v7608 = vpack.c.b16 %v7352, %v7344
        %v7609 = vpack.c.b16 %v7353, %v7345
        %v7610 = vpack.c.b16 %v7354, %v7346
        %v7611 = vpack.c.b16 %v7355, %v7347
        %v7612 = vpack.c.b16 %v7356, %v7348
        %7869 = vmatprep.subr.bf16.mxu0 %v7414
        %7870 = vmatpush1.bf16.msra.mxu0 %v7413
        %7871 = vmatprep.subr.bf16.mxu0 %v7406
        %7872 = vmatpush1.bf16.msra.mxu0 %v7405
        %7873 = vmatprep.subr.bf16.mxu0 %v7398
        %7874 = vmatpush1.bf16.msra.mxu0 %v7397
        %7875 = vmatprep.subr.bf16.mxu0 %v7390
        %7876 = vmatpush1.bf16.msra.mxu0 %v7389
        %7877 = vmatprep.subr.bf16.mxu0 %v7382
        %7878 = vmatpush1.bf16.msra.mxu0 %v7381
        %7879 = vmatprep.subr.bf16.mxu0 %v7374
        %7880 = vmatpush1.bf16.msra.mxu0 %v7373
        %7881 = vmatprep.subr.bf16.mxu0 %v7366
        %7882 = vmatpush1.bf16.msra.mxu0 %v7365
        %7883 = vmatprep.subr.bf16.mxu0 %v7358
        %7884 = vmatpush1.bf16.msra.mxu0 %v7357
        %7885 = vmatprep.subr.bf16.mxu0 %v7478
        %7886 = vmatpush2.bf16.msra.mxu0 %v7477
        %7887 = vmatprep.subr.bf16.mxu0 %v7470
        %7888 = vmatpush2.bf16.msra.mxu0 %v7469
        %7889 = vmatprep.subr.bf16.mxu0 %v7462
        %7890 = vmatpush2.bf16.msra.mxu0 %v7461
        %7891 = vmatprep.subr.bf16.mxu0 %v7454
        %7892 = vmatpush2.bf16.msra.mxu0 %v7453
        %7893 = vmatprep.subr.bf16.mxu0 %v7446
        %7894 = vmatpush2.bf16.msra.mxu0 %v7445
        %7895 = vmatprep.subr.bf16.mxu0 %v7438
        %7896 = vmatpush2.bf16.msra.mxu0 %v7437
        %7897 = vmatprep.subr.bf16.mxu0 %v7430
        %7898 = vmatpush2.bf16.msra.mxu0 %v7429
        %7899 = vmatprep.subr.bf16.mxu0 %v7422
        %7900 = vmatpush2.bf16.msra.mxu0 %v7421
        %7901 = vmatprep.mubr.bf16.mxu0 %v6288
        %7902 = vmatmul.mubr.bf16.gmra.mxu0 %v6287
        %v7903 = vpop.f32.mrf.mxu0
        %v7904 = vadd.f32 %v6552, %v7903
        %v7905 = vpop.f32.mrf.mxu0
        %v7906 = vadd.f32 %v6556, %v7905
        %v7907 = vpop.f32.mrf.mxu0
        %v7908 = vpop.f32.mrf.mxu0
        %7909 = vdwg.mxu0
        %7910 = vmatprep.subr.bf16.mxu0 %v7542
        %7911 = vmatpush1.bf16.msra.mxu0 %v7541
        %7912 = vmatprep.subr.bf16.mxu0 %v7534
        %7913 = vmatpush1.bf16.msra.mxu0 %v7533
        %7914 = vmatprep.subr.bf16.mxu0 %v7526
        %7915 = vmatpush1.bf16.msra.mxu0 %v7525
        %7916 = vmatprep.subr.bf16.mxu0 %v7518
        %7917 = vmatpush1.bf16.msra.mxu0 %v7517
        %7918 = vmatprep.subr.bf16.mxu0 %v7510
        %7919 = vmatpush1.bf16.msra.mxu0 %v7509
        %7920 = vmatprep.subr.bf16.mxu0 %v7502
        %7921 = vmatpush1.bf16.msra.mxu0 %v7501
        %7922 = vmatprep.subr.bf16.mxu0 %v7494
        %7923 = vmatpush1.bf16.msra.mxu0 %v7493
        %7924 = vmatprep.subr.bf16.mxu0 %v7486
        %7925 = vmatpush1.bf16.msra.mxu0 %v7485
        %7926 = vmatprep.subr.bf16.mxu0 %v7606
        %7927 = vmatpush2.bf16.msra.mxu0 %v7605
        %7928 = vmatprep.subr.bf16.mxu0 %v7598
        %7929 = vmatpush2.bf16.msra.mxu0 %v7597
        %7930 = vmatprep.subr.bf16.mxu0 %v7590
        %7931 = vmatpush2.bf16.msra.mxu0 %v7589
        %7932 = vmatprep.subr.bf16.mxu0 %v7582
        %7933 = vmatpush2.bf16.msra.mxu0 %v7581
        %7934 = vmatprep.subr.bf16.mxu0 %v7574
        %7935 = vmatpush2.bf16.msra.mxu0 %v7573
        %7936 = vmatprep.subr.bf16.mxu0 %v7566
        %7937 = vmatpush2.bf16.msra.mxu0 %v7565
        %7938 = vmatprep.subr.bf16.mxu0 %v7558
        %7939 = vmatpush2.bf16.msra.mxu0 %v7557
        %7940 = vmatprep.subr.bf16.mxu0 %v7550
        %7941 = vmatpush2.bf16.msra.mxu0 %v7549
        %7942 = vmatprep.mubr.bf16.mxu0 %v6290
        %7943 = vmatmul.mubr.bf16.gmra.mxu0 %v6289
        %v7944 = vpop.f32.mrf.mxu0
        %v7945 = vadd.f32 %v7904, %v7944
        %v7946 = vpop.f32.mrf.mxu0
        %v7947 = vadd.f32 %v7906, %v7946
        %v7948 = vpop.f32.mrf.mxu0
        %v7949 = vpop.f32.mrf.mxu0
        %7950 = vdwg.mxu0
        %7951 = vmatprep.subr.bf16.mxu0 %v7416
        %7952 = vmatpush1.bf16.msra.mxu0 %v7415
        %7953 = vmatprep.subr.bf16.mxu0 %v7408
        %7954 = vmatpush1.bf16.msra.mxu0 %v7407
        %7955 = vmatprep.subr.bf16.mxu0 %v7400
        %7956 = vmatpush1.bf16.msra.mxu0 %v7399
        %7957 = vmatprep.subr.bf16.mxu0 %v7392
        %7958 = vmatpush1.bf16.msra.mxu0 %v7391
        %7959 = vmatprep.subr.bf16.mxu0 %v7384
        %7960 = vmatpush1.bf16.msra.mxu0 %v7383
        %7961 = vmatprep.subr.bf16.mxu0 %v7376
        %7962 = vmatpush1.bf16.msra.mxu0 %v7375
        %7963 = vmatprep.subr.bf16.mxu0 %v7368
        %7964 = vmatpush1.bf16.msra.mxu0 %v7367
        %7965 = vmatprep.subr.bf16.mxu0 %v7360
        %7966 = vmatpush1.bf16.msra.mxu0 %v7359
        %7967 = vmatprep.subr.bf16.mxu0 %v7480
        %7968 = vmatpush2.bf16.msra.mxu0 %v7479
        %7969 = vmatprep.subr.bf16.mxu0 %v7472
        %7970 = vmatpush2.bf16.msra.mxu0 %v7471
        %7971 = vmatprep.subr.bf16.mxu0 %v7464
        %7972 = vmatpush2.bf16.msra.mxu0 %v7463
        %7973 = vmatprep.subr.bf16.mxu0 %v7456
        %7974 = vmatpush2.bf16.msra.mxu0 %v7455
        %7975 = vmatprep.subr.bf16.mxu0 %v7448
        %7976 = vmatpush2.bf16.msra.mxu0 %v7447
        %7977 = vmatprep.subr.bf16.mxu0 %v7440
        %7978 = vmatpush2.bf16.msra.mxu0 %v7439
        %7979 = vmatprep.subr.bf16.mxu0 %v7432
        %7980 = vmatpush2.bf16.msra.mxu0 %v7431
        %7981 = vmatprep.subr.bf16.mxu0 %v7424
        %7982 = vmatpush2.bf16.msra.mxu0 %v7423
        %7983 = vmatprep.mubr.bf16.mxu0 %v6288
        %7984 = vmatmul.mubr.bf16.gmra.mxu0 %v6287
        %v7985 = vpop.f32.mrf.mxu0
        %v7986 = vadd.f32 %v6560, %v7985
        %v7987 = vpop.f32.mrf.mxu0
        %v7988 = vadd.f32 %v6564, %v7987
        %v7989 = vpop.f32.mrf.mxu0
        %v7990 = vpop.f32.mrf.mxu0
        %7991 = vdwg.mxu0
        %7992 = vmatprep.subr.bf16.mxu0 %v7544
        %7993 = vmatpush1.bf16.msra.mxu0 %v7543
        %7994 = vmatprep.subr.bf16.mxu0 %v7536
        %7995 = vmatpush1.bf16.msra.mxu0 %v7535
        %7996 = vmatprep.subr.bf16.mxu0 %v7528
        %7997 = vmatpush1.bf16.msra.mxu0 %v7527
        %7998 = vmatprep.subr.bf16.mxu0 %v7520
        %7999 = vmatpush1.bf16.msra.mxu0 %v7519
        %8000 = vmatprep.subr.bf16.mxu0 %v7512
        %8001 = vmatpush1.bf16.msra.mxu0 %v7511
        %8002 = vmatprep.subr.bf16.mxu0 %v7504
        %8003 = vmatpush1.bf16.msra.mxu0 %v7503
        %8004 = vmatprep.subr.bf16.mxu0 %v7496
        %8005 = vmatpush1.bf16.msra.mxu0 %v7495
        %8006 = vmatprep.subr.bf16.mxu0 %v7488
        %8007 = vmatpush1.bf16.msra.mxu0 %v7487
        %8008 = vmatprep.subr.bf16.mxu0 %v7608
        %8009 = vmatpush2.bf16.msra.mxu0 %v7607
        %8010 = vmatprep.subr.bf16.mxu0 %v7600
        %8011 = vmatpush2.bf16.msra.mxu0 %v7599
        %8012 = vmatprep.subr.bf16.mxu0 %v7592
        %8013 = vmatpush2.bf16.msra.mxu0 %v7591
        %8014 = vmatprep.subr.bf16.mxu0 %v7584
        %8015 = vmatpush2.bf16.msra.mxu0 %v7583
        %8016 = vmatprep.subr.bf16.mxu0 %v7576
        %8017 = vmatpush2.bf16.msra.mxu0 %v7575
        %8018 = vmatprep.subr.bf16.mxu0 %v7568
        %8019 = vmatpush2.bf16.msra.mxu0 %v7567
        %8020 = vmatprep.subr.bf16.mxu0 %v7560
        %8021 = vmatpush2.bf16.msra.mxu0 %v7559
        %8022 = vmatprep.subr.bf16.mxu0 %v7552
        %8023 = vmatpush2.bf16.msra.mxu0 %v7551
        %8024 = vmatprep.mubr.bf16.mxu0 %v6290
        %8025 = vmatmul.mubr.bf16.gmra.mxu0 %v6289
        %v8026 = vpop.f32.mrf.mxu0
        %v8027 = vadd.f32 %v7986, %v8026
        %v8028 = vpop.f32.mrf.mxu0
        %v8029 = vadd.f32 %v7988, %v8028
        %v8030 = vpop.f32.mrf.mxu0
        %v8031 = vpop.f32.mrf.mxu0
        %8032 = vdwg.mxu0
        %8033 = vmatprep.subr.bf16.mxu0 %v7418
        %8034 = vmatpush1.bf16.msra.mxu0 %v7417
        %8035 = vmatprep.subr.bf16.mxu0 %v7410
        %8036 = vmatpush1.bf16.msra.mxu0 %v7409
        %8037 = vmatprep.subr.bf16.mxu0 %v7402
        %8038 = vmatpush1.bf16.msra.mxu0 %v7401
        %8039 = vmatprep.subr.bf16.mxu0 %v7394
        %8040 = vmatpush1.bf16.msra.mxu0 %v7393
        %8041 = vmatprep.subr.bf16.mxu0 %v7386
        %8042 = vmatpush1.bf16.msra.mxu0 %v7385
        %8043 = vmatprep.subr.bf16.mxu0 %v7378
        %8044 = vmatpush1.bf16.msra.mxu0 %v7377
        %8045 = vmatprep.subr.bf16.mxu0 %v7370
        %8046 = vmatpush1.bf16.msra.mxu0 %v7369
        %8047 = vmatprep.subr.bf16.mxu0 %v7362
        %8048 = vmatpush1.bf16.msra.mxu0 %v7361
        %8049 = vmatprep.subr.bf16.mxu0 %v7482
        %8050 = vmatpush2.bf16.msra.mxu0 %v7481
        %8051 = vmatprep.subr.bf16.mxu0 %v7474
        %8052 = vmatpush2.bf16.msra.mxu0 %v7473
        %8053 = vmatprep.subr.bf16.mxu0 %v7466
        %8054 = vmatpush2.bf16.msra.mxu0 %v7465
        %8055 = vmatprep.subr.bf16.mxu0 %v7458
        %8056 = vmatpush2.bf16.msra.mxu0 %v7457
        %8057 = vmatprep.subr.bf16.mxu0 %v7450
        %8058 = vmatpush2.bf16.msra.mxu0 %v7449
        %8059 = vmatprep.subr.bf16.mxu0 %v7442
        %8060 = vmatpush2.bf16.msra.mxu0 %v7441
        %8061 = vmatprep.subr.bf16.mxu0 %v7434
        %8062 = vmatpush2.bf16.msra.mxu0 %v7433
        %8063 = vmatprep.subr.bf16.mxu0 %v7426
        %8064 = vmatpush2.bf16.msra.mxu0 %v7425
        %8065 = vmatprep.mubr.bf16.mxu0 %v6288
        %8066 = vmatmul.mubr.bf16.gmra.mxu0 %v6287
        %v8067 = vpop.f32.mrf.mxu0
        %v8068 = vadd.f32 %v6568, %v8067
        %v8069 = vpop.f32.mrf.mxu0
        %v8070 = vadd.f32 %v6572, %v8069
        %v8071 = vpop.f32.mrf.mxu0
        %v8072 = vpop.f32.mrf.mxu0
        %8073 = vdwg.mxu0
        %8074 = vmatprep.subr.bf16.mxu0 %v7546
        %8075 = vmatpush1.bf16.msra.mxu0 %v7545
        %8076 = vmatprep.subr.bf16.mxu0 %v7538
        %8077 = vmatpush1.bf16.msra.mxu0 %v7537
        %8078 = vmatprep.subr.bf16.mxu0 %v7530
        %8079 = vmatpush1.bf16.msra.mxu0 %v7529
        %8080 = vmatprep.subr.bf16.mxu0 %v7522
        %8081 = vmatpush1.bf16.msra.mxu0 %v7521
        %8082 = vmatprep.subr.bf16.mxu0 %v7514
        %8083 = vmatpush1.bf16.msra.mxu0 %v7513
        %8084 = vmatprep.subr.bf16.mxu0 %v7506
        %8085 = vmatpush1.bf16.msra.mxu0 %v7505
        %8086 = vmatprep.subr.bf16.mxu0 %v7498
        %8087 = vmatpush1.bf16.msra.mxu0 %v7497
        %8088 = vmatprep.subr.bf16.mxu0 %v7490
        %8089 = vmatpush1.bf16.msra.mxu0 %v7489
        %8090 = vmatprep.subr.bf16.mxu0 %v7610
        %8091 = vmatpush2.bf16.msra.mxu0 %v7609
        %8092 = vmatprep.subr.bf16.mxu0 %v7602
        %8093 = vmatpush2.bf16.msra.mxu0 %v7601
        %8094 = vmatprep.subr.bf16.mxu0 %v7594
        %8095 = vmatpush2.bf16.msra.mxu0 %v7593
        %8096 = vmatprep.subr.bf16.mxu0 %v7586
        %8097 = vmatpush2.bf16.msra.mxu0 %v7585
        %8098 = vmatprep.subr.bf16.mxu0 %v7578
        %8099 = vmatpush2.bf16.msra.mxu0 %v7577
        %8100 = vmatprep.subr.bf16.mxu0 %v7570
        %8101 = vmatpush2.bf16.msra.mxu0 %v7569
        %8102 = vmatprep.subr.bf16.mxu0 %v7562
        %8103 = vmatpush2.bf16.msra.mxu0 %v7561
        %8104 = vmatprep.subr.bf16.mxu0 %v7554
        %8105 = vmatpush2.bf16.msra.mxu0 %v7553
        %8106 = vmatprep.mubr.bf16.mxu0 %v6290
        %8107 = vmatmul.mubr.bf16.gmra.mxu0 %v6289
        %v8108 = vpop.f32.mrf.mxu0
        %v8109 = vadd.f32 %v8068, %v8108
        %v8110 = vpop.f32.mrf.mxu0
        %v8111 = vadd.f32 %v8070, %v8110
        %v8112 = vpop.f32.mrf.mxu0
        %v8113 = vpop.f32.mrf.mxu0
        %8114 = vdwg.mxu0
        %8115 = vmatprep.subr.bf16.mxu0 %v7420
        %8116 = vmatpush1.bf16.msra.mxu0 %v7419
        %8117 = vmatprep.subr.bf16.mxu0 %v7412
        %8118 = vmatpush1.bf16.msra.mxu0 %v7411
        %8119 = vmatprep.subr.bf16.mxu0 %v7404
        %8120 = vmatpush1.bf16.msra.mxu0 %v7403
        %8121 = vmatprep.subr.bf16.mxu0 %v7396
        %8122 = vmatpush1.bf16.msra.mxu0 %v7395
        %8123 = vmatprep.subr.bf16.mxu0 %v7388
        %8124 = vmatpush1.bf16.msra.mxu0 %v7387
        %8125 = vmatprep.subr.bf16.mxu0 %v7380
        %8126 = vmatpush1.bf16.msra.mxu0 %v7379
        %8127 = vmatprep.subr.bf16.mxu0 %v7372
        %8128 = vmatpush1.bf16.msra.mxu0 %v7371
        %8129 = vmatprep.subr.bf16.mxu0 %v7364
        %8130 = vmatpush1.bf16.msra.mxu0 %v7363
        %8131 = vmatprep.subr.bf16.mxu0 %v7484
        %8132 = vmatpush2.bf16.msra.mxu0 %v7483
        %8133 = vmatprep.subr.bf16.mxu0 %v7476
        %8134 = vmatpush2.bf16.msra.mxu0 %v7475
        %8135 = vmatprep.subr.bf16.mxu0 %v7468
        %8136 = vmatpush2.bf16.msra.mxu0 %v7467
        %8137 = vmatprep.subr.bf16.mxu0 %v7460
        %8138 = vmatpush2.bf16.msra.mxu0 %v7459
        %8139 = vmatprep.subr.bf16.mxu0 %v7452
        %8140 = vmatpush2.bf16.msra.mxu0 %v7451
        %8141 = vmatprep.subr.bf16.mxu0 %v7444
        %8142 = vmatpush2.bf16.msra.mxu0 %v7443
        %8143 = vmatprep.subr.bf16.mxu0 %v7436
        %8144 = vmatpush2.bf16.msra.mxu0 %v7435
        %8145 = vmatprep.subr.bf16.mxu0 %v7428
        %8146 = vmatpush2.bf16.msra.mxu0 %v7427
        %8147 = vmatprep.mubr.bf16.mxu0 %v6288
        %8148 = vmatmul.mubr.bf16.gmra.mxu0 %v6287
        %v8149 = vpop.f32.mrf.mxu0
        %v8150 = vadd.f32 %v6576, %v8149
        %v8151 = vpop.f32.mrf.mxu0
        %v8152 = vadd.f32 %v6580, %v8151
        %v8153 = vpop.f32.mrf.mxu0
        %v8154 = vpop.f32.mrf.mxu0
        %8155 = vdwg.mxu0
        %8156 = vmatprep.subr.bf16.mxu0 %v7548
        %8157 = vmatpush1.bf16.msra.mxu0 %v7547
        %8158 = vmatprep.subr.bf16.mxu0 %v7540
        %8159 = vmatpush1.bf16.msra.mxu0 %v7539
        %8160 = vmatprep.subr.bf16.mxu0 %v7532
        %8161 = vmatpush1.bf16.msra.mxu0 %v7531
        %8162 = vmatprep.subr.bf16.mxu0 %v7524
        %8163 = vmatpush1.bf16.msra.mxu0 %v7523
        %8164 = vmatprep.subr.bf16.mxu0 %v7516
        %8165 = vmatpush1.bf16.msra.mxu0 %v7515
        %8166 = vmatprep.subr.bf16.mxu0 %v7508
        %8167 = vmatpush1.bf16.msra.mxu0 %v7507
        %8168 = vmatprep.subr.bf16.mxu0 %v7500
        %8169 = vmatpush1.bf16.msra.mxu0 %v7499
        %8170 = vmatprep.subr.bf16.mxu0 %v7492
        %8171 = vmatpush1.bf16.msra.mxu0 %v7491
        %8172 = vmatprep.subr.bf16.mxu0 %v7612
        %8173 = vmatpush2.bf16.msra.mxu0 %v7611
        %8174 = vmatprep.subr.bf16.mxu0 %v7604
        %8175 = vmatpush2.bf16.msra.mxu0 %v7603
        %8176 = vmatprep.subr.bf16.mxu0 %v7596
        %8177 = vmatpush2.bf16.msra.mxu0 %v7595
        %8178 = vmatprep.subr.bf16.mxu0 %v7588
        %8179 = vmatpush2.bf16.msra.mxu0 %v7587
        %8180 = vmatprep.subr.bf16.mxu0 %v7580
        %8181 = vmatpush2.bf16.msra.mxu0 %v7579
        %8182 = vmatprep.subr.bf16.mxu0 %v7572
        %8183 = vmatpush2.bf16.msra.mxu0 %v7571
        %8184 = vmatprep.subr.bf16.mxu0 %v7564
        %8185 = vmatpush2.bf16.msra.mxu0 %v7563
        %8186 = vmatprep.subr.bf16.mxu0 %v7556
        %8187 = vmatpush2.bf16.msra.mxu0 %v7555
        %8188 = vmatprep.mubr.bf16.mxu0 %v6290
        %8189 = vmatmul.mubr.bf16.gmra.mxu0 %v6289
        %v8190 = vpop.f32.mrf.mxu0
        %v8191 = vadd.f32 %v8150, %v8190
        %v8192 = vpop.f32.mrf.mxu0
        %v8193 = vadd.f32 %v8152, %v8192
        %v8194 = vpop.f32.mrf.mxu0
        %v8195 = vpop.f32.mrf.mxu0
        %8196 = vdwg.mxu0
        %v8197 = vld [vmem:[%s19] sm:$0xff]
        %v8198 = vld [vmem:[%s20] sm:$0xff]
        %v8199 = vadd.f32 %v7945, %v7947
        %v8200 = vadd.f32 %v8199, %v8027
        %v8201 = vadd.f32 %v8200, %v8029
        %v8202 = vadd.f32 %v8201, %v8109
        %v8203 = vadd.f32 %v8202, %v8111
        %v8204 = vadd.f32 %v8203, %v8191
        %v8205 = vadd.f32 %v8204, %v8193
        %8206 = vadd.xlane.f32.xlu0 %v8205
        %v8207 = vpop.xlane.xlu0 %8206
        %v8208 = vmul.f32 %v8207, %v4073
        %v8209 = vsub.f32 %v7945, %v8208
        %v8210 = vsub.f32 %v7947, %v8208
        %v8211 = vsub.f32 %v8027, %v8208
        %v8212 = vsub.f32 %v8029, %v8208
        %v8213 = vsub.f32 %v8109, %v8208
        %v8214 = vsub.f32 %v8111, %v8208
        %v8215 = vsub.f32 %v8191, %v8208
        %v8216 = vsub.f32 %v8193, %v8208
        %v8217 = vmul.f32 %v8209, %v8209
        %v8218 = vmul.f32 %v8210, %v8210
        %v8219 = vmul.f32 %v8211, %v8211
        %v8220 = vmul.f32 %v8212, %v8212
        %v8221 = vmul.f32 %v8213, %v8213
        %v8222 = vmul.f32 %v8214, %v8214
        %v8223 = vmul.f32 %v8215, %v8215
        %v8224 = vmul.f32 %v8216, %v8216
        %v8225 = vadd.f32 %v8217, %v8218
        %v8226 = vadd.f32 %v8225, %v8219
        %v8227 = vadd.f32 %v8226, %v8220
        %v8228 = vadd.f32 %v8227, %v8221
        %v8229 = vadd.f32 %v8228, %v8222
        %v8230 = vadd.f32 %v8229, %v8223
        %v8231 = vadd.f32 %v8230, %v8224
        %8232 = vadd.xlane.f32.xlu0 %v8231
        %v8233 = vpop.xlane.xlu0 %8232
        %v8234 = vmul.f32 %v8233, %v4073
        %v8235 = vadd.f32 %v8234, 1e-05
        %v8236 = vrsqrt.pop %v8235
        %v8237 = vmul.f32 %v8209, %v8236
        %v8238 = vmul.f32 %v8210, %v8236
        %v8239 = vmul.f32 %v8211, %v8236
        %v8240 = vmul.f32 %v8212, %v8236
        %v8241 = vmul.f32 %v8213, %v8236
        %v8242 = vmul.f32 %v8214, %v8236
        %v8243 = vmul.f32 %v8215, %v8236
        %v8244 = vmul.f32 %v8216, %v8236
        %v8246 = vlaneseq
        %v8247 = vshrl.u32 %v8246, 7
        %v8248 = vsub.s32 0, %v8247
        %v8249 = vrot.slane %v8197, %v8248
        %v8250 = vlaneseq
        %v8251 = vshrl.u32 %v8250, 7
        %v8252 = vsub.s32 1, %v8251
        %v8253 = vrot.slane %v8197, %v8252
        %v8254 = vlaneseq
        %v8255 = vshrl.u32 %v8254, 7
        %v8256 = vsub.s32 2, %v8255
        %v8257 = vrot.slane %v8197, %v8256
        %v8258 = vlaneseq
        %v8259 = vshrl.u32 %v8258, 7
        %v8260 = vsub.s32 3, %v8259
        %v8261 = vrot.slane %v8197, %v8260
        %v8262 = vlaneseq
        %v8263 = vshrl.u32 %v8262, 7
        %v8264 = vsub.s32 4, %v8263
        %v8265 = vrot.slane %v8197, %v8264
        %v8266 = vlaneseq
        %v8267 = vshrl.u32 %v8266, 7
        %v8268 = vsub.s32 5, %v8267
        %v8269 = vrot.slane %v8197, %v8268
        %v8270 = vlaneseq
        %v8271 = vshrl.u32 %v8270, 7
        %v8272 = vsub.s32 6, %v8271
        %v8273 = vrot.slane %v8197, %v8272
        %v8274 = vlaneseq
        %v8275 = vshrl.u32 %v8274, 7
        %v8276 = vsub.s32 7, %v8275
        %v8277 = vrot.slane %v8197, %v8276
        %v8286 = vmul.f32 %v8237, %v8249
        %v8287 = vmul.f32 %v8238, %v8253
        %v8288 = vmul.f32 %v8239, %v8257
        %v8289 = vmul.f32 %v8240, %v8261
        %v8290 = vmul.f32 %v8241, %v8265
        %v8291 = vmul.f32 %v8242, %v8269
        %v8292 = vmul.f32 %v8243, %v8273
        %v8293 = vmul.f32 %v8244, %v8277
        %v8295 = vlaneseq
        %v8296 = vshrl.u32 %v8295, 7
        %v8297 = vsub.s32 0, %v8296
        %v8298 = vrot.slane %v8198, %v8297
        %v8299 = vlaneseq
        %v8300 = vshrl.u32 %v8299, 7
        %v8301 = vsub.s32 1, %v8300
        %v8302 = vrot.slane %v8198, %v8301
        %v8303 = vlaneseq
        %v8304 = vshrl.u32 %v8303, 7
        %v8305 = vsub.s32 2, %v8304
        %v8306 = vrot.slane %v8198, %v8305
        %v8307 = vlaneseq
        %v8308 = vshrl.u32 %v8307, 7
        %v8309 = vsub.s32 3, %v8308
        %v8310 = vrot.slane %v8198, %v8309
        %v8311 = vlaneseq
        %v8312 = vshrl.u32 %v8311, 7
        %v8313 = vsub.s32 4, %v8312
        %v8314 = vrot.slane %v8198, %v8313
        %v8315 = vlaneseq
        %v8316 = vshrl.u32 %v8315, 7
        %v8317 = vsub.s32 5, %v8316
        %v8318 = vrot.slane %v8198, %v8317
        %v8319 = vlaneseq
        %v8320 = vshrl.u32 %v8319, 7
        %v8321 = vsub.s32 6, %v8320
        %v8322 = vrot.slane %v8198, %v8321
        %v8323 = vlaneseq
        %v8324 = vshrl.u32 %v8323, 7
        %v8325 = vsub.s32 7, %v8324
        %v8326 = vrot.slane %v8198, %v8325
        %v8335 = vadd.f32 %v8286, %v8298
        %v8336 = vadd.f32 %v8287, %v8302
        %v8337 = vadd.f32 %v8288, %v8306
        %v8338 = vadd.f32 %v8289, %v8310
        %v8339 = vadd.f32 %v8290, %v8314
        %v8340 = vadd.f32 %v8291, %v8318
        %v8341 = vadd.f32 %v8292, %v8322
        %v8342 = vadd.f32 %v8293, %v8326
        %v8343 = vxor.u32 %v8335, 2147483648
        %v8344 = vxor.u32 %v8336, 2147483648
        %v8345 = vxor.u32 %v8337, 2147483648
        %v8346 = vxor.u32 %v8338, 2147483648
        %v8347 = vxor.u32 %v8339, 2147483648
        %v8348 = vxor.u32 %v8340, 2147483648
        %v8349 = vxor.u32 %v8341, 2147483648
        %v8350 = vxor.u32 %v8342, 2147483648
        %v8351 = vmul.f32 %v8343, 1.442695
        %v8352 = vpow.pop %v8351
        %v8353 = vmul.f32 %v8344, 1.442695
        %v8354 = vpow.pop %v8353
        %v8355 = vmul.f32 %v8345, 1.442695
        %v8356 = vpow.pop %v8355
        %v8357 = vmul.f32 %v8346, 1.442695
        %v8358 = vpow.pop %v8357
        %v8359 = vmul.f32 %v8347, 1.442695
        %v8360 = vpow.pop %v8359
        %v8361 = vmul.f32 %v8348, 1.442695
        %v8362 = vpow.pop %v8361
        %v8363 = vmul.f32 %v8349, 1.442695
        %v8364 = vpow.pop %v8363
        %v8365 = vmul.f32 %v8350, 1.442695
        %v8366 = vpow.pop %v8365
        %v8367 = vadd.f32 %v8352, 1.0
        %v8368 = vadd.f32 %v8354, 1.0
        %v8369 = vadd.f32 %v8356, 1.0
        %v8370 = vadd.f32 %v8358, 1.0
        %v8371 = vadd.f32 %v8360, 1.0
        %v8372 = vadd.f32 %v8362, 1.0
        %v8373 = vadd.f32 %v8364, 1.0
        %v8374 = vadd.f32 %v8366, 1.0
        %v8375 = vrcp.pop %v8367
        %v8376 = vmul.f32 1.0, %v8375
        %v8377 = vrcp.pop %v8368
        %v8378 = vmul.f32 1.0, %v8377
        %v8379 = vrcp.pop %v8369
        %v8380 = vmul.f32 1.0, %v8379
        %v8381 = vrcp.pop %v8370
        %v8382 = vmul.f32 1.0, %v8381
        %v8383 = vrcp.pop %v8371
        %v8384 = vmul.f32 1.0, %v8383
        %v8385 = vrcp.pop %v8372
        %v8386 = vmul.f32 1.0, %v8385
        %v8387 = vrcp.pop %v8373
        %v8388 = vmul.f32 1.0, %v8387
        %v8389 = vrcp.pop %v8374
        %v8390 = vmul.f32 1.0, %v8389
        %v8391 = vmul.f32 %v8335, %v8376
        %v8392 = vmul.f32 %v8336, %v8378
        %v8393 = vmul.f32 %v8337, %v8380
        %v8394 = vmul.f32 %v8338, %v8382
        %v8395 = vmul.f32 %v8339, %v8384
        %v8396 = vmul.f32 %v8340, %v8386
        %v8397 = vmul.f32 %v8341, %v8388
        %v8398 = vmul.f32 %v8342, %v8390
        %v8399 = vpack.c.bf16 %v8391, %v8391
        %v8400 = vpack.c.bf16 %v8392, %v8392
        %v8401 = vpack.c.bf16 %v8393, %v8393
        %v8402 = vpack.c.bf16 %v8394, %v8394
        %v8403 = vpack.c.bf16 %v8395, %v8395
        %v8404 = vpack.c.bf16 %v8396, %v8396
        %v8405 = vpack.c.bf16 %v8397, %v8397
        %v8406 = vpack.c.bf16 %v8398, %v8398
        %v8407 = vld [vmem:[%s21] sm:$0xf]
        %v8408 = vld [vmem:[%s21 + $0x4] sm:$0xf]
        %v8409 = vld [vmem:[%s21 + $0x8] sm:$0xf]
        %v8410 = vld [vmem:[%s21 + $0xc] sm:$0xf]
        %v8411 = vld [vmem:[%s21 + $0x10] sm:$0xf]
        %v8412 = vld [vmem:[%s21 + $0x14] sm:$0xf]
        %v8413 = vld [vmem:[%s21 + $0x18] sm:$0xf]
        %v8414 = vld [vmem:[%s21 + $0x1c] sm:$0xf]
        %v8415 = vld [vmem:[%s21 + $0x20] sm:$0xf]
        %v8416 = vld [vmem:[%s21 + $0x24] sm:$0xf]
        %v8417 = vld [vmem:[%s21 + $0x28] sm:$0xf]
        %v8418 = vld [vmem:[%s21 + $0x2c] sm:$0xf]
        %v8419 = vld [vmem:[%s21 + $0x30] sm:$0xf]
        %v8420 = vld [vmem:[%s21 + $0x34] sm:$0xf]
        %v8421 = vld [vmem:[%s21 + $0x38] sm:$0xf]
        %v8422 = vld [vmem:[%s21 + $0x3c] sm:$0xf]
        %v8423 = vld [vmem:[%s21 + $0x40] sm:$0xf]
        %v8424 = vld [vmem:[%s21 + $0x44] sm:$0xf]
        %v8425 = vld [vmem:[%s21 + $0x48] sm:$0xf]
        %v8426 = vld [vmem:[%s21 + $0x4c] sm:$0xf]
        %v8427 = vld [vmem:[%s21 + $0x50] sm:$0xf]
        %v8428 = vld [vmem:[%s21 + $0x54] sm:$0xf]
        %v8429 = vld [vmem:[%s21 + $0x58] sm:$0xf]
        %v8430 = vld [vmem:[%s21 + $0x5c] sm:$0xf]
        %v8431 = vld [vmem:[%s21 + $0x60] sm:$0xf]
        %v8432 = vld [vmem:[%s21 + $0x64] sm:$0xf]
        %v8433 = vld [vmem:[%s21 + $0x68] sm:$0xf]
        %v8434 = vld [vmem:[%s21 + $0x6c] sm:$0xf]
        %v8435 = vld [vmem:[%s21 + $0x70] sm:$0xf]
        %v8436 = vld [vmem:[%s21 + $0x74] sm:$0xf]
        %v8437 = vld [vmem:[%s21 + $0x78] sm:$0xf]
        %v8438 = vld [vmem:[%s21 + $0x7c] sm:$0xf]
        %v8439 = vld [vmem:[%s21 + $0x80] sm:$0xf]
        %v8440 = vld [vmem:[%s21 + $0x84] sm:$0xf]
        %v8441 = vld [vmem:[%s21 + $0x88] sm:$0xf]
        %v8442 = vld [vmem:[%s21 + $0x8c] sm:$0xf]
        %v8443 = vld [vmem:[%s21 + $0x90] sm:$0xf]
        %v8444 = vld [vmem:[%s21 + $0x94] sm:$0xf]
        %v8445 = vld [vmem:[%s21 + $0x98] sm:$0xf]
        %v8446 = vld [vmem:[%s21 + $0x9c] sm:$0xf]
        %v8447 = vld [vmem:[%s21 + $0xa0] sm:$0xf]
        %v8448 = vld [vmem:[%s21 + $0xa4] sm:$0xf]
        %v8449 = vld [vmem:[%s21 + $0xa8] sm:$0xf]
        %v8450 = vld [vmem:[%s21 + $0xac] sm:$0xf]
        %v8451 = vld [vmem:[%s21 + $0xb0] sm:$0xf]
        %v8452 = vld [vmem:[%s21 + $0xb4] sm:$0xf]
        %v8453 = vld [vmem:[%s21 + $0xb8] sm:$0xf]
        %v8454 = vld [vmem:[%s21 + $0xbc] sm:$0xf]
        %v8455 = vld [vmem:[%s21 + $0xc0] sm:$0xf]
        %v8456 = vld [vmem:[%s21 + $0xc4] sm:$0xf]
        %v8457 = vld [vmem:[%s21 + $0xc8] sm:$0xf]
        %v8458 = vld [vmem:[%s21 + $0xcc] sm:$0xf]
        %v8459 = vld [vmem:[%s21 + $0xd0] sm:$0xf]
        %v8460 = vld [vmem:[%s21 + $0xd4] sm:$0xf]
        %v8461 = vld [vmem:[%s21 + $0xd8] sm:$0xf]
        %v8462 = vld [vmem:[%s21 + $0xdc] sm:$0xf]
        %v8463 = vld [vmem:[%s21 + $0xe0] sm:$0xf]
        %v8464 = vld [vmem:[%s21 + $0xe4] sm:$0xf]
        %v8465 = vld [vmem:[%s21 + $0xe8] sm:$0xf]
        %v8466 = vld [vmem:[%s21 + $0xec] sm:$0xf]
        %v8467 = vld [vmem:[%s21 + $0xf0] sm:$0xf]
        %v8468 = vld [vmem:[%s21 + $0xf4] sm:$0xf]
        %v8469 = vld [vmem:[%s21 + $0xf8] sm:$0xf]
        %v8470 = vld [vmem:[%s21 + $0xfc] sm:$0xf]
        %v8471 = vld [vmem:[%s21 + $0x100] sm:$0xf]
        %v8472 = vld [vmem:[%s21 + $0x104] sm:$0xf]
        %v8473 = vld [vmem:[%s21 + $0x108] sm:$0xf]
        %v8474 = vld [vmem:[%s21 + $0x10c] sm:$0xf]
        %v8475 = vld [vmem:[%s21 + $0x110] sm:$0xf]
        %v8476 = vld [vmem:[%s21 + $0x114] sm:$0xf]
        %v8477 = vld [vmem:[%s21 + $0x118] sm:$0xf]
        %v8478 = vld [vmem:[%s21 + $0x11c] sm:$0xf]
        %v8479 = vld [vmem:[%s21 + $0x120] sm:$0xf]
        %v8480 = vld [vmem:[%s21 + $0x124] sm:$0xf]
        %v8481 = vld [vmem:[%s21 + $0x128] sm:$0xf]
        %v8482 = vld [vmem:[%s21 + $0x12c] sm:$0xf]
        %v8483 = vld [vmem:[%s21 + $0x130] sm:$0xf]
        %v8484 = vld [vmem:[%s21 + $0x134] sm:$0xf]
        %v8485 = vld [vmem:[%s21 + $0x138] sm:$0xf]
        %v8486 = vld [vmem:[%s21 + $0x13c] sm:$0xf]
        %v8487 = vld [vmem:[%s21 + $0x140] sm:$0xf]
        %v8488 = vld [vmem:[%s21 + $0x144] sm:$0xf]
        %v8489 = vld [vmem:[%s21 + $0x148] sm:$0xf]
        %v8490 = vld [vmem:[%s21 + $0x14c] sm:$0xf]
        %v8491 = vld [vmem:[%s21 + $0x150] sm:$0xf]
        %v8492 = vld [vmem:[%s21 + $0x154] sm:$0xf]
        %v8493 = vld [vmem:[%s21 + $0x158] sm:$0xf]
        %v8494 = vld [vmem:[%s21 + $0x15c] sm:$0xf]
        %v8495 = vld [vmem:[%s21 + $0x160] sm:$0xf]
        %v8496 = vld [vmem:[%s21 + $0x164] sm:$0xf]
        %v8497 = vld [vmem:[%s21 + $0x168] sm:$0xf]
        %v8498 = vld [vmem:[%s21 + $0x16c] sm:$0xf]
        %v8499 = vld [vmem:[%s21 + $0x170] sm:$0xf]
        %v8500 = vld [vmem:[%s21 + $0x174] sm:$0xf]
        %v8501 = vld [vmem:[%s21 + $0x178] sm:$0xf]
        %v8502 = vld [vmem:[%s21 + $0x17c] sm:$0xf]
        %v8503 = vld [vmem:[%s21 + $0x180] sm:$0xf]
        %v8504 = vld [vmem:[%s21 + $0x184] sm:$0xf]
        %v8505 = vld [vmem:[%s21 + $0x188] sm:$0xf]
        %v8506 = vld [vmem:[%s21 + $0x18c] sm:$0xf]
        %v8507 = vld [vmem:[%s21 + $0x190] sm:$0xf]
        %v8508 = vld [vmem:[%s21 + $0x194] sm:$0xf]
        %v8509 = vld [vmem:[%s21 + $0x198] sm:$0xf]
        %v8510 = vld [vmem:[%s21 + $0x19c] sm:$0xf]
        %v8511 = vld [vmem:[%s21 + $0x1a0] sm:$0xf]
        %v8512 = vld [vmem:[%s21 + $0x1a4] sm:$0xf]
        %v8513 = vld [vmem:[%s21 + $0x1a8] sm:$0xf]
        %v8514 = vld [vmem:[%s21 + $0x1ac] sm:$0xf]
        %v8515 = vld [vmem:[%s21 + $0x1b0] sm:$0xf]
        %v8516 = vld [vmem:[%s21 + $0x1b4] sm:$0xf]
        %v8517 = vld [vmem:[%s21 + $0x1b8] sm:$0xf]
        %v8518 = vld [vmem:[%s21 + $0x1bc] sm:$0xf]
        %v8519 = vld [vmem:[%s21 + $0x1c0] sm:$0xf]
        %v8520 = vld [vmem:[%s21 + $0x1c4] sm:$0xf]
        %v8521 = vld [vmem:[%s21 + $0x1c8] sm:$0xf]
        %v8522 = vld [vmem:[%s21 + $0x1cc] sm:$0xf]
        %v8523 = vld [vmem:[%s21 + $0x1d0] sm:$0xf]
        %v8524 = vld [vmem:[%s21 + $0x1d4] sm:$0xf]
        %v8525 = vld [vmem:[%s21 + $0x1d8] sm:$0xf]
        %v8526 = vld [vmem:[%s21 + $0x1dc] sm:$0xf]
        %v8527 = vld [vmem:[%s21 + $0x1e0] sm:$0xf]
        %v8528 = vld [vmem:[%s21 + $0x1e4] sm:$0xf]
        %v8529 = vld [vmem:[%s21 + $0x1e8] sm:$0xf]
        %v8530 = vld [vmem:[%s21 + $0x1ec] sm:$0xf]
        %v8531 = vld [vmem:[%s21 + $0x1f0] sm:$0xf]
        %v8532 = vld [vmem:[%s21 + $0x1f4] sm:$0xf]
        %v8533 = vld [vmem:[%s21 + $0x1f8] sm:$0xf]
        %v8534 = vld [vmem:[%s21 + $0x1fc] sm:$0xf]
        %v8535 = vld [vmem:[%s22] sm:$0x1]
        %v8537 = vlaneseq
        %v8538 = vshrl.u32 %v8537, 7
        %v8539 = vsub.s32 0, %v8538
        %v8540 = vrot.slane %v8535, %v8539
        %v8670 = vunpack.c.l.b16 %v8407
        %v8671 = vunpack.c.l.b16 %v8408
        %v8672 = vunpack.c.l.b16 %v8409
        %v8673 = vunpack.c.l.b16 %v8410
        %v8674 = vunpack.c.l.b16 %v8411
        %v8675 = vunpack.c.l.b16 %v8412
        %v8676 = vunpack.c.l.b16 %v8413
        %v8677 = vunpack.c.l.b16 %v8414
        %v8678 = vunpack.c.l.b16 %v8415
        %v8679 = vunpack.c.l.b16 %v8416
        %v8680 = vunpack.c.l.b16 %v8417
        %v8681 = vunpack.c.l.b16 %v8418
        %v8682 = vunpack.c.l.b16 %v8419
        %v8683 = vunpack.c.l.b16 %v8420
        %v8684 = vunpack.c.l.b16 %v8421
        %v8685 = vunpack.c.l.b16 %v8422
        %v8686 = vunpack.c.l.b16 %v8423
        %v8687 = vunpack.c.l.b16 %v8424
        %v8688 = vunpack.c.l.b16 %v8425
        %v8689 = vunpack.c.l.b16 %v8426
        %v8690 = vunpack.c.l.b16 %v8427
        %v8691 = vunpack.c.l.b16 %v8428
        %v8692 = vunpack.c.l.b16 %v8429
        %v8693 = vunpack.c.l.b16 %v8430
        %v8694 = vunpack.c.l.b16 %v8431
        %v8695 = vunpack.c.l.b16 %v8432
        %v8696 = vunpack.c.l.b16 %v8433
        %v8697 = vunpack.c.l.b16 %v8434
        %v8698 = vunpack.c.l.b16 %v8435
        %v8699 = vunpack.c.l.b16 %v8436
        %v8700 = vunpack.c.l.b16 %v8437
        %v8701 = vunpack.c.l.b16 %v8438
        %v8702 = vunpack.c.l.b16 %v8439
        %v8703 = vunpack.c.l.b16 %v8440
        %v8704 = vunpack.c.l.b16 %v8441
        %v8705 = vunpack.c.l.b16 %v8442
        %v8706 = vunpack.c.l.b16 %v8443
        %v8707 = vunpack.c.l.b16 %v8444
        %v8708 = vunpack.c.l.b16 %v8445
        %v8709 = vunpack.c.l.b16 %v8446
        %v8710 = vunpack.c.l.b16 %v8447
        %v8711 = vunpack.c.l.b16 %v8448
        %v8712 = vunpack.c.l.b16 %v8449
        %v8713 = vunpack.c.l.b16 %v8450
        %v8714 = vunpack.c.l.b16 %v8451
        %v8715 = vunpack.c.l.b16 %v8452
        %v8716 = vunpack.c.l.b16 %v8453
        %v8717 = vunpack.c.l.b16 %v8454
        %v8718 = vunpack.c.l.b16 %v8455
        %v8719 = vunpack.c.l.b16 %v8456
        %v8720 = vunpack.c.l.b16 %v8457
        %v8721 = vunpack.c.l.b16 %v8458
        %v8722 = vunpack.c.l.b16 %v8459
        %v8723 = vunpack.c.l.b16 %v8460
        %v8724 = vunpack.c.l.b16 %v8461
        %v8725 = vunpack.c.l.b16 %v8462
        %v8726 = vunpack.c.l.b16 %v8463
        %v8727 = vunpack.c.l.b16 %v8464
        %v8728 = vunpack.c.l.b16 %v8465
        %v8729 = vunpack.c.l.b16 %v8466
        %v8730 = vunpack.c.l.b16 %v8467
        %v8731 = vunpack.c.l.b16 %v8468
        %v8732 = vunpack.c.l.b16 %v8469
        %v8733 = vunpack.c.l.b16 %v8470
        %v8734 = vunpack.c.l.b16 %v8471
        %v8735 = vunpack.c.l.b16 %v8472
        %v8736 = vunpack.c.l.b16 %v8473
        %v8737 = vunpack.c.l.b16 %v8474
        %v8738 = vunpack.c.l.b16 %v8475
        %v8739 = vunpack.c.l.b16 %v8476
        %v8740 = vunpack.c.l.b16 %v8477
        %v8741 = vunpack.c.l.b16 %v8478
        %v8742 = vunpack.c.l.b16 %v8479
        %v8743 = vunpack.c.l.b16 %v8480
        %v8744 = vunpack.c.l.b16 %v8481
        %v8745 = vunpack.c.l.b16 %v8482
        %v8746 = vunpack.c.l.b16 %v8483
        %v8747 = vunpack.c.l.b16 %v8484
        %v8748 = vunpack.c.l.b16 %v8485
        %v8749 = vunpack.c.l.b16 %v8486
        %v8750 = vunpack.c.l.b16 %v8487
        %v8751 = vunpack.c.l.b16 %v8488
        %v8752 = vunpack.c.l.b16 %v8489
        %v8753 = vunpack.c.l.b16 %v8490
        %v8754 = vunpack.c.l.b16 %v8491
        %v8755 = vunpack.c.l.b16 %v8492
        %v8756 = vunpack.c.l.b16 %v8493
        %v8757 = vunpack.c.l.b16 %v8494
        %v8758 = vunpack.c.l.b16 %v8495
        %v8759 = vunpack.c.l.b16 %v8496
        %v8760 = vunpack.c.l.b16 %v8497
        %v8761 = vunpack.c.l.b16 %v8498
        %v8762 = vunpack.c.l.b16 %v8499
        %v8763 = vunpack.c.l.b16 %v8500
        %v8764 = vunpack.c.l.b16 %v8501
        %v8765 = vunpack.c.l.b16 %v8502
        %v8766 = vunpack.c.l.b16 %v8503
        %v8767 = vunpack.c.l.b16 %v8504
        %v8768 = vunpack.c.l.b16 %v8505
        %v8769 = vunpack.c.l.b16 %v8506
        %v8770 = vunpack.c.l.b16 %v8507
        %v8771 = vunpack.c.l.b16 %v8508
        %v8772 = vunpack.c.l.b16 %v8509
        %v8773 = vunpack.c.l.b16 %v8510
        %v8774 = vunpack.c.l.b16 %v8511
        %v8775 = vunpack.c.l.b16 %v8512
        %v8776 = vunpack.c.l.b16 %v8513
        %v8777 = vunpack.c.l.b16 %v8514
        %v8778 = vunpack.c.l.b16 %v8515
        %v8779 = vunpack.c.l.b16 %v8516
        %v8780 = vunpack.c.l.b16 %v8517
        %v8781 = vunpack.c.l.b16 %v8518
        %v8782 = vunpack.c.l.b16 %v8519
        %v8783 = vunpack.c.l.b16 %v8520
        %v8784 = vunpack.c.l.b16 %v8521
        %v8785 = vunpack.c.l.b16 %v8522
        %v8786 = vunpack.c.l.b16 %v8523
        %v8787 = vunpack.c.l.b16 %v8524
        %v8788 = vunpack.c.l.b16 %v8525
        %v8789 = vunpack.c.l.b16 %v8526
        %v8790 = vunpack.c.l.b16 %v8527
        %v8791 = vunpack.c.l.b16 %v8528
        %v8792 = vunpack.c.l.b16 %v8529
        %v8793 = vunpack.c.l.b16 %v8530
        %v8794 = vunpack.c.l.b16 %v8531
        %v8795 = vunpack.c.l.b16 %v8532
        %v8796 = vunpack.c.l.b16 %v8533
        %v8797 = vunpack.c.l.b16 %v8534
        %v8798 = vpack.c.b16 %v8671, %v8670
        %v8799 = vpack.c.b16 %v8673, %v8672
        %v8800 = vpack.c.b16 %v8675, %v8674
        %v8801 = vpack.c.b16 %v8677, %v8676
        %v8802 = vpack.c.b16 %v8679, %v8678
        %v8803 = vpack.c.b16 %v8681, %v8680
        %v8804 = vpack.c.b16 %v8683, %v8682
        %v8805 = vpack.c.b16 %v8685, %v8684
        %v8806 = vpack.c.b16 %v8687, %v8686
        %v8807 = vpack.c.b16 %v8689, %v8688
        %v8808 = vpack.c.b16 %v8691, %v8690
        %v8809 = vpack.c.b16 %v8693, %v8692
        %v8810 = vpack.c.b16 %v8695, %v8694
        %v8811 = vpack.c.b16 %v8697, %v8696
        %v8812 = vpack.c.b16 %v8699, %v8698
        %v8813 = vpack.c.b16 %v8701, %v8700
        %v8814 = vpack.c.b16 %v8703, %v8702
        %v8815 = vpack.c.b16 %v8705, %v8704
        %v8816 = vpack.c.b16 %v8707, %v8706
        %v8817 = vpack.c.b16 %v8709, %v8708
        %v8818 = vpack.c.b16 %v8711, %v8710
        %v8819 = vpack.c.b16 %v8713, %v8712
        %v8820 = vpack.c.b16 %v8715, %v8714
        %v8821 = vpack.c.b16 %v8717, %v8716
        %v8822 = vpack.c.b16 %v8719, %v8718
        %v8823 = vpack.c.b16 %v8721, %v8720
        %v8824 = vpack.c.b16 %v8723, %v8722
        %v8825 = vpack.c.b16 %v8725, %v8724
        %v8826 = vpack.c.b16 %v8727, %v8726
        %v8827 = vpack.c.b16 %v8729, %v8728
        %v8828 = vpack.c.b16 %v8731, %v8730
        %v8829 = vpack.c.b16 %v8733, %v8732
        %v8830 = vpack.c.b16 %v8735, %v8734
        %v8831 = vpack.c.b16 %v8737, %v8736
        %v8832 = vpack.c.b16 %v8739, %v8738
        %v8833 = vpack.c.b16 %v8741, %v8740
        %v8834 = vpack.c.b16 %v8743, %v8742
        %v8835 = vpack.c.b16 %v8745, %v8744
        %v8836 = vpack.c.b16 %v8747, %v8746
        %v8837 = vpack.c.b16 %v8749, %v8748
        %v8838 = vpack.c.b16 %v8751, %v8750
        %v8839 = vpack.c.b16 %v8753, %v8752
        %v8840 = vpack.c.b16 %v8755, %v8754
        %v8841 = vpack.c.b16 %v8757, %v8756
        %v8842 = vpack.c.b16 %v8759, %v8758
        %v8843 = vpack.c.b16 %v8761, %v8760
        %v8844 = vpack.c.b16 %v8763, %v8762
        %v8845 = vpack.c.b16 %v8765, %v8764
        %v8846 = vpack.c.b16 %v8767, %v8766
        %v8847 = vpack.c.b16 %v8769, %v8768
        %v8848 = vpack.c.b16 %v8771, %v8770
        %v8849 = vpack.c.b16 %v8773, %v8772
        %v8850 = vpack.c.b16 %v8775, %v8774
        %v8851 = vpack.c.b16 %v8777, %v8776
        %v8852 = vpack.c.b16 %v8779, %v8778
        %v8853 = vpack.c.b16 %v8781, %v8780
        %v8854 = vpack.c.b16 %v8783, %v8782
        %v8855 = vpack.c.b16 %v8785, %v8784
        %v8856 = vpack.c.b16 %v8787, %v8786
        %v8857 = vpack.c.b16 %v8789, %v8788
        %v8858 = vpack.c.b16 %v8791, %v8790
        %v8859 = vpack.c.b16 %v8793, %v8792
        %v8860 = vpack.c.b16 %v8795, %v8794
        %v8861 = vpack.c.b16 %v8797, %v8796
        %8926 = vmatprep.subr.bf16.mxu0 0
        %8927 = vmatpush1.bf16.msra.mxu0 %v8805
        %8928 = vmatprep.subr.bf16.mxu0 0
        %8929 = vmatpush1.bf16.msra.mxu0 %v8804
        %8930 = vmatprep.subr.bf16.mxu0 0
        %8931 = vmatpush1.bf16.msra.mxu0 %v8803
        %8932 = vmatprep.subr.bf16.mxu0 0
        %8933 = vmatpush1.bf16.msra.mxu0 %v8802
        %8934 = vmatprep.subr.bf16.mxu0 0
        %8935 = vmatpush1.bf16.msra.mxu0 %v8801
        %8936 = vmatprep.subr.bf16.mxu0 0
        %8937 = vmatpush1.bf16.msra.mxu0 %v8800
        %8938 = vmatprep.subr.bf16.mxu0 0
        %8939 = vmatpush1.bf16.msra.mxu0 %v8799
        %8940 = vmatprep.subr.bf16.mxu0 0
        %8941 = vmatpush1.bf16.msra.mxu0 %v8798
        %8942 = vmatprep.subr.bf16.mxu0 0
        %8943 = vmatpush2.bf16.msra.mxu0 %v8813
        %8944 = vmatprep.subr.bf16.mxu0 0
        %8945 = vmatpush2.bf16.msra.mxu0 %v8812
        %8946 = vmatprep.subr.bf16.mxu0 0
        %8947 = vmatpush2.bf16.msra.mxu0 %v8811
        %8948 = vmatprep.subr.bf16.mxu0 0
        %8949 = vmatpush2.bf16.msra.mxu0 %v8810
        %8950 = vmatprep.subr.bf16.mxu0 0
        %8951 = vmatpush2.bf16.msra.mxu0 %v8809
        %8952 = vmatprep.subr.bf16.mxu0 0
        %8953 = vmatpush2.bf16.msra.mxu0 %v8808
        %8954 = vmatprep.subr.bf16.mxu0 0
        %8955 = vmatpush2.bf16.msra.mxu0 %v8807
        %8956 = vmatprep.subr.bf16.mxu0 0
        %8957 = vmatpush2.bf16.msra.mxu0 %v8806
        %8958 = vmatprep.mubr.bf16.mxu0 %v8400
        %8959 = vmatmul.mubr.bf16.gmra.mxu0 %v8399
        %v8960 = vpop.f32.mrf.mxu0
        %v8961 = vadd.f32 %v8540, %v8960
        %v8962 = vpop.f32.mrf.mxu0
        %v8963 = vpop.f32.mrf.mxu0
        %v8964 = vpop.f32.mrf.mxu0
        %8965 = vdwg.mxu0
        %8966 = vmatprep.subr.bf16.mxu0 0
        %8967 = vmatpush1.bf16.msra.mxu0 %v8821
        %8968 = vmatprep.subr.bf16.mxu0 0
        %8969 = vmatpush1.bf16.msra.mxu0 %v8820
        %8970 = vmatprep.subr.bf16.mxu0 0
        %8971 = vmatpush1.bf16.msra.mxu0 %v8819
        %8972 = vmatprep.subr.bf16.mxu0 0
        %8973 = vmatpush1.bf16.msra.mxu0 %v8818
        %8974 = vmatprep.subr.bf16.mxu0 0
        %8975 = vmatpush1.bf16.msra.mxu0 %v8817
        %8976 = vmatprep.subr.bf16.mxu0 0
        %8977 = vmatpush1.bf16.msra.mxu0 %v8816
        %8978 = vmatprep.subr.bf16.mxu0 0
        %8979 = vmatpush1.bf16.msra.mxu0 %v8815
        %8980 = vmatprep.subr.bf16.mxu0 0
        %8981 = vmatpush1.bf16.msra.mxu0 %v8814
        %8982 = vmatprep.subr.bf16.mxu0 0
        %8983 = vmatpush2.bf16.msra.mxu0 %v8829
        %8984 = vmatprep.subr.bf16.mxu0 0
        %8985 = vmatpush2.bf16.msra.mxu0 %v8828
        %8986 = vmatprep.subr.bf16.mxu0 0
        %8987 = vmatpush2.bf16.msra.mxu0 %v8827
        %8988 = vmatprep.subr.bf16.mxu0 0
        %8989 = vmatpush2.bf16.msra.mxu0 %v8826
        %8990 = vmatprep.subr.bf16.mxu0 0
        %8991 = vmatpush2.bf16.msra.mxu0 %v8825
        %8992 = vmatprep.subr.bf16.mxu0 0
        %8993 = vmatpush2.bf16.msra.mxu0 %v8824
        %8994 = vmatprep.subr.bf16.mxu0 0
        %8995 = vmatpush2.bf16.msra.mxu0 %v8823
        %8996 = vmatprep.subr.bf16.mxu0 0
        %8997 = vmatpush2.bf16.msra.mxu0 %v8822
        %8998 = vmatprep.mubr.bf16.mxu0 %v8402
        %8999 = vmatmul.mubr.bf16.gmra.mxu0 %v8401
        %v9000 = vpop.f32.mrf.mxu0
        %v9001 = vadd.f32 %v8961, %v9000
        %v9002 = vpop.f32.mrf.mxu0
        %v9003 = vpop.f32.mrf.mxu0
        %v9004 = vpop.f32.mrf.mxu0
        %9005 = vdwg.mxu0
        %9006 = vmatprep.subr.bf16.mxu0 0
        %9007 = vmatpush1.bf16.msra.mxu0 %v8837
        %9008 = vmatprep.subr.bf16.mxu0 0
        %9009 = vmatpush1.bf16.msra.mxu0 %v8836
        %9010 = vmatprep.subr.bf16.mxu0 0
        %9011 = vmatpush1.bf16.msra.mxu0 %v8835
        %9012 = vmatprep.subr.bf16.mxu0 0
        %9013 = vmatpush1.bf16.msra.mxu0 %v8834
        %9014 = vmatprep.subr.bf16.mxu0 0
        %9015 = vmatpush1.bf16.msra.mxu0 %v8833
        %9016 = vmatprep.subr.bf16.mxu0 0
        %9017 = vmatpush1.bf16.msra.mxu0 %v8832
        %9018 = vmatprep.subr.bf16.mxu0 0
        %9019 = vmatpush1.bf16.msra.mxu0 %v8831
        %9020 = vmatprep.subr.bf16.mxu0 0
        %9021 = vmatpush1.bf16.msra.mxu0 %v8830
        %9022 = vmatprep.subr.bf16.mxu0 0
        %9023 = vmatpush2.bf16.msra.mxu0 %v8845
        %9024 = vmatprep.subr.bf16.mxu0 0
        %9025 = vmatpush2.bf16.msra.mxu0 %v8844
        %9026 = vmatprep.subr.bf16.mxu0 0
        %9027 = vmatpush2.bf16.msra.mxu0 %v8843
        %9028 = vmatprep.subr.bf16.mxu0 0
        %9029 = vmatpush2.bf16.msra.mxu0 %v8842
        %9030 = vmatprep.subr.bf16.mxu0 0
        %9031 = vmatpush2.bf16.msra.mxu0 %v8841
        %9032 = vmatprep.subr.bf16.mxu0 0
        %9033 = vmatpush2.bf16.msra.mxu0 %v8840
        %9034 = vmatprep.subr.bf16.mxu0 0
        %9035 = vmatpush2.bf16.msra.mxu0 %v8839
        %9036 = vmatprep.subr.bf16.mxu0 0
        %9037 = vmatpush2.bf16.msra.mxu0 %v8838
        %9038 = vmatprep.mubr.bf16.mxu0 %v8404
        %9039 = vmatmul.mubr.bf16.gmra.mxu0 %v8403
        %v9040 = vpop.f32.mrf.mxu0
        %v9041 = vadd.f32 %v9001, %v9040
        %v9042 = vpop.f32.mrf.mxu0
        %v9043 = vpop.f32.mrf.mxu0
        %v9044 = vpop.f32.mrf.mxu0
        %9045 = vdwg.mxu0
        %9046 = vmatprep.subr.bf16.mxu0 0
        %9047 = vmatpush1.bf16.msra.mxu0 %v8853
        %9048 = vmatprep.subr.bf16.mxu0 0
        %9049 = vmatpush1.bf16.msra.mxu0 %v8852
        %9050 = vmatprep.subr.bf16.mxu0 0
        %9051 = vmatpush1.bf16.msra.mxu0 %v8851
        %9052 = vmatprep.subr.bf16.mxu0 0
        %9053 = vmatpush1.bf16.msra.mxu0 %v8850
        %9054 = vmatprep.subr.bf16.mxu0 0
        %9055 = vmatpush1.bf16.msra.mxu0 %v8849
        %9056 = vmatprep.subr.bf16.mxu0 0
        %9057 = vmatpush1.bf16.msra.mxu0 %v8848
        %9058 = vmatprep.subr.bf16.mxu0 0
        %9059 = vmatpush1.bf16.msra.mxu0 %v8847
        %9060 = vmatprep.subr.bf16.mxu0 0
        %9061 = vmatpush1.bf16.msra.mxu0 %v8846
        %9062 = vmatprep.subr.bf16.mxu0 0
        %9063 = vmatpush2.bf16.msra.mxu0 %v8861
        %9064 = vmatprep.subr.bf16.mxu0 0
        %9065 = vmatpush2.bf16.msra.mxu0 %v8860
        %9066 = vmatprep.subr.bf16.mxu0 0
        %9067 = vmatpush2.bf16.msra.mxu0 %v8859
        %9068 = vmatprep.subr.bf16.mxu0 0
        %9069 = vmatpush2.bf16.msra.mxu0 %v8858
        %9070 = vmatprep.subr.bf16.mxu0 0
        %9071 = vmatpush2.bf16.msra.mxu0 %v8857
        %9072 = vmatprep.subr.bf16.mxu0 0
        %9073 = vmatpush2.bf16.msra.mxu0 %v8856
        %9074 = vmatprep.subr.bf16.mxu0 0
        %9075 = vmatpush2.bf16.msra.mxu0 %v8855
        %9076 = vmatprep.subr.bf16.mxu0 0
        %9077 = vmatpush2.bf16.msra.mxu0 %v8854
        %9078 = vmatprep.mubr.bf16.mxu0 %v8406
        %9079 = vmatmul.mubr.bf16.gmra.mxu0 %v8405
        %v9080 = vpop.f32.mrf.mxu0
        %v9081 = vadd.f32 %v9041, %v9080
        %v9082 = vpop.f32.mrf.mxu0
        %v9083 = vpop.f32.mrf.mxu0
        %v9084 = vpop.f32.mrf.mxu0
        %9085 = vdwg.mxu0
        %s9086 = scalar_lea.vmem %s768, 8 [#allocation2]
        %9087 = vst [vmem:[%s9086] sm:$0xff] %v9081
        %s9088 = sand.u32 %s540, 1
        %s9089 = sand.u32 %s540, 1
        %s9090 = smul.addr %s9089, 16
        %s9091 = scalar_lea.vmem [#allocation2], %s9090
        // Predicated region
        $region113: #{hierarchical_motion_decoder.1} parent=111 // pred_check
          %p9092 = pneg %p550
        $region114: #{hierarchical_motion_decoder.1} parent=111 // pred_check_branch
          %9094 = sbr.rel (%p9092) target = $region116
        $region115: #{hierarchical_motion_decoder.1} parent=111 // pred_region
          %s9095 = smul.u32 2, %s34
          %s9096 = ssub.s32 3, %s9095
          %p9097 = scmp.lt.s32.totalorder %s9096, 2
          %s9098 = scalar_select %p9097, %s9096, 2
          %s9099 = smul.u32 128, %s9098
          %p9100 = scmp.ne.s32.totalorder 0, %s9099
          %s9101 = smul.addr %s9095, 8
          %s9102 = scalar_lea.vmem %s23, %s9101
          // Predicated region
          $region117: #{hierarchical_motion_decoder.1} parent=115 // pred_check
            %p9103 = pneg %p9100
          $region118: #{hierarchical_motion_decoder.1} parent=115 // pred_check_branch
            %9105 = sbr.rel (%p9103) target = $region120
          $region119: #{hierarchical_motion_decoder.1} parent=115 // pred_region
            // Predicated region
            $region121: #{hierarchical_motion_decoder.1} parent=119 // pred_check
              _
            $region122: #{hierarchical_motion_decoder.1} parent=119 // pred_check_branch
              %9107 = sbr.rel (0) target = $region124
            $region123: #{hierarchical_motion_decoder.1} parent=119 // pred_region
              // Predicated region
              $region143: #{hierarchical_motion_decoder.1} parent=123 // pred_check
                _
              $region144: #{hierarchical_motion_decoder.1} parent=123 // pred_check_branch
                %9159 = sbr.rel (0) target = $region146
              $region145: #{hierarchical_motion_decoder.1} parent=123 // pred_region
                %s9160 = sshrl.u32 %s9098, 1
                // While loop
                $region147: #{hierarchical_motion_decoder.1} parent=145 // loop_pre_header
                  _
                $region148: #{hierarchical_motion_decoder.1} parent=145 // loop_header
                  %s9162 = sphi 0, %s9164
                  %p9163 = scmp.ge.s32.totalorder %s9162, %s9160
                  %s9167 = sphi 0, %s9176
                  %s9168 = sphi %s9091, %s9179
                  %s9169 = sphi %s9102, %s9180
                $region149: #{hierarchical_motion_decoder.1} parent=145 // loop_header_branch
                  %9166 = sbr.rel (%p9163) target = $region153
                $region150: #{hierarchical_motion_decoder.1} parent=145 // loop_body
                  %v9170 = vld [vmem:[%s9168] sm:$0xff]
                  %9171 = vst [vmem:[%s9169] sm:$0xff] %v9170
                  %v9172 = vld [vmem:[%s9168 + $0x8] sm:$0xff]
                  %9173 = vst [vmem:[%s9169 + $0x8] sm:$0xff] %v9172
                  %s9174 = sadd.s32 1, %s9167
                  %p9175 = scmp.ge.s32.totalorder %s9174, %s9160
                  %s9176 = scalar_select %p9175, 0, %s9174
                  %s9177 = smul.u32 %s9176, 16
                  %s9178 = smul.u32 %s9176, 16
                  %s9179 = scalar_lea.vmem %s9091, %s9177 [#allocation2]
                  %s9180 = scalar_lea.vmem %s9102, %s9178
                $region151: #{hierarchical_motion_decoder.1} parent=145 // loop_footer
                  %s9164 = sadd.s32 %s9162, 1
                $region152: #{hierarchical_motion_decoder.1} parent=145 // loop_footer_branch
                  %9161 = sbr.rel target = $region148
                $region153: #{hierarchical_motion_decoder.1} parent=145 // loop_exit
                  _
                %s9181 = sshrl.u32 %s9098, 1
                %s9182 = sand.u32 %s9098, 1
                %s9183 = smul.u32 %s9181, 2
                %s9184 = smul.u32 8, %s9183
                %s9185 = scalar_lea.vmem %s9091, %s9184 [#allocation2]
                %s9186 = smul.u32 8, %s9183
                %s9187 = scalar_lea.vmem %s9102, %s9186
                // While loop
                $region154: #{hierarchical_motion_decoder.1} parent=145 // loop_pre_header
                  _
                $region155: #{hierarchical_motion_decoder.1} parent=145 // loop_header
                  %s9189 = sphi 0, %s9191
                  %p9190 = scmp.ge.s32.totalorder %s9189, %s9182
                  %s9194 = sphi 0, %s9201
                  %s9195 = sphi %s9185, %s9204
                  %s9196 = sphi %s9187, %s9205
                $region156: #{hierarchical_motion_decoder.1} parent=145 // loop_header_branch
                  %9193 = sbr.rel (%p9190) target = $region160
                $region157: #{hierarchical_motion_decoder.1} parent=145 // loop_body
                  %v9197 = vld [vmem:[%s9195] sm:$0xff]
                  %9198 = vst [vmem:[%s9196] sm:$0xff] %v9197
                  %s9199 = sadd.s32 1, %s9194
                  %p9200 = scmp.ge.s32.totalorder %s9199, %s9182
                  %s9201 = scalar_select %p9200, 0, %s9199
                  %s9202 = smul.u32 %s9201, 8
                  %s9203 = smul.u32 %s9201, 8
                  %s9204 = scalar_lea.vmem %s9185, %s9202 [#allocation2]
                  %s9205 = scalar_lea.vmem %s9187, %s9203
                $region158: #{hierarchical_motion_decoder.1} parent=145 // loop_footer
                  %s9191 = sadd.s32 %s9189, 1
                $region159: #{hierarchical_motion_decoder.1} parent=145 // loop_footer_branch
                  %9188 = sbr.rel target = $region155
                $region160: #{hierarchical_motion_decoder.1} parent=145 // loop_exit
                  _
              $region146: #{hierarchical_motion_decoder.1} parent=123 // pred_fallthru
                _
              // Predicated region
              $region161: #{hierarchical_motion_decoder.1} parent=123 // pred_check
                _
              $region162: #{hierarchical_motion_decoder.1} parent=123 // pred_check_branch
                %9207 = sbr.rel target = $region164
              $region163: #{hierarchical_motion_decoder.1} parent=123 // pred_region
                _
              $region164: #{hierarchical_motion_decoder.1} parent=123 // pred_fallthru
                _
            $region124: #{hierarchical_motion_decoder.1} parent=119 // pred_fallthru
              _
            // Predicated region
            $region125: #{hierarchical_motion_decoder.1} parent=119 // pred_check
              _
            $region126: #{hierarchical_motion_decoder.1} parent=119 // pred_check_branch
              %9109 = sbr.rel target = $region128
            $region127: #{hierarchical_motion_decoder.1} parent=119 // pred_region
              %s9111 = ssub.s32 256, 1
              %s9112 = sshrl.u32 %s9098, 1
              // While loop
              $region129: #{hierarchical_motion_decoder.1} parent=127 // loop_pre_header
                _
              $region130: #{hierarchical_motion_decoder.1} parent=127 // loop_header
                %s9114 = sphi 0, %s9116
                %p9115 = scmp.ge.s32.totalorder %s9114, %s9112
                %s9119 = sphi 0, %s9128
                %s9120 = sphi %s9091, %s9131
                %s9121 = sphi %s9102, %s9132
              $region131: #{hierarchical_motion_decoder.1} parent=127 // loop_header_branch
                %9118 = sbr.rel (%p9115) target = $region135
              $region132: #{hierarchical_motion_decoder.1} parent=127 // loop_body
                %v9122 = vld [vmem:[%s9120] sm:%s9111]
                %9123 = vst [vmem:[%s9121] sm:%s9111] %v9122
                %v9124 = vld [vmem:[%s9120 + $0x8] sm:%s9111]
                %9125 = vst [vmem:[%s9121 + $0x8] sm:%s9111] %v9124
                %s9126 = sadd.s32 1, %s9119
                %p9127 = scmp.ge.s32.totalorder %s9126, %s9112
                %s9128 = scalar_select %p9127, 0, %s9126
                %s9129 = smul.u32 %s9128, 16
                %s9130 = smul.u32 %s9128, 16
                %s9131 = scalar_lea.vmem %s9091, %s9129 [#allocation2]
                %s9132 = scalar_lea.vmem %s9102, %s9130
              $region133: #{hierarchical_motion_decoder.1} parent=127 // loop_footer
                %s9116 = sadd.s32 %s9114, 1
              $region134: #{hierarchical_motion_decoder.1} parent=127 // loop_footer_branch
                %9113 = sbr.rel target = $region130
              $region135: #{hierarchical_motion_decoder.1} parent=127 // loop_exit
                _
              %s9133 = sshrl.u32 %s9098, 1
              %s9134 = sand.u32 %s9098, 1
              %s9135 = smul.u32 %s9133, 2
              %s9136 = smul.u32 8, %s9135
              %s9137 = scalar_lea.vmem %s9091, %s9136 [#allocation2]
              %s9138 = smul.u32 8, %s9135
              %s9139 = scalar_lea.vmem %s9102, %s9138
              // While loop
              $region136: #{hierarchical_motion_decoder.1} parent=127 // loop_pre_header
                _
              $region137: #{hierarchical_motion_decoder.1} parent=127 // loop_header
                %s9141 = sphi 0, %s9143
                %p9142 = scmp.ge.s32.totalorder %s9141, %s9134
                %s9146 = sphi 0, %s9153
                %s9147 = sphi %s9137, %s9156
                %s9148 = sphi %s9139, %s9157
              $region138: #{hierarchical_motion_decoder.1} parent=127 // loop_header_branch
                %9145 = sbr.rel (%p9142) target = $region142
              $region139: #{hierarchical_motion_decoder.1} parent=127 // loop_body
                %v9149 = vld [vmem:[%s9147] sm:%s9111]
                %9150 = vst [vmem:[%s9148] sm:%s9111] %v9149
                %s9151 = sadd.s32 1, %s9146
                %p9152 = scmp.ge.s32.totalorder %s9151, %s9134
                %s9153 = scalar_select %p9152, 0, %s9151
                %s9154 = smul.u32 %s9153, 8
                %s9155 = smul.u32 %s9153, 8
                %s9156 = scalar_lea.vmem %s9137, %s9154 [#allocation2]
                %s9157 = scalar_lea.vmem %s9139, %s9155
              $region140: #{hierarchical_motion_decoder.1} parent=127 // loop_footer
                %s9143 = sadd.s32 %s9141, 1
              $region141: #{hierarchical_motion_decoder.1} parent=127 // loop_footer_branch
                %9140 = sbr.rel target = $region137
              $region142: #{hierarchical_motion_decoder.1} parent=127 // loop_exit
                _
            $region128: #{hierarchical_motion_decoder.1} parent=119 // pred_fallthru
              _
          $region120: #{hierarchical_motion_decoder.1} parent=115 // pred_fallthru
            _
          %9208 = vnop
        $region116: #{hierarchical_motion_decoder.1} parent=111 // pred_fallthru
          _
      $region112: #{hierarchical_motion_decoder.1} parent=5 // pred_fallthru
        _
      %p9209 = scmp.le.s32.totalorder 2, %s29
      // Predicated region
      $region165: #{hierarchical_motion_decoder.1} parent=5 // pred_check
        %p9210 = pneg %p9209
      $region166: #{hierarchical_motion_decoder.1} parent=5 // pred_check_branch
        %9212 = sbr.rel (%p9210) target = $region168
      $region167: #{hierarchical_motion_decoder.1} parent=5 // pred_region
        %s9213 = ssub.s32 %s29, 2
        // Predicated region
        $region169: #{hierarchical_motion_decoder.1} parent=167 // pred_check
          %p9214 = pneg %p556
        $region170: #{hierarchical_motion_decoder.1} parent=167 // pred_check_branch
          %9216 = sbr.rel (%p9214) target = $region172
        $region171: #{hierarchical_motion_decoder.1} parent=167 // pred_region
          %s9217 = sand.u32 %s541, 1
          %s9218 = sand.u32 %s541, 1
          %s9219 = smul.addr %s9218, 16
          %s9220 = scalar_lea.vmem [#allocation2], %s9219
        $region172: #{hierarchical_motion_decoder.1} parent=167 // pred_fallthru
          _
      $region168: #{hierarchical_motion_decoder.1} parent=5 // pred_fallthru
        _
    $region6: #{hierarchical_motion_decoder.1} parent=1 // loop_footer
      %s33 = sadd.s32 1, %s29
    $region7: #{hierarchical_motion_decoder.1} parent=1 // loop_footer_branch
      %28 = sbr.rel target = $region3
    $region8: #{hierarchical_motion_decoder.1} parent=1 // loop_exit
      _

</llo_original>
